<compile_context>
chip_gen: v5e
topology: v5e:2x2
jax: 0.10.0
libtpu: 0.0.40
codegen_flags: <defaults>
</compile_context>

<pallas_src>
import functools

import jax
import jax.numpy as jnp
import numpy as np
from jax.experimental import pallas as pl
from jax.experimental.pallas import tpu as pltpu

ATTENTION_NUM = 2
FC_DIM = 512
NUM_CLASSES = 2
BN_EPS = 1e-5
VMEM_LIMIT_BYTES = 32 * 1024 * 1024


def _osme_mamc_head_kernel(x_ref, w1_ref, b1_ref, w2_ref, b2_ref,
                           wfc_ref, bfc_ref, wcls_ref,
                           out_ref, fc_ref, att_ref, *, batch, pixels):
    """One attention head per grid step (grid axis 0 = head, 'parallel').

    x_ref    : (B*P, C)           bf16  backbone features (head-invariant block)
    w1_ref   : (C, C)             bf16  this head's 1x1 conv + folded BN (eval mode)
    b1_ref   : (1, C)             f32
    w2_ref   : (1, 1, C)          f32   this head's C->1 conv weight (row layout)
    b2_ref   : (1, 1, 1)          f32
    wfc_ref  : (1, C, FC_DIM)     bf16
    bfc_ref  : (1, 1, FC_DIM)     f32
    wcls_ref : (1, FC_DIM, NCLS)  f32   this head's slice of the classifier (already transposed)
    out_ref  : (1, B, NCLS)       f32   per-head PARTIAL classifier logits
    fc_ref   : (1, B, FC_DIM)     f32
    att_ref  : (1, B*P, 1)        f32
    """
    B, P = batch, pixels
    inv_p = 1.0 / P

    x = x_ref[...]                                                       # (B*P, C) bf16

    # (1) 1x1 conv + folded BN as one bf16 MXU matmul with f32 accumulation, ReLU on VPU.
    h = jnp.dot(x, w1_ref[...], preferred_element_type=jnp.float32) + b1_ref[...]
    h = jnp.maximum(h, 0.0)                                              # (B*P, C) f32

    # (2) C->1 conv as multiply + lane reduction (avoids an N=1 matmul), Sigmoid on EUP.
    logit = jnp.sum(h * w2_ref[0], axis=-1, keepdims=True) + b2_ref[0]   # (B*P, 1)
    att = jax.nn.sigmoid(logit)
    att_ref[0] = att

    # (3) Attention-weighted AdaptiveAvgPool2d(1), exact f32:
    #     pooled[b, :] = mean_p att[b, p] * x[b, p, :]
    x_f32 = x.astype(jnp.float32)
    pooled = (x_f32 * att).reshape(B, P, -1).sum(axis=1) * inv_p          # (B, C)

    # (4) Per-head FC (bf16 MXU, f32 acc) and this head's slice of the classifier.
    fc = jnp.dot(pooled.astype(jnp.bfloat16), wfc_ref[0],
                 preferred_element_type=jnp.float32) + bfc_ref[0]         # (B, FC_DIM)
    fc_ref[0] = fc
    out_ref[0] = jnp.dot(fc, wcls_ref[0],
                         preferred_element_type=jnp.float32)              # (B, NCLS) partial


def osme_mamc_forward(features_nchw, params):
    B, C, H, W = features_nchw.shape
    P = H * W
    A = ATTENTION_NUM
    # NCHW -> (B*P, C) with channels on the 128-lane axis; cast to bf16 in the wrapper so the
    # kernel's x DMA is halved and no in-kernel cast is needed before the MXU.
    x2d = jnp.transpose(features_nchw, (0, 2, 3, 1)).reshape(B * P, C).astype(jnp.bfloat16)

    kernel = functools.partial(_osme_mamc_head_kernel, batch=B, pixels=P)

    in_specs = [
        pl.BlockSpec((B * P, C), lambda a: (0, 0)),                       # x (head-invariant)
        pl.BlockSpec((C, C), lambda a: (0, a)),                           # w1 per-head columns
        pl.BlockSpec((1, C), lambda a: (0, a)),                           # b1
        pl.BlockSpec((1, 1, C), lambda a: (a, 0, 0)),                     # w2
        pl.BlockSpec((1, 1, 1), lambda a: (a, 0, 0)),                     # b2
        pl.BlockSpec((1, C, FC_DIM), lambda a: (a, 0, 0)),                # wfc
        pl.BlockSpec((1, 1, FC_DIM), lambda a: (a, 0, 0)),                # bfc
        pl.BlockSpec((1, FC_DIM, NUM_CLASSES), lambda a: (a, 0, 0)),      # wcls
    ]
    out_specs = [
        pl.BlockSpec((1, B, NUM_CLASSES), lambda a: (a, 0, 0)),
        pl.BlockSpec((1, B, FC_DIM), lambda a: (a, 0, 0)),
        pl.BlockSpec((1, B * P, 1), lambda a: (a, 0, 0)),
    ]
    out_shapes = [
        jax.ShapeDtypeStruct((A, B, NUM_CLASSES), jnp.float32),           # per-head partial logits
        jax.ShapeDtypeStruct((A, B, FC_DIM), jnp.float32),                # fc heads
        jax.ShapeDtypeStruct((A, B * P, 1), jnp.float32),                 # attention maps
    ]

    partial_logits, fc, att = pl.pallas_call(
        kernel,
        grid=(A,),
        in_specs=in_specs,
        out_specs=out_specs,
        out_shape=out_shapes,
        compiler_params=pltpu.CompilerParams(
            dimension_semantics=("parallel",),
            vmem_limit_bytes=VMEM_LIMIT_BYTES),
    )(x2d, params["w1"], params["b1"], params["w2"], params["b2"],
      params["wfc"], params["bfc"], params["wcls"])

    # Sum the per-head partial classifier logits in the wrapper (no cross-core race).
    outputs = jnp.sum(partial_logits, axis=0) + params["bcls"]            # (B, NCLS)
    attention_features = [fc[i] for i in range(A)]                        # A x (B, FC_DIM)
    attention_maps = [att[i, :, 0].reshape(B, H, W)[:, None, :, :]
                      for i in range(A)]                                  # A x (B, 1, H, W)
    return outputs, attention_features, attention_maps


def card_classifier_forward(features_nchw, params):
    # TODO(synk): EfficientNet-B0 `self.features` backbone not reproduced; input is its output
    # feature map. Grad-CAM hook registration has no inference-time effect and is skipped.
    outputs, attention_features, attention_maps = osme_mamc_forward(features_nchw, params)
    dummy_red = jnp.ones_like(features_nchw[:, :1, :, :])
    dummy_yellow = jnp.ones_like(features_nchw[:, :1, :, :])
    return outputs, attention_features, attention_maps, dummy_red, dummy_yellow


def init_params(key, C):
    """Deterministic synthetic parameters for OSME_MAMC_Module(in_channels=C, attention_num=2).

    BatchNorm2d is taken in eval mode and folded into the preceding 1x1 conv. Layouts are
    chosen for MXU-friendly, transpose-free contractions inside the kernel; large matmul
    weights (w1, wfc) are stored in bfloat16, everything else float32.
    """
    A = ATTENTION_NUM
    keys = jax.random.split(key, A + 1)
    w1_cols, b1_parts, w2_l, b2_l, wfc_l, bfc_l = [], [], [], [], [], []
    for i in range(A):
        k = jax.random.split(keys[i], 10)
        conv1_w = 0.02 * jax.random.normal(k[0], (C, C), jnp.float32)     # (C_out, C_in)
        conv1_b = 0.02 * jax.random.normal(k[1], (C,), jnp.float32)
        gamma = 1.0 + 0.1 * jax.random.normal(k[2], (C,), jnp.float32)
        beta = 0.1 * jax.random.normal(k[3], (C,), jnp.float32)
        running_mean = 0.1 * jax.random.normal(k[4], (C,), jnp.float32)
        running_var = 1.0 + 0.1 * jax.random.uniform(k[5], (C,), jnp.float32)
        scale = gamma / jnp.sqrt(running_var + BN_EPS)
        w1_cols.append((conv1_w * scale[:, None]).T)                      # (C_in, C_out)
        b1_parts.append((conv1_b - running_mean) * scale + beta)          # (C,)
        conv2_w = 0.02 * jax.random.normal(k[6], (1, C), jnp.float32)
        conv2_b = 0.02 * jax.random.normal(k[7], (1,), jnp.float32)
        w2_l.append(conv2_w)                                              # (1, C)
        b2_l.append(conv2_b.reshape(1, 1))
        fc_w = 0.02 * jax.random.normal(k[8], (FC_DIM, C), jnp.float32)
        fc_b = 0.02 * jax.random.normal(k[9], (FC_DIM,), jnp.float32)
        wfc_l.append(fc_w.T)                                              # (C, FC_DIM)
        bfc_l.append(fc_b[None, :])
    kc = jax.random.split(keys[-1], 2)
    cls_w = 0.02 * jax.random.normal(kc[0], (NUM_CLASSES, A * FC_DIM), jnp.float32)
    cls_b = 0.02 * jax.random.normal(kc[1], (NUM_CLASSES,), jnp.float32)
    wcls = jnp.stack([cls_w[:, i * FC_DIM:(i + 1) * FC_DIM].T for i in range(A)])
    return dict(
        w1=jnp.concatenate(w1_cols, axis=1).astype(jnp.bfloat16),         # (C, A*C)        bf16
        b1=jnp.concatenate(b1_parts)[None, :],                            # (1, A*C)        f32
        w2=jnp.stack(w2_l),                                               # (A, 1, C)       f32
        b2=jnp.stack(b2_l),                                               # (A, 1, 1)       f32
        wfc=jnp.stack(wfc_l).astype(jnp.bfloat16),                        # (A, C, FC_DIM)  bf16
        bfc=jnp.stack(bfc_l),                                             # (A, 1, FC_DIM)  f32
        wcls=wcls,                                                        # (A, FC, NCLS)   f32
        bcls=cls_b[None, :],                                              # (1, NCLS)       f32
    )


def ref_forward(features_nchw, params):
    """Pure-JAX f32 reference of OSME_MAMC_Module.forward (same bf16-quantized x / weights)."""
    B, C, H, W = features_nchw.shape
    A = ATTENTION_NUM
    x = jnp.transpose(features_nchw, (0, 2, 3, 1)).reshape(B, H * W, C)
    x = x.astype(jnp.bfloat16).astype(jnp.float32)     # same quantized activations as the kernel
    w1 = params["w1"].astype(jnp.float32)
    wfc = params["wfc"].astype(jnp.float32)
    fcs, atts = [], []
    for i in range(A):
        w1_i = w1[:, i * C:(i + 1) * C]
        b1_i = params["b1"][0, i * C:(i + 1) * C]
        w2_i = params["w2"][i, 0]                                          # (C,)
        b2_i = params["b2"][i, 0, 0]
        h = jnp.maximum(jnp.einsum("bpc,cd->bpd", x, w1_i) + b1_i, 0.0)
        att = jax.nn.sigmoid(jnp.einsum("bpc,c->bp", h, w2_i) + b2_i)[..., None]
        pooled = jnp.mean(x * att, axis=1)                                 # (B, C)
        fc = pooled @ wfc[i] + params["bfc"][i, 0]
        fcs.append(fc)
        atts.append(att.reshape(B, H, W)[:, None, :, :])
    out = sum(fcs[i] @ params["wcls"][i] for i in range(A)) + params["bcls"][0]
    return out, fcs, atts


if __name__ == "__main__":
    B, C, H, W = 2, 1280, 4, 4   # backbone output: EfficientNet-B0 -> 1280 channels; small grid
    key = jax.random.PRNGKey(0)
    k_feat, k_param = jax.random.split(key)
    features = jax.random.normal(k_feat, (B, C, H, W), dtype=jnp.float32)
    params = init_params(k_param, C)

    result = card_classifier_forward(features, params)
    result = jax.block_until_ready(result)
    outputs, att_feats, att_maps, red_att, yellow_att = result

    # Validate against pure-JAX reference.
    ref_out, ref_fcs, ref_atts = ref_forward(features, params)
    assert outputs.shape == (B, NUM_CLASSES)
    assert np.allclose(np.asarray(outputs), np.asarray(ref_out), rtol=2e-3, atol=2e-3)
    for a, b in zip(att_feats, ref_fcs):
        assert a.shape == (B, FC_DIM)
        assert np.allclose(np.asarray(a), np.asarray(b), rtol=2e-3, atol=2e-3)
    for a, b in zip(att_maps, ref_atts):
        assert a.shape == (B, 1, H, W)
        assert np.allclose(np.asarray(a), np.asarray(b), rtol=2e-3, atol=2e-3)
    assert red_att.shape == (B, 1, H, W) and bool(jnp.all(red_att == 1.0))
    assert yellow_att.shape == (B, 1, H, W) and bool(jnp.all(yellow_att == 1.0))

    print("KERNEL_OK")
</pallas_src>

<mosaic_0001>
module attributes {stable_mosaic.version = 11 : i64} {
  func.func @_osme_mamc_head_kernel(%arg0: i32, %arg1: memref<32x1280xbf16, #tpu.memory_space<vmem>>, %arg2: memref<1280x1280xbf16, #tpu.memory_space<vmem>>, %arg3: memref<1x1280xf32, #tpu.memory_space<vmem>>, %arg4: memref<1x1x1280xf32, #tpu.memory_space<vmem>>, %arg5: memref<1x1x1xf32, #tpu.memory_space<vmem>>, %arg6: memref<1x1280x512xbf16, #tpu.memory_space<vmem>>, %arg7: memref<1x1x512xf32, #tpu.memory_space<vmem>>, %arg8: memref<1x512x2xf32, #tpu.memory_space<vmem>>, %arg9: memref<1x2x2xf32, #tpu.memory_space<vmem>>, %arg10: memref<1x2x512xf32, #tpu.memory_space<vmem>>, %arg11: memref<1x32x1xf32, #tpu.memory_space<vmem>>) attributes {dimension_semantics = [#tpu.dimension_semantics<parallel>], iteration_bounds = array<i64: 2>, scalar_prefetch = 0 : i64, scratch_operands = 0 : i64, tpu.core_type = #tpu.core_type<tc>, window_params = [{pipeline_mode = #tpu.pipeline_mode<synchronous>, transform_indices = @transform_0, window_bounds = array<i64: 32, 1280>}, {transform_indices = @transform_1, window_bounds = array<i64: 1280, 1280>}, {transform_indices = @transform_2, window_bounds = array<i64: 1, 1280>}, {transform_indices = @transform_3, window_bounds = array<i64: 1, 1, 1280>}, {transform_indices = @transform_4, window_bounds = array<i64: 1, 1, 1>}, {transform_indices = @transform_5, window_bounds = array<i64: 1, 1280, 512>}, {transform_indices = @transform_6, window_bounds = array<i64: 1, 1, 512>}, {transform_indices = @transform_7, window_bounds = array<i64: 1, 512, 2>}, {transform_indices = @transform_8, window_bounds = array<i64: 1, 2, 2>}, {transform_indices = @transform_9, window_bounds = array<i64: 1, 2, 512>}, {transform_indices = @transform_10, window_bounds = array<i64: 1, 32, 1>}]} {
    %c0 = arith.constant 0 : index
    %c0_0 = arith.constant 0 : index
    %0 = vector.load %arg1[%c0, %c0_0] : memref<32x1280xbf16, #tpu.memory_space<vmem>>, vector<32x1280xbf16>
    %c0_1 = arith.constant 0 : index
    %c0_2 = arith.constant 0 : index
    %1 = vector.load %arg2[%c0_1, %c0_2] : memref<1280x1280xbf16, #tpu.memory_space<vmem>>, vector<1280x1280xbf16>
    %cst = arith.constant dense<0.000000e+00> : vector<32x1280xf32>
    %2 = tpu.matmul %0, %1, %cst {dimension_numbers = #tpu.dot_dimension_numbers<[1], [0], [0], [1], [0, 0, 1, 1], [], []>} : vector<32x1280xbf16>, vector<1280x1280xbf16>, vector<32x1280xf32> -> vector<32x1280xf32>
    %c0_3 = arith.constant 0 : index
    %c0_4 = arith.constant 0 : index
    %3 = vector.load %arg3[%c0_3, %c0_4] : memref<1x1280xf32, #tpu.memory_space<vmem>>, vector<1x1280xf32>
    %4 = vector.broadcast %3 : vector<1x1280xf32> to vector<32x1280xf32>
    %5 = arith.addf %2, %4 : vector<32x1280xf32>
    %cst_5 = arith.constant 0.000000e+00 : f32
    %6 = vector.broadcast %cst_5 : f32 to vector<32x1280xf32>
    %7 = arith.maximumf %5, %6 : vector<32x1280xf32>
    %c0_6 = arith.constant 0 : index
    %c0_7 = arith.constant 0 : index
    %c0_8 = arith.constant 0 : index
    %8 = vector.load %arg4[%c0_6, %c0_7, %c0_8] : memref<1x1x1280xf32, #tpu.memory_space<vmem>>, vector<1x1x1280xf32>
    %9 = vector.shape_cast %8 : vector<1x1x1280xf32> to vector<1x1280xf32>
    %10 = vector.broadcast %9 : vector<1x1280xf32> to vector<32x1280xf32>
    %11 = arith.mulf %7, %10 : vector<32x1280xf32>
    %cst_9 = arith.constant dense<0.000000e+00> : vector<32xf32>
    %12 = vector.multi_reduction <add>, %11, %cst_9 [1] : vector<32x1280xf32> to vector<32xf32>
    %13 = vector.shape_cast %12 : vector<32xf32> to vector<32x1xf32>
    %c0_10 = arith.constant 0 : index
    %c0_11 = arith.constant 0 : index
    %c0_12 = arith.constant 0 : index
    %14 = vector.load %arg5[%c0_10, %c0_11, %c0_12] : memref<1x1x1xf32, #tpu.memory_space<vmem>>, vector<1x1x1xf32>
    %15 = vector.shape_cast %14 : vector<1x1x1xf32> to vector<1x1xf32>
    %16 = vector.broadcast %15 : vector<1x1xf32> to vector<32x1xf32>
    %17 = arith.addf %13, %16 : vector<32x1xf32>
    %18 = arith.negf %17 : vector<32x1xf32>
    %19 = math.exp %18 : vector<32x1xf32>
    %cst_13 = arith.constant 1.000000e+00 : f32
    %20 = vector.broadcast %cst_13 : f32 to vector<32x1xf32>
    %21 = arith.addf %20, %19 : vector<32x1xf32>
    %22 = arith.divf %20, %21 : vector<32x1xf32>
    %c0_14 = arith.constant 0 : index
    %c0_15 = arith.constant 0 : index
    %c0_16 = arith.constant 0 : index
    %23 = vector.load %arg11[%c0_14, %c0_15, %c0_16] : memref<1x32x1xf32, #tpu.memory_space<vmem>>, vector<1x32x1xf32>
    %24 = vector.shape_cast %23 : vector<1x32x1xf32> to vector<32x1xf32>
    %25 = vector.shape_cast %22 : vector<32x1xf32> to vector<1x32x1xf32>
    tpu.vector_store %arg11[%c0_14, %c0_15, %c0_16], %25 {strides = array<i32>} : memref<1x32x1xf32, #tpu.memory_space<vmem>>, vector<1x32x1xf32>,
    %26 = arith.extf %0 : vector<32x1280xbf16> to vector<32x1280xf32>
    %27 = vector.broadcast %22 : vector<32x1xf32> to vector<32x1280xf32>
    %28 = arith.mulf %26, %27 : vector<32x1280xf32>
    %29 = vector.shape_cast %28 : vector<32x1280xf32> to vector<2x16x1280xf32>
    %cst_17 = arith.constant dense<0.000000e+00> : vector<2x1280xf32>
    %30 = vector.multi_reduction <add>, %29, %cst_17 [1] : vector<2x16x1280xf32> to vector<2x1280xf32>
    %cst_18 = arith.constant 6.250000e-02 : f32
    %31 = vector.broadcast %cst_18 : f32 to vector<2x1280xf32>
    %32 = arith.mulf %30, %31 : vector<2x1280xf32>
    %33 = arith.truncf %32 : vector<2x1280xf32> to vector<2x1280xbf16>
    %c0_19 = arith.constant 0 : index
    %c0_20 = arith.constant 0 : index
    %c0_21 = arith.constant 0 : index
    %34 = vector.load %arg6[%c0_19, %c0_20, %c0_21] : memref<1x1280x512xbf16, #tpu.memory_space<vmem>>, vector<1x1280x512xbf16>
    %35 = vector.shape_cast %34 : vector<1x1280x512xbf16> to vector<1280x512xbf16>
    %cst_22 = arith.constant dense<0.000000e+00> : vector<2x512xf32>
    %36 = tpu.matmul %33, %35, %cst_22 {dimension_numbers = #tpu.dot_dimension_numbers<[1], [0], [0], [1], [0, 0, 1, 1], [], []>} : vector<2x1280xbf16>, vector<1280x512xbf16>, vector<2x512xf32> -> vector<2x512xf32>
    %c0_23 = arith.constant 0 : index
    %c0_24 = arith.constant 0 : index
    %c0_25 = arith.constant 0 : index
    %37 = vector.load %arg7[%c0_23, %c0_24, %c0_25] : memref<1x1x512xf32, #tpu.memory_space<vmem>>, vector<1x1x512xf32>
    %38 = vector.shape_cast %37 : vector<1x1x512xf32> to vector<1x512xf32>
    %39 = vector.broadcast %38 : vector<1x512xf32> to vector<2x512xf32>
    %40 = arith.addf %36, %39 : vector<2x512xf32>
    %c0_26 = arith.constant 0 : index
    %c0_27 = arith.constant 0 : index
    %c0_28 = arith.constant 0 : index
    %41 = vector.load %arg10[%c0_26, %c0_27, %c0_28] : memref<1x2x512xf32, #tpu.memory_space<vmem>>, vector<1x2x512xf32>
    %42 = vector.shape_cast %41 : vector<1x2x512xf32> to vector<2x512xf32>
    %43 = vector.shape_cast %40 : vector<2x512xf32> to vector<1x2x512xf32>
    tpu.vector_store %arg10[%c0_26, %c0_27, %c0_28], %43 {strides = array<i32>} : memref<1x2x512xf32, #tpu.memory_space<vmem>>, vector<1x2x512xf32>,
    %c0_29 = arith.constant 0 : index
    %c0_30 = arith.constant 0 : index
    %c0_31 = arith.constant 0 : index
    %44 = vector.load %arg8[%c0_29, %c0_30, %c0_31] : memref<1x512x2xf32, #tpu.memory_space<vmem>>, vector<1x512x2xf32>
    %45 = vector.shape_cast %44 : vector<1x512x2xf32> to vector<512x2xf32>
    %cst_32 = arith.constant dense<0.000000e+00> : vector<2x2xf32>
    %46 = tpu.matmul %40, %45, %cst_32 {dimension_numbers = #tpu.dot_dimension_numbers<[1], [0], [0], [1], [0, 0, 1, 1], [], []>} : vector<2x512xf32>, vector<512x2xf32>, vector<2x2xf32> -> vector<2x2xf32>
    %c0_33 = arith.constant 0 : index
    %c0_34 = arith.constant 0 : index
    %c0_35 = arith.constant 0 : index
    %47 = vector.load %arg9[%c0_33, %c0_34, %c0_35] : memref<1x2x2xf32, #tpu.memory_space<vmem>>, vector<1x2x2xf32>
    %48 = vector.shape_cast %47 : vector<1x2x2xf32> to vector<2x2xf32>
    %49 = vector.shape_cast %46 : vector<2x2xf32> to vector<1x2x2xf32>
    tpu.vector_store %arg9[%c0_33, %c0_34, %c0_35], %49 {strides = array<i32>} : memref<1x2x2xf32, #tpu.memory_space<vmem>>, vector<1x2x2xf32>,
    return
  }
  func.func @transform_0(%arg0: i32) -> (i32, i32) {
    %c0_i32 = arith.constant 0 : i32
    %c0_i32_0 = arith.constant 0 : i32
    %c0_i32_1 = arith.constant 0 : i32
    return %c0_i32, %c0_i32_0 : i32, i32
  }
  func.func @transform_1(%arg0: i32) -> (i32, i32) {
    %c0_i32 = arith.constant 0 : i32
    %c0_i32_0 = arith.constant 0 : i32
    return %c0_i32, %arg0 : i32, i32
  }
  func.func @transform_2(%arg0: i32) -> (i32, i32) {
    %c0_i32 = arith.constant 0 : i32
    %c0_i32_0 = arith.constant 0 : i32
    return %c0_i32, %arg0 : i32, i32
  }
  func.func @transform_3(%arg0: i32) -> (i32, i32, i32) {
    %c0_i32 = arith.constant 0 : i32
    %c0_i32_0 = arith.constant 0 : i32
    %c0_i32_1 = arith.constant 0 : i32
    return %arg0, %c0_i32, %c0_i32_0 : i32, i32, i32
  }
  func.func @transform_4(%arg0: i32) -> (i32, i32, i32) {
    %c0_i32 = arith.constant 0 : i32
    %c0_i32_0 = arith.constant 0 : i32
    %c0_i32_1 = arith.constant 0 : i32
    return %arg0, %c0_i32, %c0_i32_0 : i32, i32, i32
  }
  func.func @transform_5(%arg0: i32) -> (i32, i32, i32) {
    %c0_i32 = arith.constant 0 : i32
    %c0_i32_0 = arith.constant 0 : i32
    %c0_i32_1 = arith.constant 0 : i32
    return %arg0, %c0_i32, %c0_i32_0 : i32, i32, i32
  }
  func.func @transform_6(%arg0: i32) -> (i32, i32, i32) {
    %c0_i32 = arith.constant 0 : i32
    %c0_i32_0 = arith.constant 0 : i32
    %c0_i32_1 = arith.constant 0 : i32
    return %arg0, %c0_i32, %c0_i32_0 : i32, i32, i32
  }
  func.func @transform_7(%arg0: i32) -> (i32, i32, i32) {
    %c0_i32 = arith.constant 0 : i32
    %c0_i32_0 = arith.constant 0 : i32
    %c0_i32_1 = arith.constant 0 : i32
    return %arg0, %c0_i32, %c0_i32_0 : i32, i32, i32
  }
  func.func @transform_8(%arg0: i32) -> (i32, i32, i32) {
    %c0_i32 = arith.constant 0 : i32
    %c0_i32_0 = arith.constant 0 : i32
    %c0_i32_1 = arith.constant 0 : i32
    return %arg0, %c0_i32, %c0_i32_0 : i32, i32, i32
  }
  func.func @transform_9(%arg0: i32) -> (i32, i32, i32) {
    %c0_i32 = arith.constant 0 : i32
    %c0_i32_0 = arith.constant 0 : i32
    %c0_i32_1 = arith.constant 0 : i32
    return %arg0, %c0_i32, %c0_i32_0 : i32, i32, i32
  }
  func.func @transform_10(%arg0: i32) -> (i32, i32, i32) {
    %c0_i32 = arith.constant 0 : i32
    %c0_i32_0 = arith.constant 0 : i32
    %c0_i32_1 = arith.constant 0 : i32
    return %arg0, %c0_i32, %c0_i32_0 : i32, i32, i32
  }
}

</mosaic_0001>

<llo_original>
// kernel: tpu_custom_call.1
$region0: #{tpu_custom_call.1}
  #allocation0 [shape = 'u32[]', space=smem, size = 0x4, offset = 0x4, fixed_abs, tag = 'smem constant byte address 0x4 - core index']
  #allocation1 [shape = 'u32[72,128]{1,0:T(1,128)}', space=vmem, size = 0x9000, scoped, tag = 'internal scratch']
  %s0 = inlined_call_operand.hbm [shape: bf16[32,1280], index: 0, kind: input, shape index: {}]
  %s1 = inlined_call_operand.hbm [shape: bf16[1280,2560], index: 1, kind: input, shape index: {}]
  %s2 = inlined_call_operand.hbm [shape: f32[1,2560], index: 2, kind: input, shape index: {}]
  %s3 = inlined_call_operand.hbm [shape: f32[2,1,1280], index: 3, kind: input, shape index: {}]
  %s4 = inlined_call_operand.vmem [shape: f32[2,1,1], index: 4, kind: input, shape index: {}]
  %s5 = inlined_call_operand.hbm [shape: bf16[2,1280,512], index: 5, kind: input, shape index: {}]
  %s6 = inlined_call_operand.hbm [shape: f32[2,1,512], index: 6, kind: input, shape index: {}]
  %s7 = inlined_call_operand.vmem [shape: f32[2,512,2], index: 7, kind: input, shape index: {}]
  %s8 = inlined_call_operand.hbm [shape: f32[2,2,2], index: 8, kind: output, shape index: {0}]
  %s9 = inlined_call_operand.hbm [shape: f32[2,2,512], index: 9, kind: output, shape index: {1}]
  %s10 = inlined_call_operand.vmem [shape: f32[2,32,1], index: 10, kind: output, shape index: {2}]
  %11 = xla_tuple %s8, %s9, %s10
  %s12 = sld [smem:[#allocation0]]
  $region105: #{tpu_custom_call.1} parent=0
    _
  %s14 = ssub.s32 1, %s12
  %s15 = scalar_select 0, %s14, %s12
  $region1: #{tpu_custom_call.1} parent=0
    #allocation2 [shape = 'u8[81920]{0}', space=vmem, size = 0x14000, scoped, tag = 'input window, operand 0, single buffered']
    #allocation3 [shape = 's32[2]{0}', space=sflag, size = 0x8, scoped, tag = 'scoped memory for tpu_custom_call.1']
    #allocation4 [shape = 's32[2]{0}', space=sflag, size = 0x8, scoped, tag = 'scoped memory for tpu_custom_call.1']
    #allocation5 [shape = 'u8[6553600]{0}', space=vmem, size = 0x640000, scoped, tag = 'input window, operand 1']
    #allocation6 [shape = 's32[2]{0}', space=sflag, size = 0x8, scoped, tag = 'scoped memory for tpu_custom_call.1']
    #allocation7 [shape = 'u8[10240]{0}', space=vmem, size = 0x2800, scoped, tag = 'input window, operand 2']
    #allocation8 [shape = 'u8[10240]{0}', space=vmem, size = 0x2800, scoped, tag = 'input window, operand 3']
    #allocation9 [shape = 's32[2]{0}', space=sflag, size = 0x8, scoped, tag = 'scoped memory for tpu_custom_call.1']
    #allocation10 [shape = 'u8[2621440]{0}', space=vmem, size = 0x280000, scoped, tag = 'input window, operand 5']
    #allocation11 [shape = 'u8[4096]{0}', space=vmem, size = 0x1000, scoped, tag = 'input window, operand 6']
    #allocation12 [shape = 's32[2]{0}', space=sflag, size = 0x8, scoped, tag = 'scoped memory for tpu_custom_call.1']
    #allocation13 [shape = 'u8[2048]{0}', space=vmem, size = 0x800, scoped, tag = 'output window, operand 0']
    #allocation14 [shape = 'u8[8192]{0}', space=vmem, size = 0x2000, scoped, tag = 'output window, operand 1']
    #allocation15 [shape = 's32[2]{0}', space=sflag, size = 0x8, scoped, tag = 'scoped memory for tpu_custom_call.1']
    %16 = vsyncpa [#allocation3], 0
    %17 = vsyncpa [#allocation6], 0
    %s18 = scalar_lea.sflag [#allocation6], 1
    %19 = vsyncpa %s18, 0
    %20 = vsyncpa [#allocation9], 0
    %s21 = scalar_lea.sflag [#allocation9], 1
    %22 = vsyncpa %s21, 0
    %23 = vsyncpa [#allocation12], 0
    %s24 = scalar_lea.sflag [#allocation12], 1
    %25 = vsyncpa %s24, 0
    %26 = vsyncpa [#allocation4], 0
    %s27 = scalar_lea.sflag [#allocation4], 1
    %28 = vsyncpa %s27, 0
    %29 = vsyncpa [#allocation15], 0
    %s30 = scalar_lea.sflag [#allocation15], 1
    %31 = vsyncpa %s30, 0
    loop: start=0, step=1, limit=4
    $region2: #{tpu_custom_call.1} parent=1 // loop_pre_header
      _
    $region3: #{tpu_custom_call.1} parent=1 // loop_header
      %s33 = sphi 0, %s37
      %p34 = scmp.ge.s32.totalorder %s33, 4
      %s41 = sphi 0, %s41
      %s43 = sphi 0, %s41
      %s44 = sphi 0, %s43
      %s58 = sphi 0, %s44
      %s64 = sphi 0, %s66
      %s67 = sphi 0, %s64
      %s68 = sphi 0, %s67
      %s84 = sphi 0, %s68
      %s90 = sphi 0, %s92
      %s93 = sphi 0, %s90
      %s94 = sphi 0, %s93
      %s110 = sphi 0, %s94
      %s116 = sphi 0, %s118
      %s119 = sphi 0, %s116
      %s120 = sphi 0, %s119
      %s136 = sphi 0, %s120
      %s142 = sphi 0, %s144
      %s145 = sphi 0, %s142
      %s146 = sphi 0, %s145
      %s162 = sphi 0, %s146
      %s168 = sphi 0, %s170
      %s171 = sphi 0, %s168
      %s172 = sphi 0, %s171
      %s188 = sphi 0, %s172
      %s194 = sphi 0, %s196
      %s197 = sphi 0, %s194
      %s198 = sphi 0, %s197
      %s214 = sphi 0, %s198
      %s220 = sphi 0, %s222
      %s223 = sphi 0, %s220
      %s224 = sphi 0, %s223
      %s240 = sphi 0, %s224
      %s246 = sphi 0, %s248
      %s249 = sphi 0, %s246
      %s250 = sphi 0, %s249
      %s266 = sphi 0, %s250
      %s272 = sphi 0, %s274
      %s275 = sphi 0, %s272
      %s276 = sphi 0, %s275
      %s292 = sphi 0, %s276
      %s298 = sphi 0, %s300
      %s301 = sphi 0, %s298
      %s302 = sphi 0, %s301
      %s318 = sphi 0, %s302
    $region4: #{tpu_custom_call.1} parent=1 // loop_header_branch
      %36 = sbr.rel (%p34) target = $region8
    $region5: #{tpu_custom_call.1} parent=1 // loop_body
      %s38 = ssub.s32 %s33, 1
      %s39 = ssub.s32 %s33, 2
      %s40 = sadd.s32 %s33, 1
      %s42 = sadd.s32 %s41, 1
      %p45 = scmp.eq.s32.totalorder %s33, 1
      %p46 = scmp.ne.s32.totalorder %s41, %s43
      %p47 = scmp.eq.s32.totalorder %s33, 0
      %p48 = por %p46, %p47
      %p49 = scmp.ne.s32.totalorder %s41, %s43
      %p50 = scmp.eq.s32.totalorder %s38, 1
      %p51 = por %p49, %p50
      %p52 = scmp.ne.s32.totalorder %s43, %s44
      %p53 = scmp.eq.s32.totalorder %s38, 0
      %p54 = por %p52, %p53
      %p55 = scmp.ne.s32.totalorder %s43, %s44
      %p56 = scmp.eq.s32.totalorder %s39, 1
      %p57 = por %p55, %p56
      %p59 = scmp.ne.s32.totalorder %s44, %s58
      %p60 = scmp.eq.s32.totalorder %s39, 0
      %p61 = por %p59, %p60
      %s62 = ssub.s32 %s33, %s40
      %p63 = scmp.eq.s32.totalorder %s62, 0
      %s65 = sadd.s32 %s64, 1
      %s66 = scalar_select %p63, %s64, %s65
      %p69 = pneg %p63
      %p70 = scmp.eq.s32.totalorder %s33, 1
      %p71 = por %p69, %p70
      %p72 = scmp.ne.s32.totalorder %s64, %s67
      %p73 = scmp.eq.s32.totalorder %s33, 0
      %p74 = por %p72, %p73
      %p75 = scmp.ne.s32.totalorder %s64, %s67
      %p76 = scmp.eq.s32.totalorder %s38, 1
      %p77 = por %p75, %p76
      %p78 = scmp.ne.s32.totalorder %s67, %s68
      %p79 = scmp.eq.s32.totalorder %s38, 0
      %p80 = por %p78, %p79
      %p81 = scmp.ne.s32.totalorder %s67, %s68
      %p82 = scmp.eq.s32.totalorder %s39, 1
      %p83 = por %p81, %p82
      %p85 = scmp.ne.s32.totalorder %s68, %s84
      %p86 = scmp.eq.s32.totalorder %s39, 0
      %p87 = por %p85, %p86
      %s88 = ssub.s32 %s33, %s40
      %p89 = scmp.eq.s32.totalorder %s88, 0
      %s91 = sadd.s32 %s90, 1
      %s92 = scalar_select %p89, %s90, %s91
      %p95 = pneg %p89
      %p96 = scmp.eq.s32.totalorder %s33, 1
      %p97 = por %p95, %p96
      %p98 = scmp.ne.s32.totalorder %s90, %s93
      %p99 = scmp.eq.s32.totalorder %s33, 0
      %p100 = por %p98, %p99
      %p101 = scmp.ne.s32.totalorder %s90, %s93
      %p102 = scmp.eq.s32.totalorder %s38, 1
      %p103 = por %p101, %p102
      %p104 = scmp.ne.s32.totalorder %s93, %s94
      %p105 = scmp.eq.s32.totalorder %s38, 0
      %p106 = por %p104, %p105
      %p107 = scmp.ne.s32.totalorder %s93, %s94
      %p108 = scmp.eq.s32.totalorder %s39, 1
      %p109 = por %p107, %p108
      %p111 = scmp.ne.s32.totalorder %s94, %s110
      %p112 = scmp.eq.s32.totalorder %s39, 0
      %p113 = por %p111, %p112
      %s114 = ssub.s32 %s33, %s40
      %p115 = scmp.eq.s32.totalorder %s114, 0
      %s117 = sadd.s32 %s116, 1
      %s118 = scalar_select %p115, %s116, %s117
      %p121 = pneg %p115
      %p122 = scmp.eq.s32.totalorder %s33, 1
      %p123 = por %p121, %p122
      %p124 = scmp.ne.s32.totalorder %s116, %s119
      %p125 = scmp.eq.s32.totalorder %s33, 0
      %p126 = por %p124, %p125
      %p127 = scmp.ne.s32.totalorder %s116, %s119
      %p128 = scmp.eq.s32.totalorder %s38, 1
      %p129 = por %p127, %p128
      %p130 = scmp.ne.s32.totalorder %s119, %s120
      %p131 = scmp.eq.s32.totalorder %s38, 0
      %p132 = por %p130, %p131
      %p133 = scmp.ne.s32.totalorder %s119, %s120
      %p134 = scmp.eq.s32.totalorder %s39, 1
      %p135 = por %p133, %p134
      %p137 = scmp.ne.s32.totalorder %s120, %s136
      %p138 = scmp.eq.s32.totalorder %s39, 0
      %p139 = por %p137, %p138
      %s140 = ssub.s32 %s33, %s40
      %p141 = scmp.eq.s32.totalorder %s140, 0
      %s143 = sadd.s32 %s142, 1
      %s144 = scalar_select %p141, %s142, %s143
      %p147 = pneg %p141
      %p148 = scmp.eq.s32.totalorder %s33, 1
      %p149 = por %p147, %p148
      %p150 = scmp.ne.s32.totalorder %s142, %s145
      %p151 = scmp.eq.s32.totalorder %s33, 0
      %p152 = por %p150, %p151
      %p153 = scmp.ne.s32.totalorder %s142, %s145
      %p154 = scmp.eq.s32.totalorder %s38, 1
      %p155 = por %p153, %p154
      %p156 = scmp.ne.s32.totalorder %s145, %s146
      %p157 = scmp.eq.s32.totalorder %s38, 0
      %p158 = por %p156, %p157
      %p159 = scmp.ne.s32.totalorder %s145, %s146
      %p160 = scmp.eq.s32.totalorder %s39, 1
      %p161 = por %p159, %p160
      %p163 = scmp.ne.s32.totalorder %s146, %s162
      %p164 = scmp.eq.s32.totalorder %s39, 0
      %p165 = por %p163, %p164
      %s166 = ssub.s32 %s33, %s40
      %p167 = scmp.eq.s32.totalorder %s166, 0
      %s169 = sadd.s32 %s168, 1
      %s170 = scalar_select %p167, %s168, %s169
      %p173 = pneg %p167
      %p174 = scmp.eq.s32.totalorder %s33, 1
      %p175 = por %p173, %p174
      %p176 = scmp.ne.s32.totalorder %s168, %s171
      %p177 = scmp.eq.s32.totalorder %s33, 0
      %p178 = por %p176, %p177
      %p179 = scmp.ne.s32.totalorder %s168, %s171
      %p180 = scmp.eq.s32.totalorder %s38, 1
      %p181 = por %p179, %p180
      %p182 = scmp.ne.s32.totalorder %s171, %s172
      %p183 = scmp.eq.s32.totalorder %s38, 0
      %p184 = por %p182, %p183
      %p185 = scmp.ne.s32.totalorder %s171, %s172
      %p186 = scmp.eq.s32.totalorder %s39, 1
      %p187 = por %p185, %p186
      %p189 = scmp.ne.s32.totalorder %s172, %s188
      %p190 = scmp.eq.s32.totalorder %s39, 0
      %p191 = por %p189, %p190
      %s192 = ssub.s32 %s33, %s40
      %p193 = scmp.eq.s32.totalorder %s192, 0
      %s195 = sadd.s32 %s194, 1
      %s196 = scalar_select %p193, %s194, %s195
      %p199 = pneg %p193
      %p200 = scmp.eq.s32.totalorder %s33, 1
      %p201 = por %p199, %p200
      %p202 = scmp.ne.s32.totalorder %s194, %s197
      %p203 = scmp.eq.s32.totalorder %s33, 0
      %p204 = por %p202, %p203
      %p205 = scmp.ne.s32.totalorder %s194, %s197
      %p206 = scmp.eq.s32.totalorder %s38, 1
      %p207 = por %p205, %p206
      %p208 = scmp.ne.s32.totalorder %s197, %s198
      %p209 = scmp.eq.s32.totalorder %s38, 0
      %p210 = por %p208, %p209
      %p211 = scmp.ne.s32.totalorder %s197, %s198
      %p212 = scmp.eq.s32.totalorder %s39, 1
      %p213 = por %p211, %p212
      %p215 = scmp.ne.s32.totalorder %s198, %s214
      %p216 = scmp.eq.s32.totalorder %s39, 0
      %p217 = por %p215, %p216
      %s218 = ssub.s32 %s33, %s40
      %p219 = scmp.eq.s32.totalorder %s218, 0
      %s221 = sadd.s32 %s220, 1
      %s222 = scalar_select %p219, %s220, %s221
      %p225 = pneg %p219
      %p226 = scmp.eq.s32.totalorder %s33, 1
      %p227 = por %p225, %p226
      %p228 = scmp.ne.s32.totalorder %s220, %s223
      %p229 = scmp.eq.s32.totalorder %s33, 0
      %p230 = por %p228, %p229
      %p231 = scmp.ne.s32.totalorder %s220, %s223
      %p232 = scmp.eq.s32.totalorder %s38, 1
      %p233 = por %p231, %p232
      %p234 = scmp.ne.s32.totalorder %s223, %s224
      %p235 = scmp.eq.s32.totalorder %s38, 0
      %p236 = por %p234, %p235
      %p237 = scmp.ne.s32.totalorder %s223, %s224
      %p238 = scmp.eq.s32.totalorder %s39, 1
      %p239 = por %p237, %p238
      %p241 = scmp.ne.s32.totalorder %s224, %s240
      %p242 = scmp.eq.s32.totalorder %s39, 0
      %p243 = por %p241, %p242
      %s244 = ssub.s32 %s33, %s40
      %p245 = scmp.eq.s32.totalorder %s244, 0
      %s247 = sadd.s32 %s246, 1
      %s248 = scalar_select %p245, %s246, %s247
      %p251 = pneg %p245
      %p252 = scmp.eq.s32.totalorder %s33, 1
      %p253 = por %p251, %p252
      %p254 = scmp.ne.s32.totalorder %s246, %s249
      %p255 = scmp.eq.s32.totalorder %s33, 0
      %p256 = por %p254, %p255
      %p257 = scmp.ne.s32.totalorder %s246, %s249
      %p258 = scmp.eq.s32.totalorder %s38, 1
      %p259 = por %p257, %p258
      %p260 = scmp.ne.s32.totalorder %s249, %s250
      %p261 = scmp.eq.s32.totalorder %s38, 0
      %p262 = por %p260, %p261
      %p263 = scmp.ne.s32.totalorder %s249, %s250
      %p264 = scmp.eq.s32.totalorder %s39, 1
      %p265 = por %p263, %p264
      %p267 = scmp.ne.s32.totalorder %s250, %s266
      %p268 = scmp.eq.s32.totalorder %s39, 0
      %p269 = por %p267, %p268
      %s270 = ssub.s32 %s33, %s40
      %p271 = scmp.eq.s32.totalorder %s270, 0
      %s273 = sadd.s32 %s272, 1
      %s274 = scalar_select %p271, %s272, %s273
      %p277 = pneg %p271
      %p278 = scmp.eq.s32.totalorder %s33, 1
      %p279 = por %p277, %p278
      %p280 = scmp.ne.s32.totalorder %s272, %s275
      %p281 = scmp.eq.s32.totalorder %s33, 0
      %p282 = por %p280, %p281
      %p283 = scmp.ne.s32.totalorder %s272, %s275
      %p284 = scmp.eq.s32.totalorder %s38, 1
      %p285 = por %p283, %p284
      %p286 = scmp.ne.s32.totalorder %s275, %s276
      %p287 = scmp.eq.s32.totalorder %s38, 0
      %p288 = por %p286, %p287
      %p289 = scmp.ne.s32.totalorder %s275, %s276
      %p290 = scmp.eq.s32.totalorder %s39, 1
      %p291 = por %p289, %p290
      %p293 = scmp.ne.s32.totalorder %s276, %s292
      %p294 = scmp.eq.s32.totalorder %s39, 0
      %p295 = por %p293, %p294
      %s296 = ssub.s32 %s33, %s40
      %p297 = scmp.eq.s32.totalorder %s296, 0
      %s299 = sadd.s32 %s298, 1
      %s300 = scalar_select %p297, %s298, %s299
      %p303 = pneg %p297
      %p304 = scmp.eq.s32.totalorder %s33, 1
      %p305 = por %p303, %p304
      %p306 = scmp.ne.s32.totalorder %s298, %s301
      %p307 = scmp.eq.s32.totalorder %s33, 0
      %p308 = por %p306, %p307
      %p309 = scmp.ne.s32.totalorder %s298, %s301
      %p310 = scmp.eq.s32.totalorder %s38, 1
      %p311 = por %p309, %p310
      %p312 = scmp.ne.s32.totalorder %s301, %s302
      %p313 = scmp.eq.s32.totalorder %s38, 0
      %p314 = por %p312, %p313
      %p315 = scmp.ne.s32.totalorder %s301, %s302
      %p316 = scmp.eq.s32.totalorder %s39, 1
      %p317 = por %p315, %p316
      %p319 = scmp.ne.s32.totalorder %s302, %s318
      %p320 = scmp.eq.s32.totalorder %s39, 0
      %p321 = por %p319, %p320
      %p322 = scmp.le.s32.totalorder 1, %s33
      %p323 = scmp.lt.s32.totalorder %s33, 3
      %p324 = pnand %p322, %p323
      %p325 = pneg %p324
      // Predicated region
      $region9: #{tpu_custom_call.1} parent=5 // pred_check
        _
      $region10: #{tpu_custom_call.1} parent=5 // pred_check_branch
        %327 = sbr.rel (%p324) target = $region12
      $region11: #{tpu_custom_call.1} parent=5 // pred_region
        %s328 = ssub.s32 %s33, 1
        // Predicated region
        $region13: #{tpu_custom_call.1} parent=11 // pred_check
          %p329 = pneg %p54
        $region14: #{tpu_custom_call.1} parent=11 // pred_check_branch
          %331 = sbr.rel (%p329) target = $region16
        $region15: #{tpu_custom_call.1} parent=11 // pred_region
          %333 = vsyncadd [#allocation3], 0
          %s334 = sshll.u32 %s0, 4
          %s335 = int_to_ptr.hbm [resolvable:$true] %s334
          %s336 = sshll.u32 [#allocation2], 4
          %s337 = int_to_ptr.vmem [resolvable:$true] %s336
          %342 = dma.hbm_to_vmem [thread:$0]  %s335, 2560, %s337, [#allocation3], 640, 640, 40
        $region16: #{tpu_custom_call.1} parent=11 // pred_fallthru
          _
      $region12: #{tpu_custom_call.1} parent=5 // pred_fallthru
        _
      %p343 = scmp.lt.s32.totalorder %s33, 2
      // Predicated region
      $region17: #{tpu_custom_call.1} parent=5 // pred_check
        %p344 = pneg %p343
      $region18: #{tpu_custom_call.1} parent=5 // pred_check_branch
        %346 = sbr.rel (%p344) target = $region20
      $region19: #{tpu_custom_call.1} parent=5 // pred_region
        // Predicated region
        $region21: #{tpu_custom_call.1} parent=19 // pred_check
          %p347 = pneg %p74
        $region22: #{tpu_custom_call.1} parent=19 // pred_check_branch
          %349 = sbr.rel (%p347) target = $region24
        $region23: #{tpu_custom_call.1} parent=19 // pred_region
          %s350 = sand.u32 %s33, 1
          %s351 = scalar_lea.sflag [#allocation6], %s350
          %s352 = sand.u32 %s64, 1
          %s353 = smul.addr %s352, 6400
          %s354 = scalar_lea.vmem [#allocation5], %s353
          %s355 = smul.u32 10, %s33
          %357 = vsyncadd %s351, 0
          %s358 = smul.addr %s355, 4
          %s359 = scalar_lea.hbm %s1, %s358
          %s360 = sshll.u32 %s359, 4
          %s361 = int_to_ptr.hbm [resolvable:$true] %s360
          %s362 = sshll.u32 %s354, 4
          %s363 = int_to_ptr.vmem [resolvable:$true] %s362
          %368 = dma.hbm_to_vmem [thread:$0]  %s361, 102400, %s363, %s351, 1280, 640, 40
        $region24: #{tpu_custom_call.1} parent=19 // pred_fallthru
          _
        // Predicated region
        $region25: #{tpu_custom_call.1} parent=19 // pred_check
          %p369 = pneg %p100
        $region26: #{tpu_custom_call.1} parent=19 // pred_check_branch
          %371 = sbr.rel (%p369) target = $region28
        $region27: #{tpu_custom_call.1} parent=19 // pred_region
          %s372 = sand.u32 %s33, 1
          %s373 = scalar_lea.sflag [#allocation6], %s372
          %s374 = sand.u32 %s90, 1
          %s375 = smul.addr %s374, 10
          %s376 = scalar_lea.vmem [#allocation7], %s375
          %s377 = smul.u32 10, %s33
          %379 = vsyncadd %s373, 0
          %s380 = scalar_lea.hbm %s2, %s377
          %s382 = sshll.u32 %s380, 4
          %s383 = int_to_ptr.hbm [resolvable:$true] %s382
          %s384 = sshll.u32 %s376, 4
          %s385 = int_to_ptr.vmem [resolvable:$true] %s384
          %387 = dma.hbm_to_vmem [thread:$0]  %s383, 160, %s385, %s373
        $region28: #{tpu_custom_call.1} parent=19 // pred_fallthru
          _
        // Predicated region
        $region29: #{tpu_custom_call.1} parent=19 // pred_check
          %p388 = pneg %p126
        $region30: #{tpu_custom_call.1} parent=19 // pred_check_branch
          %390 = sbr.rel (%p388) target = $region32
        $region31: #{tpu_custom_call.1} parent=19 // pred_region
          %s391 = sand.u32 %s33, 1
          %s392 = scalar_lea.sflag [#allocation9], %s391
          %s393 = sand.u32 %s116, 1
          %s394 = smul.addr %s393, 10
          %s395 = scalar_lea.vmem [#allocation8], %s394
          %397 = vsyncadd %s392, 0
          %s398 = smul.addr %s33, 10
          %s399 = scalar_lea.hbm %s3, %s398
          %s401 = sshll.u32 %s399, 4
          %s402 = int_to_ptr.hbm [resolvable:$true] %s401
          %s403 = sshll.u32 %s395, 4
          %s404 = int_to_ptr.vmem [resolvable:$true] %s403
          %406 = dma.hbm_to_vmem [thread:$0]  %s402, 160, %s404, %s392
        $region32: #{tpu_custom_call.1} parent=19 // pred_fallthru
          _
        // Predicated region
        $region33: #{tpu_custom_call.1} parent=19 // pred_check
          %p407 = pneg %p152
        $region34: #{tpu_custom_call.1} parent=19 // pred_check_branch
          %409 = sbr.rel (%p407) target = $region36
        $region35: #{tpu_custom_call.1} parent=19 // pred_region
          %p410 = scmp.lt.s32.totalorder %s33, 1
          %s411 = scalar_select %p410, %s33, 1
          %s412 = scalar_lea.vmem %s4, %s411
        $region36: #{tpu_custom_call.1} parent=19 // pred_fallthru
          _
        // Predicated region
        $region37: #{tpu_custom_call.1} parent=19 // pred_check
          %p413 = pneg %p178
        $region38: #{tpu_custom_call.1} parent=19 // pred_check_branch
          %415 = sbr.rel (%p413) target = $region40
        $region39: #{tpu_custom_call.1} parent=19 // pred_region
          %s416 = sand.u32 %s33, 1
          %s417 = scalar_lea.sflag [#allocation9], %s416
          %s418 = sand.u32 %s168, 1
          %s419 = smul.addr %s418, 2560
          %s420 = scalar_lea.vmem [#allocation10], %s419
          %422 = vsyncadd %s417, 0
          %s423 = smul.addr %s33, 640
          %s424 = smul.addr %s423, 4
          %s425 = scalar_lea.hbm %s5, %s424
          %s426 = sshll.u32 %s425, 4
          %s427 = int_to_ptr.hbm [resolvable:$true] %s426
          %s428 = sshll.u32 %s420, 4
          %s429 = int_to_ptr.vmem [resolvable:$true] %s428
          %434 = dma.hbm_to_vmem [thread:$0]  %s427, 40960, %s429, %s417, 256, 256, 16
        $region40: #{tpu_custom_call.1} parent=19 // pred_fallthru
          _
        // Predicated region
        $region41: #{tpu_custom_call.1} parent=19 // pred_check
          %p435 = pneg %p204
        $region42: #{tpu_custom_call.1} parent=19 // pred_check_branch
          %437 = sbr.rel (%p435) target = $region44
        $region43: #{tpu_custom_call.1} parent=19 // pred_region
          %s438 = sand.u32 %s194, 1
          %s439 = scalar_lea.sflag [#allocation12], %s438
          %s440 = sand.u32 %s194, 1
          %s441 = smul.addr %s440, 4
          %s442 = scalar_lea.vmem [#allocation11], %s441
          %444 = vsyncadd %s439, 0
          %s445 = smul.addr %s33, 4
          %s446 = scalar_lea.hbm %s6, %s445
          %s448 = sshll.u32 %s446, 4
          %s449 = int_to_ptr.hbm [resolvable:$true] %s448
          %s450 = sshll.u32 %s442, 4
          %s451 = int_to_ptr.vmem [resolvable:$true] %s450
          %453 = dma.hbm_to_vmem [thread:$0]  %s449, 64, %s451, %s439
        $region44: #{tpu_custom_call.1} parent=19 // pred_fallthru
          _
        // Predicated region
        $region45: #{tpu_custom_call.1} parent=19 // pred_check
          %p454 = pneg %p230
        $region46: #{tpu_custom_call.1} parent=19 // pred_check_branch
          %456 = sbr.rel (%p454) target = $region48
        $region47: #{tpu_custom_call.1} parent=19 // pred_region
          %p457 = scmp.lt.s32.totalorder %s33, 1
          %s458 = scalar_select %p457, %s33, 1
          %s459 = smul.addr %s458, 64
          %s460 = smul.addr %s459, 8
          %s461 = scalar_lea.vmem %s7, %s460
        $region48: #{tpu_custom_call.1} parent=19 // pred_fallthru
          _
      $region20: #{tpu_custom_call.1} parent=5 // pred_fallthru
        _
      %p462 = scmp.le.s32.totalorder 1, %s33
      %p463 = scmp.lt.s32.totalorder %s33, 3
      %p464 = pnand %p462, %p463
      %p465 = pneg %p464
      // Predicated region
      $region49: #{tpu_custom_call.1} parent=5 // pred_check
        _
      $region50: #{tpu_custom_call.1} parent=5 // pred_check_branch
        %467 = sbr.rel (%p464) target = $region52
      $region51: #{tpu_custom_call.1} parent=5 // pred_region
        %s468 = ssub.s32 %s33, 1
        // Predicated region
        $region53: #{tpu_custom_call.1} parent=51 // pred_check
          %p469 = pneg %p54
        $region54: #{tpu_custom_call.1} parent=51 // pred_check_branch
          %471 = sbr.rel (%p469) target = $region56
        $region55: #{tpu_custom_call.1} parent=51 // pred_region
          %473 = dma.done [#allocation3], 2560
        $region56: #{tpu_custom_call.1} parent=51 // pred_fallthru
          _
        %s474 = sand.u32 %s38, 1
        %s475 = scalar_lea.sflag [#allocation6], %s474
        %s476 = sand.u32 %s67, 1
        %s477 = smul.addr %s476, 6400
        %s478 = scalar_lea.vmem [#allocation5], %s477
        // Predicated region
        $region57: #{tpu_custom_call.1} parent=51 // pred_check
          %p479 = pneg %p80
        $region58: #{tpu_custom_call.1} parent=51 // pred_check_branch
          %481 = sbr.rel (%p479) target = $region60
        $region59: #{tpu_custom_call.1} parent=51 // pred_region
          %483 = dma.done %s475, 102400
        $region60: #{tpu_custom_call.1} parent=51 // pred_fallthru
          _
        %s484 = sand.u32 %s38, 1
        %s485 = scalar_lea.sflag [#allocation6], %s484
        %s486 = sand.u32 %s93, 1
        %s487 = smul.addr %s486, 10
        %s488 = scalar_lea.vmem [#allocation7], %s487
        // Predicated region
        $region61: #{tpu_custom_call.1} parent=51 // pred_check
          %p489 = pneg %p106
        $region62: #{tpu_custom_call.1} parent=51 // pred_check_branch
          %491 = sbr.rel (%p489) target = $region64
        $region63: #{tpu_custom_call.1} parent=51 // pred_region
          %493 = dma.done %s485, 160
        $region64: #{tpu_custom_call.1} parent=51 // pred_fallthru
          _
        %s494 = sand.u32 %s38, 1
        %s495 = scalar_lea.sflag [#allocation9], %s494
        %s496 = sand.u32 %s119, 1
        %s497 = smul.addr %s496, 10
        %s498 = scalar_lea.vmem [#allocation8], %s497
        // Predicated region
        $region65: #{tpu_custom_call.1} parent=51 // pred_check
          %p499 = pneg %p132
        $region66: #{tpu_custom_call.1} parent=51 // pred_check_branch
          %501 = sbr.rel (%p499) target = $region68
        $region67: #{tpu_custom_call.1} parent=51 // pred_region
          %503 = dma.done %s495, 160
        $region68: #{tpu_custom_call.1} parent=51 // pred_fallthru
          _
        %s504 = sand.u32 %s38, 1
        %s505 = scalar_lea.sflag [#allocation9], %s504
        %s506 = sand.u32 %s171, 1
        %s507 = smul.addr %s506, 2560
        %s508 = scalar_lea.vmem [#allocation10], %s507
        // Predicated region
        $region69: #{tpu_custom_call.1} parent=51 // pred_check
          %p509 = pneg %p184
        $region70: #{tpu_custom_call.1} parent=51 // pred_check_branch
          %511 = sbr.rel (%p509) target = $region72
        $region71: #{tpu_custom_call.1} parent=51 // pred_region
          %513 = dma.done %s505, 40960
        $region72: #{tpu_custom_call.1} parent=51 // pred_fallthru
          _
        %s514 = sand.u32 %s197, 1
        %s515 = scalar_lea.sflag [#allocation12], %s514
        %s516 = sand.u32 %s197, 1
        %s517 = smul.addr %s516, 4
        %s518 = scalar_lea.vmem [#allocation11], %s517
        // Predicated region
        $region73: #{tpu_custom_call.1} parent=51 // pred_check
          %p519 = pneg %p210
        $region74: #{tpu_custom_call.1} parent=51 // pred_check_branch
          %521 = sbr.rel (%p519) target = $region76
        $region75: #{tpu_custom_call.1} parent=51 // pred_region
          %523 = dma.done %s515, 64
        $region76: #{tpu_custom_call.1} parent=51 // pred_fallthru
          _
        %p524 = pneg %p54
        %p525 = pneg %p51
        %s526 = sand.u32 %s38, 1
        %s527 = scalar_lea.sflag [#allocation6], %s526
        %s528 = sand.u32 %s67, 1
        %s529 = smul.addr %s528, 6400
        %s530 = scalar_lea.vmem [#allocation5], %s529
        %p531 = pneg %p80
        %p532 = pneg %p77
        %s533 = sand.u32 %s38, 1
        %s534 = scalar_lea.sflag [#allocation6], %s533
        %s535 = sand.u32 %s93, 1
        %s536 = smul.addr %s535, 10
        %s537 = scalar_lea.vmem [#allocation7], %s536
        %p538 = pneg %p106
        %p539 = pneg %p103
        %s540 = sand.u32 %s38, 1
        %s541 = scalar_lea.sflag [#allocation9], %s540
        %s542 = sand.u32 %s119, 1
        %s543 = smul.addr %s542, 10
        %s544 = scalar_lea.vmem [#allocation8], %s543
        %p545 = pneg %p132
        %p546 = pneg %p129
        %p547 = scmp.lt.s32.totalorder %s38, 1
        %s548 = scalar_select %p547, %s38, 1
        %s549 = scalar_lea.vmem %s4, %s548
        %p550 = pneg %p158
        %p551 = pneg %p155
        %s552 = sand.u32 %s38, 1
        %s553 = scalar_lea.sflag [#allocation9], %s552
        %s554 = sand.u32 %s171, 1
        %s555 = smul.addr %s554, 2560
        %s556 = scalar_lea.vmem [#allocation10], %s555
        %p557 = pneg %p184
        %p558 = pneg %p181
        %s559 = sand.u32 %s197, 1
        %s560 = scalar_lea.sflag [#allocation12], %s559
        %s561 = sand.u32 %s197, 1
        %s562 = smul.addr %s561, 4
        %s563 = scalar_lea.vmem [#allocation11], %s562
        %p564 = pneg %p210
        %p565 = pneg %p207
        %p566 = scmp.lt.s32.totalorder %s38, 1
        %s567 = scalar_select %p566, %s38, 1
        %s568 = smul.addr %s567, 64
        %s569 = smul.addr %s568, 8
        %s570 = scalar_lea.vmem %s7, %s569
        %p571 = pneg %p236
        %p572 = pneg %p233
        %p573 = pneg %p262
        %p574 = pneg %p259
        %s575 = sand.u32 %s249, 1
        %s576 = scalar_lea.sflag [#allocation4], %s575
        %s577 = sand.u32 %s249, 1
        %s578 = smul.addr %s577, 2
        %s579 = scalar_lea.vmem [#allocation13], %s578
        %p580 = pneg %p288
        %p581 = pneg %p285
        %s582 = sand.u32 %s275, 1
        %s583 = scalar_lea.sflag [#allocation15], %s582
        %s584 = sand.u32 %s275, 1
        %s585 = smul.addr %s584, 8
        %s586 = scalar_lea.vmem [#allocation14], %s585
        %p587 = pneg %p314
        %p588 = pneg %p311
        %p589 = scmp.lt.s32.totalorder %s38, 1
        %s590 = scalar_select %p589, %s38, 1
        %s591 = smul.addr %s590, 4
        %s592 = smul.addr %s591, 8
        %s593 = scalar_lea.vmem %s10, %s592
        %s594 = smul.u32 10, %s38
        %s595 = smul.u32 10, %s38
        %p596 = scmp.lt.s32.totalorder %s38, 1
        %s597 = scalar_select %p596, %s38, 1
        %s598 = scalar_lea.vmem %s4, %s597
        %p599 = scmp.lt.s32.totalorder %s38, 1
        %s600 = scalar_select %p599, %s38, 1
        %s601 = smul.addr %s600, 64
        %s602 = smul.addr %s601, 8
        %s603 = scalar_lea.vmem %s7, %s602
        %p604 = scmp.lt.s32.totalorder %s38, 1
        %s605 = scalar_select %p604, %s38, 1
        %s606 = smul.addr %s605, 4
        %s607 = smul.addr %s606, 8
        %s608 = scalar_lea.vmem %s10, %s607
        %v609 = vld [vmem:[#allocation2] sm:$0xff]
        %v610 = vld [vmem:[#allocation2 + $0x8] sm:$0xff]
        %v611 = vld [vmem:[#allocation2 + $0x10] sm:$0xff]
        %v612 = vld [vmem:[#allocation2 + $0x18] sm:$0xff]
        %v613 = vld [vmem:[#allocation2 + $0x20] sm:$0xff]
        %v614 = vld [vmem:[#allocation2 + $0x28] sm:$0xff]
        %v615 = vld [vmem:[#allocation2 + $0x30] sm:$0xff]
        %v616 = vld [vmem:[#allocation2 + $0x38] sm:$0xff]
        %v617 = vld [vmem:[#allocation2 + $0x40] sm:$0xff]
        %v618 = vld [vmem:[#allocation2 + $0x48] sm:$0xff]
        %v619 = vld [vmem:[#allocation2 + $0x50] sm:$0xff]
        %v620 = vld [vmem:[#allocation2 + $0x58] sm:$0xff]
        %v621 = vld [vmem:[#allocation2 + $0x60] sm:$0xff]
        %v622 = vld [vmem:[#allocation2 + $0x68] sm:$0xff]
        %v623 = vld [vmem:[#allocation2 + $0x70] sm:$0xff]
        %v624 = vld [vmem:[#allocation2 + $0x78] sm:$0xff]
        %v625 = vld [vmem:[#allocation2 + $0x80] sm:$0xff]
        %v626 = vld [vmem:[#allocation2 + $0x88] sm:$0xff]
        %v627 = vld [vmem:[#allocation2 + $0x90] sm:$0xff]
        %v628 = vld [vmem:[#allocation2 + $0x98] sm:$0xff]
        %v629 = vld [vmem:[%s478] sm:$0xff]
        %v630 = vld [vmem:[%s478 + $0x8] sm:$0xff]
        %v631 = vld [vmem:[%s478 + $0x10] sm:$0xff]
        %v632 = vld [vmem:[%s478 + $0x18] sm:$0xff]
        %v633 = vld [vmem:[%s478 + $0x20] sm:$0xff]
        %v634 = vld [vmem:[%s478 + $0x28] sm:$0xff]
        %v635 = vld [vmem:[%s478 + $0x30] sm:$0xff]
        %v636 = vld [vmem:[%s478 + $0x38] sm:$0xff]
        %v637 = vld [vmem:[%s478 + $0x40] sm:$0xff]
        %v638 = vld [vmem:[%s478 + $0x48] sm:$0xff]
        %v639 = vld [vmem:[%s478 + $0x50] sm:$0xff]
        %v640 = vld [vmem:[%s478 + $0x58] sm:$0xff]
        %v641 = vld [vmem:[%s478 + $0x60] sm:$0xff]
        %v642 = vld [vmem:[%s478 + $0x68] sm:$0xff]
        %v643 = vld [vmem:[%s478 + $0x70] sm:$0xff]
        %v644 = vld [vmem:[%s478 + $0x78] sm:$0xff]
        %v645 = vld [vmem:[%s478 + $0x80] sm:$0xff]
        %v646 = vld [vmem:[%s478 + $0x88] sm:$0xff]
        %v647 = vld [vmem:[%s478 + $0x90] sm:$0xff]
        %v648 = vld [vmem:[%s478 + $0x98] sm:$0xff]
        %v649 = vld [vmem:[%s478 + $0xa0] sm:$0xff]
        %v650 = vld [vmem:[%s478 + $0xa8] sm:$0xff]
        %v651 = vld [vmem:[%s478 + $0xb0] sm:$0xff]
        %v652 = vld [vmem:[%s478 + $0xb8] sm:$0xff]
        %v653 = vld [vmem:[%s478 + $0xc0] sm:$0xff]
        %v654 = vld [vmem:[%s478 + $0xc8] sm:$0xff]
        %v655 = vld [vmem:[%s478 + $0xd0] sm:$0xff]
        %v656 = vld [vmem:[%s478 + $0xd8] sm:$0xff]
        %v657 = vld [vmem:[%s478 + $0xe0] sm:$0xff]
        %v658 = vld [vmem:[%s478 + $0xe8] sm:$0xff]
        %v659 = vld [vmem:[%s478 + $0xf0] sm:$0xff]
        %v660 = vld [vmem:[%s478 + $0xf8] sm:$0xff]
        %v661 = vld [vmem:[%s478 + $0x100] sm:$0xff]
        %v662 = vld [vmem:[%s478 + $0x108] sm:$0xff]
        %v663 = vld [vmem:[%s478 + $0x110] sm:$0xff]
        %v664 = vld [vmem:[%s478 + $0x118] sm:$0xff]
        %v665 = vld [vmem:[%s478 + $0x120] sm:$0xff]
        %v666 = vld [vmem:[%s478 + $0x128] sm:$0xff]
        %v667 = vld [vmem:[%s478 + $0x130] sm:$0xff]
        %v668 = vld [vmem:[%s478 + $0x138] sm:$0xff]
        %v669 = vld [vmem:[%s478 + $0x140] sm:$0xff]
        %v670 = vld [vmem:[%s478 + $0x148] sm:$0xff]
        %v671 = vld [vmem:[%s478 + $0x150] sm:$0xff]
        %v672 = vld [vmem:[%s478 + $0x158] sm:$0xff]
        %v673 = vld [vmem:[%s478 + $0x160] sm:$0xff]
        %v674 = vld [vmem:[%s478 + $0x168] sm:$0xff]
        %v675 = vld [vmem:[%s478 + $0x170] sm:$0xff]
        %v676 = vld [vmem:[%s478 + $0x178] sm:$0xff]
        %v677 = vld [vmem:[%s478 + $0x180] sm:$0xff]
        %v678 = vld [vmem:[%s478 + $0x188] sm:$0xff]
        %v679 = vld [vmem:[%s478 + $0x190] sm:$0xff]
        %v680 = vld [vmem:[%s478 + $0x198] sm:$0xff]
        %v681 = vld [vmem:[%s478 + $0x1a0] sm:$0xff]
        %v682 = vld [vmem:[%s478 + $0x1a8] sm:$0xff]
        %v683 = vld [vmem:[%s478 + $0x1b0] sm:$0xff]
        %v684 = vld [vmem:[%s478 + $0x1b8] sm:$0xff]
        %v685 = vld [vmem:[%s478 + $0x1c0] sm:$0xff]
        %v686 = vld [vmem:[%s478 + $0x1c8] sm:$0xff]
        %v687 = vld [vmem:[%s478 + $0x1d0] sm:$0xff]
        %v688 = vld [vmem:[%s478 + $0x1d8] sm:$0xff]
        %v689 = vld [vmem:[%s478 + $0x1e0] sm:$0xff]
        %v690 = vld [vmem:[%s478 + $0x1e8] sm:$0xff]
        %v691 = vld [vmem:[%s478 + $0x1f0] sm:$0xff]
        %v692 = vld [vmem:[%s478 + $0x1f8] sm:$0xff]
        %v693 = vld [vmem:[%s478 + $0x200] sm:$0xff]
        %v694 = vld [vmem:[%s478 + $0x208] sm:$0xff]
        %v695 = vld [vmem:[%s478 + $0x210] sm:$0xff]
        %v696 = vld [vmem:[%s478 + $0x218] sm:$0xff]
        %v697 = vld [vmem:[%s478 + $0x220] sm:$0xff]
        %v698 = vld [vmem:[%s478 + $0x228] sm:$0xff]
        %v699 = vld [vmem:[%s478 + $0x230] sm:$0xff]
        %v700 = vld [vmem:[%s478 + $0x238] sm:$0xff]
        %v701 = vld [vmem:[%s478 + $0x240] sm:$0xff]
        %v702 = vld [vmem:[%s478 + $0x248] sm:$0xff]
        %v703 = vld [vmem:[%s478 + $0x250] sm:$0xff]
        %v704 = vld [vmem:[%s478 + $0x258] sm:$0xff]
        %v705 = vld [vmem:[%s478 + $0x260] sm:$0xff]
        %v706 = vld [vmem:[%s478 + $0x268] sm:$0xff]
        %v707 = vld [vmem:[%s478 + $0x270] sm:$0xff]
        %v708 = vld [vmem:[%s478 + $0x278] sm:$0xff]
        %v709 = vld [vmem:[%s478 + $0x280] sm:$0xff]
        %v710 = vld [vmem:[%s478 + $0x288] sm:$0xff]
        %v711 = vld [vmem:[%s478 + $0x290] sm:$0xff]
        %v712 = vld [vmem:[%s478 + $0x298] sm:$0xff]
        %v713 = vld [vmem:[%s478 + $0x2a0] sm:$0xff]
        %v714 = vld [vmem:[%s478 + $0x2a8] sm:$0xff]
        %v715 = vld [vmem:[%s478 + $0x2b0] sm:$0xff]
        %v716 = vld [vmem:[%s478 + $0x2b8] sm:$0xff]
        %v717 = vld [vmem:[%s478 + $0x2c0] sm:$0xff]
        %v718 = vld [vmem:[%s478 + $0x2c8] sm:$0xff]
        %v719 = vld [vmem:[%s478 + $0x2d0] sm:$0xff]
        %v720 = vld [vmem:[%s478 + $0x2d8] sm:$0xff]
        %v721 = vld [vmem:[%s478 + $0x2e0] sm:$0xff]
        %v722 = vld [vmem:[%s478 + $0x2e8] sm:$0xff]
        %v723 = vld [vmem:[%s478 + $0x2f0] sm:$0xff]
        %v724 = vld [vmem:[%s478 + $0x2f8] sm:$0xff]
        %v725 = vld [vmem:[%s478 + $0x300] sm:$0xff]
        %v726 = vld [vmem:[%s478 + $0x308] sm:$0xff]
        %v727 = vld [vmem:[%s478 + $0x310] sm:$0xff]
        %v728 = vld [vmem:[%s478 + $0x318] sm:$0xff]
        %v729 = vld [vmem:[%s478 + $0x320] sm:$0xff]
        %v730 = vld [vmem:[%s478 + $0x328] sm:$0xff]
        %v731 = vld [vmem:[%s478 + $0x330] sm:$0xff]
        %v732 = vld [vmem:[%s478 + $0x338] sm:$0xff]
        %v733 = vld [vmem:[%s478 + $0x340] sm:$0xff]
        %v734 = vld [vmem:[%s478 + $0x348] sm:$0xff]
        %v735 = vld [vmem:[%s478 + $0x350] sm:$0xff]
        %v736 = vld [vmem:[%s478 + $0x358] sm:$0xff]
        %v737 = vld [vmem:[%s478 + $0x360] sm:$0xff]
        %v738 = vld [vmem:[%s478 + $0x368] sm:$0xff]
        %v739 = vld [vmem:[%s478 + $0x370] sm:$0xff]
        %v740 = vld [vmem:[%s478 + $0x378] sm:$0xff]
        %v741 = vld [vmem:[%s478 + $0x380] sm:$0xff]
        %v742 = vld [vmem:[%s478 + $0x388] sm:$0xff]
        %v743 = vld [vmem:[%s478 + $0x390] sm:$0xff]
        %v744 = vld [vmem:[%s478 + $0x398] sm:$0xff]
        %v745 = vld [vmem:[%s478 + $0x3a0] sm:$0xff]
        %v746 = vld [vmem:[%s478 + $0x3a8] sm:$0xff]
        %v747 = vld [vmem:[%s478 + $0x3b0] sm:$0xff]
        %v748 = vld [vmem:[%s478 + $0x3b8] sm:$0xff]
        %v749 = vld [vmem:[%s478 + $0x3c0] sm:$0xff]
        %v750 = vld [vmem:[%s478 + $0x3c8] sm:$0xff]
        %v751 = vld [vmem:[%s478 + $0x3d0] sm:$0xff]
        %v752 = vld [vmem:[%s478 + $0x3d8] sm:$0xff]
        %v753 = vld [vmem:[%s478 + $0x3e0] sm:$0xff]
        %v754 = vld [vmem:[%s478 + $0x3e8] sm:$0xff]
        %v755 = vld [vmem:[%s478 + $0x3f0] sm:$0xff]
        %v756 = vld [vmem:[%s478 + $0x3f8] sm:$0xff]
        %v757 = vld [vmem:[%s478 + $0x400] sm:$0xff]
        %v758 = vld [vmem:[%s478 + $0x408] sm:$0xff]
        %v759 = vld [vmem:[%s478 + $0x410] sm:$0xff]
        %v760 = vld [vmem:[%s478 + $0x418] sm:$0xff]
        %v761 = vld [vmem:[%s478 + $0x420] sm:$0xff]
        %v762 = vld [vmem:[%s478 + $0x428] sm:$0xff]
        %v763 = vld [vmem:[%s478 + $0x430] sm:$0xff]
        %v764 = vld [vmem:[%s478 + $0x438] sm:$0xff]
        %v765 = vld [vmem:[%s478 + $0x440] sm:$0xff]
        %v766 = vld [vmem:[%s478 + $0x448] sm:$0xff]
        %v767 = vld [vmem:[%s478 + $0x450] sm:$0xff]
        %v768 = vld [vmem:[%s478 + $0x458] sm:$0xff]
        %v769 = vld [vmem:[%s478 + $0x460] sm:$0xff]
        %v770 = vld [vmem:[%s478 + $0x468] sm:$0xff]
        %v771 = vld [vmem:[%s478 + $0x470] sm:$0xff]
        %v772 = vld [vmem:[%s478 + $0x478] sm:$0xff]
        %v773 = vld [vmem:[%s478 + $0x480] sm:$0xff]
        %v774 = vld [vmem:[%s478 + $0x488] sm:$0xff]
        %v775 = vld [vmem:[%s478 + $0x490] sm:$0xff]
        %v776 = vld [vmem:[%s478 + $0x498] sm:$0xff]
        %v777 = vld [vmem:[%s478 + $0x4a0] sm:$0xff]
        %v778 = vld [vmem:[%s478 + $0x4a8] sm:$0xff]
        %v779 = vld [vmem:[%s478 + $0x4b0] sm:$0xff]
        %v780 = vld [vmem:[%s478 + $0x4b8] sm:$0xff]
        %v781 = vld [vmem:[%s478 + $0x4c0] sm:$0xff]
        %v782 = vld [vmem:[%s478 + $0x4c8] sm:$0xff]
        %v783 = vld [vmem:[%s478 + $0x4d0] sm:$0xff]
        %v784 = vld [vmem:[%s478 + $0x4d8] sm:$0xff]
        %v785 = vld [vmem:[%s478 + $0x4e0] sm:$0xff]
        %v786 = vld [vmem:[%s478 + $0x4e8] sm:$0xff]
        %v787 = vld [vmem:[%s478 + $0x4f0] sm:$0xff]
        %v788 = vld [vmem:[%s478 + $0x4f8] sm:$0xff]
        %v789 = vld [vmem:[%s478 + $0x500] sm:$0xff]
        %v790 = vld [vmem:[%s478 + $0x508] sm:$0xff]
        %v791 = vld [vmem:[%s478 + $0x510] sm:$0xff]
        %v792 = vld [vmem:[%s478 + $0x518] sm:$0xff]
        %v793 = vld [vmem:[%s478 + $0x520] sm:$0xff]
        %v794 = vld [vmem:[%s478 + $0x528] sm:$0xff]
        %v795 = vld [vmem:[%s478 + $0x530] sm:$0xff]
        %v796 = vld [vmem:[%s478 + $0x538] sm:$0xff]
        %v797 = vld [vmem:[%s478 + $0x540] sm:$0xff]
        %v798 = vld [vmem:[%s478 + $0x548] sm:$0xff]
        %v799 = vld [vmem:[%s478 + $0x550] sm:$0xff]
        %v800 = vld [vmem:[%s478 + $0x558] sm:$0xff]
        %v801 = vld [vmem:[%s478 + $0x560] sm:$0xff]
        %v802 = vld [vmem:[%s478 + $0x568] sm:$0xff]
        %v803 = vld [vmem:[%s478 + $0x570] sm:$0xff]
        %v804 = vld [vmem:[%s478 + $0x578] sm:$0xff]
        %v805 = vld [vmem:[%s478 + $0x580] sm:$0xff]
        %v806 = vld [vmem:[%s478 + $0x588] sm:$0xff]
        %v807 = vld [vmem:[%s478 + $0x590] sm:$0xff]
        %v808 = vld [vmem:[%s478 + $0x598] sm:$0xff]
        %v809 = vld [vmem:[%s478 + $0x5a0] sm:$0xff]
        %v810 = vld [vmem:[%s478 + $0x5a8] sm:$0xff]
        %v811 = vld [vmem:[%s478 + $0x5b0] sm:$0xff]
        %v812 = vld [vmem:[%s478 + $0x5b8] sm:$0xff]
        %v813 = vld [vmem:[%s478 + $0x5c0] sm:$0xff]
        %v814 = vld [vmem:[%s478 + $0x5c8] sm:$0xff]
        %v815 = vld [vmem:[%s478 + $0x5d0] sm:$0xff]
        %v816 = vld [vmem:[%s478 + $0x5d8] sm:$0xff]
        %v817 = vld [vmem:[%s478 + $0x5e0] sm:$0xff]
        %v818 = vld [vmem:[%s478 + $0x5e8] sm:$0xff]
        %v819 = vld [vmem:[%s478 + $0x5f0] sm:$0xff]
        %v820 = vld [vmem:[%s478 + $0x5f8] sm:$0xff]
        %v821 = vld [vmem:[%s478 + $0x600] sm:$0xff]
        %v822 = vld [vmem:[%s478 + $0x608] sm:$0xff]
        %v823 = vld [vmem:[%s478 + $0x610] sm:$0xff]
        %v824 = vld [vmem:[%s478 + $0x618] sm:$0xff]
        %v825 = vld [vmem:[%s478 + $0x620] sm:$0xff]
        %v826 = vld [vmem:[%s478 + $0x628] sm:$0xff]
        %v827 = vld [vmem:[%s478 + $0x630] sm:$0xff]
        %v828 = vld [vmem:[%s478 + $0x638] sm:$0xff]
        %v829 = vld [vmem:[%s478 + $0x640] sm:$0xff]
        %v830 = vld [vmem:[%s478 + $0x648] sm:$0xff]
        %v831 = vld [vmem:[%s478 + $0x650] sm:$0xff]
        %v832 = vld [vmem:[%s478 + $0x658] sm:$0xff]
        %v833 = vld [vmem:[%s478 + $0x660] sm:$0xff]
        %v834 = vld [vmem:[%s478 + $0x668] sm:$0xff]
        %v835 = vld [vmem:[%s478 + $0x670] sm:$0xff]
        %v836 = vld [vmem:[%s478 + $0x678] sm:$0xff]
        %v837 = vld [vmem:[%s478 + $0x680] sm:$0xff]
        %v838 = vld [vmem:[%s478 + $0x688] sm:$0xff]
        %v839 = vld [vmem:[%s478 + $0x690] sm:$0xff]
        %v840 = vld [vmem:[%s478 + $0x698] sm:$0xff]
        %v841 = vld [vmem:[%s478 + $0x6a0] sm:$0xff]
        %v842 = vld [vmem:[%s478 + $0x6a8] sm:$0xff]
        %v843 = vld [vmem:[%s478 + $0x6b0] sm:$0xff]
        %v844 = vld [vmem:[%s478 + $0x6b8] sm:$0xff]
        %v845 = vld [vmem:[%s478 + $0x6c0] sm:$0xff]
        %v846 = vld [vmem:[%s478 + $0x6c8] sm:$0xff]
        %v847 = vld [vmem:[%s478 + $0x6d0] sm:$0xff]
        %v848 = vld [vmem:[%s478 + $0x6d8] sm:$0xff]
        %v849 = vld [vmem:[%s478 + $0x6e0] sm:$0xff]
        %v850 = vld [vmem:[%s478 + $0x6e8] sm:$0xff]
        %v851 = vld [vmem:[%s478 + $0x6f0] sm:$0xff]
        %v852 = vld [vmem:[%s478 + $0x6f8] sm:$0xff]
        %v853 = vld [vmem:[%s478 + $0x700] sm:$0xff]
        %v854 = vld [vmem:[%s478 + $0x708] sm:$0xff]
        %v855 = vld [vmem:[%s478 + $0x710] sm:$0xff]
        %v856 = vld [vmem:[%s478 + $0x718] sm:$0xff]
        %v857 = vld [vmem:[%s478 + $0x720] sm:$0xff]
        %v858 = vld [vmem:[%s478 + $0x728] sm:$0xff]
        %v859 = vld [vmem:[%s478 + $0x730] sm:$0xff]
        %v860 = vld [vmem:[%s478 + $0x738] sm:$0xff]
        %v861 = vld [vmem:[%s478 + $0x740] sm:$0xff]
        %v862 = vld [vmem:[%s478 + $0x748] sm:$0xff]
        %v863 = vld [vmem:[%s478 + $0x750] sm:$0xff]
        %v864 = vld [vmem:[%s478 + $0x758] sm:$0xff]
        %v865 = vld [vmem:[%s478 + $0x760] sm:$0xff]
        %v866 = vld [vmem:[%s478 + $0x768] sm:$0xff]
        %v867 = vld [vmem:[%s478 + $0x770] sm:$0xff]
        %v868 = vld [vmem:[%s478 + $0x778] sm:$0xff]
        %v869 = vld [vmem:[%s478 + $0x780] sm:$0xff]
        %v870 = vld [vmem:[%s478 + $0x788] sm:$0xff]
        %v871 = vld [vmem:[%s478 + $0x790] sm:$0xff]
        %v872 = vld [vmem:[%s478 + $0x798] sm:$0xff]
        %v873 = vld [vmem:[%s478 + $0x7a0] sm:$0xff]
        %v874 = vld [vmem:[%s478 + $0x7a8] sm:$0xff]
        %v875 = vld [vmem:[%s478 + $0x7b0] sm:$0xff]
        %v876 = vld [vmem:[%s478 + $0x7b8] sm:$0xff]
        %v877 = vld [vmem:[%s478 + $0x7c0] sm:$0xff]
        %v878 = vld [vmem:[%s478 + $0x7c8] sm:$0xff]
        %v879 = vld [vmem:[%s478 + $0x7d0] sm:$0xff]
        %v880 = vld [vmem:[%s478 + $0x7d8] sm:$0xff]
        %v881 = vld [vmem:[%s478 + $0x7e0] sm:$0xff]
        %v882 = vld [vmem:[%s478 + $0x7e8] sm:$0xff]
        %v883 = vld [vmem:[%s478 + $0x7f0] sm:$0xff]
        %v884 = vld [vmem:[%s478 + $0x7f8] sm:$0xff]
        %v885 = vld [vmem:[%s478 + $0x800] sm:$0xff]
        %v886 = vld [vmem:[%s478 + $0x808] sm:$0xff]
        %v887 = vld [vmem:[%s478 + $0x810] sm:$0xff]
        %v888 = vld [vmem:[%s478 + $0x818] sm:$0xff]
        %v889 = vld [vmem:[%s478 + $0x820] sm:$0xff]
        %v890 = vld [vmem:[%s478 + $0x828] sm:$0xff]
        %v891 = vld [vmem:[%s478 + $0x830] sm:$0xff]
        %v892 = vld [vmem:[%s478 + $0x838] sm:$0xff]
        %v893 = vld [vmem:[%s478 + $0x840] sm:$0xff]
        %v894 = vld [vmem:[%s478 + $0x848] sm:$0xff]
        %v895 = vld [vmem:[%s478 + $0x850] sm:$0xff]
        %v896 = vld [vmem:[%s478 + $0x858] sm:$0xff]
        %v897 = vld [vmem:[%s478 + $0x860] sm:$0xff]
        %v898 = vld [vmem:[%s478 + $0x868] sm:$0xff]
        %v899 = vld [vmem:[%s478 + $0x870] sm:$0xff]
        %v900 = vld [vmem:[%s478 + $0x878] sm:$0xff]
        %v901 = vld [vmem:[%s478 + $0x880] sm:$0xff]
        %v902 = vld [vmem:[%s478 + $0x888] sm:$0xff]
        %v903 = vld [vmem:[%s478 + $0x890] sm:$0xff]
        %v904 = vld [vmem:[%s478 + $0x898] sm:$0xff]
        %v905 = vld [vmem:[%s478 + $0x8a0] sm:$0xff]
        %v906 = vld [vmem:[%s478 + $0x8a8] sm:$0xff]
        %v907 = vld [vmem:[%s478 + $0x8b0] sm:$0xff]
        %v908 = vld [vmem:[%s478 + $0x8b8] sm:$0xff]
        %v909 = vld [vmem:[%s478 + $0x8c0] sm:$0xff]
        %v910 = vld [vmem:[%s478 + $0x8c8] sm:$0xff]
        %v911 = vld [vmem:[%s478 + $0x8d0] sm:$0xff]
        %v912 = vld [vmem:[%s478 + $0x8d8] sm:$0xff]
        %v913 = vld [vmem:[%s478 + $0x8e0] sm:$0xff]
        %v914 = vld [vmem:[%s478 + $0x8e8] sm:$0xff]
        %v915 = vld [vmem:[%s478 + $0x8f0] sm:$0xff]
        %v916 = vld [vmem:[%s478 + $0x8f8] sm:$0xff]
        %v917 = vld [vmem:[%s478 + $0x900] sm:$0xff]
        %v918 = vld [vmem:[%s478 + $0x908] sm:$0xff]
        %v919 = vld [vmem:[%s478 + $0x910] sm:$0xff]
        %v920 = vld [vmem:[%s478 + $0x918] sm:$0xff]
        %v921 = vld [vmem:[%s478 + $0x920] sm:$0xff]
        %v922 = vld [vmem:[%s478 + $0x928] sm:$0xff]
        %v923 = vld [vmem:[%s478 + $0x930] sm:$0xff]
        %v924 = vld [vmem:[%s478 + $0x938] sm:$0xff]
        %v925 = vld [vmem:[%s478 + $0x940] sm:$0xff]
        %v926 = vld [vmem:[%s478 + $0x948] sm:$0xff]
        %v927 = vld [vmem:[%s478 + $0x950] sm:$0xff]
        %v928 = vld [vmem:[%s478 + $0x958] sm:$0xff]
        %v929 = vld [vmem:[%s478 + $0x960] sm:$0xff]
        %v930 = vld [vmem:[%s478 + $0x968] sm:$0xff]
        %v931 = vld [vmem:[%s478 + $0x970] sm:$0xff]
        %v932 = vld [vmem:[%s478 + $0x978] sm:$0xff]
        %v933 = vld [vmem:[%s478 + $0x980] sm:$0xff]
        %v934 = vld [vmem:[%s478 + $0x988] sm:$0xff]
        %v935 = vld [vmem:[%s478 + $0x990] sm:$0xff]
        %v936 = vld [vmem:[%s478 + $0x998] sm:$0xff]
        %v937 = vld [vmem:[%s478 + $0x9a0] sm:$0xff]
        %v938 = vld [vmem:[%s478 + $0x9a8] sm:$0xff]
        %v939 = vld [vmem:[%s478 + $0x9b0] sm:$0xff]
        %v940 = vld [vmem:[%s478 + $0x9b8] sm:$0xff]
        %v941 = vld [vmem:[%s478 + $0x9c0] sm:$0xff]
        %v942 = vld [vmem:[%s478 + $0x9c8] sm:$0xff]
        %v943 = vld [vmem:[%s478 + $0x9d0] sm:$0xff]
        %v944 = vld [vmem:[%s478 + $0x9d8] sm:$0xff]
        %v945 = vld [vmem:[%s478 + $0x9e0] sm:$0xff]
        %v946 = vld [vmem:[%s478 + $0x9e8] sm:$0xff]
        %v947 = vld [vmem:[%s478 + $0x9f0] sm:$0xff]
        %v948 = vld [vmem:[%s478 + $0x9f8] sm:$0xff]
        %v949 = vld [vmem:[%s478 + $0xa00] sm:$0xff]
        %v950 = vld [vmem:[%s478 + $0xa08] sm:$0xff]
        %v951 = vld [vmem:[%s478 + $0xa10] sm:$0xff]
        %v952 = vld [vmem:[%s478 + $0xa18] sm:$0xff]
        %v953 = vld [vmem:[%s478 + $0xa20] sm:$0xff]
        %v954 = vld [vmem:[%s478 + $0xa28] sm:$0xff]
        %v955 = vld [vmem:[%s478 + $0xa30] sm:$0xff]
        %v956 = vld [vmem:[%s478 + $0xa38] sm:$0xff]
        %v957 = vld [vmem:[%s478 + $0xa40] sm:$0xff]
        %v958 = vld [vmem:[%s478 + $0xa48] sm:$0xff]
        %v959 = vld [vmem:[%s478 + $0xa50] sm:$0xff]
        %v960 = vld [vmem:[%s478 + $0xa58] sm:$0xff]
        %v961 = vld [vmem:[%s478 + $0xa60] sm:$0xff]
        %v962 = vld [vmem:[%s478 + $0xa68] sm:$0xff]
        %v963 = vld [vmem:[%s478 + $0xa70] sm:$0xff]
        %v964 = vld [vmem:[%s478 + $0xa78] sm:$0xff]
        %v965 = vld [vmem:[%s478 + $0xa80] sm:$0xff]
        %v966 = vld [vmem:[%s478 + $0xa88] sm:$0xff]
        %v967 = vld [vmem:[%s478 + $0xa90] sm:$0xff]
        %v968 = vld [vmem:[%s478 + $0xa98] sm:$0xff]
        %v969 = vld [vmem:[%s478 + $0xaa0] sm:$0xff]
        %v970 = vld [vmem:[%s478 + $0xaa8] sm:$0xff]
        %v971 = vld [vmem:[%s478 + $0xab0] sm:$0xff]
        %v972 = vld [vmem:[%s478 + $0xab8] sm:$0xff]
        %v973 = vld [vmem:[%s478 + $0xac0] sm:$0xff]
        %v974 = vld [vmem:[%s478 + $0xac8] sm:$0xff]
        %v975 = vld [vmem:[%s478 + $0xad0] sm:$0xff]
        %v976 = vld [vmem:[%s478 + $0xad8] sm:$0xff]
        %v977 = vld [vmem:[%s478 + $0xae0] sm:$0xff]
        %v978 = vld [vmem:[%s478 + $0xae8] sm:$0xff]
        %v979 = vld [vmem:[%s478 + $0xaf0] sm:$0xff]
        %v980 = vld [vmem:[%s478 + $0xaf8] sm:$0xff]
        %v981 = vld [vmem:[%s478 + $0xb00] sm:$0xff]
        %v982 = vld [vmem:[%s478 + $0xb08] sm:$0xff]
        %v983 = vld [vmem:[%s478 + $0xb10] sm:$0xff]
        %v984 = vld [vmem:[%s478 + $0xb18] sm:$0xff]
        %v985 = vld [vmem:[%s478 + $0xb20] sm:$0xff]
        %v986 = vld [vmem:[%s478 + $0xb28] sm:$0xff]
        %v987 = vld [vmem:[%s478 + $0xb30] sm:$0xff]
        %v988 = vld [vmem:[%s478 + $0xb38] sm:$0xff]
        %v989 = vld [vmem:[%s478 + $0xb40] sm:$0xff]
        %v990 = vld [vmem:[%s478 + $0xb48] sm:$0xff]
        %v991 = vld [vmem:[%s478 + $0xb50] sm:$0xff]
        %v992 = vld [vmem:[%s478 + $0xb58] sm:$0xff]
        %v993 = vld [vmem:[%s478 + $0xb60] sm:$0xff]
        %v994 = vld [vmem:[%s478 + $0xb68] sm:$0xff]
        %v995 = vld [vmem:[%s478 + $0xb70] sm:$0xff]
        %v996 = vld [vmem:[%s478 + $0xb78] sm:$0xff]
        %v997 = vld [vmem:[%s478 + $0xb80] sm:$0xff]
        %v998 = vld [vmem:[%s478 + $0xb88] sm:$0xff]
        %v999 = vld [vmem:[%s478 + $0xb90] sm:$0xff]
        %v1000 = vld [vmem:[%s478 + $0xb98] sm:$0xff]
        %v1001 = vld [vmem:[%s478 + $0xba0] sm:$0xff]
        %v1002 = vld [vmem:[%s478 + $0xba8] sm:$0xff]
        %v1003 = vld [vmem:[%s478 + $0xbb0] sm:$0xff]
        %v1004 = vld [vmem:[%s478 + $0xbb8] sm:$0xff]
        %v1005 = vld [vmem:[%s478 + $0xbc0] sm:$0xff]
        %v1006 = vld [vmem:[%s478 + $0xbc8] sm:$0xff]
        %v1007 = vld [vmem:[%s478 + $0xbd0] sm:$0xff]
        %v1008 = vld [vmem:[%s478 + $0xbd8] sm:$0xff]
        %v1009 = vld [vmem:[%s478 + $0xbe0] sm:$0xff]
        %v1010 = vld [vmem:[%s478 + $0xbe8] sm:$0xff]
        %v1011 = vld [vmem:[%s478 + $0xbf0] sm:$0xff]
        %v1012 = vld [vmem:[%s478 + $0xbf8] sm:$0xff]
        %v1013 = vld [vmem:[%s478 + $0xc00] sm:$0xff]
        %v1014 = vld [vmem:[%s478 + $0xc08] sm:$0xff]
        %v1015 = vld [vmem:[%s478 + $0xc10] sm:$0xff]
        %v1016 = vld [vmem:[%s478 + $0xc18] sm:$0xff]
        %v1017 = vld [vmem:[%s478 + $0xc20] sm:$0xff]
        %v1018 = vld [vmem:[%s478 + $0xc28] sm:$0xff]
        %v1019 = vld [vmem:[%s478 + $0xc30] sm:$0xff]
        %v1020 = vld [vmem:[%s478 + $0xc38] sm:$0xff]
        %v1021 = vld [vmem:[%s478 + $0xc40] sm:$0xff]
        %v1022 = vld [vmem:[%s478 + $0xc48] sm:$0xff]
        %v1023 = vld [vmem:[%s478 + $0xc50] sm:$0xff]
        %v1024 = vld [vmem:[%s478 + $0xc58] sm:$0xff]
        %v1025 = vld [vmem:[%s478 + $0xc60] sm:$0xff]
        %v1026 = vld [vmem:[%s478 + $0xc68] sm:$0xff]
        %v1027 = vld [vmem:[%s478 + $0xc70] sm:$0xff]
        %v1028 = vld [vmem:[%s478 + $0xc78] sm:$0xff]
        %v1029 = vld [vmem:[%s478 + $0xc80] sm:$0xff]
        %v1030 = vld [vmem:[%s478 + $0xc88] sm:$0xff]
        %v1031 = vld [vmem:[%s478 + $0xc90] sm:$0xff]
        %v1032 = vld [vmem:[%s478 + $0xc98] sm:$0xff]
        %v1033 = vld [vmem:[%s478 + $0xca0] sm:$0xff]
        %v1034 = vld [vmem:[%s478 + $0xca8] sm:$0xff]
        %v1035 = vld [vmem:[%s478 + $0xcb0] sm:$0xff]
        %v1036 = vld [vmem:[%s478 + $0xcb8] sm:$0xff]
        %v1037 = vld [vmem:[%s478 + $0xcc0] sm:$0xff]
        %v1038 = vld [vmem:[%s478 + $0xcc8] sm:$0xff]
        %v1039 = vld [vmem:[%s478 + $0xcd0] sm:$0xff]
        %v1040 = vld [vmem:[%s478 + $0xcd8] sm:$0xff]
        %v1041 = vld [vmem:[%s478 + $0xce0] sm:$0xff]
        %v1042 = vld [vmem:[%s478 + $0xce8] sm:$0xff]
        %v1043 = vld [vmem:[%s478 + $0xcf0] sm:$0xff]
        %v1044 = vld [vmem:[%s478 + $0xcf8] sm:$0xff]
        %v1045 = vld [vmem:[%s478 + $0xd00] sm:$0xff]
        %v1046 = vld [vmem:[%s478 + $0xd08] sm:$0xff]
        %v1047 = vld [vmem:[%s478 + $0xd10] sm:$0xff]
        %v1048 = vld [vmem:[%s478 + $0xd18] sm:$0xff]
        %v1049 = vld [vmem:[%s478 + $0xd20] sm:$0xff]
        %v1050 = vld [vmem:[%s478 + $0xd28] sm:$0xff]
        %v1051 = vld [vmem:[%s478 + $0xd30] sm:$0xff]
        %v1052 = vld [vmem:[%s478 + $0xd38] sm:$0xff]
        %v1053 = vld [vmem:[%s478 + $0xd40] sm:$0xff]
        %v1054 = vld [vmem:[%s478 + $0xd48] sm:$0xff]
        %v1055 = vld [vmem:[%s478 + $0xd50] sm:$0xff]
        %v1056 = vld [vmem:[%s478 + $0xd58] sm:$0xff]
        %v1057 = vld [vmem:[%s478 + $0xd60] sm:$0xff]
        %v1058 = vld [vmem:[%s478 + $0xd68] sm:$0xff]
        %v1059 = vld [vmem:[%s478 + $0xd70] sm:$0xff]
        %v1060 = vld [vmem:[%s478 + $0xd78] sm:$0xff]
        %v1061 = vld [vmem:[%s478 + $0xd80] sm:$0xff]
        %v1062 = vld [vmem:[%s478 + $0xd88] sm:$0xff]
        %v1063 = vld [vmem:[%s478 + $0xd90] sm:$0xff]
        %v1064 = vld [vmem:[%s478 + $0xd98] sm:$0xff]
        %v1065 = vld [vmem:[%s478 + $0xda0] sm:$0xff]
        %v1066 = vld [vmem:[%s478 + $0xda8] sm:$0xff]
        %v1067 = vld [vmem:[%s478 + $0xdb0] sm:$0xff]
        %v1068 = vld [vmem:[%s478 + $0xdb8] sm:$0xff]
        %v1069 = vld [vmem:[%s478 + $0xdc0] sm:$0xff]
        %v1070 = vld [vmem:[%s478 + $0xdc8] sm:$0xff]
        %v1071 = vld [vmem:[%s478 + $0xdd0] sm:$0xff]
        %v1072 = vld [vmem:[%s478 + $0xdd8] sm:$0xff]
        %v1073 = vld [vmem:[%s478 + $0xde0] sm:$0xff]
        %v1074 = vld [vmem:[%s478 + $0xde8] sm:$0xff]
        %v1075 = vld [vmem:[%s478 + $0xdf0] sm:$0xff]
        %v1076 = vld [vmem:[%s478 + $0xdf8] sm:$0xff]
        %v1077 = vld [vmem:[%s478 + $0xe00] sm:$0xff]
        %v1078 = vld [vmem:[%s478 + $0xe08] sm:$0xff]
        %v1079 = vld [vmem:[%s478 + $0xe10] sm:$0xff]
        %v1080 = vld [vmem:[%s478 + $0xe18] sm:$0xff]
        %v1081 = vld [vmem:[%s478 + $0xe20] sm:$0xff]
        %v1082 = vld [vmem:[%s478 + $0xe28] sm:$0xff]
        %v1083 = vld [vmem:[%s478 + $0xe30] sm:$0xff]
        %v1084 = vld [vmem:[%s478 + $0xe38] sm:$0xff]
        %v1085 = vld [vmem:[%s478 + $0xe40] sm:$0xff]
        %v1086 = vld [vmem:[%s478 + $0xe48] sm:$0xff]
        %v1087 = vld [vmem:[%s478 + $0xe50] sm:$0xff]
        %v1088 = vld [vmem:[%s478 + $0xe58] sm:$0xff]
        %v1089 = vld [vmem:[%s478 + $0xe60] sm:$0xff]
        %v1090 = vld [vmem:[%s478 + $0xe68] sm:$0xff]
        %v1091 = vld [vmem:[%s478 + $0xe70] sm:$0xff]
        %v1092 = vld [vmem:[%s478 + $0xe78] sm:$0xff]
        %v1093 = vld [vmem:[%s478 + $0xe80] sm:$0xff]
        %v1094 = vld [vmem:[%s478 + $0xe88] sm:$0xff]
        %v1095 = vld [vmem:[%s478 + $0xe90] sm:$0xff]
        %v1096 = vld [vmem:[%s478 + $0xe98] sm:$0xff]
        %v1097 = vld [vmem:[%s478 + $0xea0] sm:$0xff]
        %v1098 = vld [vmem:[%s478 + $0xea8] sm:$0xff]
        %v1099 = vld [vmem:[%s478 + $0xeb0] sm:$0xff]
        %v1100 = vld [vmem:[%s478 + $0xeb8] sm:$0xff]
        %v1101 = vld [vmem:[%s478 + $0xec0] sm:$0xff]
        %v1102 = vld [vmem:[%s478 + $0xec8] sm:$0xff]
        %v1103 = vld [vmem:[%s478 + $0xed0] sm:$0xff]
        %v1104 = vld [vmem:[%s478 + $0xed8] sm:$0xff]
        %v1105 = vld [vmem:[%s478 + $0xee0] sm:$0xff]
        %v1106 = vld [vmem:[%s478 + $0xee8] sm:$0xff]
        %v1107 = vld [vmem:[%s478 + $0xef0] sm:$0xff]
        %v1108 = vld [vmem:[%s478 + $0xef8] sm:$0xff]
        %v1109 = vld [vmem:[%s478 + $0xf00] sm:$0xff]
        %v1110 = vld [vmem:[%s478 + $0xf08] sm:$0xff]
        %v1111 = vld [vmem:[%s478 + $0xf10] sm:$0xff]
        %v1112 = vld [vmem:[%s478 + $0xf18] sm:$0xff]
        %v1113 = vld [vmem:[%s478 + $0xf20] sm:$0xff]
        %v1114 = vld [vmem:[%s478 + $0xf28] sm:$0xff]
        %v1115 = vld [vmem:[%s478 + $0xf30] sm:$0xff]
        %v1116 = vld [vmem:[%s478 + $0xf38] sm:$0xff]
        %v1117 = vld [vmem:[%s478 + $0xf40] sm:$0xff]
        %v1118 = vld [vmem:[%s478 + $0xf48] sm:$0xff]
        %v1119 = vld [vmem:[%s478 + $0xf50] sm:$0xff]
        %v1120 = vld [vmem:[%s478 + $0xf58] sm:$0xff]
        %v1121 = vld [vmem:[%s478 + $0xf60] sm:$0xff]
        %v1122 = vld [vmem:[%s478 + $0xf68] sm:$0xff]
        %v1123 = vld [vmem:[%s478 + $0xf70] sm:$0xff]
        %v1124 = vld [vmem:[%s478 + $0xf78] sm:$0xff]
        %v1125 = vld [vmem:[%s478 + $0xf80] sm:$0xff]
        %v1126 = vld [vmem:[%s478 + $0xf88] sm:$0xff]
        %v1127 = vld [vmem:[%s478 + $0xf90] sm:$0xff]
        %v1128 = vld [vmem:[%s478 + $0xf98] sm:$0xff]
        %v1129 = vld [vmem:[%s478 + $0xfa0] sm:$0xff]
        %v1130 = vld [vmem:[%s478 + $0xfa8] sm:$0xff]
        %v1131 = vld [vmem:[%s478 + $0xfb0] sm:$0xff]
        %v1132 = vld [vmem:[%s478 + $0xfb8] sm:$0xff]
        %v1133 = vld [vmem:[%s478 + $0xfc0] sm:$0xff]
        %v1134 = vld [vmem:[%s478 + $0xfc8] sm:$0xff]
        %v1135 = vld [vmem:[%s478 + $0xfd0] sm:$0xff]
        %v1136 = vld [vmem:[%s478 + $0xfd8] sm:$0xff]
        %v1137 = vld [vmem:[%s478 + $0xfe0] sm:$0xff]
        %v1138 = vld [vmem:[%s478 + $0xfe8] sm:$0xff]
        %v1139 = vld [vmem:[%s478 + $0xff0] sm:$0xff]
        %v1140 = vld [vmem:[%s478 + $0xff8] sm:$0xff]
        %v1141 = vld [vmem:[%s478 + $0x1000] sm:$0xff]
        %v1142 = vld [vmem:[%s478 + $0x1008] sm:$0xff]
        %v1143 = vld [vmem:[%s478 + $0x1010] sm:$0xff]
        %v1144 = vld [vmem:[%s478 + $0x1018] sm:$0xff]
        %v1145 = vld [vmem:[%s478 + $0x1020] sm:$0xff]
        %v1146 = vld [vmem:[%s478 + $0x1028] sm:$0xff]
        %v1147 = vld [vmem:[%s478 + $0x1030] sm:$0xff]
        %v1148 = vld [vmem:[%s478 + $0x1038] sm:$0xff]
        %v1149 = vld [vmem:[%s478 + $0x1040] sm:$0xff]
        %v1150 = vld [vmem:[%s478 + $0x1048] sm:$0xff]
        %v1151 = vld [vmem:[%s478 + $0x1050] sm:$0xff]
        %v1152 = vld [vmem:[%s478 + $0x1058] sm:$0xff]
        %v1153 = vld [vmem:[%s478 + $0x1060] sm:$0xff]
        %v1154 = vld [vmem:[%s478 + $0x1068] sm:$0xff]
        %v1155 = vld [vmem:[%s478 + $0x1070] sm:$0xff]
        %v1156 = vld [vmem:[%s478 + $0x1078] sm:$0xff]
        %v1157 = vld [vmem:[%s478 + $0x1080] sm:$0xff]
        %v1158 = vld [vmem:[%s478 + $0x1088] sm:$0xff]
        %v1159 = vld [vmem:[%s478 + $0x1090] sm:$0xff]
        %v1160 = vld [vmem:[%s478 + $0x1098] sm:$0xff]
        %v1161 = vld [vmem:[%s478 + $0x10a0] sm:$0xff]
        %v1162 = vld [vmem:[%s478 + $0x10a8] sm:$0xff]
        %v1163 = vld [vmem:[%s478 + $0x10b0] sm:$0xff]
        %v1164 = vld [vmem:[%s478 + $0x10b8] sm:$0xff]
        %v1165 = vld [vmem:[%s478 + $0x10c0] sm:$0xff]
        %v1166 = vld [vmem:[%s478 + $0x10c8] sm:$0xff]
        %v1167 = vld [vmem:[%s478 + $0x10d0] sm:$0xff]
        %v1168 = vld [vmem:[%s478 + $0x10d8] sm:$0xff]
        %v1169 = vld [vmem:[%s478 + $0x10e0] sm:$0xff]
        %v1170 = vld [vmem:[%s478 + $0x10e8] sm:$0xff]
        %v1171 = vld [vmem:[%s478 + $0x10f0] sm:$0xff]
        %v1172 = vld [vmem:[%s478 + $0x10f8] sm:$0xff]
        %v1173 = vld [vmem:[%s478 + $0x1100] sm:$0xff]
        %v1174 = vld [vmem:[%s478 + $0x1108] sm:$0xff]
        %v1175 = vld [vmem:[%s478 + $0x1110] sm:$0xff]
        %v1176 = vld [vmem:[%s478 + $0x1118] sm:$0xff]
        %v1177 = vld [vmem:[%s478 + $0x1120] sm:$0xff]
        %v1178 = vld [vmem:[%s478 + $0x1128] sm:$0xff]
        %v1179 = vld [vmem:[%s478 + $0x1130] sm:$0xff]
        %v1180 = vld [vmem:[%s478 + $0x1138] sm:$0xff]
        %v1181 = vld [vmem:[%s478 + $0x1140] sm:$0xff]
        %v1182 = vld [vmem:[%s478 + $0x1148] sm:$0xff]
        %v1183 = vld [vmem:[%s478 + $0x1150] sm:$0xff]
        %v1184 = vld [vmem:[%s478 + $0x1158] sm:$0xff]
        %v1185 = vld [vmem:[%s478 + $0x1160] sm:$0xff]
        %v1186 = vld [vmem:[%s478 + $0x1168] sm:$0xff]
        %v1187 = vld [vmem:[%s478 + $0x1170] sm:$0xff]
        %v1188 = vld [vmem:[%s478 + $0x1178] sm:$0xff]
        %v1189 = vld [vmem:[%s478 + $0x1180] sm:$0xff]
        %v1190 = vld [vmem:[%s478 + $0x1188] sm:$0xff]
        %v1191 = vld [vmem:[%s478 + $0x1190] sm:$0xff]
        %v1192 = vld [vmem:[%s478 + $0x1198] sm:$0xff]
        %v1193 = vld [vmem:[%s478 + $0x11a0] sm:$0xff]
        %v1194 = vld [vmem:[%s478 + $0x11a8] sm:$0xff]
        %v1195 = vld [vmem:[%s478 + $0x11b0] sm:$0xff]
        %v1196 = vld [vmem:[%s478 + $0x11b8] sm:$0xff]
        %v1197 = vld [vmem:[%s478 + $0x11c0] sm:$0xff]
        %v1198 = vld [vmem:[%s478 + $0x11c8] sm:$0xff]
        %v1199 = vld [vmem:[%s478 + $0x11d0] sm:$0xff]
        %v1200 = vld [vmem:[%s478 + $0x11d8] sm:$0xff]
        %v1201 = vld [vmem:[%s478 + $0x11e0] sm:$0xff]
        %v1202 = vld [vmem:[%s478 + $0x11e8] sm:$0xff]
        %v1203 = vld [vmem:[%s478 + $0x11f0] sm:$0xff]
        %v1204 = vld [vmem:[%s478 + $0x11f8] sm:$0xff]
        %v1205 = vld [vmem:[%s478 + $0x1200] sm:$0xff]
        %v1206 = vld [vmem:[%s478 + $0x1208] sm:$0xff]
        %v1207 = vld [vmem:[%s478 + $0x1210] sm:$0xff]
        %v1208 = vld [vmem:[%s478 + $0x1218] sm:$0xff]
        %v1209 = vld [vmem:[%s478 + $0x1220] sm:$0xff]
        %v1210 = vld [vmem:[%s478 + $0x1228] sm:$0xff]
        %v1211 = vld [vmem:[%s478 + $0x1230] sm:$0xff]
        %v1212 = vld [vmem:[%s478 + $0x1238] sm:$0xff]
        %v1213 = vld [vmem:[%s478 + $0x1240] sm:$0xff]
        %v1214 = vld [vmem:[%s478 + $0x1248] sm:$0xff]
        %v1215 = vld [vmem:[%s478 + $0x1250] sm:$0xff]
        %v1216 = vld [vmem:[%s478 + $0x1258] sm:$0xff]
        %v1217 = vld [vmem:[%s478 + $0x1260] sm:$0xff]
        %v1218 = vld [vmem:[%s478 + $0x1268] sm:$0xff]
        %v1219 = vld [vmem:[%s478 + $0x1270] sm:$0xff]
        %v1220 = vld [vmem:[%s478 + $0x1278] sm:$0xff]
        %v1221 = vld [vmem:[%s478 + $0x1280] sm:$0xff]
        %v1222 = vld [vmem:[%s478 + $0x1288] sm:$0xff]
        %v1223 = vld [vmem:[%s478 + $0x1290] sm:$0xff]
        %v1224 = vld [vmem:[%s478 + $0x1298] sm:$0xff]
        %v1225 = vld [vmem:[%s478 + $0x12a0] sm:$0xff]
        %v1226 = vld [vmem:[%s478 + $0x12a8] sm:$0xff]
        %v1227 = vld [vmem:[%s478 + $0x12b0] sm:$0xff]
        %v1228 = vld [vmem:[%s478 + $0x12b8] sm:$0xff]
        %v1229 = vld [vmem:[%s478 + $0x12c0] sm:$0xff]
        %v1230 = vld [vmem:[%s478 + $0x12c8] sm:$0xff]
        %v1231 = vld [vmem:[%s478 + $0x12d0] sm:$0xff]
        %v1232 = vld [vmem:[%s478 + $0x12d8] sm:$0xff]
        %v1233 = vld [vmem:[%s478 + $0x12e0] sm:$0xff]
        %v1234 = vld [vmem:[%s478 + $0x12e8] sm:$0xff]
        %v1235 = vld [vmem:[%s478 + $0x12f0] sm:$0xff]
        %v1236 = vld [vmem:[%s478 + $0x12f8] sm:$0xff]
        %v1237 = vld [vmem:[%s478 + $0x1300] sm:$0xff]
        %v1238 = vld [vmem:[%s478 + $0x1308] sm:$0xff]
        %v1239 = vld [vmem:[%s478 + $0x1310] sm:$0xff]
        %v1240 = vld [vmem:[%s478 + $0x1318] sm:$0xff]
        %v1241 = vld [vmem:[%s478 + $0x1320] sm:$0xff]
        %v1242 = vld [vmem:[%s478 + $0x1328] sm:$0xff]
        %v1243 = vld [vmem:[%s478 + $0x1330] sm:$0xff]
        %v1244 = vld [vmem:[%s478 + $0x1338] sm:$0xff]
        %v1245 = vld [vmem:[%s478 + $0x1340] sm:$0xff]
        %v1246 = vld [vmem:[%s478 + $0x1348] sm:$0xff]
        %v1247 = vld [vmem:[%s478 + $0x1350] sm:$0xff]
        %v1248 = vld [vmem:[%s478 + $0x1358] sm:$0xff]
        %v1249 = vld [vmem:[%s478 + $0x1360] sm:$0xff]
        %v1250 = vld [vmem:[%s478 + $0x1368] sm:$0xff]
        %v1251 = vld [vmem:[%s478 + $0x1370] sm:$0xff]
        %v1252 = vld [vmem:[%s478 + $0x1378] sm:$0xff]
        %v1253 = vld [vmem:[%s478 + $0x1380] sm:$0xff]
        %v1254 = vld [vmem:[%s478 + $0x1388] sm:$0xff]
        %v1255 = vld [vmem:[%s478 + $0x1390] sm:$0xff]
        %v1256 = vld [vmem:[%s478 + $0x1398] sm:$0xff]
        %v1257 = vld [vmem:[%s478 + $0x13a0] sm:$0xff]
        %v1258 = vld [vmem:[%s478 + $0x13a8] sm:$0xff]
        %v1259 = vld [vmem:[%s478 + $0x13b0] sm:$0xff]
        %v1260 = vld [vmem:[%s478 + $0x13b8] sm:$0xff]
        %v1261 = vld [vmem:[%s478 + $0x13c0] sm:$0xff]
        %v1262 = vld [vmem:[%s478 + $0x13c8] sm:$0xff]
        %v1263 = vld [vmem:[%s478 + $0x13d0] sm:$0xff]
        %v1264 = vld [vmem:[%s478 + $0x13d8] sm:$0xff]
        %v1265 = vld [vmem:[%s478 + $0x13e0] sm:$0xff]
        %v1266 = vld [vmem:[%s478 + $0x13e8] sm:$0xff]
        %v1267 = vld [vmem:[%s478 + $0x13f0] sm:$0xff]
        %v1268 = vld [vmem:[%s478 + $0x13f8] sm:$0xff]
        %v1269 = vld [vmem:[%s478 + $0x1400] sm:$0xff]
        %v1270 = vld [vmem:[%s478 + $0x1408] sm:$0xff]
        %v1271 = vld [vmem:[%s478 + $0x1410] sm:$0xff]
        %v1272 = vld [vmem:[%s478 + $0x1418] sm:$0xff]
        %v1273 = vld [vmem:[%s478 + $0x1420] sm:$0xff]
        %v1274 = vld [vmem:[%s478 + $0x1428] sm:$0xff]
        %v1275 = vld [vmem:[%s478 + $0x1430] sm:$0xff]
        %v1276 = vld [vmem:[%s478 + $0x1438] sm:$0xff]
        %v1277 = vld [vmem:[%s478 + $0x1440] sm:$0xff]
        %v1278 = vld [vmem:[%s478 + $0x1448] sm:$0xff]
        %v1279 = vld [vmem:[%s478 + $0x1450] sm:$0xff]
        %v1280 = vld [vmem:[%s478 + $0x1458] sm:$0xff]
        %v1281 = vld [vmem:[%s478 + $0x1460] sm:$0xff]
        %v1282 = vld [vmem:[%s478 + $0x1468] sm:$0xff]
        %v1283 = vld [vmem:[%s478 + $0x1470] sm:$0xff]
        %v1284 = vld [vmem:[%s478 + $0x1478] sm:$0xff]
        %v1285 = vld [vmem:[%s478 + $0x1480] sm:$0xff]
        %v1286 = vld [vmem:[%s478 + $0x1488] sm:$0xff]
        %v1287 = vld [vmem:[%s478 + $0x1490] sm:$0xff]
        %v1288 = vld [vmem:[%s478 + $0x1498] sm:$0xff]
        %v1289 = vld [vmem:[%s478 + $0x14a0] sm:$0xff]
        %v1290 = vld [vmem:[%s478 + $0x14a8] sm:$0xff]
        %v1291 = vld [vmem:[%s478 + $0x14b0] sm:$0xff]
        %v1292 = vld [vmem:[%s478 + $0x14b8] sm:$0xff]
        %v1293 = vld [vmem:[%s478 + $0x14c0] sm:$0xff]
        %v1294 = vld [vmem:[%s478 + $0x14c8] sm:$0xff]
        %v1295 = vld [vmem:[%s478 + $0x14d0] sm:$0xff]
        %v1296 = vld [vmem:[%s478 + $0x14d8] sm:$0xff]
        %v1297 = vld [vmem:[%s478 + $0x14e0] sm:$0xff]
        %v1298 = vld [vmem:[%s478 + $0x14e8] sm:$0xff]
        %v1299 = vld [vmem:[%s478 + $0x14f0] sm:$0xff]
        %v1300 = vld [vmem:[%s478 + $0x14f8] sm:$0xff]
        %v1301 = vld [vmem:[%s478 + $0x1500] sm:$0xff]
        %v1302 = vld [vmem:[%s478 + $0x1508] sm:$0xff]
        %v1303 = vld [vmem:[%s478 + $0x1510] sm:$0xff]
        %v1304 = vld [vmem:[%s478 + $0x1518] sm:$0xff]
        %v1305 = vld [vmem:[%s478 + $0x1520] sm:$0xff]
        %v1306 = vld [vmem:[%s478 + $0x1528] sm:$0xff]
        %v1307 = vld [vmem:[%s478 + $0x1530] sm:$0xff]
        %v1308 = vld [vmem:[%s478 + $0x1538] sm:$0xff]
        %v1309 = vld [vmem:[%s478 + $0x1540] sm:$0xff]
        %v1310 = vld [vmem:[%s478 + $0x1548] sm:$0xff]
        %v1311 = vld [vmem:[%s478 + $0x1550] sm:$0xff]
        %v1312 = vld [vmem:[%s478 + $0x1558] sm:$0xff]
        %v1313 = vld [vmem:[%s478 + $0x1560] sm:$0xff]
        %v1314 = vld [vmem:[%s478 + $0x1568] sm:$0xff]
        %v1315 = vld [vmem:[%s478 + $0x1570] sm:$0xff]
        %v1316 = vld [vmem:[%s478 + $0x1578] sm:$0xff]
        %v1317 = vld [vmem:[%s478 + $0x1580] sm:$0xff]
        %v1318 = vld [vmem:[%s478 + $0x1588] sm:$0xff]
        %v1319 = vld [vmem:[%s478 + $0x1590] sm:$0xff]
        %v1320 = vld [vmem:[%s478 + $0x1598] sm:$0xff]
        %v1321 = vld [vmem:[%s478 + $0x15a0] sm:$0xff]
        %v1322 = vld [vmem:[%s478 + $0x15a8] sm:$0xff]
        %v1323 = vld [vmem:[%s478 + $0x15b0] sm:$0xff]
        %v1324 = vld [vmem:[%s478 + $0x15b8] sm:$0xff]
        %v1325 = vld [vmem:[%s478 + $0x15c0] sm:$0xff]
        %v1326 = vld [vmem:[%s478 + $0x15c8] sm:$0xff]
        %v1327 = vld [vmem:[%s478 + $0x15d0] sm:$0xff]
        %v1328 = vld [vmem:[%s478 + $0x15d8] sm:$0xff]
        %v1329 = vld [vmem:[%s478 + $0x15e0] sm:$0xff]
        %v1330 = vld [vmem:[%s478 + $0x15e8] sm:$0xff]
        %v1331 = vld [vmem:[%s478 + $0x15f0] sm:$0xff]
        %v1332 = vld [vmem:[%s478 + $0x15f8] sm:$0xff]
        %v1333 = vld [vmem:[%s478 + $0x1600] sm:$0xff]
        %v1334 = vld [vmem:[%s478 + $0x1608] sm:$0xff]
        %v1335 = vld [vmem:[%s478 + $0x1610] sm:$0xff]
        %v1336 = vld [vmem:[%s478 + $0x1618] sm:$0xff]
        %v1337 = vld [vmem:[%s478 + $0x1620] sm:$0xff]
        %v1338 = vld [vmem:[%s478 + $0x1628] sm:$0xff]
        %v1339 = vld [vmem:[%s478 + $0x1630] sm:$0xff]
        %v1340 = vld [vmem:[%s478 + $0x1638] sm:$0xff]
        %v1341 = vld [vmem:[%s478 + $0x1640] sm:$0xff]
        %v1342 = vld [vmem:[%s478 + $0x1648] sm:$0xff]
        %v1343 = vld [vmem:[%s478 + $0x1650] sm:$0xff]
        %v1344 = vld [vmem:[%s478 + $0x1658] sm:$0xff]
        %v1345 = vld [vmem:[%s478 + $0x1660] sm:$0xff]
        %v1346 = vld [vmem:[%s478 + $0x1668] sm:$0xff]
        %v1347 = vld [vmem:[%s478 + $0x1670] sm:$0xff]
        %v1348 = vld [vmem:[%s478 + $0x1678] sm:$0xff]
        %v1349 = vld [vmem:[%s478 + $0x1680] sm:$0xff]
        %v1350 = vld [vmem:[%s478 + $0x1688] sm:$0xff]
        %v1351 = vld [vmem:[%s478 + $0x1690] sm:$0xff]
        %v1352 = vld [vmem:[%s478 + $0x1698] sm:$0xff]
        %v1353 = vld [vmem:[%s478 + $0x16a0] sm:$0xff]
        %v1354 = vld [vmem:[%s478 + $0x16a8] sm:$0xff]
        %v1355 = vld [vmem:[%s478 + $0x16b0] sm:$0xff]
        %v1356 = vld [vmem:[%s478 + $0x16b8] sm:$0xff]
        %v1357 = vld [vmem:[%s478 + $0x16c0] sm:$0xff]
        %v1358 = vld [vmem:[%s478 + $0x16c8] sm:$0xff]
        %v1359 = vld [vmem:[%s478 + $0x16d0] sm:$0xff]
        %v1360 = vld [vmem:[%s478 + $0x16d8] sm:$0xff]
        %v1361 = vld [vmem:[%s478 + $0x16e0] sm:$0xff]
        %v1362 = vld [vmem:[%s478 + $0x16e8] sm:$0xff]
        %v1363 = vld [vmem:[%s478 + $0x16f0] sm:$0xff]
        %v1364 = vld [vmem:[%s478 + $0x16f8] sm:$0xff]
        %v1365 = vld [vmem:[%s478 + $0x1700] sm:$0xff]
        %v1366 = vld [vmem:[%s478 + $0x1708] sm:$0xff]
        %v1367 = vld [vmem:[%s478 + $0x1710] sm:$0xff]
        %v1368 = vld [vmem:[%s478 + $0x1718] sm:$0xff]
        %v1369 = vld [vmem:[%s478 + $0x1720] sm:$0xff]
        %v1370 = vld [vmem:[%s478 + $0x1728] sm:$0xff]
        %v1371 = vld [vmem:[%s478 + $0x1730] sm:$0xff]
        %v1372 = vld [vmem:[%s478 + $0x1738] sm:$0xff]
        %v1373 = vld [vmem:[%s478 + $0x1740] sm:$0xff]
        %v1374 = vld [vmem:[%s478 + $0x1748] sm:$0xff]
        %v1375 = vld [vmem:[%s478 + $0x1750] sm:$0xff]
        %v1376 = vld [vmem:[%s478 + $0x1758] sm:$0xff]
        %v1377 = vld [vmem:[%s478 + $0x1760] sm:$0xff]
        %v1378 = vld [vmem:[%s478 + $0x1768] sm:$0xff]
        %v1379 = vld [vmem:[%s478 + $0x1770] sm:$0xff]
        %v1380 = vld [vmem:[%s478 + $0x1778] sm:$0xff]
        %v1381 = vld [vmem:[%s478 + $0x1780] sm:$0xff]
        %v1382 = vld [vmem:[%s478 + $0x1788] sm:$0xff]
        %v1383 = vld [vmem:[%s478 + $0x1790] sm:$0xff]
        %v1384 = vld [vmem:[%s478 + $0x1798] sm:$0xff]
        %v1385 = vld [vmem:[%s478 + $0x17a0] sm:$0xff]
        %v1386 = vld [vmem:[%s478 + $0x17a8] sm:$0xff]
        %v1387 = vld [vmem:[%s478 + $0x17b0] sm:$0xff]
        %v1388 = vld [vmem:[%s478 + $0x17b8] sm:$0xff]
        %v1389 = vld [vmem:[%s478 + $0x17c0] sm:$0xff]
        %v1390 = vld [vmem:[%s478 + $0x17c8] sm:$0xff]
        %v1391 = vld [vmem:[%s478 + $0x17d0] sm:$0xff]
        %v1392 = vld [vmem:[%s478 + $0x17d8] sm:$0xff]
        %v1393 = vld [vmem:[%s478 + $0x17e0] sm:$0xff]
        %v1394 = vld [vmem:[%s478 + $0x17e8] sm:$0xff]
        %v1395 = vld [vmem:[%s478 + $0x17f0] sm:$0xff]
        %v1396 = vld [vmem:[%s478 + $0x17f8] sm:$0xff]
        %v1397 = vld [vmem:[%s478 + $0x1800] sm:$0xff]
        %v1398 = vld [vmem:[%s478 + $0x1808] sm:$0xff]
        %v1399 = vld [vmem:[%s478 + $0x1810] sm:$0xff]
        %v1400 = vld [vmem:[%s478 + $0x1818] sm:$0xff]
        %v1401 = vld [vmem:[%s478 + $0x1820] sm:$0xff]
        %v1402 = vld [vmem:[%s478 + $0x1828] sm:$0xff]
        %v1403 = vld [vmem:[%s478 + $0x1830] sm:$0xff]
        %v1404 = vld [vmem:[%s478 + $0x1838] sm:$0xff]
        %v1405 = vld [vmem:[%s478 + $0x1840] sm:$0xff]
        %v1406 = vld [vmem:[%s478 + $0x1848] sm:$0xff]
        %v1407 = vld [vmem:[%s478 + $0x1850] sm:$0xff]
        %v1408 = vld [vmem:[%s478 + $0x1858] sm:$0xff]
        %v1409 = vld [vmem:[%s478 + $0x1860] sm:$0xff]
        %v1410 = vld [vmem:[%s478 + $0x1868] sm:$0xff]
        %v1411 = vld [vmem:[%s478 + $0x1870] sm:$0xff]
        %v1412 = vld [vmem:[%s478 + $0x1878] sm:$0xff]
        %v1413 = vld [vmem:[%s478 + $0x1880] sm:$0xff]
        %v1414 = vld [vmem:[%s478 + $0x1888] sm:$0xff]
        %v1415 = vld [vmem:[%s478 + $0x1890] sm:$0xff]
        %v1416 = vld [vmem:[%s478 + $0x1898] sm:$0xff]
        %v1417 = vld [vmem:[%s478 + $0x18a0] sm:$0xff]
        %v1418 = vld [vmem:[%s478 + $0x18a8] sm:$0xff]
        %v1419 = vld [vmem:[%s478 + $0x18b0] sm:$0xff]
        %v1420 = vld [vmem:[%s478 + $0x18b8] sm:$0xff]
        %v1421 = vld [vmem:[%s478 + $0x18c0] sm:$0xff]
        %v1422 = vld [vmem:[%s478 + $0x18c8] sm:$0xff]
        %v1423 = vld [vmem:[%s478 + $0x18d0] sm:$0xff]
        %v1424 = vld [vmem:[%s478 + $0x18d8] sm:$0xff]
        %v1425 = vld [vmem:[%s478 + $0x18e0] sm:$0xff]
        %v1426 = vld [vmem:[%s478 + $0x18e8] sm:$0xff]
        %v1427 = vld [vmem:[%s478 + $0x18f0] sm:$0xff]
        %v1428 = vld [vmem:[%s478 + $0x18f8] sm:$0xff]
        %v1429 = vld [vmem:[%s488] sm:$0xff]
        %v1430 = vld [vmem:[%s488 + $0x8] sm:$0x3]
        %v1433 = vperm.slane %v1429, 0
        %v1434 = vperm.slane %v1429, 1
        %v1435 = vperm.slane %v1429, 2
        %v1436 = vperm.slane %v1429, 3
        %v1437 = vperm.slane %v1429, 4
        %v1438 = vperm.slane %v1429, 5
        %v1439 = vperm.slane %v1429, 6
        %v1440 = vperm.slane %v1429, 7
        %v1441 = vperm.slane %v1430, 0
        %v1442 = vperm.slane %v1430, 1
        %v1473 = vunpack.c.l.b16 %v609
        %v1474 = vunpack.c.h.b16 %v609
        %v1475 = vunpack.c.l.b16 %v610
        %v1476 = vunpack.c.h.b16 %v610
        %v1477 = vunpack.c.l.b16 %v611
        %v1478 = vunpack.c.h.b16 %v611
        %v1479 = vunpack.c.l.b16 %v612
        %v1480 = vunpack.c.h.b16 %v612
        %v1481 = vunpack.c.l.b16 %v613
        %v1482 = vunpack.c.h.b16 %v613
        %v1483 = vunpack.c.l.b16 %v614
        %v1484 = vunpack.c.h.b16 %v614
        %v1485 = vunpack.c.l.b16 %v615
        %v1486 = vunpack.c.h.b16 %v615
        %v1487 = vunpack.c.l.b16 %v616
        %v1488 = vunpack.c.h.b16 %v616
        %v1489 = vunpack.c.l.b16 %v617
        %v1490 = vunpack.c.h.b16 %v617
        %v1491 = vunpack.c.l.b16 %v618
        %v1492 = vunpack.c.h.b16 %v618
        %v1493 = vunpack.c.l.b16 %v619
        %v1494 = vunpack.c.h.b16 %v619
        %v1495 = vunpack.c.l.b16 %v620
        %v1496 = vunpack.c.h.b16 %v620
        %v1497 = vunpack.c.l.b16 %v621
        %v1498 = vunpack.c.h.b16 %v621
        %v1499 = vunpack.c.l.b16 %v622
        %v1500 = vunpack.c.h.b16 %v622
        %v1501 = vunpack.c.l.b16 %v623
        %v1502 = vunpack.c.h.b16 %v623
        %v1503 = vunpack.c.l.b16 %v624
        %v1504 = vunpack.c.h.b16 %v624
        %v1505 = vunpack.c.l.b16 %v625
        %v1506 = vunpack.c.h.b16 %v625
        %v1507 = vunpack.c.l.b16 %v626
        %v1508 = vunpack.c.h.b16 %v626
        %v1509 = vunpack.c.l.b16 %v627
        %v1510 = vunpack.c.h.b16 %v627
        %v1511 = vunpack.c.l.b16 %v628
        %v1512 = vunpack.c.h.b16 %v628
        %v1513 = vpack.c.b16 %v1483, %v1473
        %v1514 = vpack.c.b16 %v1484, %v1474
        %v1515 = vpack.c.b16 %v1485, %v1475
        %v1516 = vpack.c.b16 %v1486, %v1476
        %v1517 = vpack.c.b16 %v1487, %v1477
        %v1518 = vpack.c.b16 %v1488, %v1478
        %v1519 = vpack.c.b16 %v1489, %v1479
        %v1520 = vpack.c.b16 %v1490, %v1480
        %v1521 = vpack.c.b16 %v1491, %v1481
        %v1522 = vpack.c.b16 %v1492, %v1482
        %v1523 = vpack.c.b16 %v1503, %v1493
        %v1524 = vpack.c.b16 %v1504, %v1494
        %v1525 = vpack.c.b16 %v1505, %v1495
        %v1526 = vpack.c.b16 %v1506, %v1496
        %v1527 = vpack.c.b16 %v1507, %v1497
        %v1528 = vpack.c.b16 %v1508, %v1498
        %v1529 = vpack.c.b16 %v1509, %v1499
        %v1530 = vpack.c.b16 %v1510, %v1500
        %v1531 = vpack.c.b16 %v1511, %v1501
        %v1532 = vpack.c.b16 %v1512, %v1502
        %v2353 = vunpack.c.l.b16 %v629
        %v2354 = vunpack.c.h.b16 %v629
        %v2355 = vunpack.c.l.b16 %v630
        %v2356 = vunpack.c.h.b16 %v630
        %v2357 = vunpack.c.l.b16 %v631
        %v2358 = vunpack.c.h.b16 %v631
        %v2359 = vunpack.c.l.b16 %v632
        %v2360 = vunpack.c.h.b16 %v632
        %v2361 = vunpack.c.l.b16 %v633
        %v2362 = vunpack.c.h.b16 %v633
        %v2363 = vunpack.c.l.b16 %v634
        %v2364 = vunpack.c.h.b16 %v634
        %v2365 = vunpack.c.l.b16 %v635
        %v2366 = vunpack.c.h.b16 %v635
        %v2367 = vunpack.c.l.b16 %v636
        %v2368 = vunpack.c.h.b16 %v636
        %v2369 = vunpack.c.l.b16 %v637
        %v2370 = vunpack.c.h.b16 %v637
        %v2371 = vunpack.c.l.b16 %v638
        %v2372 = vunpack.c.h.b16 %v638
        %v2373 = vunpack.c.l.b16 %v639
        %v2374 = vunpack.c.h.b16 %v639
        %v2375 = vunpack.c.l.b16 %v640
        %v2376 = vunpack.c.h.b16 %v640
        %v2377 = vunpack.c.l.b16 %v641
        %v2378 = vunpack.c.h.b16 %v641
        %v2379 = vunpack.c.l.b16 %v642
        %v2380 = vunpack.c.h.b16 %v642
        %v2381 = vunpack.c.l.b16 %v643
        %v2382 = vunpack.c.h.b16 %v643
        %v2383 = vunpack.c.l.b16 %v644
        %v2384 = vunpack.c.h.b16 %v644
        %v2385 = vunpack.c.l.b16 %v645
        %v2386 = vunpack.c.h.b16 %v645
        %v2387 = vunpack.c.l.b16 %v646
        %v2388 = vunpack.c.h.b16 %v646
        %v2389 = vunpack.c.l.b16 %v647
        %v2390 = vunpack.c.h.b16 %v647
        %v2391 = vunpack.c.l.b16 %v648
        %v2392 = vunpack.c.h.b16 %v648
        %v2393 = vunpack.c.l.b16 %v649
        %v2394 = vunpack.c.h.b16 %v649
        %v2395 = vunpack.c.l.b16 %v650
        %v2396 = vunpack.c.h.b16 %v650
        %v2397 = vunpack.c.l.b16 %v651
        %v2398 = vunpack.c.h.b16 %v651
        %v2399 = vunpack.c.l.b16 %v652
        %v2400 = vunpack.c.h.b16 %v652
        %v2401 = vunpack.c.l.b16 %v653
        %v2402 = vunpack.c.h.b16 %v653
        %v2403 = vunpack.c.l.b16 %v654
        %v2404 = vunpack.c.h.b16 %v654
        %v2405 = vunpack.c.l.b16 %v655
        %v2406 = vunpack.c.h.b16 %v655
        %v2407 = vunpack.c.l.b16 %v656
        %v2408 = vunpack.c.h.b16 %v656
        %v2409 = vunpack.c.l.b16 %v657
        %v2410 = vunpack.c.h.b16 %v657
        %v2411 = vunpack.c.l.b16 %v658
        %v2412 = vunpack.c.h.b16 %v658
        %v2413 = vunpack.c.l.b16 %v659
        %v2414 = vunpack.c.h.b16 %v659
        %v2415 = vunpack.c.l.b16 %v660
        %v2416 = vunpack.c.h.b16 %v660
        %v2417 = vunpack.c.l.b16 %v661
        %v2418 = vunpack.c.h.b16 %v661
        %v2419 = vunpack.c.l.b16 %v662
        %v2420 = vunpack.c.h.b16 %v662
        %v2421 = vunpack.c.l.b16 %v663
        %v2422 = vunpack.c.h.b16 %v663
        %v2423 = vunpack.c.l.b16 %v664
        %v2424 = vunpack.c.h.b16 %v664
        %v2425 = vunpack.c.l.b16 %v665
        %v2426 = vunpack.c.h.b16 %v665
        %v2427 = vunpack.c.l.b16 %v666
        %v2428 = vunpack.c.h.b16 %v666
        %v2429 = vunpack.c.l.b16 %v667
        %v2430 = vunpack.c.h.b16 %v667
        %v2431 = vunpack.c.l.b16 %v668
        %v2432 = vunpack.c.h.b16 %v668
        %v2433 = vunpack.c.l.b16 %v669
        %v2434 = vunpack.c.h.b16 %v669
        %v2435 = vunpack.c.l.b16 %v670
        %v2436 = vunpack.c.h.b16 %v670
        %v2437 = vunpack.c.l.b16 %v671
        %v2438 = vunpack.c.h.b16 %v671
        %v2439 = vunpack.c.l.b16 %v672
        %v2440 = vunpack.c.h.b16 %v672
        %v2441 = vunpack.c.l.b16 %v673
        %v2442 = vunpack.c.h.b16 %v673
        %v2443 = vunpack.c.l.b16 %v674
        %v2444 = vunpack.c.h.b16 %v674
        %v2445 = vunpack.c.l.b16 %v675
        %v2446 = vunpack.c.h.b16 %v675
        %v2447 = vunpack.c.l.b16 %v676
        %v2448 = vunpack.c.h.b16 %v676
        %v2449 = vunpack.c.l.b16 %v677
        %v2450 = vunpack.c.h.b16 %v677
        %v2451 = vunpack.c.l.b16 %v678
        %v2452 = vunpack.c.h.b16 %v678
        %v2453 = vunpack.c.l.b16 %v679
        %v2454 = vunpack.c.h.b16 %v679
        %v2455 = vunpack.c.l.b16 %v680
        %v2456 = vunpack.c.h.b16 %v680
        %v2457 = vunpack.c.l.b16 %v681
        %v2458 = vunpack.c.h.b16 %v681
        %v2459 = vunpack.c.l.b16 %v682
        %v2460 = vunpack.c.h.b16 %v682
        %v2461 = vunpack.c.l.b16 %v683
        %v2462 = vunpack.c.h.b16 %v683
        %v2463 = vunpack.c.l.b16 %v684
        %v2464 = vunpack.c.h.b16 %v684
        %v2465 = vunpack.c.l.b16 %v685
        %v2466 = vunpack.c.h.b16 %v685
        %v2467 = vunpack.c.l.b16 %v686
        %v2468 = vunpack.c.h.b16 %v686
        %v2469 = vunpack.c.l.b16 %v687
        %v2470 = vunpack.c.h.b16 %v687
        %v2471 = vunpack.c.l.b16 %v688
        %v2472 = vunpack.c.h.b16 %v688
        %v2473 = vunpack.c.l.b16 %v689
        %v2474 = vunpack.c.h.b16 %v689
        %v2475 = vunpack.c.l.b16 %v690
        %v2476 = vunpack.c.h.b16 %v690
        %v2477 = vunpack.c.l.b16 %v691
        %v2478 = vunpack.c.h.b16 %v691
        %v2479 = vunpack.c.l.b16 %v692
        %v2480 = vunpack.c.h.b16 %v692
        %v2481 = vunpack.c.l.b16 %v693
        %v2482 = vunpack.c.h.b16 %v693
        %v2483 = vunpack.c.l.b16 %v694
        %v2484 = vunpack.c.h.b16 %v694
        %v2485 = vunpack.c.l.b16 %v695
        %v2486 = vunpack.c.h.b16 %v695
        %v2487 = vunpack.c.l.b16 %v696
        %v2488 = vunpack.c.h.b16 %v696
        %v2489 = vunpack.c.l.b16 %v697
        %v2490 = vunpack.c.h.b16 %v697
        %v2491 = vunpack.c.l.b16 %v698
        %v2492 = vunpack.c.h.b16 %v698
        %v2493 = vunpack.c.l.b16 %v699
        %v2494 = vunpack.c.h.b16 %v699
        %v2495 = vunpack.c.l.b16 %v700
        %v2496 = vunpack.c.h.b16 %v700
        %v2497 = vunpack.c.l.b16 %v701
        %v2498 = vunpack.c.h.b16 %v701
        %v2499 = vunpack.c.l.b16 %v702
        %v2500 = vunpack.c.h.b16 %v702
        %v2501 = vunpack.c.l.b16 %v703
        %v2502 = vunpack.c.h.b16 %v703
        %v2503 = vunpack.c.l.b16 %v704
        %v2504 = vunpack.c.h.b16 %v704
        %v2505 = vunpack.c.l.b16 %v705
        %v2506 = vunpack.c.h.b16 %v705
        %v2507 = vunpack.c.l.b16 %v706
        %v2508 = vunpack.c.h.b16 %v706
        %v2509 = vunpack.c.l.b16 %v707
        %v2510 = vunpack.c.h.b16 %v707
        %v2511 = vunpack.c.l.b16 %v708
        %v2512 = vunpack.c.h.b16 %v708
        %v2513 = vunpack.c.l.b16 %v709
        %v2514 = vunpack.c.h.b16 %v709
        %v2515 = vunpack.c.l.b16 %v710
        %v2516 = vunpack.c.h.b16 %v710
        %v2517 = vunpack.c.l.b16 %v711
        %v2518 = vunpack.c.h.b16 %v711
        %v2519 = vunpack.c.l.b16 %v712
        %v2520 = vunpack.c.h.b16 %v712
        %v2521 = vunpack.c.l.b16 %v713
        %v2522 = vunpack.c.h.b16 %v713
        %v2523 = vunpack.c.l.b16 %v714
        %v2524 = vunpack.c.h.b16 %v714
        %v2525 = vunpack.c.l.b16 %v715
        %v2526 = vunpack.c.h.b16 %v715
        %v2527 = vunpack.c.l.b16 %v716
        %v2528 = vunpack.c.h.b16 %v716
        %v2529 = vunpack.c.l.b16 %v717
        %v2530 = vunpack.c.h.b16 %v717
        %v2531 = vunpack.c.l.b16 %v718
        %v2532 = vunpack.c.h.b16 %v718
        %v2533 = vunpack.c.l.b16 %v719
        %v2534 = vunpack.c.h.b16 %v719
        %v2535 = vunpack.c.l.b16 %v720
        %v2536 = vunpack.c.h.b16 %v720
        %v2537 = vunpack.c.l.b16 %v721
        %v2538 = vunpack.c.h.b16 %v721
        %v2539 = vunpack.c.l.b16 %v722
        %v2540 = vunpack.c.h.b16 %v722
        %v2541 = vunpack.c.l.b16 %v723
        %v2542 = vunpack.c.h.b16 %v723
        %v2543 = vunpack.c.l.b16 %v724
        %v2544 = vunpack.c.h.b16 %v724
        %v2545 = vunpack.c.l.b16 %v725
        %v2546 = vunpack.c.h.b16 %v725
        %v2547 = vunpack.c.l.b16 %v726
        %v2548 = vunpack.c.h.b16 %v726
        %v2549 = vunpack.c.l.b16 %v727
        %v2550 = vunpack.c.h.b16 %v727
        %v2551 = vunpack.c.l.b16 %v728
        %v2552 = vunpack.c.h.b16 %v728
        %v2553 = vunpack.c.l.b16 %v729
        %v2554 = vunpack.c.h.b16 %v729
        %v2555 = vunpack.c.l.b16 %v730
        %v2556 = vunpack.c.h.b16 %v730
        %v2557 = vunpack.c.l.b16 %v731
        %v2558 = vunpack.c.h.b16 %v731
        %v2559 = vunpack.c.l.b16 %v732
        %v2560 = vunpack.c.h.b16 %v732
        %v2561 = vunpack.c.l.b16 %v733
        %v2562 = vunpack.c.h.b16 %v733
        %v2563 = vunpack.c.l.b16 %v734
        %v2564 = vunpack.c.h.b16 %v734
        %v2565 = vunpack.c.l.b16 %v735
        %v2566 = vunpack.c.h.b16 %v735
        %v2567 = vunpack.c.l.b16 %v736
        %v2568 = vunpack.c.h.b16 %v736
        %v2569 = vunpack.c.l.b16 %v737
        %v2570 = vunpack.c.h.b16 %v737
        %v2571 = vunpack.c.l.b16 %v738
        %v2572 = vunpack.c.h.b16 %v738
        %v2573 = vunpack.c.l.b16 %v739
        %v2574 = vunpack.c.h.b16 %v739
        %v2575 = vunpack.c.l.b16 %v740
        %v2576 = vunpack.c.h.b16 %v740
        %v2577 = vunpack.c.l.b16 %v741
        %v2578 = vunpack.c.h.b16 %v741
        %v2579 = vunpack.c.l.b16 %v742
        %v2580 = vunpack.c.h.b16 %v742
        %v2581 = vunpack.c.l.b16 %v743
        %v2582 = vunpack.c.h.b16 %v743
        %v2583 = vunpack.c.l.b16 %v744
        %v2584 = vunpack.c.h.b16 %v744
        %v2585 = vunpack.c.l.b16 %v745
        %v2586 = vunpack.c.h.b16 %v745
        %v2587 = vunpack.c.l.b16 %v746
        %v2588 = vunpack.c.h.b16 %v746
        %v2589 = vunpack.c.l.b16 %v747
        %v2590 = vunpack.c.h.b16 %v747
        %v2591 = vunpack.c.l.b16 %v748
        %v2592 = vunpack.c.h.b16 %v748
        %v2593 = vunpack.c.l.b16 %v749
        %v2594 = vunpack.c.h.b16 %v749
        %v2595 = vunpack.c.l.b16 %v750
        %v2596 = vunpack.c.h.b16 %v750
        %v2597 = vunpack.c.l.b16 %v751
        %v2598 = vunpack.c.h.b16 %v751
        %v2599 = vunpack.c.l.b16 %v752
        %v2600 = vunpack.c.h.b16 %v752
        %v2601 = vunpack.c.l.b16 %v753
        %v2602 = vunpack.c.h.b16 %v753
        %v2603 = vunpack.c.l.b16 %v754
        %v2604 = vunpack.c.h.b16 %v754
        %v2605 = vunpack.c.l.b16 %v755
        %v2606 = vunpack.c.h.b16 %v755
        %v2607 = vunpack.c.l.b16 %v756
        %v2608 = vunpack.c.h.b16 %v756
        %v2609 = vunpack.c.l.b16 %v757
        %v2610 = vunpack.c.h.b16 %v757
        %v2611 = vunpack.c.l.b16 %v758
        %v2612 = vunpack.c.h.b16 %v758
        %v2613 = vunpack.c.l.b16 %v759
        %v2614 = vunpack.c.h.b16 %v759
        %v2615 = vunpack.c.l.b16 %v760
        %v2616 = vunpack.c.h.b16 %v760
        %v2617 = vunpack.c.l.b16 %v761
        %v2618 = vunpack.c.h.b16 %v761
        %v2619 = vunpack.c.l.b16 %v762
        %v2620 = vunpack.c.h.b16 %v762
        %v2621 = vunpack.c.l.b16 %v763
        %v2622 = vunpack.c.h.b16 %v763
        %v2623 = vunpack.c.l.b16 %v764
        %v2624 = vunpack.c.h.b16 %v764
        %v2625 = vunpack.c.l.b16 %v765
        %v2626 = vunpack.c.h.b16 %v765
        %v2627 = vunpack.c.l.b16 %v766
        %v2628 = vunpack.c.h.b16 %v766
        %v2629 = vunpack.c.l.b16 %v767
        %v2630 = vunpack.c.h.b16 %v767
        %v2631 = vunpack.c.l.b16 %v768
        %v2632 = vunpack.c.h.b16 %v768
        %v2633 = vunpack.c.l.b16 %v769
        %v2634 = vunpack.c.h.b16 %v769
        %v2635 = vunpack.c.l.b16 %v770
        %v2636 = vunpack.c.h.b16 %v770
        %v2637 = vunpack.c.l.b16 %v771
        %v2638 = vunpack.c.h.b16 %v771
        %v2639 = vunpack.c.l.b16 %v772
        %v2640 = vunpack.c.h.b16 %v772
        %v2641 = vunpack.c.l.b16 %v773
        %v2642 = vunpack.c.h.b16 %v773
        %v2643 = vunpack.c.l.b16 %v774
        %v2644 = vunpack.c.h.b16 %v774
        %v2645 = vunpack.c.l.b16 %v775
        %v2646 = vunpack.c.h.b16 %v775
        %v2647 = vunpack.c.l.b16 %v776
        %v2648 = vunpack.c.h.b16 %v776
        %v2649 = vunpack.c.l.b16 %v777
        %v2650 = vunpack.c.h.b16 %v777
        %v2651 = vunpack.c.l.b16 %v778
        %v2652 = vunpack.c.h.b16 %v778
        %v2653 = vunpack.c.l.b16 %v779
        %v2654 = vunpack.c.h.b16 %v779
        %v2655 = vunpack.c.l.b16 %v780
        %v2656 = vunpack.c.h.b16 %v780
        %v2657 = vunpack.c.l.b16 %v781
        %v2658 = vunpack.c.h.b16 %v781
        %v2659 = vunpack.c.l.b16 %v782
        %v2660 = vunpack.c.h.b16 %v782
        %v2661 = vunpack.c.l.b16 %v783
        %v2662 = vunpack.c.h.b16 %v783
        %v2663 = vunpack.c.l.b16 %v784
        %v2664 = vunpack.c.h.b16 %v784
        %v2665 = vunpack.c.l.b16 %v785
        %v2666 = vunpack.c.h.b16 %v785
        %v2667 = vunpack.c.l.b16 %v786
        %v2668 = vunpack.c.h.b16 %v786
        %v2669 = vunpack.c.l.b16 %v787
        %v2670 = vunpack.c.h.b16 %v787
        %v2671 = vunpack.c.l.b16 %v788
        %v2672 = vunpack.c.h.b16 %v788
        %v2673 = vunpack.c.l.b16 %v789
        %v2674 = vunpack.c.h.b16 %v789
        %v2675 = vunpack.c.l.b16 %v790
        %v2676 = vunpack.c.h.b16 %v790
        %v2677 = vunpack.c.l.b16 %v791
        %v2678 = vunpack.c.h.b16 %v791
        %v2679 = vunpack.c.l.b16 %v792
        %v2680 = vunpack.c.h.b16 %v792
        %v2681 = vunpack.c.l.b16 %v793
        %v2682 = vunpack.c.h.b16 %v793
        %v2683 = vunpack.c.l.b16 %v794
        %v2684 = vunpack.c.h.b16 %v794
        %v2685 = vunpack.c.l.b16 %v795
        %v2686 = vunpack.c.h.b16 %v795
        %v2687 = vunpack.c.l.b16 %v796
        %v2688 = vunpack.c.h.b16 %v796
        %v2689 = vunpack.c.l.b16 %v797
        %v2690 = vunpack.c.h.b16 %v797
        %v2691 = vunpack.c.l.b16 %v798
        %v2692 = vunpack.c.h.b16 %v798
        %v2693 = vunpack.c.l.b16 %v799
        %v2694 = vunpack.c.h.b16 %v799
        %v2695 = vunpack.c.l.b16 %v800
        %v2696 = vunpack.c.h.b16 %v800
        %v2697 = vunpack.c.l.b16 %v801
        %v2698 = vunpack.c.h.b16 %v801
        %v2699 = vunpack.c.l.b16 %v802
        %v2700 = vunpack.c.h.b16 %v802
        %v2701 = vunpack.c.l.b16 %v803
        %v2702 = vunpack.c.h.b16 %v803
        %v2703 = vunpack.c.l.b16 %v804
        %v2704 = vunpack.c.h.b16 %v804
        %v2705 = vunpack.c.l.b16 %v805
        %v2706 = vunpack.c.h.b16 %v805
        %v2707 = vunpack.c.l.b16 %v806
        %v2708 = vunpack.c.h.b16 %v806
        %v2709 = vunpack.c.l.b16 %v807
        %v2710 = vunpack.c.h.b16 %v807
        %v2711 = vunpack.c.l.b16 %v808
        %v2712 = vunpack.c.h.b16 %v808
        %v2713 = vunpack.c.l.b16 %v809
        %v2714 = vunpack.c.h.b16 %v809
        %v2715 = vunpack.c.l.b16 %v810
        %v2716 = vunpack.c.h.b16 %v810
        %v2717 = vunpack.c.l.b16 %v811
        %v2718 = vunpack.c.h.b16 %v811
        %v2719 = vunpack.c.l.b16 %v812
        %v2720 = vunpack.c.h.b16 %v812
        %v2721 = vunpack.c.l.b16 %v813
        %v2722 = vunpack.c.h.b16 %v813
        %v2723 = vunpack.c.l.b16 %v814
        %v2724 = vunpack.c.h.b16 %v814
        %v2725 = vunpack.c.l.b16 %v815
        %v2726 = vunpack.c.h.b16 %v815
        %v2727 = vunpack.c.l.b16 %v816
        %v2728 = vunpack.c.h.b16 %v816
        %v2729 = vunpack.c.l.b16 %v817
        %v2730 = vunpack.c.h.b16 %v817
        %v2731 = vunpack.c.l.b16 %v818
        %v2732 = vunpack.c.h.b16 %v818
        %v2733 = vunpack.c.l.b16 %v819
        %v2734 = vunpack.c.h.b16 %v819
        %v2735 = vunpack.c.l.b16 %v820
        %v2736 = vunpack.c.h.b16 %v820
        %v2737 = vunpack.c.l.b16 %v821
        %v2738 = vunpack.c.h.b16 %v821
        %v2739 = vunpack.c.l.b16 %v822
        %v2740 = vunpack.c.h.b16 %v822
        %v2741 = vunpack.c.l.b16 %v823
        %v2742 = vunpack.c.h.b16 %v823
        %v2743 = vunpack.c.l.b16 %v824
        %v2744 = vunpack.c.h.b16 %v824
        %v2745 = vunpack.c.l.b16 %v825
        %v2746 = vunpack.c.h.b16 %v825
        %v2747 = vunpack.c.l.b16 %v826
        %v2748 = vunpack.c.h.b16 %v826
        %v2749 = vunpack.c.l.b16 %v827
        %v2750 = vunpack.c.h.b16 %v827
        %v2751 = vunpack.c.l.b16 %v828
        %v2752 = vunpack.c.h.b16 %v828
        %v2753 = vunpack.c.l.b16 %v829
        %v2754 = vunpack.c.h.b16 %v829
        %v2755 = vunpack.c.l.b16 %v830
        %v2756 = vunpack.c.h.b16 %v830
        %v2757 = vunpack.c.l.b16 %v831
        %v2758 = vunpack.c.h.b16 %v831
        %v2759 = vunpack.c.l.b16 %v832
        %v2760 = vunpack.c.h.b16 %v832
        %v2761 = vunpack.c.l.b16 %v833
        %v2762 = vunpack.c.h.b16 %v833
        %v2763 = vunpack.c.l.b16 %v834
        %v2764 = vunpack.c.h.b16 %v834
        %v2765 = vunpack.c.l.b16 %v835
        %v2766 = vunpack.c.h.b16 %v835
        %v2767 = vunpack.c.l.b16 %v836
        %v2768 = vunpack.c.h.b16 %v836
        %v2769 = vunpack.c.l.b16 %v837
        %v2770 = vunpack.c.h.b16 %v837
        %v2771 = vunpack.c.l.b16 %v838
        %v2772 = vunpack.c.h.b16 %v838
        %v2773 = vunpack.c.l.b16 %v839
        %v2774 = vunpack.c.h.b16 %v839
        %v2775 = vunpack.c.l.b16 %v840
        %v2776 = vunpack.c.h.b16 %v840
        %v2777 = vunpack.c.l.b16 %v841
        %v2778 = vunpack.c.h.b16 %v841
        %v2779 = vunpack.c.l.b16 %v842
        %v2780 = vunpack.c.h.b16 %v842
        %v2781 = vunpack.c.l.b16 %v843
        %v2782 = vunpack.c.h.b16 %v843
        %v2783 = vunpack.c.l.b16 %v844
        %v2784 = vunpack.c.h.b16 %v844
        %v2785 = vunpack.c.l.b16 %v845
        %v2786 = vunpack.c.h.b16 %v845
        %v2787 = vunpack.c.l.b16 %v846
        %v2788 = vunpack.c.h.b16 %v846
        %v2789 = vunpack.c.l.b16 %v847
        %v2790 = vunpack.c.h.b16 %v847
        %v2791 = vunpack.c.l.b16 %v848
        %v2792 = vunpack.c.h.b16 %v848
        %v2793 = vunpack.c.l.b16 %v849
        %v2794 = vunpack.c.h.b16 %v849
        %v2795 = vunpack.c.l.b16 %v850
        %v2796 = vunpack.c.h.b16 %v850
        %v2797 = vunpack.c.l.b16 %v851
        %v2798 = vunpack.c.h.b16 %v851
        %v2799 = vunpack.c.l.b16 %v852
        %v2800 = vunpack.c.h.b16 %v852
        %v2801 = vunpack.c.l.b16 %v853
        %v2802 = vunpack.c.h.b16 %v853
        %v2803 = vunpack.c.l.b16 %v854
        %v2804 = vunpack.c.h.b16 %v854
        %v2805 = vunpack.c.l.b16 %v855
        %v2806 = vunpack.c.h.b16 %v855
        %v2807 = vunpack.c.l.b16 %v856
        %v2808 = vunpack.c.h.b16 %v856
        %v2809 = vunpack.c.l.b16 %v857
        %v2810 = vunpack.c.h.b16 %v857
        %v2811 = vunpack.c.l.b16 %v858
        %v2812 = vunpack.c.h.b16 %v858
        %v2813 = vunpack.c.l.b16 %v859
        %v2814 = vunpack.c.h.b16 %v859
        %v2815 = vunpack.c.l.b16 %v860
        %v2816 = vunpack.c.h.b16 %v860
        %v2817 = vunpack.c.l.b16 %v861
        %v2818 = vunpack.c.h.b16 %v861
        %v2819 = vunpack.c.l.b16 %v862
        %v2820 = vunpack.c.h.b16 %v862
        %v2821 = vunpack.c.l.b16 %v863
        %v2822 = vunpack.c.h.b16 %v863
        %v2823 = vunpack.c.l.b16 %v864
        %v2824 = vunpack.c.h.b16 %v864
        %v2825 = vunpack.c.l.b16 %v865
        %v2826 = vunpack.c.h.b16 %v865
        %v2827 = vunpack.c.l.b16 %v866
        %v2828 = vunpack.c.h.b16 %v866
        %v2829 = vunpack.c.l.b16 %v867
        %v2830 = vunpack.c.h.b16 %v867
        %v2831 = vunpack.c.l.b16 %v868
        %v2832 = vunpack.c.h.b16 %v868
        %v2833 = vunpack.c.l.b16 %v869
        %v2834 = vunpack.c.h.b16 %v869
        %v2835 = vunpack.c.l.b16 %v870
        %v2836 = vunpack.c.h.b16 %v870
        %v2837 = vunpack.c.l.b16 %v871
        %v2838 = vunpack.c.h.b16 %v871
        %v2839 = vunpack.c.l.b16 %v872
        %v2840 = vunpack.c.h.b16 %v872
        %v2841 = vunpack.c.l.b16 %v873
        %v2842 = vunpack.c.h.b16 %v873
        %v2843 = vunpack.c.l.b16 %v874
        %v2844 = vunpack.c.h.b16 %v874
        %v2845 = vunpack.c.l.b16 %v875
        %v2846 = vunpack.c.h.b16 %v875
        %v2847 = vunpack.c.l.b16 %v876
        %v2848 = vunpack.c.h.b16 %v876
        %v2849 = vunpack.c.l.b16 %v877
        %v2850 = vunpack.c.h.b16 %v877
        %v2851 = vunpack.c.l.b16 %v878
        %v2852 = vunpack.c.h.b16 %v878
        %v2853 = vunpack.c.l.b16 %v879
        %v2854 = vunpack.c.h.b16 %v879
        %v2855 = vunpack.c.l.b16 %v880
        %v2856 = vunpack.c.h.b16 %v880
        %v2857 = vunpack.c.l.b16 %v881
        %v2858 = vunpack.c.h.b16 %v881
        %v2859 = vunpack.c.l.b16 %v882
        %v2860 = vunpack.c.h.b16 %v882
        %v2861 = vunpack.c.l.b16 %v883
        %v2862 = vunpack.c.h.b16 %v883
        %v2863 = vunpack.c.l.b16 %v884
        %v2864 = vunpack.c.h.b16 %v884
        %v2865 = vunpack.c.l.b16 %v885
        %v2866 = vunpack.c.h.b16 %v885
        %v2867 = vunpack.c.l.b16 %v886
        %v2868 = vunpack.c.h.b16 %v886
        %v2869 = vunpack.c.l.b16 %v887
        %v2870 = vunpack.c.h.b16 %v887
        %v2871 = vunpack.c.l.b16 %v888
        %v2872 = vunpack.c.h.b16 %v888
        %v2873 = vunpack.c.l.b16 %v889
        %v2874 = vunpack.c.h.b16 %v889
        %v2875 = vunpack.c.l.b16 %v890
        %v2876 = vunpack.c.h.b16 %v890
        %v2877 = vunpack.c.l.b16 %v891
        %v2878 = vunpack.c.h.b16 %v891
        %v2879 = vunpack.c.l.b16 %v892
        %v2880 = vunpack.c.h.b16 %v892
        %v2881 = vunpack.c.l.b16 %v893
        %v2882 = vunpack.c.h.b16 %v893
        %v2883 = vunpack.c.l.b16 %v894
        %v2884 = vunpack.c.h.b16 %v894
        %v2885 = vunpack.c.l.b16 %v895
        %v2886 = vunpack.c.h.b16 %v895
        %v2887 = vunpack.c.l.b16 %v896
        %v2888 = vunpack.c.h.b16 %v896
        %v2889 = vunpack.c.l.b16 %v897
        %v2890 = vunpack.c.h.b16 %v897
        %v2891 = vunpack.c.l.b16 %v898
        %v2892 = vunpack.c.h.b16 %v898
        %v2893 = vunpack.c.l.b16 %v899
        %v2894 = vunpack.c.h.b16 %v899
        %v2895 = vunpack.c.l.b16 %v900
        %v2896 = vunpack.c.h.b16 %v900
        %v2897 = vunpack.c.l.b16 %v901
        %v2898 = vunpack.c.h.b16 %v901
        %v2899 = vunpack.c.l.b16 %v902
        %v2900 = vunpack.c.h.b16 %v902
        %v2901 = vunpack.c.l.b16 %v903
        %v2902 = vunpack.c.h.b16 %v903
        %v2903 = vunpack.c.l.b16 %v904
        %v2904 = vunpack.c.h.b16 %v904
        %v2905 = vunpack.c.l.b16 %v905
        %v2906 = vunpack.c.h.b16 %v905
        %v2907 = vunpack.c.l.b16 %v906
        %v2908 = vunpack.c.h.b16 %v906
        %v2909 = vunpack.c.l.b16 %v907
        %v2910 = vunpack.c.h.b16 %v907
        %v2911 = vunpack.c.l.b16 %v908
        %v2912 = vunpack.c.h.b16 %v908
        %v2913 = vunpack.c.l.b16 %v909
        %v2914 = vunpack.c.h.b16 %v909
        %v2915 = vunpack.c.l.b16 %v910
        %v2916 = vunpack.c.h.b16 %v910
        %v2917 = vunpack.c.l.b16 %v911
        %v2918 = vunpack.c.h.b16 %v911
        %v2919 = vunpack.c.l.b16 %v912
        %v2920 = vunpack.c.h.b16 %v912
        %v2921 = vunpack.c.l.b16 %v913
        %v2922 = vunpack.c.h.b16 %v913
        %v2923 = vunpack.c.l.b16 %v914
        %v2924 = vunpack.c.h.b16 %v914
        %v2925 = vunpack.c.l.b16 %v915
        %v2926 = vunpack.c.h.b16 %v915
        %v2927 = vunpack.c.l.b16 %v916
        %v2928 = vunpack.c.h.b16 %v916
        %v2929 = vunpack.c.l.b16 %v917
        %v2930 = vunpack.c.h.b16 %v917
        %v2931 = vunpack.c.l.b16 %v918
        %v2932 = vunpack.c.h.b16 %v918
        %v2933 = vunpack.c.l.b16 %v919
        %v2934 = vunpack.c.h.b16 %v919
        %v2935 = vunpack.c.l.b16 %v920
        %v2936 = vunpack.c.h.b16 %v920
        %v2937 = vunpack.c.l.b16 %v921
        %v2938 = vunpack.c.h.b16 %v921
        %v2939 = vunpack.c.l.b16 %v922
        %v2940 = vunpack.c.h.b16 %v922
        %v2941 = vunpack.c.l.b16 %v923
        %v2942 = vunpack.c.h.b16 %v923
        %v2943 = vunpack.c.l.b16 %v924
        %v2944 = vunpack.c.h.b16 %v924
        %v2945 = vunpack.c.l.b16 %v925
        %v2946 = vunpack.c.h.b16 %v925
        %v2947 = vunpack.c.l.b16 %v926
        %v2948 = vunpack.c.h.b16 %v926
        %v2949 = vunpack.c.l.b16 %v927
        %v2950 = vunpack.c.h.b16 %v927
        %v2951 = vunpack.c.l.b16 %v928
        %v2952 = vunpack.c.h.b16 %v928
        %v2953 = vunpack.c.l.b16 %v929
        %v2954 = vunpack.c.h.b16 %v929
        %v2955 = vunpack.c.l.b16 %v930
        %v2956 = vunpack.c.h.b16 %v930
        %v2957 = vunpack.c.l.b16 %v931
        %v2958 = vunpack.c.h.b16 %v931
        %v2959 = vunpack.c.l.b16 %v932
        %v2960 = vunpack.c.h.b16 %v932
        %v2961 = vunpack.c.l.b16 %v933
        %v2962 = vunpack.c.h.b16 %v933
        %v2963 = vunpack.c.l.b16 %v934
        %v2964 = vunpack.c.h.b16 %v934
        %v2965 = vunpack.c.l.b16 %v935
        %v2966 = vunpack.c.h.b16 %v935
        %v2967 = vunpack.c.l.b16 %v936
        %v2968 = vunpack.c.h.b16 %v936
        %v2969 = vunpack.c.l.b16 %v937
        %v2970 = vunpack.c.h.b16 %v937
        %v2971 = vunpack.c.l.b16 %v938
        %v2972 = vunpack.c.h.b16 %v938
        %v2973 = vunpack.c.l.b16 %v939
        %v2974 = vunpack.c.h.b16 %v939
        %v2975 = vunpack.c.l.b16 %v940
        %v2976 = vunpack.c.h.b16 %v940
        %v2977 = vunpack.c.l.b16 %v941
        %v2978 = vunpack.c.h.b16 %v941
        %v2979 = vunpack.c.l.b16 %v942
        %v2980 = vunpack.c.h.b16 %v942
        %v2981 = vunpack.c.l.b16 %v943
        %v2982 = vunpack.c.h.b16 %v943
        %v2983 = vunpack.c.l.b16 %v944
        %v2984 = vunpack.c.h.b16 %v944
        %v2985 = vunpack.c.l.b16 %v945
        %v2986 = vunpack.c.h.b16 %v945
        %v2987 = vunpack.c.l.b16 %v946
        %v2988 = vunpack.c.h.b16 %v946
        %v2989 = vunpack.c.l.b16 %v947
        %v2990 = vunpack.c.h.b16 %v947
        %v2991 = vunpack.c.l.b16 %v948
        %v2992 = vunpack.c.h.b16 %v948
        %v2993 = vunpack.c.l.b16 %v949
        %v2994 = vunpack.c.h.b16 %v949
        %v2995 = vunpack.c.l.b16 %v950
        %v2996 = vunpack.c.h.b16 %v950
        %v2997 = vunpack.c.l.b16 %v951
        %v2998 = vunpack.c.h.b16 %v951
        %v2999 = vunpack.c.l.b16 %v952
        %v3000 = vunpack.c.h.b16 %v952
        %v3001 = vunpack.c.l.b16 %v953
        %v3002 = vunpack.c.h.b16 %v953
        %v3003 = vunpack.c.l.b16 %v954
        %v3004 = vunpack.c.h.b16 %v954
        %v3005 = vunpack.c.l.b16 %v955
        %v3006 = vunpack.c.h.b16 %v955
        %v3007 = vunpack.c.l.b16 %v956
        %v3008 = vunpack.c.h.b16 %v956
        %v3009 = vunpack.c.l.b16 %v957
        %v3010 = vunpack.c.h.b16 %v957
        %v3011 = vunpack.c.l.b16 %v958
        %v3012 = vunpack.c.h.b16 %v958
        %v3013 = vunpack.c.l.b16 %v959
        %v3014 = vunpack.c.h.b16 %v959
        %v3015 = vunpack.c.l.b16 %v960
        %v3016 = vunpack.c.h.b16 %v960
        %v3017 = vunpack.c.l.b16 %v961
        %v3018 = vunpack.c.h.b16 %v961
        %v3019 = vunpack.c.l.b16 %v962
        %v3020 = vunpack.c.h.b16 %v962
        %v3021 = vunpack.c.l.b16 %v963
        %v3022 = vunpack.c.h.b16 %v963
        %v3023 = vunpack.c.l.b16 %v964
        %v3024 = vunpack.c.h.b16 %v964
        %v3025 = vunpack.c.l.b16 %v965
        %v3026 = vunpack.c.h.b16 %v965
        %v3027 = vunpack.c.l.b16 %v966
        %v3028 = vunpack.c.h.b16 %v966
        %v3029 = vunpack.c.l.b16 %v967
        %v3030 = vunpack.c.h.b16 %v967
        %v3031 = vunpack.c.l.b16 %v968
        %v3032 = vunpack.c.h.b16 %v968
        %v3033 = vunpack.c.l.b16 %v969
        %v3034 = vunpack.c.h.b16 %v969
        %v3035 = vunpack.c.l.b16 %v970
        %v3036 = vunpack.c.h.b16 %v970
        %v3037 = vunpack.c.l.b16 %v971
        %v3038 = vunpack.c.h.b16 %v971
        %v3039 = vunpack.c.l.b16 %v972
        %v3040 = vunpack.c.h.b16 %v972
        %v3041 = vunpack.c.l.b16 %v973
        %v3042 = vunpack.c.h.b16 %v973
        %v3043 = vunpack.c.l.b16 %v974
        %v3044 = vunpack.c.h.b16 %v974
        %v3045 = vunpack.c.l.b16 %v975
        %v3046 = vunpack.c.h.b16 %v975
        %v3047 = vunpack.c.l.b16 %v976
        %v3048 = vunpack.c.h.b16 %v976
        %v3049 = vunpack.c.l.b16 %v977
        %v3050 = vunpack.c.h.b16 %v977
        %v3051 = vunpack.c.l.b16 %v978
        %v3052 = vunpack.c.h.b16 %v978
        %v3053 = vunpack.c.l.b16 %v979
        %v3054 = vunpack.c.h.b16 %v979
        %v3055 = vunpack.c.l.b16 %v980
        %v3056 = vunpack.c.h.b16 %v980
        %v3057 = vunpack.c.l.b16 %v981
        %v3058 = vunpack.c.h.b16 %v981
        %v3059 = vunpack.c.l.b16 %v982
        %v3060 = vunpack.c.h.b16 %v982
        %v3061 = vunpack.c.l.b16 %v983
        %v3062 = vunpack.c.h.b16 %v983
        %v3063 = vunpack.c.l.b16 %v984
        %v3064 = vunpack.c.h.b16 %v984
        %v3065 = vunpack.c.l.b16 %v985
        %v3066 = vunpack.c.h.b16 %v985
        %v3067 = vunpack.c.l.b16 %v986
        %v3068 = vunpack.c.h.b16 %v986
        %v3069 = vunpack.c.l.b16 %v987
        %v3070 = vunpack.c.h.b16 %v987
        %v3071 = vunpack.c.l.b16 %v988
        %v3072 = vunpack.c.h.b16 %v988
        %v3073 = vunpack.c.l.b16 %v989
        %v3074 = vunpack.c.h.b16 %v989
        %v3075 = vunpack.c.l.b16 %v990
        %v3076 = vunpack.c.h.b16 %v990
        %v3077 = vunpack.c.l.b16 %v991
        %v3078 = vunpack.c.h.b16 %v991
        %v3079 = vunpack.c.l.b16 %v992
        %v3080 = vunpack.c.h.b16 %v992
        %v3081 = vunpack.c.l.b16 %v993
        %v3082 = vunpack.c.h.b16 %v993
        %v3083 = vunpack.c.l.b16 %v994
        %v3084 = vunpack.c.h.b16 %v994
        %v3085 = vunpack.c.l.b16 %v995
        %v3086 = vunpack.c.h.b16 %v995
        %v3087 = vunpack.c.l.b16 %v996
        %v3088 = vunpack.c.h.b16 %v996
        %v3089 = vunpack.c.l.b16 %v997
        %v3090 = vunpack.c.h.b16 %v997
        %v3091 = vunpack.c.l.b16 %v998
        %v3092 = vunpack.c.h.b16 %v998
        %v3093 = vunpack.c.l.b16 %v999
        %v3094 = vunpack.c.h.b16 %v999
        %v3095 = vunpack.c.l.b16 %v1000
        %v3096 = vunpack.c.h.b16 %v1000
        %v3097 = vunpack.c.l.b16 %v1001
        %v3098 = vunpack.c.h.b16 %v1001
        %v3099 = vunpack.c.l.b16 %v1002
        %v3100 = vunpack.c.h.b16 %v1002
        %v3101 = vunpack.c.l.b16 %v1003
        %v3102 = vunpack.c.h.b16 %v1003
        %v3103 = vunpack.c.l.b16 %v1004
        %v3104 = vunpack.c.h.b16 %v1004
        %v3105 = vunpack.c.l.b16 %v1005
        %v3106 = vunpack.c.h.b16 %v1005
        %v3107 = vunpack.c.l.b16 %v1006
        %v3108 = vunpack.c.h.b16 %v1006
        %v3109 = vunpack.c.l.b16 %v1007
        %v3110 = vunpack.c.h.b16 %v1007
        %v3111 = vunpack.c.l.b16 %v1008
        %v3112 = vunpack.c.h.b16 %v1008
        %v3113 = vunpack.c.l.b16 %v1009
        %v3114 = vunpack.c.h.b16 %v1009
        %v3115 = vunpack.c.l.b16 %v1010
        %v3116 = vunpack.c.h.b16 %v1010
        %v3117 = vunpack.c.l.b16 %v1011
        %v3118 = vunpack.c.h.b16 %v1011
        %v3119 = vunpack.c.l.b16 %v1012
        %v3120 = vunpack.c.h.b16 %v1012
        %v3121 = vunpack.c.l.b16 %v1013
        %v3122 = vunpack.c.h.b16 %v1013
        %v3123 = vunpack.c.l.b16 %v1014
        %v3124 = vunpack.c.h.b16 %v1014
        %v3125 = vunpack.c.l.b16 %v1015
        %v3126 = vunpack.c.h.b16 %v1015
        %v3127 = vunpack.c.l.b16 %v1016
        %v3128 = vunpack.c.h.b16 %v1016
        %v3129 = vunpack.c.l.b16 %v1017
        %v3130 = vunpack.c.h.b16 %v1017
        %v3131 = vunpack.c.l.b16 %v1018
        %v3132 = vunpack.c.h.b16 %v1018
        %v3133 = vunpack.c.l.b16 %v1019
        %v3134 = vunpack.c.h.b16 %v1019
        %v3135 = vunpack.c.l.b16 %v1020
        %v3136 = vunpack.c.h.b16 %v1020
        %v3137 = vunpack.c.l.b16 %v1021
        %v3138 = vunpack.c.h.b16 %v1021
        %v3139 = vunpack.c.l.b16 %v1022
        %v3140 = vunpack.c.h.b16 %v1022
        %v3141 = vunpack.c.l.b16 %v1023
        %v3142 = vunpack.c.h.b16 %v1023
        %v3143 = vunpack.c.l.b16 %v1024
        %v3144 = vunpack.c.h.b16 %v1024
        %v3145 = vunpack.c.l.b16 %v1025
        %v3146 = vunpack.c.h.b16 %v1025
        %v3147 = vunpack.c.l.b16 %v1026
        %v3148 = vunpack.c.h.b16 %v1026
        %v3149 = vunpack.c.l.b16 %v1027
        %v3150 = vunpack.c.h.b16 %v1027
        %v3151 = vunpack.c.l.b16 %v1028
        %v3152 = vunpack.c.h.b16 %v1028
        %v3153 = vunpack.c.l.b16 %v1029
        %v3154 = vunpack.c.h.b16 %v1029
        %v3155 = vunpack.c.l.b16 %v1030
        %v3156 = vunpack.c.h.b16 %v1030
        %v3157 = vunpack.c.l.b16 %v1031
        %v3158 = vunpack.c.h.b16 %v1031
        %v3159 = vunpack.c.l.b16 %v1032
        %v3160 = vunpack.c.h.b16 %v1032
        %v3161 = vunpack.c.l.b16 %v1033
        %v3162 = vunpack.c.h.b16 %v1033
        %v3163 = vunpack.c.l.b16 %v1034
        %v3164 = vunpack.c.h.b16 %v1034
        %v3165 = vunpack.c.l.b16 %v1035
        %v3166 = vunpack.c.h.b16 %v1035
        %v3167 = vunpack.c.l.b16 %v1036
        %v3168 = vunpack.c.h.b16 %v1036
        %v3169 = vunpack.c.l.b16 %v1037
        %v3170 = vunpack.c.h.b16 %v1037
        %v3171 = vunpack.c.l.b16 %v1038
        %v3172 = vunpack.c.h.b16 %v1038
        %v3173 = vunpack.c.l.b16 %v1039
        %v3174 = vunpack.c.h.b16 %v1039
        %v3175 = vunpack.c.l.b16 %v1040
        %v3176 = vunpack.c.h.b16 %v1040
        %v3177 = vunpack.c.l.b16 %v1041
        %v3178 = vunpack.c.h.b16 %v1041
        %v3179 = vunpack.c.l.b16 %v1042
        %v3180 = vunpack.c.h.b16 %v1042
        %v3181 = vunpack.c.l.b16 %v1043
        %v3182 = vunpack.c.h.b16 %v1043
        %v3183 = vunpack.c.l.b16 %v1044
        %v3184 = vunpack.c.h.b16 %v1044
        %v3185 = vunpack.c.l.b16 %v1045
        %v3186 = vunpack.c.h.b16 %v1045
        %v3187 = vunpack.c.l.b16 %v1046
        %v3188 = vunpack.c.h.b16 %v1046
        %v3189 = vunpack.c.l.b16 %v1047
        %v3190 = vunpack.c.h.b16 %v1047
        %v3191 = vunpack.c.l.b16 %v1048
        %v3192 = vunpack.c.h.b16 %v1048
        %v3193 = vunpack.c.l.b16 %v1049
        %v3194 = vunpack.c.h.b16 %v1049
        %v3195 = vunpack.c.l.b16 %v1050
        %v3196 = vunpack.c.h.b16 %v1050
        %v3197 = vunpack.c.l.b16 %v1051
        %v3198 = vunpack.c.h.b16 %v1051
        %v3199 = vunpack.c.l.b16 %v1052
        %v3200 = vunpack.c.h.b16 %v1052
        %v3201 = vunpack.c.l.b16 %v1053
        %v3202 = vunpack.c.h.b16 %v1053
        %v3203 = vunpack.c.l.b16 %v1054
        %v3204 = vunpack.c.h.b16 %v1054
        %v3205 = vunpack.c.l.b16 %v1055
        %v3206 = vunpack.c.h.b16 %v1055
        %v3207 = vunpack.c.l.b16 %v1056
        %v3208 = vunpack.c.h.b16 %v1056
        %v3209 = vunpack.c.l.b16 %v1057
        %v3210 = vunpack.c.h.b16 %v1057
        %v3211 = vunpack.c.l.b16 %v1058
        %v3212 = vunpack.c.h.b16 %v1058
        %v3213 = vunpack.c.l.b16 %v1059
        %v3214 = vunpack.c.h.b16 %v1059
        %v3215 = vunpack.c.l.b16 %v1060
        %v3216 = vunpack.c.h.b16 %v1060
        %v3217 = vunpack.c.l.b16 %v1061
        %v3218 = vunpack.c.h.b16 %v1061
        %v3219 = vunpack.c.l.b16 %v1062
        %v3220 = vunpack.c.h.b16 %v1062
        %v3221 = vunpack.c.l.b16 %v1063
        %v3222 = vunpack.c.h.b16 %v1063
        %v3223 = vunpack.c.l.b16 %v1064
        %v3224 = vunpack.c.h.b16 %v1064
        %v3225 = vunpack.c.l.b16 %v1065
        %v3226 = vunpack.c.h.b16 %v1065
        %v3227 = vunpack.c.l.b16 %v1066
        %v3228 = vunpack.c.h.b16 %v1066
        %v3229 = vunpack.c.l.b16 %v1067
        %v3230 = vunpack.c.h.b16 %v1067
        %v3231 = vunpack.c.l.b16 %v1068
        %v3232 = vunpack.c.h.b16 %v1068
        %v3233 = vunpack.c.l.b16 %v1069
        %v3234 = vunpack.c.h.b16 %v1069
        %v3235 = vunpack.c.l.b16 %v1070
        %v3236 = vunpack.c.h.b16 %v1070
        %v3237 = vunpack.c.l.b16 %v1071
        %v3238 = vunpack.c.h.b16 %v1071
        %v3239 = vunpack.c.l.b16 %v1072
        %v3240 = vunpack.c.h.b16 %v1072
        %v3241 = vunpack.c.l.b16 %v1073
        %v3242 = vunpack.c.h.b16 %v1073
        %v3243 = vunpack.c.l.b16 %v1074
        %v3244 = vunpack.c.h.b16 %v1074
        %v3245 = vunpack.c.l.b16 %v1075
        %v3246 = vunpack.c.h.b16 %v1075
        %v3247 = vunpack.c.l.b16 %v1076
        %v3248 = vunpack.c.h.b16 %v1076
        %v3249 = vunpack.c.l.b16 %v1077
        %v3250 = vunpack.c.h.b16 %v1077
        %v3251 = vunpack.c.l.b16 %v1078
        %v3252 = vunpack.c.h.b16 %v1078
        %v3253 = vunpack.c.l.b16 %v1079
        %v3254 = vunpack.c.h.b16 %v1079
        %v3255 = vunpack.c.l.b16 %v1080
        %v3256 = vunpack.c.h.b16 %v1080
        %v3257 = vunpack.c.l.b16 %v1081
        %v3258 = vunpack.c.h.b16 %v1081
        %v3259 = vunpack.c.l.b16 %v1082
        %v3260 = vunpack.c.h.b16 %v1082
        %v3261 = vunpack.c.l.b16 %v1083
        %v3262 = vunpack.c.h.b16 %v1083
        %v3263 = vunpack.c.l.b16 %v1084
        %v3264 = vunpack.c.h.b16 %v1084
        %v3265 = vunpack.c.l.b16 %v1085
        %v3266 = vunpack.c.h.b16 %v1085
        %v3267 = vunpack.c.l.b16 %v1086
        %v3268 = vunpack.c.h.b16 %v1086
        %v3269 = vunpack.c.l.b16 %v1087
        %v3270 = vunpack.c.h.b16 %v1087
        %v3271 = vunpack.c.l.b16 %v1088
        %v3272 = vunpack.c.h.b16 %v1088
        %v3273 = vunpack.c.l.b16 %v1089
        %v3274 = vunpack.c.h.b16 %v1089
        %v3275 = vunpack.c.l.b16 %v1090
        %v3276 = vunpack.c.h.b16 %v1090
        %v3277 = vunpack.c.l.b16 %v1091
        %v3278 = vunpack.c.h.b16 %v1091
        %v3279 = vunpack.c.l.b16 %v1092
        %v3280 = vunpack.c.h.b16 %v1092
        %v3281 = vunpack.c.l.b16 %v1093
        %v3282 = vunpack.c.h.b16 %v1093
        %v3283 = vunpack.c.l.b16 %v1094
        %v3284 = vunpack.c.h.b16 %v1094
        %v3285 = vunpack.c.l.b16 %v1095
        %v3286 = vunpack.c.h.b16 %v1095
        %v3287 = vunpack.c.l.b16 %v1096
        %v3288 = vunpack.c.h.b16 %v1096
        %v3289 = vunpack.c.l.b16 %v1097
        %v3290 = vunpack.c.h.b16 %v1097
        %v3291 = vunpack.c.l.b16 %v1098
        %v3292 = vunpack.c.h.b16 %v1098
        %v3293 = vunpack.c.l.b16 %v1099
        %v3294 = vunpack.c.h.b16 %v1099
        %v3295 = vunpack.c.l.b16 %v1100
        %v3296 = vunpack.c.h.b16 %v1100
        %v3297 = vunpack.c.l.b16 %v1101
        %v3298 = vunpack.c.h.b16 %v1101
        %v3299 = vunpack.c.l.b16 %v1102
        %v3300 = vunpack.c.h.b16 %v1102
        %v3301 = vunpack.c.l.b16 %v1103
        %v3302 = vunpack.c.h.b16 %v1103
        %v3303 = vunpack.c.l.b16 %v1104
        %v3304 = vunpack.c.h.b16 %v1104
        %v3305 = vunpack.c.l.b16 %v1105
        %v3306 = vunpack.c.h.b16 %v1105
        %v3307 = vunpack.c.l.b16 %v1106
        %v3308 = vunpack.c.h.b16 %v1106
        %v3309 = vunpack.c.l.b16 %v1107
        %v3310 = vunpack.c.h.b16 %v1107
        %v3311 = vunpack.c.l.b16 %v1108
        %v3312 = vunpack.c.h.b16 %v1108
        %v3313 = vunpack.c.l.b16 %v1109
        %v3314 = vunpack.c.h.b16 %v1109
        %v3315 = vunpack.c.l.b16 %v1110
        %v3316 = vunpack.c.h.b16 %v1110
        %v3317 = vunpack.c.l.b16 %v1111
        %v3318 = vunpack.c.h.b16 %v1111
        %v3319 = vunpack.c.l.b16 %v1112
        %v3320 = vunpack.c.h.b16 %v1112
        %v3321 = vunpack.c.l.b16 %v1113
        %v3322 = vunpack.c.h.b16 %v1113
        %v3323 = vunpack.c.l.b16 %v1114
        %v3324 = vunpack.c.h.b16 %v1114
        %v3325 = vunpack.c.l.b16 %v1115
        %v3326 = vunpack.c.h.b16 %v1115
        %v3327 = vunpack.c.l.b16 %v1116
        %v3328 = vunpack.c.h.b16 %v1116
        %v3329 = vunpack.c.l.b16 %v1117
        %v3330 = vunpack.c.h.b16 %v1117
        %v3331 = vunpack.c.l.b16 %v1118
        %v3332 = vunpack.c.h.b16 %v1118
        %v3333 = vunpack.c.l.b16 %v1119
        %v3334 = vunpack.c.h.b16 %v1119
        %v3335 = vunpack.c.l.b16 %v1120
        %v3336 = vunpack.c.h.b16 %v1120
        %v3337 = vunpack.c.l.b16 %v1121
        %v3338 = vunpack.c.h.b16 %v1121
        %v3339 = vunpack.c.l.b16 %v1122
        %v3340 = vunpack.c.h.b16 %v1122
        %v3341 = vunpack.c.l.b16 %v1123
        %v3342 = vunpack.c.h.b16 %v1123
        %v3343 = vunpack.c.l.b16 %v1124
        %v3344 = vunpack.c.h.b16 %v1124
        %v3345 = vunpack.c.l.b16 %v1125
        %v3346 = vunpack.c.h.b16 %v1125
        %v3347 = vunpack.c.l.b16 %v1126
        %v3348 = vunpack.c.h.b16 %v1126
        %v3349 = vunpack.c.l.b16 %v1127
        %v3350 = vunpack.c.h.b16 %v1127
        %v3351 = vunpack.c.l.b16 %v1128
        %v3352 = vunpack.c.h.b16 %v1128
        %v3353 = vunpack.c.l.b16 %v1129
        %v3354 = vunpack.c.h.b16 %v1129
        %v3355 = vunpack.c.l.b16 %v1130
        %v3356 = vunpack.c.h.b16 %v1130
        %v3357 = vunpack.c.l.b16 %v1131
        %v3358 = vunpack.c.h.b16 %v1131
        %v3359 = vunpack.c.l.b16 %v1132
        %v3360 = vunpack.c.h.b16 %v1132
        %v3361 = vunpack.c.l.b16 %v1133
        %v3362 = vunpack.c.h.b16 %v1133
        %v3363 = vunpack.c.l.b16 %v1134
        %v3364 = vunpack.c.h.b16 %v1134
        %v3365 = vunpack.c.l.b16 %v1135
        %v3366 = vunpack.c.h.b16 %v1135
        %v3367 = vunpack.c.l.b16 %v1136
        %v3368 = vunpack.c.h.b16 %v1136
        %v3369 = vunpack.c.l.b16 %v1137
        %v3370 = vunpack.c.h.b16 %v1137
        %v3371 = vunpack.c.l.b16 %v1138
        %v3372 = vunpack.c.h.b16 %v1138
        %v3373 = vunpack.c.l.b16 %v1139
        %v3374 = vunpack.c.h.b16 %v1139
        %v3375 = vunpack.c.l.b16 %v1140
        %v3376 = vunpack.c.h.b16 %v1140
        %v3377 = vunpack.c.l.b16 %v1141
        %v3378 = vunpack.c.h.b16 %v1141
        %v3379 = vunpack.c.l.b16 %v1142
        %v3380 = vunpack.c.h.b16 %v1142
        %v3381 = vunpack.c.l.b16 %v1143
        %v3382 = vunpack.c.h.b16 %v1143
        %v3383 = vunpack.c.l.b16 %v1144
        %v3384 = vunpack.c.h.b16 %v1144
        %v3385 = vunpack.c.l.b16 %v1145
        %v3386 = vunpack.c.h.b16 %v1145
        %v3387 = vunpack.c.l.b16 %v1146
        %v3388 = vunpack.c.h.b16 %v1146
        %v3389 = vunpack.c.l.b16 %v1147
        %v3390 = vunpack.c.h.b16 %v1147
        %v3391 = vunpack.c.l.b16 %v1148
        %v3392 = vunpack.c.h.b16 %v1148
        %v3393 = vunpack.c.l.b16 %v1149
        %v3394 = vunpack.c.h.b16 %v1149
        %v3395 = vunpack.c.l.b16 %v1150
        %v3396 = vunpack.c.h.b16 %v1150
        %v3397 = vunpack.c.l.b16 %v1151
        %v3398 = vunpack.c.h.b16 %v1151
        %v3399 = vunpack.c.l.b16 %v1152
        %v3400 = vunpack.c.h.b16 %v1152
        %v3401 = vunpack.c.l.b16 %v1153
        %v3402 = vunpack.c.h.b16 %v1153
        %v3403 = vunpack.c.l.b16 %v1154
        %v3404 = vunpack.c.h.b16 %v1154
        %v3405 = vunpack.c.l.b16 %v1155
        %v3406 = vunpack.c.h.b16 %v1155
        %v3407 = vunpack.c.l.b16 %v1156
        %v3408 = vunpack.c.h.b16 %v1156
        %v3409 = vunpack.c.l.b16 %v1157
        %v3410 = vunpack.c.h.b16 %v1157
        %v3411 = vunpack.c.l.b16 %v1158
        %v3412 = vunpack.c.h.b16 %v1158
        %v3413 = vunpack.c.l.b16 %v1159
        %v3414 = vunpack.c.h.b16 %v1159
        %v3415 = vunpack.c.l.b16 %v1160
        %v3416 = vunpack.c.h.b16 %v1160
        %v3417 = vunpack.c.l.b16 %v1161
        %v3418 = vunpack.c.h.b16 %v1161
        %v3419 = vunpack.c.l.b16 %v1162
        %v3420 = vunpack.c.h.b16 %v1162
        %v3421 = vunpack.c.l.b16 %v1163
        %v3422 = vunpack.c.h.b16 %v1163
        %v3423 = vunpack.c.l.b16 %v1164
        %v3424 = vunpack.c.h.b16 %v1164
        %v3425 = vunpack.c.l.b16 %v1165
        %v3426 = vunpack.c.h.b16 %v1165
        %v3427 = vunpack.c.l.b16 %v1166
        %v3428 = vunpack.c.h.b16 %v1166
        %v3429 = vunpack.c.l.b16 %v1167
        %v3430 = vunpack.c.h.b16 %v1167
        %v3431 = vunpack.c.l.b16 %v1168
        %v3432 = vunpack.c.h.b16 %v1168
        %v3433 = vunpack.c.l.b16 %v1169
        %v3434 = vunpack.c.h.b16 %v1169
        %v3435 = vunpack.c.l.b16 %v1170
        %v3436 = vunpack.c.h.b16 %v1170
        %v3437 = vunpack.c.l.b16 %v1171
        %v3438 = vunpack.c.h.b16 %v1171
        %v3439 = vunpack.c.l.b16 %v1172
        %v3440 = vunpack.c.h.b16 %v1172
        %v3441 = vunpack.c.l.b16 %v1173
        %v3442 = vunpack.c.h.b16 %v1173
        %v3443 = vunpack.c.l.b16 %v1174
        %v3444 = vunpack.c.h.b16 %v1174
        %v3445 = vunpack.c.l.b16 %v1175
        %v3446 = vunpack.c.h.b16 %v1175
        %v3447 = vunpack.c.l.b16 %v1176
        %v3448 = vunpack.c.h.b16 %v1176
        %v3449 = vunpack.c.l.b16 %v1177
        %v3450 = vunpack.c.h.b16 %v1177
        %v3451 = vunpack.c.l.b16 %v1178
        %v3452 = vunpack.c.h.b16 %v1178
        %v3453 = vunpack.c.l.b16 %v1179
        %v3454 = vunpack.c.h.b16 %v1179
        %v3455 = vunpack.c.l.b16 %v1180
        %v3456 = vunpack.c.h.b16 %v1180
        %v3457 = vunpack.c.l.b16 %v1181
        %v3458 = vunpack.c.h.b16 %v1181
        %v3459 = vunpack.c.l.b16 %v1182
        %v3460 = vunpack.c.h.b16 %v1182
        %v3461 = vunpack.c.l.b16 %v1183
        %v3462 = vunpack.c.h.b16 %v1183
        %v3463 = vunpack.c.l.b16 %v1184
        %v3464 = vunpack.c.h.b16 %v1184
        %v3465 = vunpack.c.l.b16 %v1185
        %v3466 = vunpack.c.h.b16 %v1185
        %v3467 = vunpack.c.l.b16 %v1186
        %v3468 = vunpack.c.h.b16 %v1186
        %v3469 = vunpack.c.l.b16 %v1187
        %v3470 = vunpack.c.h.b16 %v1187
        %v3471 = vunpack.c.l.b16 %v1188
        %v3472 = vunpack.c.h.b16 %v1188
        %v3473 = vunpack.c.l.b16 %v1189
        %v3474 = vunpack.c.h.b16 %v1189
        %v3475 = vunpack.c.l.b16 %v1190
        %v3476 = vunpack.c.h.b16 %v1190
        %v3477 = vunpack.c.l.b16 %v1191
        %v3478 = vunpack.c.h.b16 %v1191
        %v3479 = vunpack.c.l.b16 %v1192
        %v3480 = vunpack.c.h.b16 %v1192
        %v3481 = vunpack.c.l.b16 %v1193
        %v3482 = vunpack.c.h.b16 %v1193
        %v3483 = vunpack.c.l.b16 %v1194
        %v3484 = vunpack.c.h.b16 %v1194
        %v3485 = vunpack.c.l.b16 %v1195
        %v3486 = vunpack.c.h.b16 %v1195
        %v3487 = vunpack.c.l.b16 %v1196
        %v3488 = vunpack.c.h.b16 %v1196
        %v3489 = vunpack.c.l.b16 %v1197
        %v3490 = vunpack.c.h.b16 %v1197
        %v3491 = vunpack.c.l.b16 %v1198
        %v3492 = vunpack.c.h.b16 %v1198
        %v3493 = vunpack.c.l.b16 %v1199
        %v3494 = vunpack.c.h.b16 %v1199
        %v3495 = vunpack.c.l.b16 %v1200
        %v3496 = vunpack.c.h.b16 %v1200
        %v3497 = vunpack.c.l.b16 %v1201
        %v3498 = vunpack.c.h.b16 %v1201
        %v3499 = vunpack.c.l.b16 %v1202
        %v3500 = vunpack.c.h.b16 %v1202
        %v3501 = vunpack.c.l.b16 %v1203
        %v3502 = vunpack.c.h.b16 %v1203
        %v3503 = vunpack.c.l.b16 %v1204
        %v3504 = vunpack.c.h.b16 %v1204
        %v3505 = vunpack.c.l.b16 %v1205
        %v3506 = vunpack.c.h.b16 %v1205
        %v3507 = vunpack.c.l.b16 %v1206
        %v3508 = vunpack.c.h.b16 %v1206
        %v3509 = vunpack.c.l.b16 %v1207
        %v3510 = vunpack.c.h.b16 %v1207
        %v3511 = vunpack.c.l.b16 %v1208
        %v3512 = vunpack.c.h.b16 %v1208
        %v3513 = vunpack.c.l.b16 %v1209
        %v3514 = vunpack.c.h.b16 %v1209
        %v3515 = vunpack.c.l.b16 %v1210
        %v3516 = vunpack.c.h.b16 %v1210
        %v3517 = vunpack.c.l.b16 %v1211
        %v3518 = vunpack.c.h.b16 %v1211
        %v3519 = vunpack.c.l.b16 %v1212
        %v3520 = vunpack.c.h.b16 %v1212
        %v3521 = vunpack.c.l.b16 %v1213
        %v3522 = vunpack.c.h.b16 %v1213
        %v3523 = vunpack.c.l.b16 %v1214
        %v3524 = vunpack.c.h.b16 %v1214
        %v3525 = vunpack.c.l.b16 %v1215
        %v3526 = vunpack.c.h.b16 %v1215
        %v3527 = vunpack.c.l.b16 %v1216
        %v3528 = vunpack.c.h.b16 %v1216
        %v3529 = vunpack.c.l.b16 %v1217
        %v3530 = vunpack.c.h.b16 %v1217
        %v3531 = vunpack.c.l.b16 %v1218
        %v3532 = vunpack.c.h.b16 %v1218
        %v3533 = vunpack.c.l.b16 %v1219
        %v3534 = vunpack.c.h.b16 %v1219
        %v3535 = vunpack.c.l.b16 %v1220
        %v3536 = vunpack.c.h.b16 %v1220
        %v3537 = vunpack.c.l.b16 %v1221
        %v3538 = vunpack.c.h.b16 %v1221
        %v3539 = vunpack.c.l.b16 %v1222
        %v3540 = vunpack.c.h.b16 %v1222
        %v3541 = vunpack.c.l.b16 %v1223
        %v3542 = vunpack.c.h.b16 %v1223
        %v3543 = vunpack.c.l.b16 %v1224
        %v3544 = vunpack.c.h.b16 %v1224
        %v3545 = vunpack.c.l.b16 %v1225
        %v3546 = vunpack.c.h.b16 %v1225
        %v3547 = vunpack.c.l.b16 %v1226
        %v3548 = vunpack.c.h.b16 %v1226
        %v3549 = vunpack.c.l.b16 %v1227
        %v3550 = vunpack.c.h.b16 %v1227
        %v3551 = vunpack.c.l.b16 %v1228
        %v3552 = vunpack.c.h.b16 %v1228
        %v3553 = vunpack.c.l.b16 %v1229
        %v3554 = vunpack.c.h.b16 %v1229
        %v3555 = vunpack.c.l.b16 %v1230
        %v3556 = vunpack.c.h.b16 %v1230
        %v3557 = vunpack.c.l.b16 %v1231
        %v3558 = vunpack.c.h.b16 %v1231
        %v3559 = vunpack.c.l.b16 %v1232
        %v3560 = vunpack.c.h.b16 %v1232
        %v3561 = vunpack.c.l.b16 %v1233
        %v3562 = vunpack.c.h.b16 %v1233
        %v3563 = vunpack.c.l.b16 %v1234
        %v3564 = vunpack.c.h.b16 %v1234
        %v3565 = vunpack.c.l.b16 %v1235
        %v3566 = vunpack.c.h.b16 %v1235
        %v3567 = vunpack.c.l.b16 %v1236
        %v3568 = vunpack.c.h.b16 %v1236
        %v3569 = vunpack.c.l.b16 %v1237
        %v3570 = vunpack.c.h.b16 %v1237
        %v3571 = vunpack.c.l.b16 %v1238
        %v3572 = vunpack.c.h.b16 %v1238
        %v3573 = vunpack.c.l.b16 %v1239
        %v3574 = vunpack.c.h.b16 %v1239
        %v3575 = vunpack.c.l.b16 %v1240
        %v3576 = vunpack.c.h.b16 %v1240
        %v3577 = vunpack.c.l.b16 %v1241
        %v3578 = vunpack.c.h.b16 %v1241
        %v3579 = vunpack.c.l.b16 %v1242
        %v3580 = vunpack.c.h.b16 %v1242
        %v3581 = vunpack.c.l.b16 %v1243
        %v3582 = vunpack.c.h.b16 %v1243
        %v3583 = vunpack.c.l.b16 %v1244
        %v3584 = vunpack.c.h.b16 %v1244
        %v3585 = vunpack.c.l.b16 %v1245
        %v3586 = vunpack.c.h.b16 %v1245
        %v3587 = vunpack.c.l.b16 %v1246
        %v3588 = vunpack.c.h.b16 %v1246
        %v3589 = vunpack.c.l.b16 %v1247
        %v3590 = vunpack.c.h.b16 %v1247
        %v3591 = vunpack.c.l.b16 %v1248
        %v3592 = vunpack.c.h.b16 %v1248
        %v3593 = vunpack.c.l.b16 %v1249
        %v3594 = vunpack.c.h.b16 %v1249
        %v3595 = vunpack.c.l.b16 %v1250
        %v3596 = vunpack.c.h.b16 %v1250
        %v3597 = vunpack.c.l.b16 %v1251
        %v3598 = vunpack.c.h.b16 %v1251
        %v3599 = vunpack.c.l.b16 %v1252
        %v3600 = vunpack.c.h.b16 %v1252
        %v3601 = vunpack.c.l.b16 %v1253
        %v3602 = vunpack.c.h.b16 %v1253
        %v3603 = vunpack.c.l.b16 %v1254
        %v3604 = vunpack.c.h.b16 %v1254
        %v3605 = vunpack.c.l.b16 %v1255
        %v3606 = vunpack.c.h.b16 %v1255
        %v3607 = vunpack.c.l.b16 %v1256
        %v3608 = vunpack.c.h.b16 %v1256
        %v3609 = vunpack.c.l.b16 %v1257
        %v3610 = vunpack.c.h.b16 %v1257
        %v3611 = vunpack.c.l.b16 %v1258
        %v3612 = vunpack.c.h.b16 %v1258
        %v3613 = vunpack.c.l.b16 %v1259
        %v3614 = vunpack.c.h.b16 %v1259
        %v3615 = vunpack.c.l.b16 %v1260
        %v3616 = vunpack.c.h.b16 %v1260
        %v3617 = vunpack.c.l.b16 %v1261
        %v3618 = vunpack.c.h.b16 %v1261
        %v3619 = vunpack.c.l.b16 %v1262
        %v3620 = vunpack.c.h.b16 %v1262
        %v3621 = vunpack.c.l.b16 %v1263
        %v3622 = vunpack.c.h.b16 %v1263
        %v3623 = vunpack.c.l.b16 %v1264
        %v3624 = vunpack.c.h.b16 %v1264
        %v3625 = vunpack.c.l.b16 %v1265
        %v3626 = vunpack.c.h.b16 %v1265
        %v3627 = vunpack.c.l.b16 %v1266
        %v3628 = vunpack.c.h.b16 %v1266
        %v3629 = vunpack.c.l.b16 %v1267
        %v3630 = vunpack.c.h.b16 %v1267
        %v3631 = vunpack.c.l.b16 %v1268
        %v3632 = vunpack.c.h.b16 %v1268
        %v3633 = vunpack.c.l.b16 %v1269
        %v3634 = vunpack.c.h.b16 %v1269
        %v3635 = vunpack.c.l.b16 %v1270
        %v3636 = vunpack.c.h.b16 %v1270
        %v3637 = vunpack.c.l.b16 %v1271
        %v3638 = vunpack.c.h.b16 %v1271
        %v3639 = vunpack.c.l.b16 %v1272
        %v3640 = vunpack.c.h.b16 %v1272
        %v3641 = vunpack.c.l.b16 %v1273
        %v3642 = vunpack.c.h.b16 %v1273
        %v3643 = vunpack.c.l.b16 %v1274
        %v3644 = vunpack.c.h.b16 %v1274
        %v3645 = vunpack.c.l.b16 %v1275
        %v3646 = vunpack.c.h.b16 %v1275
        %v3647 = vunpack.c.l.b16 %v1276
        %v3648 = vunpack.c.h.b16 %v1276
        %v3649 = vunpack.c.l.b16 %v1277
        %v3650 = vunpack.c.h.b16 %v1277
        %v3651 = vunpack.c.l.b16 %v1278
        %v3652 = vunpack.c.h.b16 %v1278
        %v3653 = vunpack.c.l.b16 %v1279
        %v3654 = vunpack.c.h.b16 %v1279
        %v3655 = vunpack.c.l.b16 %v1280
        %v3656 = vunpack.c.h.b16 %v1280
        %v3657 = vunpack.c.l.b16 %v1281
        %v3658 = vunpack.c.h.b16 %v1281
        %v3659 = vunpack.c.l.b16 %v1282
        %v3660 = vunpack.c.h.b16 %v1282
        %v3661 = vunpack.c.l.b16 %v1283
        %v3662 = vunpack.c.h.b16 %v1283
        %v3663 = vunpack.c.l.b16 %v1284
        %v3664 = vunpack.c.h.b16 %v1284
        %v3665 = vunpack.c.l.b16 %v1285
        %v3666 = vunpack.c.h.b16 %v1285
        %v3667 = vunpack.c.l.b16 %v1286
        %v3668 = vunpack.c.h.b16 %v1286
        %v3669 = vunpack.c.l.b16 %v1287
        %v3670 = vunpack.c.h.b16 %v1287
        %v3671 = vunpack.c.l.b16 %v1288
        %v3672 = vunpack.c.h.b16 %v1288
        %v3673 = vunpack.c.l.b16 %v1289
        %v3674 = vunpack.c.h.b16 %v1289
        %v3675 = vunpack.c.l.b16 %v1290
        %v3676 = vunpack.c.h.b16 %v1290
        %v3677 = vunpack.c.l.b16 %v1291
        %v3678 = vunpack.c.h.b16 %v1291
        %v3679 = vunpack.c.l.b16 %v1292
        %v3680 = vunpack.c.h.b16 %v1292
        %v3681 = vunpack.c.l.b16 %v1293
        %v3682 = vunpack.c.h.b16 %v1293
        %v3683 = vunpack.c.l.b16 %v1294
        %v3684 = vunpack.c.h.b16 %v1294
        %v3685 = vunpack.c.l.b16 %v1295
        %v3686 = vunpack.c.h.b16 %v1295
        %v3687 = vunpack.c.l.b16 %v1296
        %v3688 = vunpack.c.h.b16 %v1296
        %v3689 = vunpack.c.l.b16 %v1297
        %v3690 = vunpack.c.h.b16 %v1297
        %v3691 = vunpack.c.l.b16 %v1298
        %v3692 = vunpack.c.h.b16 %v1298
        %v3693 = vunpack.c.l.b16 %v1299
        %v3694 = vunpack.c.h.b16 %v1299
        %v3695 = vunpack.c.l.b16 %v1300
        %v3696 = vunpack.c.h.b16 %v1300
        %v3697 = vunpack.c.l.b16 %v1301
        %v3698 = vunpack.c.h.b16 %v1301
        %v3699 = vunpack.c.l.b16 %v1302
        %v3700 = vunpack.c.h.b16 %v1302
        %v3701 = vunpack.c.l.b16 %v1303
        %v3702 = vunpack.c.h.b16 %v1303
        %v3703 = vunpack.c.l.b16 %v1304
        %v3704 = vunpack.c.h.b16 %v1304
        %v3705 = vunpack.c.l.b16 %v1305
        %v3706 = vunpack.c.h.b16 %v1305
        %v3707 = vunpack.c.l.b16 %v1306
        %v3708 = vunpack.c.h.b16 %v1306
        %v3709 = vunpack.c.l.b16 %v1307
        %v3710 = vunpack.c.h.b16 %v1307
        %v3711 = vunpack.c.l.b16 %v1308
        %v3712 = vunpack.c.h.b16 %v1308
        %v3713 = vunpack.c.l.b16 %v1309
        %v3714 = vunpack.c.h.b16 %v1309
        %v3715 = vunpack.c.l.b16 %v1310
        %v3716 = vunpack.c.h.b16 %v1310
        %v3717 = vunpack.c.l.b16 %v1311
        %v3718 = vunpack.c.h.b16 %v1311
        %v3719 = vunpack.c.l.b16 %v1312
        %v3720 = vunpack.c.h.b16 %v1312
        %v3721 = vunpack.c.l.b16 %v1313
        %v3722 = vunpack.c.h.b16 %v1313
        %v3723 = vunpack.c.l.b16 %v1314
        %v3724 = vunpack.c.h.b16 %v1314
        %v3725 = vunpack.c.l.b16 %v1315
        %v3726 = vunpack.c.h.b16 %v1315
        %v3727 = vunpack.c.l.b16 %v1316
        %v3728 = vunpack.c.h.b16 %v1316
        %v3729 = vunpack.c.l.b16 %v1317
        %v3730 = vunpack.c.h.b16 %v1317
        %v3731 = vunpack.c.l.b16 %v1318
        %v3732 = vunpack.c.h.b16 %v1318
        %v3733 = vunpack.c.l.b16 %v1319
        %v3734 = vunpack.c.h.b16 %v1319
        %v3735 = vunpack.c.l.b16 %v1320
        %v3736 = vunpack.c.h.b16 %v1320
        %v3737 = vunpack.c.l.b16 %v1321
        %v3738 = vunpack.c.h.b16 %v1321
        %v3739 = vunpack.c.l.b16 %v1322
        %v3740 = vunpack.c.h.b16 %v1322
        %v3741 = vunpack.c.l.b16 %v1323
        %v3742 = vunpack.c.h.b16 %v1323
        %v3743 = vunpack.c.l.b16 %v1324
        %v3744 = vunpack.c.h.b16 %v1324
        %v3745 = vunpack.c.l.b16 %v1325
        %v3746 = vunpack.c.h.b16 %v1325
        %v3747 = vunpack.c.l.b16 %v1326
        %v3748 = vunpack.c.h.b16 %v1326
        %v3749 = vunpack.c.l.b16 %v1327
        %v3750 = vunpack.c.h.b16 %v1327
        %v3751 = vunpack.c.l.b16 %v1328
        %v3752 = vunpack.c.h.b16 %v1328
        %v3753 = vunpack.c.l.b16 %v1329
        %v3754 = vunpack.c.h.b16 %v1329
        %v3755 = vunpack.c.l.b16 %v1330
        %v3756 = vunpack.c.h.b16 %v1330
        %v3757 = vunpack.c.l.b16 %v1331
        %v3758 = vunpack.c.h.b16 %v1331
        %v3759 = vunpack.c.l.b16 %v1332
        %v3760 = vunpack.c.h.b16 %v1332
        %v3761 = vunpack.c.l.b16 %v1333
        %v3762 = vunpack.c.h.b16 %v1333
        %v3763 = vunpack.c.l.b16 %v1334
        %v3764 = vunpack.c.h.b16 %v1334
        %v3765 = vunpack.c.l.b16 %v1335
        %v3766 = vunpack.c.h.b16 %v1335
        %v3767 = vunpack.c.l.b16 %v1336
        %v3768 = vunpack.c.h.b16 %v1336
        %v3769 = vunpack.c.l.b16 %v1337
        %v3770 = vunpack.c.h.b16 %v1337
        %v3771 = vunpack.c.l.b16 %v1338
        %v3772 = vunpack.c.h.b16 %v1338
        %v3773 = vunpack.c.l.b16 %v1339
        %v3774 = vunpack.c.h.b16 %v1339
        %v3775 = vunpack.c.l.b16 %v1340
        %v3776 = vunpack.c.h.b16 %v1340
        %v3777 = vunpack.c.l.b16 %v1341
        %v3778 = vunpack.c.h.b16 %v1341
        %v3779 = vunpack.c.l.b16 %v1342
        %v3780 = vunpack.c.h.b16 %v1342
        %v3781 = vunpack.c.l.b16 %v1343
        %v3782 = vunpack.c.h.b16 %v1343
        %v3783 = vunpack.c.l.b16 %v1344
        %v3784 = vunpack.c.h.b16 %v1344
        %v3785 = vunpack.c.l.b16 %v1345
        %v3786 = vunpack.c.h.b16 %v1345
        %v3787 = vunpack.c.l.b16 %v1346
        %v3788 = vunpack.c.h.b16 %v1346
        %v3789 = vunpack.c.l.b16 %v1347
        %v3790 = vunpack.c.h.b16 %v1347
        %v3791 = vunpack.c.l.b16 %v1348
        %v3792 = vunpack.c.h.b16 %v1348
        %v3793 = vunpack.c.l.b16 %v1349
        %v3794 = vunpack.c.h.b16 %v1349
        %v3795 = vunpack.c.l.b16 %v1350
        %v3796 = vunpack.c.h.b16 %v1350
        %v3797 = vunpack.c.l.b16 %v1351
        %v3798 = vunpack.c.h.b16 %v1351
        %v3799 = vunpack.c.l.b16 %v1352
        %v3800 = vunpack.c.h.b16 %v1352
        %v3801 = vunpack.c.l.b16 %v1353
        %v3802 = vunpack.c.h.b16 %v1353
        %v3803 = vunpack.c.l.b16 %v1354
        %v3804 = vunpack.c.h.b16 %v1354
        %v3805 = vunpack.c.l.b16 %v1355
        %v3806 = vunpack.c.h.b16 %v1355
        %v3807 = vunpack.c.l.b16 %v1356
        %v3808 = vunpack.c.h.b16 %v1356
        %v3809 = vunpack.c.l.b16 %v1357
        %v3810 = vunpack.c.h.b16 %v1357
        %v3811 = vunpack.c.l.b16 %v1358
        %v3812 = vunpack.c.h.b16 %v1358
        %v3813 = vunpack.c.l.b16 %v1359
        %v3814 = vunpack.c.h.b16 %v1359
        %v3815 = vunpack.c.l.b16 %v1360
        %v3816 = vunpack.c.h.b16 %v1360
        %v3817 = vunpack.c.l.b16 %v1361
        %v3818 = vunpack.c.h.b16 %v1361
        %v3819 = vunpack.c.l.b16 %v1362
        %v3820 = vunpack.c.h.b16 %v1362
        %v3821 = vunpack.c.l.b16 %v1363
        %v3822 = vunpack.c.h.b16 %v1363
        %v3823 = vunpack.c.l.b16 %v1364
        %v3824 = vunpack.c.h.b16 %v1364
        %v3825 = vunpack.c.l.b16 %v1365
        %v3826 = vunpack.c.h.b16 %v1365
        %v3827 = vunpack.c.l.b16 %v1366
        %v3828 = vunpack.c.h.b16 %v1366
        %v3829 = vunpack.c.l.b16 %v1367
        %v3830 = vunpack.c.h.b16 %v1367
        %v3831 = vunpack.c.l.b16 %v1368
        %v3832 = vunpack.c.h.b16 %v1368
        %v3833 = vunpack.c.l.b16 %v1369
        %v3834 = vunpack.c.h.b16 %v1369
        %v3835 = vunpack.c.l.b16 %v1370
        %v3836 = vunpack.c.h.b16 %v1370
        %v3837 = vunpack.c.l.b16 %v1371
        %v3838 = vunpack.c.h.b16 %v1371
        %v3839 = vunpack.c.l.b16 %v1372
        %v3840 = vunpack.c.h.b16 %v1372
        %v3841 = vunpack.c.l.b16 %v1373
        %v3842 = vunpack.c.h.b16 %v1373
        %v3843 = vunpack.c.l.b16 %v1374
        %v3844 = vunpack.c.h.b16 %v1374
        %v3845 = vunpack.c.l.b16 %v1375
        %v3846 = vunpack.c.h.b16 %v1375
        %v3847 = vunpack.c.l.b16 %v1376
        %v3848 = vunpack.c.h.b16 %v1376
        %v3849 = vunpack.c.l.b16 %v1377
        %v3850 = vunpack.c.h.b16 %v1377
        %v3851 = vunpack.c.l.b16 %v1378
        %v3852 = vunpack.c.h.b16 %v1378
        %v3853 = vunpack.c.l.b16 %v1379
        %v3854 = vunpack.c.h.b16 %v1379
        %v3855 = vunpack.c.l.b16 %v1380
        %v3856 = vunpack.c.h.b16 %v1380
        %v3857 = vunpack.c.l.b16 %v1381
        %v3858 = vunpack.c.h.b16 %v1381
        %v3859 = vunpack.c.l.b16 %v1382
        %v3860 = vunpack.c.h.b16 %v1382
        %v3861 = vunpack.c.l.b16 %v1383
        %v3862 = vunpack.c.h.b16 %v1383
        %v3863 = vunpack.c.l.b16 %v1384
        %v3864 = vunpack.c.h.b16 %v1384
        %v3865 = vunpack.c.l.b16 %v1385
        %v3866 = vunpack.c.h.b16 %v1385
        %v3867 = vunpack.c.l.b16 %v1386
        %v3868 = vunpack.c.h.b16 %v1386
        %v3869 = vunpack.c.l.b16 %v1387
        %v3870 = vunpack.c.h.b16 %v1387
        %v3871 = vunpack.c.l.b16 %v1388
        %v3872 = vunpack.c.h.b16 %v1388
        %v3873 = vunpack.c.l.b16 %v1389
        %v3874 = vunpack.c.h.b16 %v1389
        %v3875 = vunpack.c.l.b16 %v1390
        %v3876 = vunpack.c.h.b16 %v1390
        %v3877 = vunpack.c.l.b16 %v1391
        %v3878 = vunpack.c.h.b16 %v1391
        %v3879 = vunpack.c.l.b16 %v1392
        %v3880 = vunpack.c.h.b16 %v1392
        %v3881 = vunpack.c.l.b16 %v1393
        %v3882 = vunpack.c.h.b16 %v1393
        %v3883 = vunpack.c.l.b16 %v1394
        %v3884 = vunpack.c.h.b16 %v1394
        %v3885 = vunpack.c.l.b16 %v1395
        %v3886 = vunpack.c.h.b16 %v1395
        %v3887 = vunpack.c.l.b16 %v1396
        %v3888 = vunpack.c.h.b16 %v1396
        %v3889 = vunpack.c.l.b16 %v1397
        %v3890 = vunpack.c.h.b16 %v1397
        %v3891 = vunpack.c.l.b16 %v1398
        %v3892 = vunpack.c.h.b16 %v1398
        %v3893 = vunpack.c.l.b16 %v1399
        %v3894 = vunpack.c.h.b16 %v1399
        %v3895 = vunpack.c.l.b16 %v1400
        %v3896 = vunpack.c.h.b16 %v1400
        %v3897 = vunpack.c.l.b16 %v1401
        %v3898 = vunpack.c.h.b16 %v1401
        %v3899 = vunpack.c.l.b16 %v1402
        %v3900 = vunpack.c.h.b16 %v1402
        %v3901 = vunpack.c.l.b16 %v1403
        %v3902 = vunpack.c.h.b16 %v1403
        %v3903 = vunpack.c.l.b16 %v1404
        %v3904 = vunpack.c.h.b16 %v1404
        %v3905 = vunpack.c.l.b16 %v1405
        %v3906 = vunpack.c.h.b16 %v1405
        %v3907 = vunpack.c.l.b16 %v1406
        %v3908 = vunpack.c.h.b16 %v1406
        %v3909 = vunpack.c.l.b16 %v1407
        %v3910 = vunpack.c.h.b16 %v1407
        %v3911 = vunpack.c.l.b16 %v1408
        %v3912 = vunpack.c.h.b16 %v1408
        %v3913 = vunpack.c.l.b16 %v1409
        %v3914 = vunpack.c.h.b16 %v1409
        %v3915 = vunpack.c.l.b16 %v1410
        %v3916 = vunpack.c.h.b16 %v1410
        %v3917 = vunpack.c.l.b16 %v1411
        %v3918 = vunpack.c.h.b16 %v1411
        %v3919 = vunpack.c.l.b16 %v1412
        %v3920 = vunpack.c.h.b16 %v1412
        %v3921 = vunpack.c.l.b16 %v1413
        %v3922 = vunpack.c.h.b16 %v1413
        %v3923 = vunpack.c.l.b16 %v1414
        %v3924 = vunpack.c.h.b16 %v1414
        %v3925 = vunpack.c.l.b16 %v1415
        %v3926 = vunpack.c.h.b16 %v1415
        %v3927 = vunpack.c.l.b16 %v1416
        %v3928 = vunpack.c.h.b16 %v1416
        %v3929 = vunpack.c.l.b16 %v1417
        %v3930 = vunpack.c.h.b16 %v1417
        %v3931 = vunpack.c.l.b16 %v1418
        %v3932 = vunpack.c.h.b16 %v1418
        %v3933 = vunpack.c.l.b16 %v1419
        %v3934 = vunpack.c.h.b16 %v1419
        %v3935 = vunpack.c.l.b16 %v1420
        %v3936 = vunpack.c.h.b16 %v1420
        %v3937 = vunpack.c.l.b16 %v1421
        %v3938 = vunpack.c.h.b16 %v1421
        %v3939 = vunpack.c.l.b16 %v1422
        %v3940 = vunpack.c.h.b16 %v1422
        %v3941 = vunpack.c.l.b16 %v1423
        %v3942 = vunpack.c.h.b16 %v1423
        %v3943 = vunpack.c.l.b16 %v1424
        %v3944 = vunpack.c.h.b16 %v1424
        %v3945 = vunpack.c.l.b16 %v1425
        %v3946 = vunpack.c.h.b16 %v1425
        %v3947 = vunpack.c.l.b16 %v1426
        %v3948 = vunpack.c.h.b16 %v1426
        %v3949 = vunpack.c.l.b16 %v1427
        %v3950 = vunpack.c.h.b16 %v1427
        %v3951 = vunpack.c.l.b16 %v1428
        %v3952 = vunpack.c.h.b16 %v1428
        %v3953 = vpack.c.b16 %v2363, %v2353
        %v3954 = vpack.c.b16 %v2364, %v2354
        %v3955 = vpack.c.b16 %v2365, %v2355
        %v3956 = vpack.c.b16 %v2366, %v2356
        %v3957 = vpack.c.b16 %v2367, %v2357
        %v3958 = vpack.c.b16 %v2368, %v2358
        %v3959 = vpack.c.b16 %v2369, %v2359
        %v3960 = vpack.c.b16 %v2370, %v2360
        %v3961 = vpack.c.b16 %v2371, %v2361
        %v3962 = vpack.c.b16 %v2372, %v2362
        %v3963 = vpack.c.b16 %v2383, %v2373
        %v3964 = vpack.c.b16 %v2384, %v2374
        %v3965 = vpack.c.b16 %v2385, %v2375
        %v3966 = vpack.c.b16 %v2386, %v2376
        %v3967 = vpack.c.b16 %v2387, %v2377
        %v3968 = vpack.c.b16 %v2388, %v2378
        %v3969 = vpack.c.b16 %v2389, %v2379
        %v3970 = vpack.c.b16 %v2390, %v2380
        %v3971 = vpack.c.b16 %v2391, %v2381
        %v3972 = vpack.c.b16 %v2392, %v2382
        %v3973 = vpack.c.b16 %v2403, %v2393
        %v3974 = vpack.c.b16 %v2404, %v2394
        %v3975 = vpack.c.b16 %v2405, %v2395
        %v3976 = vpack.c.b16 %v2406, %v2396
        %v3977 = vpack.c.b16 %v2407, %v2397
        %v3978 = vpack.c.b16 %v2408, %v2398
        %v3979 = vpack.c.b16 %v2409, %v2399
        %v3980 = vpack.c.b16 %v2410, %v2400
        %v3981 = vpack.c.b16 %v2411, %v2401
        %v3982 = vpack.c.b16 %v2412, %v2402
        %v3983 = vpack.c.b16 %v2423, %v2413
        %v3984 = vpack.c.b16 %v2424, %v2414
        %v3985 = vpack.c.b16 %v2425, %v2415
        %v3986 = vpack.c.b16 %v2426, %v2416
        %v3987 = vpack.c.b16 %v2427, %v2417
        %v3988 = vpack.c.b16 %v2428, %v2418
        %v3989 = vpack.c.b16 %v2429, %v2419
        %v3990 = vpack.c.b16 %v2430, %v2420
        %v3991 = vpack.c.b16 %v2431, %v2421
        %v3992 = vpack.c.b16 %v2432, %v2422
        %v3993 = vpack.c.b16 %v2443, %v2433
        %v3994 = vpack.c.b16 %v2444, %v2434
        %v3995 = vpack.c.b16 %v2445, %v2435
        %v3996 = vpack.c.b16 %v2446, %v2436
        %v3997 = vpack.c.b16 %v2447, %v2437
        %v3998 = vpack.c.b16 %v2448, %v2438
        %v3999 = vpack.c.b16 %v2449, %v2439
        %v4000 = vpack.c.b16 %v2450, %v2440
        %v4001 = vpack.c.b16 %v2451, %v2441
        %v4002 = vpack.c.b16 %v2452, %v2442
        %v4003 = vpack.c.b16 %v2463, %v2453
        %v4004 = vpack.c.b16 %v2464, %v2454
        %v4005 = vpack.c.b16 %v2465, %v2455
        %v4006 = vpack.c.b16 %v2466, %v2456
        %v4007 = vpack.c.b16 %v2467, %v2457
        %v4008 = vpack.c.b16 %v2468, %v2458
        %v4009 = vpack.c.b16 %v2469, %v2459
        %v4010 = vpack.c.b16 %v2470, %v2460
        %v4011 = vpack.c.b16 %v2471, %v2461
        %v4012 = vpack.c.b16 %v2472, %v2462
        %v4013 = vpack.c.b16 %v2483, %v2473
        %v4014 = vpack.c.b16 %v2484, %v2474
        %v4015 = vpack.c.b16 %v2485, %v2475
        %v4016 = vpack.c.b16 %v2486, %v2476
        %v4017 = vpack.c.b16 %v2487, %v2477
        %v4018 = vpack.c.b16 %v2488, %v2478
        %v4019 = vpack.c.b16 %v2489, %v2479
        %v4020 = vpack.c.b16 %v2490, %v2480
        %v4021 = vpack.c.b16 %v2491, %v2481
        %v4022 = vpack.c.b16 %v2492, %v2482
        %v4023 = vpack.c.b16 %v2503, %v2493
        %v4024 = vpack.c.b16 %v2504, %v2494
        %v4025 = vpack.c.b16 %v2505, %v2495
        %v4026 = vpack.c.b16 %v2506, %v2496
        %v4027 = vpack.c.b16 %v2507, %v2497
        %v4028 = vpack.c.b16 %v2508, %v2498
        %v4029 = vpack.c.b16 %v2509, %v2499
        %v4030 = vpack.c.b16 %v2510, %v2500
        %v4031 = vpack.c.b16 %v2511, %v2501
        %v4032 = vpack.c.b16 %v2512, %v2502
        %v4033 = vpack.c.b16 %v2523, %v2513
        %v4034 = vpack.c.b16 %v2524, %v2514
        %v4035 = vpack.c.b16 %v2525, %v2515
        %v4036 = vpack.c.b16 %v2526, %v2516
        %v4037 = vpack.c.b16 %v2527, %v2517
        %v4038 = vpack.c.b16 %v2528, %v2518
        %v4039 = vpack.c.b16 %v2529, %v2519
        %v4040 = vpack.c.b16 %v2530, %v2520
        %v4041 = vpack.c.b16 %v2531, %v2521
        %v4042 = vpack.c.b16 %v2532, %v2522
        %v4043 = vpack.c.b16 %v2543, %v2533
        %v4044 = vpack.c.b16 %v2544, %v2534
        %v4045 = vpack.c.b16 %v2545, %v2535
        %v4046 = vpack.c.b16 %v2546, %v2536
        %v4047 = vpack.c.b16 %v2547, %v2537
        %v4048 = vpack.c.b16 %v2548, %v2538
        %v4049 = vpack.c.b16 %v2549, %v2539
        %v4050 = vpack.c.b16 %v2550, %v2540
        %v4051 = vpack.c.b16 %v2551, %v2541
        %v4052 = vpack.c.b16 %v2552, %v2542
        %v4053 = vpack.c.b16 %v2563, %v2553
        %v4054 = vpack.c.b16 %v2564, %v2554
        %v4055 = vpack.c.b16 %v2565, %v2555
        %v4056 = vpack.c.b16 %v2566, %v2556
        %v4057 = vpack.c.b16 %v2567, %v2557
        %v4058 = vpack.c.b16 %v2568, %v2558
        %v4059 = vpack.c.b16 %v2569, %v2559
        %v4060 = vpack.c.b16 %v2570, %v2560
        %v4061 = vpack.c.b16 %v2571, %v2561
        %v4062 = vpack.c.b16 %v2572, %v2562
        %v4063 = vpack.c.b16 %v2583, %v2573
        %v4064 = vpack.c.b16 %v2584, %v2574
        %v4065 = vpack.c.b16 %v2585, %v2575
        %v4066 = vpack.c.b16 %v2586, %v2576
        %v4067 = vpack.c.b16 %v2587, %v2577
        %v4068 = vpack.c.b16 %v2588, %v2578
        %v4069 = vpack.c.b16 %v2589, %v2579
        %v4070 = vpack.c.b16 %v2590, %v2580
        %v4071 = vpack.c.b16 %v2591, %v2581
        %v4072 = vpack.c.b16 %v2592, %v2582
        %v4073 = vpack.c.b16 %v2603, %v2593
        %v4074 = vpack.c.b16 %v2604, %v2594
        %v4075 = vpack.c.b16 %v2605, %v2595
        %v4076 = vpack.c.b16 %v2606, %v2596
        %v4077 = vpack.c.b16 %v2607, %v2597
        %v4078 = vpack.c.b16 %v2608, %v2598
        %v4079 = vpack.c.b16 %v2609, %v2599
        %v4080 = vpack.c.b16 %v2610, %v2600
        %v4081 = vpack.c.b16 %v2611, %v2601
        %v4082 = vpack.c.b16 %v2612, %v2602
        %v4083 = vpack.c.b16 %v2623, %v2613
        %v4084 = vpack.c.b16 %v2624, %v2614
        %v4085 = vpack.c.b16 %v2625, %v2615
        %v4086 = vpack.c.b16 %v2626, %v2616
        %v4087 = vpack.c.b16 %v2627, %v2617
        %v4088 = vpack.c.b16 %v2628, %v2618
        %v4089 = vpack.c.b16 %v2629, %v2619
        %v4090 = vpack.c.b16 %v2630, %v2620
        %v4091 = vpack.c.b16 %v2631, %v2621
        %v4092 = vpack.c.b16 %v2632, %v2622
        %v4093 = vpack.c.b16 %v2643, %v2633
        %v4094 = vpack.c.b16 %v2644, %v2634
        %v4095 = vpack.c.b16 %v2645, %v2635
        %v4096 = vpack.c.b16 %v2646, %v2636
        %v4097 = vpack.c.b16 %v2647, %v2637
        %v4098 = vpack.c.b16 %v2648, %v2638
        %v4099 = vpack.c.b16 %v2649, %v2639
        %v4100 = vpack.c.b16 %v2650, %v2640
        %v4101 = vpack.c.b16 %v2651, %v2641
        %v4102 = vpack.c.b16 %v2652, %v2642
        %v4103 = vpack.c.b16 %v2663, %v2653
        %v4104 = vpack.c.b16 %v2664, %v2654
        %v4105 = vpack.c.b16 %v2665, %v2655
        %v4106 = vpack.c.b16 %v2666, %v2656
        %v4107 = vpack.c.b16 %v2667, %v2657
        %v4108 = vpack.c.b16 %v2668, %v2658
        %v4109 = vpack.c.b16 %v2669, %v2659
        %v4110 = vpack.c.b16 %v2670, %v2660
        %v4111 = vpack.c.b16 %v2671, %v2661
        %v4112 = vpack.c.b16 %v2672, %v2662
        %v4113 = vpack.c.b16 %v2683, %v2673
        %v4114 = vpack.c.b16 %v2684, %v2674
        %v4115 = vpack.c.b16 %v2685, %v2675
        %v4116 = vpack.c.b16 %v2686, %v2676
        %v4117 = vpack.c.b16 %v2687, %v2677
        %v4118 = vpack.c.b16 %v2688, %v2678
        %v4119 = vpack.c.b16 %v2689, %v2679
        %v4120 = vpack.c.b16 %v2690, %v2680
        %v4121 = vpack.c.b16 %v2691, %v2681
        %v4122 = vpack.c.b16 %v2692, %v2682
        %v4123 = vpack.c.b16 %v2703, %v2693
        %v4124 = vpack.c.b16 %v2704, %v2694
        %v4125 = vpack.c.b16 %v2705, %v2695
        %v4126 = vpack.c.b16 %v2706, %v2696
        %v4127 = vpack.c.b16 %v2707, %v2697
        %v4128 = vpack.c.b16 %v2708, %v2698
        %v4129 = vpack.c.b16 %v2709, %v2699
        %v4130 = vpack.c.b16 %v2710, %v2700
        %v4131 = vpack.c.b16 %v2711, %v2701
        %v4132 = vpack.c.b16 %v2712, %v2702
        %v4133 = vpack.c.b16 %v2723, %v2713
        %v4134 = vpack.c.b16 %v2724, %v2714
        %v4135 = vpack.c.b16 %v2725, %v2715
        %v4136 = vpack.c.b16 %v2726, %v2716
        %v4137 = vpack.c.b16 %v2727, %v2717
        %v4138 = vpack.c.b16 %v2728, %v2718
        %v4139 = vpack.c.b16 %v2729, %v2719
        %v4140 = vpack.c.b16 %v2730, %v2720
        %v4141 = vpack.c.b16 %v2731, %v2721
        %v4142 = vpack.c.b16 %v2732, %v2722
        %v4143 = vpack.c.b16 %v2743, %v2733
        %v4144 = vpack.c.b16 %v2744, %v2734
        %v4145 = vpack.c.b16 %v2745, %v2735
        %v4146 = vpack.c.b16 %v2746, %v2736
        %v4147 = vpack.c.b16 %v2747, %v2737
        %v4148 = vpack.c.b16 %v2748, %v2738
        %v4149 = vpack.c.b16 %v2749, %v2739
        %v4150 = vpack.c.b16 %v2750, %v2740
        %v4151 = vpack.c.b16 %v2751, %v2741
        %v4152 = vpack.c.b16 %v2752, %v2742
        %v4153 = vpack.c.b16 %v2763, %v2753
        %v4154 = vpack.c.b16 %v2764, %v2754
        %v4155 = vpack.c.b16 %v2765, %v2755
        %v4156 = vpack.c.b16 %v2766, %v2756
        %v4157 = vpack.c.b16 %v2767, %v2757
        %v4158 = vpack.c.b16 %v2768, %v2758
        %v4159 = vpack.c.b16 %v2769, %v2759
        %v4160 = vpack.c.b16 %v2770, %v2760
        %v4161 = vpack.c.b16 %v2771, %v2761
        %v4162 = vpack.c.b16 %v2772, %v2762
        %v4163 = vpack.c.b16 %v2783, %v2773
        %v4164 = vpack.c.b16 %v2784, %v2774
        %v4165 = vpack.c.b16 %v2785, %v2775
        %v4166 = vpack.c.b16 %v2786, %v2776
        %v4167 = vpack.c.b16 %v2787, %v2777
        %v4168 = vpack.c.b16 %v2788, %v2778
        %v4169 = vpack.c.b16 %v2789, %v2779
        %v4170 = vpack.c.b16 %v2790, %v2780
        %v4171 = vpack.c.b16 %v2791, %v2781
        %v4172 = vpack.c.b16 %v2792, %v2782
        %v4173 = vpack.c.b16 %v2803, %v2793
        %v4174 = vpack.c.b16 %v2804, %v2794
        %v4175 = vpack.c.b16 %v2805, %v2795
        %v4176 = vpack.c.b16 %v2806, %v2796
        %v4177 = vpack.c.b16 %v2807, %v2797
        %v4178 = vpack.c.b16 %v2808, %v2798
        %v4179 = vpack.c.b16 %v2809, %v2799
        %v4180 = vpack.c.b16 %v2810, %v2800
        %v4181 = vpack.c.b16 %v2811, %v2801
        %v4182 = vpack.c.b16 %v2812, %v2802
        %v4183 = vpack.c.b16 %v2823, %v2813
        %v4184 = vpack.c.b16 %v2824, %v2814
        %v4185 = vpack.c.b16 %v2825, %v2815
        %v4186 = vpack.c.b16 %v2826, %v2816
        %v4187 = vpack.c.b16 %v2827, %v2817
        %v4188 = vpack.c.b16 %v2828, %v2818
        %v4189 = vpack.c.b16 %v2829, %v2819
        %v4190 = vpack.c.b16 %v2830, %v2820
        %v4191 = vpack.c.b16 %v2831, %v2821
        %v4192 = vpack.c.b16 %v2832, %v2822
        %v4193 = vpack.c.b16 %v2843, %v2833
        %v4194 = vpack.c.b16 %v2844, %v2834
        %v4195 = vpack.c.b16 %v2845, %v2835
        %v4196 = vpack.c.b16 %v2846, %v2836
        %v4197 = vpack.c.b16 %v2847, %v2837
        %v4198 = vpack.c.b16 %v2848, %v2838
        %v4199 = vpack.c.b16 %v2849, %v2839
        %v4200 = vpack.c.b16 %v2850, %v2840
        %v4201 = vpack.c.b16 %v2851, %v2841
        %v4202 = vpack.c.b16 %v2852, %v2842
        %v4203 = vpack.c.b16 %v2863, %v2853
        %v4204 = vpack.c.b16 %v2864, %v2854
        %v4205 = vpack.c.b16 %v2865, %v2855
        %v4206 = vpack.c.b16 %v2866, %v2856
        %v4207 = vpack.c.b16 %v2867, %v2857
        %v4208 = vpack.c.b16 %v2868, %v2858
        %v4209 = vpack.c.b16 %v2869, %v2859
        %v4210 = vpack.c.b16 %v2870, %v2860
        %v4211 = vpack.c.b16 %v2871, %v2861
        %v4212 = vpack.c.b16 %v2872, %v2862
        %v4213 = vpack.c.b16 %v2883, %v2873
        %v4214 = vpack.c.b16 %v2884, %v2874
        %v4215 = vpack.c.b16 %v2885, %v2875
        %v4216 = vpack.c.b16 %v2886, %v2876
        %v4217 = vpack.c.b16 %v2887, %v2877
        %v4218 = vpack.c.b16 %v2888, %v2878
        %v4219 = vpack.c.b16 %v2889, %v2879
        %v4220 = vpack.c.b16 %v2890, %v2880
        %v4221 = vpack.c.b16 %v2891, %v2881
        %v4222 = vpack.c.b16 %v2892, %v2882
        %v4223 = vpack.c.b16 %v2903, %v2893
        %v4224 = vpack.c.b16 %v2904, %v2894
        %v4225 = vpack.c.b16 %v2905, %v2895
        %v4226 = vpack.c.b16 %v2906, %v2896
        %v4227 = vpack.c.b16 %v2907, %v2897
        %v4228 = vpack.c.b16 %v2908, %v2898
        %v4229 = vpack.c.b16 %v2909, %v2899
        %v4230 = vpack.c.b16 %v2910, %v2900
        %v4231 = vpack.c.b16 %v2911, %v2901
        %v4232 = vpack.c.b16 %v2912, %v2902
        %v4233 = vpack.c.b16 %v2923, %v2913
        %v4234 = vpack.c.b16 %v2924, %v2914
        %v4235 = vpack.c.b16 %v2925, %v2915
        %v4236 = vpack.c.b16 %v2926, %v2916
        %v4237 = vpack.c.b16 %v2927, %v2917
        %v4238 = vpack.c.b16 %v2928, %v2918
        %v4239 = vpack.c.b16 %v2929, %v2919
        %v4240 = vpack.c.b16 %v2930, %v2920
        %v4241 = vpack.c.b16 %v2931, %v2921
        %v4242 = vpack.c.b16 %v2932, %v2922
        %v4243 = vpack.c.b16 %v2943, %v2933
        %v4244 = vpack.c.b16 %v2944, %v2934
        %v4245 = vpack.c.b16 %v2945, %v2935
        %v4246 = vpack.c.b16 %v2946, %v2936
        %v4247 = vpack.c.b16 %v2947, %v2937
        %v4248 = vpack.c.b16 %v2948, %v2938
        %v4249 = vpack.c.b16 %v2949, %v2939
        %v4250 = vpack.c.b16 %v2950, %v2940
        %v4251 = vpack.c.b16 %v2951, %v2941
        %v4252 = vpack.c.b16 %v2952, %v2942
        %v4253 = vpack.c.b16 %v2963, %v2953
        %v4254 = vpack.c.b16 %v2964, %v2954
        %v4255 = vpack.c.b16 %v2965, %v2955
        %v4256 = vpack.c.b16 %v2966, %v2956
        %v4257 = vpack.c.b16 %v2967, %v2957
        %v4258 = vpack.c.b16 %v2968, %v2958
        %v4259 = vpack.c.b16 %v2969, %v2959
        %v4260 = vpack.c.b16 %v2970, %v2960
        %v4261 = vpack.c.b16 %v2971, %v2961
        %v4262 = vpack.c.b16 %v2972, %v2962
        %v4263 = vpack.c.b16 %v2983, %v2973
        %v4264 = vpack.c.b16 %v2984, %v2974
        %v4265 = vpack.c.b16 %v2985, %v2975
        %v4266 = vpack.c.b16 %v2986, %v2976
        %v4267 = vpack.c.b16 %v2987, %v2977
        %v4268 = vpack.c.b16 %v2988, %v2978
        %v4269 = vpack.c.b16 %v2989, %v2979
        %v4270 = vpack.c.b16 %v2990, %v2980
        %v4271 = vpack.c.b16 %v2991, %v2981
        %v4272 = vpack.c.b16 %v2992, %v2982
        %v4273 = vpack.c.b16 %v3003, %v2993
        %v4274 = vpack.c.b16 %v3004, %v2994
        %v4275 = vpack.c.b16 %v3005, %v2995
        %v4276 = vpack.c.b16 %v3006, %v2996
        %v4277 = vpack.c.b16 %v3007, %v2997
        %v4278 = vpack.c.b16 %v3008, %v2998
        %v4279 = vpack.c.b16 %v3009, %v2999
        %v4280 = vpack.c.b16 %v3010, %v3000
        %v4281 = vpack.c.b16 %v3011, %v3001
        %v4282 = vpack.c.b16 %v3012, %v3002
        %v4283 = vpack.c.b16 %v3023, %v3013
        %v4284 = vpack.c.b16 %v3024, %v3014
        %v4285 = vpack.c.b16 %v3025, %v3015
        %v4286 = vpack.c.b16 %v3026, %v3016
        %v4287 = vpack.c.b16 %v3027, %v3017
        %v4288 = vpack.c.b16 %v3028, %v3018
        %v4289 = vpack.c.b16 %v3029, %v3019
        %v4290 = vpack.c.b16 %v3030, %v3020
        %v4291 = vpack.c.b16 %v3031, %v3021
        %v4292 = vpack.c.b16 %v3032, %v3022
        %v4293 = vpack.c.b16 %v3043, %v3033
        %v4294 = vpack.c.b16 %v3044, %v3034
        %v4295 = vpack.c.b16 %v3045, %v3035
        %v4296 = vpack.c.b16 %v3046, %v3036
        %v4297 = vpack.c.b16 %v3047, %v3037
        %v4298 = vpack.c.b16 %v3048, %v3038
        %v4299 = vpack.c.b16 %v3049, %v3039
        %v4300 = vpack.c.b16 %v3050, %v3040
        %v4301 = vpack.c.b16 %v3051, %v3041
        %v4302 = vpack.c.b16 %v3052, %v3042
        %v4303 = vpack.c.b16 %v3063, %v3053
        %v4304 = vpack.c.b16 %v3064, %v3054
        %v4305 = vpack.c.b16 %v3065, %v3055
        %v4306 = vpack.c.b16 %v3066, %v3056
        %v4307 = vpack.c.b16 %v3067, %v3057
        %v4308 = vpack.c.b16 %v3068, %v3058
        %v4309 = vpack.c.b16 %v3069, %v3059
        %v4310 = vpack.c.b16 %v3070, %v3060
        %v4311 = vpack.c.b16 %v3071, %v3061
        %v4312 = vpack.c.b16 %v3072, %v3062
        %v4313 = vpack.c.b16 %v3083, %v3073
        %v4314 = vpack.c.b16 %v3084, %v3074
        %v4315 = vpack.c.b16 %v3085, %v3075
        %v4316 = vpack.c.b16 %v3086, %v3076
        %v4317 = vpack.c.b16 %v3087, %v3077
        %v4318 = vpack.c.b16 %v3088, %v3078
        %v4319 = vpack.c.b16 %v3089, %v3079
        %v4320 = vpack.c.b16 %v3090, %v3080
        %v4321 = vpack.c.b16 %v3091, %v3081
        %v4322 = vpack.c.b16 %v3092, %v3082
        %v4323 = vpack.c.b16 %v3103, %v3093
        %v4324 = vpack.c.b16 %v3104, %v3094
        %v4325 = vpack.c.b16 %v3105, %v3095
        %v4326 = vpack.c.b16 %v3106, %v3096
        %v4327 = vpack.c.b16 %v3107, %v3097
        %v4328 = vpack.c.b16 %v3108, %v3098
        %v4329 = vpack.c.b16 %v3109, %v3099
        %v4330 = vpack.c.b16 %v3110, %v3100
        %v4331 = vpack.c.b16 %v3111, %v3101
        %v4332 = vpack.c.b16 %v3112, %v3102
        %v4333 = vpack.c.b16 %v3123, %v3113
        %v4334 = vpack.c.b16 %v3124, %v3114
        %v4335 = vpack.c.b16 %v3125, %v3115
        %v4336 = vpack.c.b16 %v3126, %v3116
        %v4337 = vpack.c.b16 %v3127, %v3117
        %v4338 = vpack.c.b16 %v3128, %v3118
        %v4339 = vpack.c.b16 %v3129, %v3119
        %v4340 = vpack.c.b16 %v3130, %v3120
        %v4341 = vpack.c.b16 %v3131, %v3121
        %v4342 = vpack.c.b16 %v3132, %v3122
        %v4343 = vpack.c.b16 %v3143, %v3133
        %v4344 = vpack.c.b16 %v3144, %v3134
        %v4345 = vpack.c.b16 %v3145, %v3135
        %v4346 = vpack.c.b16 %v3146, %v3136
        %v4347 = vpack.c.b16 %v3147, %v3137
        %v4348 = vpack.c.b16 %v3148, %v3138
        %v4349 = vpack.c.b16 %v3149, %v3139
        %v4350 = vpack.c.b16 %v3150, %v3140
        %v4351 = vpack.c.b16 %v3151, %v3141
        %v4352 = vpack.c.b16 %v3152, %v3142
        %v4353 = vpack.c.b16 %v3163, %v3153
        %v4354 = vpack.c.b16 %v3164, %v3154
        %v4355 = vpack.c.b16 %v3165, %v3155
        %v4356 = vpack.c.b16 %v3166, %v3156
        %v4357 = vpack.c.b16 %v3167, %v3157
        %v4358 = vpack.c.b16 %v3168, %v3158
        %v4359 = vpack.c.b16 %v3169, %v3159
        %v4360 = vpack.c.b16 %v3170, %v3160
        %v4361 = vpack.c.b16 %v3171, %v3161
        %v4362 = vpack.c.b16 %v3172, %v3162
        %v4363 = vpack.c.b16 %v3183, %v3173
        %v4364 = vpack.c.b16 %v3184, %v3174
        %v4365 = vpack.c.b16 %v3185, %v3175
        %v4366 = vpack.c.b16 %v3186, %v3176
        %v4367 = vpack.c.b16 %v3187, %v3177
        %v4368 = vpack.c.b16 %v3188, %v3178
        %v4369 = vpack.c.b16 %v3189, %v3179
        %v4370 = vpack.c.b16 %v3190, %v3180
        %v4371 = vpack.c.b16 %v3191, %v3181
        %v4372 = vpack.c.b16 %v3192, %v3182
        %v4373 = vpack.c.b16 %v3203, %v3193
        %v4374 = vpack.c.b16 %v3204, %v3194
        %v4375 = vpack.c.b16 %v3205, %v3195
        %v4376 = vpack.c.b16 %v3206, %v3196
        %v4377 = vpack.c.b16 %v3207, %v3197
        %v4378 = vpack.c.b16 %v3208, %v3198
        %v4379 = vpack.c.b16 %v3209, %v3199
        %v4380 = vpack.c.b16 %v3210, %v3200
        %v4381 = vpack.c.b16 %v3211, %v3201
        %v4382 = vpack.c.b16 %v3212, %v3202
        %v4383 = vpack.c.b16 %v3223, %v3213
        %v4384 = vpack.c.b16 %v3224, %v3214
        %v4385 = vpack.c.b16 %v3225, %v3215
        %v4386 = vpack.c.b16 %v3226, %v3216
        %v4387 = vpack.c.b16 %v3227, %v3217
        %v4388 = vpack.c.b16 %v3228, %v3218
        %v4389 = vpack.c.b16 %v3229, %v3219
        %v4390 = vpack.c.b16 %v3230, %v3220
        %v4391 = vpack.c.b16 %v3231, %v3221
        %v4392 = vpack.c.b16 %v3232, %v3222
        %v4393 = vpack.c.b16 %v3243, %v3233
        %v4394 = vpack.c.b16 %v3244, %v3234
        %v4395 = vpack.c.b16 %v3245, %v3235
        %v4396 = vpack.c.b16 %v3246, %v3236
        %v4397 = vpack.c.b16 %v3247, %v3237
        %v4398 = vpack.c.b16 %v3248, %v3238
        %v4399 = vpack.c.b16 %v3249, %v3239
        %v4400 = vpack.c.b16 %v3250, %v3240
        %v4401 = vpack.c.b16 %v3251, %v3241
        %v4402 = vpack.c.b16 %v3252, %v3242
        %v4403 = vpack.c.b16 %v3263, %v3253
        %v4404 = vpack.c.b16 %v3264, %v3254
        %v4405 = vpack.c.b16 %v3265, %v3255
        %v4406 = vpack.c.b16 %v3266, %v3256
        %v4407 = vpack.c.b16 %v3267, %v3257
        %v4408 = vpack.c.b16 %v3268, %v3258
        %v4409 = vpack.c.b16 %v3269, %v3259
        %v4410 = vpack.c.b16 %v3270, %v3260
        %v4411 = vpack.c.b16 %v3271, %v3261
        %v4412 = vpack.c.b16 %v3272, %v3262
        %v4413 = vpack.c.b16 %v3283, %v3273
        %v4414 = vpack.c.b16 %v3284, %v3274
        %v4415 = vpack.c.b16 %v3285, %v3275
        %v4416 = vpack.c.b16 %v3286, %v3276
        %v4417 = vpack.c.b16 %v3287, %v3277
        %v4418 = vpack.c.b16 %v3288, %v3278
        %v4419 = vpack.c.b16 %v3289, %v3279
        %v4420 = vpack.c.b16 %v3290, %v3280
        %v4421 = vpack.c.b16 %v3291, %v3281
        %v4422 = vpack.c.b16 %v3292, %v3282
        %v4423 = vpack.c.b16 %v3303, %v3293
        %v4424 = vpack.c.b16 %v3304, %v3294
        %v4425 = vpack.c.b16 %v3305, %v3295
        %v4426 = vpack.c.b16 %v3306, %v3296
        %v4427 = vpack.c.b16 %v3307, %v3297
        %v4428 = vpack.c.b16 %v3308, %v3298
        %v4429 = vpack.c.b16 %v3309, %v3299
        %v4430 = vpack.c.b16 %v3310, %v3300
        %v4431 = vpack.c.b16 %v3311, %v3301
        %v4432 = vpack.c.b16 %v3312, %v3302
        %v4433 = vpack.c.b16 %v3323, %v3313
        %v4434 = vpack.c.b16 %v3324, %v3314
        %v4435 = vpack.c.b16 %v3325, %v3315
        %v4436 = vpack.c.b16 %v3326, %v3316
        %v4437 = vpack.c.b16 %v3327, %v3317
        %v4438 = vpack.c.b16 %v3328, %v3318
        %v4439 = vpack.c.b16 %v3329, %v3319
        %v4440 = vpack.c.b16 %v3330, %v3320
        %v4441 = vpack.c.b16 %v3331, %v3321
        %v4442 = vpack.c.b16 %v3332, %v3322
        %v4443 = vpack.c.b16 %v3343, %v3333
        %v4444 = vpack.c.b16 %v3344, %v3334
        %v4445 = vpack.c.b16 %v3345, %v3335
        %v4446 = vpack.c.b16 %v3346, %v3336
        %v4447 = vpack.c.b16 %v3347, %v3337
        %v4448 = vpack.c.b16 %v3348, %v3338
        %v4449 = vpack.c.b16 %v3349, %v3339
        %v4450 = vpack.c.b16 %v3350, %v3340
        %v4451 = vpack.c.b16 %v3351, %v3341
        %v4452 = vpack.c.b16 %v3352, %v3342
        %v4453 = vpack.c.b16 %v3363, %v3353
        %v4454 = vpack.c.b16 %v3364, %v3354
        %v4455 = vpack.c.b16 %v3365, %v3355
        %v4456 = vpack.c.b16 %v3366, %v3356
        %v4457 = vpack.c.b16 %v3367, %v3357
        %v4458 = vpack.c.b16 %v3368, %v3358
        %v4459 = vpack.c.b16 %v3369, %v3359
        %v4460 = vpack.c.b16 %v3370, %v3360
        %v4461 = vpack.c.b16 %v3371, %v3361
        %v4462 = vpack.c.b16 %v3372, %v3362
        %v4463 = vpack.c.b16 %v3383, %v3373
        %v4464 = vpack.c.b16 %v3384, %v3374
        %v4465 = vpack.c.b16 %v3385, %v3375
        %v4466 = vpack.c.b16 %v3386, %v3376
        %v4467 = vpack.c.b16 %v3387, %v3377
        %v4468 = vpack.c.b16 %v3388, %v3378
        %v4469 = vpack.c.b16 %v3389, %v3379
        %v4470 = vpack.c.b16 %v3390, %v3380
        %v4471 = vpack.c.b16 %v3391, %v3381
        %v4472 = vpack.c.b16 %v3392, %v3382
        %v4473 = vpack.c.b16 %v3403, %v3393
        %v4474 = vpack.c.b16 %v3404, %v3394
        %v4475 = vpack.c.b16 %v3405, %v3395
        %v4476 = vpack.c.b16 %v3406, %v3396
        %v4477 = vpack.c.b16 %v3407, %v3397
        %v4478 = vpack.c.b16 %v3408, %v3398
        %v4479 = vpack.c.b16 %v3409, %v3399
        %v4480 = vpack.c.b16 %v3410, %v3400
        %v4481 = vpack.c.b16 %v3411, %v3401
        %v4482 = vpack.c.b16 %v3412, %v3402
        %v4483 = vpack.c.b16 %v3423, %v3413
        %v4484 = vpack.c.b16 %v3424, %v3414
        %v4485 = vpack.c.b16 %v3425, %v3415
        %v4486 = vpack.c.b16 %v3426, %v3416
        %v4487 = vpack.c.b16 %v3427, %v3417
        %v4488 = vpack.c.b16 %v3428, %v3418
        %v4489 = vpack.c.b16 %v3429, %v3419
        %v4490 = vpack.c.b16 %v3430, %v3420
        %v4491 = vpack.c.b16 %v3431, %v3421
        %v4492 = vpack.c.b16 %v3432, %v3422
        %v4493 = vpack.c.b16 %v3443, %v3433
        %v4494 = vpack.c.b16 %v3444, %v3434
        %v4495 = vpack.c.b16 %v3445, %v3435
        %v4496 = vpack.c.b16 %v3446, %v3436
        %v4497 = vpack.c.b16 %v3447, %v3437
        %v4498 = vpack.c.b16 %v3448, %v3438
        %v4499 = vpack.c.b16 %v3449, %v3439
        %v4500 = vpack.c.b16 %v3450, %v3440
        %v4501 = vpack.c.b16 %v3451, %v3441
        %v4502 = vpack.c.b16 %v3452, %v3442
        %v4503 = vpack.c.b16 %v3463, %v3453
        %v4504 = vpack.c.b16 %v3464, %v3454
        %v4505 = vpack.c.b16 %v3465, %v3455
        %v4506 = vpack.c.b16 %v3466, %v3456
        %v4507 = vpack.c.b16 %v3467, %v3457
        %v4508 = vpack.c.b16 %v3468, %v3458
        %v4509 = vpack.c.b16 %v3469, %v3459
        %v4510 = vpack.c.b16 %v3470, %v3460
        %v4511 = vpack.c.b16 %v3471, %v3461
        %v4512 = vpack.c.b16 %v3472, %v3462
        %v4513 = vpack.c.b16 %v3483, %v3473
        %v4514 = vpack.c.b16 %v3484, %v3474
        %v4515 = vpack.c.b16 %v3485, %v3475
        %v4516 = vpack.c.b16 %v3486, %v3476
        %v4517 = vpack.c.b16 %v3487, %v3477
        %v4518 = vpack.c.b16 %v3488, %v3478
        %v4519 = vpack.c.b16 %v3489, %v3479
        %v4520 = vpack.c.b16 %v3490, %v3480
        %v4521 = vpack.c.b16 %v3491, %v3481
        %v4522 = vpack.c.b16 %v3492, %v3482
        %v4523 = vpack.c.b16 %v3503, %v3493
        %v4524 = vpack.c.b16 %v3504, %v3494
        %v4525 = vpack.c.b16 %v3505, %v3495
        %v4526 = vpack.c.b16 %v3506, %v3496
        %v4527 = vpack.c.b16 %v3507, %v3497
        %v4528 = vpack.c.b16 %v3508, %v3498
        %v4529 = vpack.c.b16 %v3509, %v3499
        %v4530 = vpack.c.b16 %v3510, %v3500
        %v4531 = vpack.c.b16 %v3511, %v3501
        %v4532 = vpack.c.b16 %v3512, %v3502
        %v4533 = vpack.c.b16 %v3523, %v3513
        %v4534 = vpack.c.b16 %v3524, %v3514
        %v4535 = vpack.c.b16 %v3525, %v3515
        %v4536 = vpack.c.b16 %v3526, %v3516
        %v4537 = vpack.c.b16 %v3527, %v3517
        %v4538 = vpack.c.b16 %v3528, %v3518
        %v4539 = vpack.c.b16 %v3529, %v3519
        %v4540 = vpack.c.b16 %v3530, %v3520
        %v4541 = vpack.c.b16 %v3531, %v3521
        %v4542 = vpack.c.b16 %v3532, %v3522
        %v4543 = vpack.c.b16 %v3543, %v3533
        %v4544 = vpack.c.b16 %v3544, %v3534
        %v4545 = vpack.c.b16 %v3545, %v3535
        %v4546 = vpack.c.b16 %v3546, %v3536
        %v4547 = vpack.c.b16 %v3547, %v3537
        %v4548 = vpack.c.b16 %v3548, %v3538
        %v4549 = vpack.c.b16 %v3549, %v3539
        %v4550 = vpack.c.b16 %v3550, %v3540
        %v4551 = vpack.c.b16 %v3551, %v3541
        %v4552 = vpack.c.b16 %v3552, %v3542
        %v4553 = vpack.c.b16 %v3563, %v3553
        %v4554 = vpack.c.b16 %v3564, %v3554
        %v4555 = vpack.c.b16 %v3565, %v3555
        %v4556 = vpack.c.b16 %v3566, %v3556
        %v4557 = vpack.c.b16 %v3567, %v3557
        %v4558 = vpack.c.b16 %v3568, %v3558
        %v4559 = vpack.c.b16 %v3569, %v3559
        %v4560 = vpack.c.b16 %v3570, %v3560
        %v4561 = vpack.c.b16 %v3571, %v3561
        %v4562 = vpack.c.b16 %v3572, %v3562
        %v4563 = vpack.c.b16 %v3583, %v3573
        %v4564 = vpack.c.b16 %v3584, %v3574
        %v4565 = vpack.c.b16 %v3585, %v3575
        %v4566 = vpack.c.b16 %v3586, %v3576
        %v4567 = vpack.c.b16 %v3587, %v3577
        %v4568 = vpack.c.b16 %v3588, %v3578
        %v4569 = vpack.c.b16 %v3589, %v3579
        %v4570 = vpack.c.b16 %v3590, %v3580
        %v4571 = vpack.c.b16 %v3591, %v3581
        %v4572 = vpack.c.b16 %v3592, %v3582
        %v4573 = vpack.c.b16 %v3603, %v3593
        %v4574 = vpack.c.b16 %v3604, %v3594
        %v4575 = vpack.c.b16 %v3605, %v3595
        %v4576 = vpack.c.b16 %v3606, %v3596
        %v4577 = vpack.c.b16 %v3607, %v3597
        %v4578 = vpack.c.b16 %v3608, %v3598
        %v4579 = vpack.c.b16 %v3609, %v3599
        %v4580 = vpack.c.b16 %v3610, %v3600
        %v4581 = vpack.c.b16 %v3611, %v3601
        %v4582 = vpack.c.b16 %v3612, %v3602
        %v4583 = vpack.c.b16 %v3623, %v3613
        %v4584 = vpack.c.b16 %v3624, %v3614
        %v4585 = vpack.c.b16 %v3625, %v3615
        %v4586 = vpack.c.b16 %v3626, %v3616
        %v4587 = vpack.c.b16 %v3627, %v3617
        %v4588 = vpack.c.b16 %v3628, %v3618
        %v4589 = vpack.c.b16 %v3629, %v3619
        %v4590 = vpack.c.b16 %v3630, %v3620
        %v4591 = vpack.c.b16 %v3631, %v3621
        %v4592 = vpack.c.b16 %v3632, %v3622
        %v4593 = vpack.c.b16 %v3643, %v3633
        %v4594 = vpack.c.b16 %v3644, %v3634
        %v4595 = vpack.c.b16 %v3645, %v3635
        %v4596 = vpack.c.b16 %v3646, %v3636
        %v4597 = vpack.c.b16 %v3647, %v3637
        %v4598 = vpack.c.b16 %v3648, %v3638
        %v4599 = vpack.c.b16 %v3649, %v3639
        %v4600 = vpack.c.b16 %v3650, %v3640
        %v4601 = vpack.c.b16 %v3651, %v3641
        %v4602 = vpack.c.b16 %v3652, %v3642
        %v4603 = vpack.c.b16 %v3663, %v3653
        %v4604 = vpack.c.b16 %v3664, %v3654
        %v4605 = vpack.c.b16 %v3665, %v3655
        %v4606 = vpack.c.b16 %v3666, %v3656
        %v4607 = vpack.c.b16 %v3667, %v3657
        %v4608 = vpack.c.b16 %v3668, %v3658
        %v4609 = vpack.c.b16 %v3669, %v3659
        %v4610 = vpack.c.b16 %v3670, %v3660
        %v4611 = vpack.c.b16 %v3671, %v3661
        %v4612 = vpack.c.b16 %v3672, %v3662
        %v4613 = vpack.c.b16 %v3683, %v3673
        %v4614 = vpack.c.b16 %v3684, %v3674
        %v4615 = vpack.c.b16 %v3685, %v3675
        %v4616 = vpack.c.b16 %v3686, %v3676
        %v4617 = vpack.c.b16 %v3687, %v3677
        %v4618 = vpack.c.b16 %v3688, %v3678
        %v4619 = vpack.c.b16 %v3689, %v3679
        %v4620 = vpack.c.b16 %v3690, %v3680
        %v4621 = vpack.c.b16 %v3691, %v3681
        %v4622 = vpack.c.b16 %v3692, %v3682
        %v4623 = vpack.c.b16 %v3703, %v3693
        %v4624 = vpack.c.b16 %v3704, %v3694
        %v4625 = vpack.c.b16 %v3705, %v3695
        %v4626 = vpack.c.b16 %v3706, %v3696
        %v4627 = vpack.c.b16 %v3707, %v3697
        %v4628 = vpack.c.b16 %v3708, %v3698
        %v4629 = vpack.c.b16 %v3709, %v3699
        %v4630 = vpack.c.b16 %v3710, %v3700
        %v4631 = vpack.c.b16 %v3711, %v3701
        %v4632 = vpack.c.b16 %v3712, %v3702
        %v4633 = vpack.c.b16 %v3723, %v3713
        %v4634 = vpack.c.b16 %v3724, %v3714
        %v4635 = vpack.c.b16 %v3725, %v3715
        %v4636 = vpack.c.b16 %v3726, %v3716
        %v4637 = vpack.c.b16 %v3727, %v3717
        %v4638 = vpack.c.b16 %v3728, %v3718
        %v4639 = vpack.c.b16 %v3729, %v3719
        %v4640 = vpack.c.b16 %v3730, %v3720
        %v4641 = vpack.c.b16 %v3731, %v3721
        %v4642 = vpack.c.b16 %v3732, %v3722
        %v4643 = vpack.c.b16 %v3743, %v3733
        %v4644 = vpack.c.b16 %v3744, %v3734
        %v4645 = vpack.c.b16 %v3745, %v3735
        %v4646 = vpack.c.b16 %v3746, %v3736
        %v4647 = vpack.c.b16 %v3747, %v3737
        %v4648 = vpack.c.b16 %v3748, %v3738
        %v4649 = vpack.c.b16 %v3749, %v3739
        %v4650 = vpack.c.b16 %v3750, %v3740
        %v4651 = vpack.c.b16 %v3751, %v3741
        %v4652 = vpack.c.b16 %v3752, %v3742
        %v4653 = vpack.c.b16 %v3763, %v3753
        %v4654 = vpack.c.b16 %v3764, %v3754
        %v4655 = vpack.c.b16 %v3765, %v3755
        %v4656 = vpack.c.b16 %v3766, %v3756
        %v4657 = vpack.c.b16 %v3767, %v3757
        %v4658 = vpack.c.b16 %v3768, %v3758
        %v4659 = vpack.c.b16 %v3769, %v3759
        %v4660 = vpack.c.b16 %v3770, %v3760
        %v4661 = vpack.c.b16 %v3771, %v3761
        %v4662 = vpack.c.b16 %v3772, %v3762
        %v4663 = vpack.c.b16 %v3783, %v3773
        %v4664 = vpack.c.b16 %v3784, %v3774
        %v4665 = vpack.c.b16 %v3785, %v3775
        %v4666 = vpack.c.b16 %v3786, %v3776
        %v4667 = vpack.c.b16 %v3787, %v3777
        %v4668 = vpack.c.b16 %v3788, %v3778
        %v4669 = vpack.c.b16 %v3789, %v3779
        %v4670 = vpack.c.b16 %v3790, %v3780
        %v4671 = vpack.c.b16 %v3791, %v3781
        %v4672 = vpack.c.b16 %v3792, %v3782
        %v4673 = vpack.c.b16 %v3803, %v3793
        %v4674 = vpack.c.b16 %v3804, %v3794
        %v4675 = vpack.c.b16 %v3805, %v3795
        %v4676 = vpack.c.b16 %v3806, %v3796
        %v4677 = vpack.c.b16 %v3807, %v3797
        %v4678 = vpack.c.b16 %v3808, %v3798
        %v4679 = vpack.c.b16 %v3809, %v3799
        %v4680 = vpack.c.b16 %v3810, %v3800
        %v4681 = vpack.c.b16 %v3811, %v3801
        %v4682 = vpack.c.b16 %v3812, %v3802
        %v4683 = vpack.c.b16 %v3823, %v3813
        %v4684 = vpack.c.b16 %v3824, %v3814
        %v4685 = vpack.c.b16 %v3825, %v3815
        %v4686 = vpack.c.b16 %v3826, %v3816
        %v4687 = vpack.c.b16 %v3827, %v3817
        %v4688 = vpack.c.b16 %v3828, %v3818
        %v4689 = vpack.c.b16 %v3829, %v3819
        %v4690 = vpack.c.b16 %v3830, %v3820
        %v4691 = vpack.c.b16 %v3831, %v3821
        %v4692 = vpack.c.b16 %v3832, %v3822
        %v4693 = vpack.c.b16 %v3843, %v3833
        %v4694 = vpack.c.b16 %v3844, %v3834
        %v4695 = vpack.c.b16 %v3845, %v3835
        %v4696 = vpack.c.b16 %v3846, %v3836
        %v4697 = vpack.c.b16 %v3847, %v3837
        %v4698 = vpack.c.b16 %v3848, %v3838
        %v4699 = vpack.c.b16 %v3849, %v3839
        %v4700 = vpack.c.b16 %v3850, %v3840
        %v4701 = vpack.c.b16 %v3851, %v3841
        %v4702 = vpack.c.b16 %v3852, %v3842
        %v4703 = vpack.c.b16 %v3863, %v3853
        %v4704 = vpack.c.b16 %v3864, %v3854
        %v4705 = vpack.c.b16 %v3865, %v3855
        %v4706 = vpack.c.b16 %v3866, %v3856
        %v4707 = vpack.c.b16 %v3867, %v3857
        %v4708 = vpack.c.b16 %v3868, %v3858
        %v4709 = vpack.c.b16 %v3869, %v3859
        %v4710 = vpack.c.b16 %v3870, %v3860
        %v4711 = vpack.c.b16 %v3871, %v3861
        %v4712 = vpack.c.b16 %v3872, %v3862
        %v4713 = vpack.c.b16 %v3883, %v3873
        %v4714 = vpack.c.b16 %v3884, %v3874
        %v4715 = vpack.c.b16 %v3885, %v3875
        %v4716 = vpack.c.b16 %v3886, %v3876
        %v4717 = vpack.c.b16 %v3887, %v3877
        %v4718 = vpack.c.b16 %v3888, %v3878
        %v4719 = vpack.c.b16 %v3889, %v3879
        %v4720 = vpack.c.b16 %v3890, %v3880
        %v4721 = vpack.c.b16 %v3891, %v3881
        %v4722 = vpack.c.b16 %v3892, %v3882
        %v4723 = vpack.c.b16 %v3903, %v3893
        %v4724 = vpack.c.b16 %v3904, %v3894
        %v4725 = vpack.c.b16 %v3905, %v3895
        %v4726 = vpack.c.b16 %v3906, %v3896
        %v4727 = vpack.c.b16 %v3907, %v3897
        %v4728 = vpack.c.b16 %v3908, %v3898
        %v4729 = vpack.c.b16 %v3909, %v3899
        %v4730 = vpack.c.b16 %v3910, %v3900
        %v4731 = vpack.c.b16 %v3911, %v3901
        %v4732 = vpack.c.b16 %v3912, %v3902
        %v4733 = vpack.c.b16 %v3923, %v3913
        %v4734 = vpack.c.b16 %v3924, %v3914
        %v4735 = vpack.c.b16 %v3925, %v3915
        %v4736 = vpack.c.b16 %v3926, %v3916
        %v4737 = vpack.c.b16 %v3927, %v3917
        %v4738 = vpack.c.b16 %v3928, %v3918
        %v4739 = vpack.c.b16 %v3929, %v3919
        %v4740 = vpack.c.b16 %v3930, %v3920
        %v4741 = vpack.c.b16 %v3931, %v3921
        %v4742 = vpack.c.b16 %v3932, %v3922
        %v4743 = vpack.c.b16 %v3943, %v3933
        %v4744 = vpack.c.b16 %v3944, %v3934
        %v4745 = vpack.c.b16 %v3945, %v3935
        %v4746 = vpack.c.b16 %v3946, %v3936
        %v4747 = vpack.c.b16 %v3947, %v3937
        %v4748 = vpack.c.b16 %v3948, %v3938
        %v4749 = vpack.c.b16 %v3949, %v3939
        %v4750 = vpack.c.b16 %v3950, %v3940
        %v4751 = vpack.c.b16 %v3951, %v3941
        %v4752 = vpack.c.b16 %v3952, %v3942
        %5553 = vmatpush.bf16.msra.mxu0 %v4023
        %5554 = vmatpush.bf16.msra.mxu0 %v4013
        %5555 = vmatpush.bf16.msra.mxu0 %v4003
        %5556 = vmatpush.bf16.msra.mxu0 %v3993
        %5557 = vmatpush.bf16.msra.mxu0 %v3983
        %5558 = vmatpush.bf16.msra.mxu0 %v3973
        %5559 = vmatpush.bf16.msra.mxu0 %v3963
        %5560 = vmatpush.bf16.msra.mxu0 %v3953
        %5561 = vmatmul.bf16.gmra.mxu0 %v1513
        %v5562 = vpop.f32.mrf.mxu0
        %v5563 = vadd.f32 %v1433, %v5562
        %v5564 = vpop.f32.mrf.mxu0
        %v5565 = vadd.f32 %v1433, %v5564
        %5566 = vmatmul.bf16.gmra.mxu0 %v1523
        %v5567 = vpop.f32.mrf.mxu0
        %v5568 = vadd.f32 %v1433, %v5567
        %v5569 = vpop.f32.mrf.mxu0
        %v5570 = vadd.f32 %v1433, %v5569
        %5571 = vdwg.mxu0
        %5572 = vmatpush.bf16.msra.mxu0 %v4103
        %5573 = vmatpush.bf16.msra.mxu0 %v4093
        %5574 = vmatpush.bf16.msra.mxu0 %v4083
        %5575 = vmatpush.bf16.msra.mxu0 %v4073
        %5576 = vmatpush.bf16.msra.mxu0 %v4063
        %5577 = vmatpush.bf16.msra.mxu0 %v4053
        %5578 = vmatpush.bf16.msra.mxu0 %v4043
        %5579 = vmatpush.bf16.msra.mxu0 %v4033
        %5580 = vmatmul.bf16.gmra.mxu0 %v1514
        %v5581 = vpop.f32.mrf.mxu0
        %v5582 = vadd.f32 %v5563, %v5581
        %v5583 = vpop.f32.mrf.mxu0
        %v5584 = vadd.f32 %v5565, %v5583
        %5585 = vmatmul.bf16.gmra.mxu0 %v1524
        %v5586 = vpop.f32.mrf.mxu0
        %v5587 = vadd.f32 %v5568, %v5586
        %v5588 = vpop.f32.mrf.mxu0
        %v5589 = vadd.f32 %v5570, %v5588
        %5590 = vdwg.mxu0
        %5591 = vmatpush.bf16.msra.mxu0 %v4183
        %5592 = vmatpush.bf16.msra.mxu0 %v4173
        %5593 = vmatpush.bf16.msra.mxu0 %v4163
        %5594 = vmatpush.bf16.msra.mxu0 %v4153
        %5595 = vmatpush.bf16.msra.mxu0 %v4143
        %5596 = vmatpush.bf16.msra.mxu0 %v4133
        %5597 = vmatpush.bf16.msra.mxu0 %v4123
        %5598 = vmatpush.bf16.msra.mxu0 %v4113
        %5599 = vmatmul.bf16.gmra.mxu0 %v1515
        %v5600 = vpop.f32.mrf.mxu0
        %v5601 = vadd.f32 %v5582, %v5600
        %v5602 = vpop.f32.mrf.mxu0
        %v5603 = vadd.f32 %v5584, %v5602
        %5604 = vmatmul.bf16.gmra.mxu0 %v1525
        %v5605 = vpop.f32.mrf.mxu0
        %v5606 = vadd.f32 %v5587, %v5605
        %v5607 = vpop.f32.mrf.mxu0
        %v5608 = vadd.f32 %v5589, %v5607
        %5609 = vdwg.mxu0
        %5610 = vmatpush.bf16.msra.mxu0 %v4263
        %5611 = vmatpush.bf16.msra.mxu0 %v4253
        %5612 = vmatpush.bf16.msra.mxu0 %v4243
        %5613 = vmatpush.bf16.msra.mxu0 %v4233
        %5614 = vmatpush.bf16.msra.mxu0 %v4223
        %5615 = vmatpush.bf16.msra.mxu0 %v4213
        %5616 = vmatpush.bf16.msra.mxu0 %v4203
        %5617 = vmatpush.bf16.msra.mxu0 %v4193
        %5618 = vmatmul.bf16.gmra.mxu0 %v1516
        %v5619 = vpop.f32.mrf.mxu0
        %v5620 = vadd.f32 %v5601, %v5619
        %v5621 = vpop.f32.mrf.mxu0
        %v5622 = vadd.f32 %v5603, %v5621
        %5623 = vmatmul.bf16.gmra.mxu0 %v1526
        %v5624 = vpop.f32.mrf.mxu0
        %v5625 = vadd.f32 %v5606, %v5624
        %v5626 = vpop.f32.mrf.mxu0
        %v5627 = vadd.f32 %v5608, %v5626
        %5628 = vdwg.mxu0
        %5629 = vmatpush.bf16.msra.mxu0 %v4343
        %5630 = vmatpush.bf16.msra.mxu0 %v4333
        %5631 = vmatpush.bf16.msra.mxu0 %v4323
        %5632 = vmatpush.bf16.msra.mxu0 %v4313
        %5633 = vmatpush.bf16.msra.mxu0 %v4303
        %5634 = vmatpush.bf16.msra.mxu0 %v4293
        %5635 = vmatpush.bf16.msra.mxu0 %v4283
        %5636 = vmatpush.bf16.msra.mxu0 %v4273
        %5637 = vmatmul.bf16.gmra.mxu0 %v1517
        %v5638 = vpop.f32.mrf.mxu0
        %v5639 = vadd.f32 %v5620, %v5638
        %v5640 = vpop.f32.mrf.mxu0
        %v5641 = vadd.f32 %v5622, %v5640
        %5642 = vmatmul.bf16.gmra.mxu0 %v1527
        %v5643 = vpop.f32.mrf.mxu0
        %v5644 = vadd.f32 %v5625, %v5643
        %v5645 = vpop.f32.mrf.mxu0
        %v5646 = vadd.f32 %v5627, %v5645
        %5647 = vdwg.mxu0
        %5648 = vmatpush.bf16.msra.mxu0 %v4423
        %5649 = vmatpush.bf16.msra.mxu0 %v4413
        %5650 = vmatpush.bf16.msra.mxu0 %v4403
        %5651 = vmatpush.bf16.msra.mxu0 %v4393
        %5652 = vmatpush.bf16.msra.mxu0 %v4383
        %5653 = vmatpush.bf16.msra.mxu0 %v4373
        %5654 = vmatpush.bf16.msra.mxu0 %v4363
        %5655 = vmatpush.bf16.msra.mxu0 %v4353
        %5656 = vmatmul.bf16.gmra.mxu0 %v1518
        %v5657 = vpop.f32.mrf.mxu0
        %v5658 = vadd.f32 %v5639, %v5657
        %v5659 = vpop.f32.mrf.mxu0
        %v5660 = vadd.f32 %v5641, %v5659
        %5661 = vmatmul.bf16.gmra.mxu0 %v1528
        %v5662 = vpop.f32.mrf.mxu0
        %v5663 = vadd.f32 %v5644, %v5662
        %v5664 = vpop.f32.mrf.mxu0
        %v5665 = vadd.f32 %v5646, %v5664
        %5666 = vdwg.mxu0
        %5667 = vmatpush.bf16.msra.mxu0 %v4503
        %5668 = vmatpush.bf16.msra.mxu0 %v4493
        %5669 = vmatpush.bf16.msra.mxu0 %v4483
        %5670 = vmatpush.bf16.msra.mxu0 %v4473
        %5671 = vmatpush.bf16.msra.mxu0 %v4463
        %5672 = vmatpush.bf16.msra.mxu0 %v4453
        %5673 = vmatpush.bf16.msra.mxu0 %v4443
        %5674 = vmatpush.bf16.msra.mxu0 %v4433
        %5675 = vmatmul.bf16.gmra.mxu0 %v1519
        %v5676 = vpop.f32.mrf.mxu0
        %v5677 = vadd.f32 %v5658, %v5676
        %v5678 = vpop.f32.mrf.mxu0
        %v5679 = vadd.f32 %v5660, %v5678
        %5680 = vmatmul.bf16.gmra.mxu0 %v1529
        %v5681 = vpop.f32.mrf.mxu0
        %v5682 = vadd.f32 %v5663, %v5681
        %v5683 = vpop.f32.mrf.mxu0
        %v5684 = vadd.f32 %v5665, %v5683
        %5685 = vdwg.mxu0
        %5686 = vmatpush.bf16.msra.mxu0 %v4583
        %5687 = vmatpush.bf16.msra.mxu0 %v4573
        %5688 = vmatpush.bf16.msra.mxu0 %v4563
        %5689 = vmatpush.bf16.msra.mxu0 %v4553
        %5690 = vmatpush.bf16.msra.mxu0 %v4543
        %5691 = vmatpush.bf16.msra.mxu0 %v4533
        %5692 = vmatpush.bf16.msra.mxu0 %v4523
        %5693 = vmatpush.bf16.msra.mxu0 %v4513
        %5694 = vmatmul.bf16.gmra.mxu0 %v1520
        %v5695 = vpop.f32.mrf.mxu0
        %v5696 = vadd.f32 %v5677, %v5695
        %v5697 = vpop.f32.mrf.mxu0
        %v5698 = vadd.f32 %v5679, %v5697
        %5699 = vmatmul.bf16.gmra.mxu0 %v1530
        %v5700 = vpop.f32.mrf.mxu0
        %v5701 = vadd.f32 %v5682, %v5700
        %v5702 = vpop.f32.mrf.mxu0
        %v5703 = vadd.f32 %v5684, %v5702
        %5704 = vdwg.mxu0
        %5705 = vmatpush.bf16.msra.mxu0 %v4663
        %5706 = vmatpush.bf16.msra.mxu0 %v4653
        %5707 = vmatpush.bf16.msra.mxu0 %v4643
        %5708 = vmatpush.bf16.msra.mxu0 %v4633
        %5709 = vmatpush.bf16.msra.mxu0 %v4623
        %5710 = vmatpush.bf16.msra.mxu0 %v4613
        %5711 = vmatpush.bf16.msra.mxu0 %v4603
        %5712 = vmatpush.bf16.msra.mxu0 %v4593
        %5713 = vmatmul.bf16.gmra.mxu0 %v1521
        %v5714 = vpop.f32.mrf.mxu0
        %v5715 = vadd.f32 %v5696, %v5714
        %v5716 = vpop.f32.mrf.mxu0
        %v5717 = vadd.f32 %v5698, %v5716
        %5718 = vmatmul.bf16.gmra.mxu0 %v1531
        %v5719 = vpop.f32.mrf.mxu0
        %v5720 = vadd.f32 %v5701, %v5719
        %v5721 = vpop.f32.mrf.mxu0
        %v5722 = vadd.f32 %v5703, %v5721
        %5723 = vdwg.mxu0
        %5724 = vmatpush.bf16.msra.mxu0 %v4743
        %5725 = vmatpush.bf16.msra.mxu0 %v4733
        %5726 = vmatpush.bf16.msra.mxu0 %v4723
        %5727 = vmatpush.bf16.msra.mxu0 %v4713
        %5728 = vmatpush.bf16.msra.mxu0 %v4703
        %5729 = vmatpush.bf16.msra.mxu0 %v4693
        %5730 = vmatpush.bf16.msra.mxu0 %v4683
        %5731 = vmatpush.bf16.msra.mxu0 %v4673
        %5732 = vmatmul.bf16.gmra.mxu0 %v1522
        %v5733 = vpop.f32.mrf.mxu0
        %v5734 = vadd.f32 %v5715, %v5733
        %v5735 = vpop.f32.mrf.mxu0
        %v5736 = vadd.f32 %v5717, %v5735
        %5737 = vmatmul.bf16.gmra.mxu0 %v1532
        %v5738 = vpop.f32.mrf.mxu0
        %v5739 = vadd.f32 %v5720, %v5738
        %v5740 = vpop.f32.mrf.mxu0
        %v5741 = vadd.f32 %v5722, %v5740
        %5742 = vdwg.mxu0
        %5743 = vmatpush.bf16.msra.mxu0 %v4024
        %5744 = vmatpush.bf16.msra.mxu0 %v4014
        %5745 = vmatpush.bf16.msra.mxu0 %v4004
        %5746 = vmatpush.bf16.msra.mxu0 %v3994
        %5747 = vmatpush.bf16.msra.mxu0 %v3984
        %5748 = vmatpush.bf16.msra.mxu0 %v3974
        %5749 = vmatpush.bf16.msra.mxu0 %v3964
        %5750 = vmatpush.bf16.msra.mxu0 %v3954
        %5751 = vmatmul.bf16.gmra.mxu0 %v1513
        %v5752 = vpop.f32.mrf.mxu0
        %v5753 = vadd.f32 %v1434, %v5752
        %v5754 = vpop.f32.mrf.mxu0
        %v5755 = vadd.f32 %v1434, %v5754
        %5756 = vmatmul.bf16.gmra.mxu0 %v1523
        %v5757 = vpop.f32.mrf.mxu0
        %v5758 = vadd.f32 %v1434, %v5757
        %v5759 = vpop.f32.mrf.mxu0
        %v5760 = vadd.f32 %v1434, %v5759
        %5761 = vdwg.mxu0
        %5762 = vmatpush.bf16.msra.mxu0 %v4104
        %5763 = vmatpush.bf16.msra.mxu0 %v4094
        %5764 = vmatpush.bf16.msra.mxu0 %v4084
        %5765 = vmatpush.bf16.msra.mxu0 %v4074
        %5766 = vmatpush.bf16.msra.mxu0 %v4064
        %5767 = vmatpush.bf16.msra.mxu0 %v4054
        %5768 = vmatpush.bf16.msra.mxu0 %v4044
        %5769 = vmatpush.bf16.msra.mxu0 %v4034
        %5770 = vmatmul.bf16.gmra.mxu0 %v1514
        %v5771 = vpop.f32.mrf.mxu0
        %v5772 = vadd.f32 %v5753, %v5771
        %v5773 = vpop.f32.mrf.mxu0
        %v5774 = vadd.f32 %v5755, %v5773
        %5775 = vmatmul.bf16.gmra.mxu0 %v1524
        %v5776 = vpop.f32.mrf.mxu0
        %v5777 = vadd.f32 %v5758, %v5776
        %v5778 = vpop.f32.mrf.mxu0
        %v5779 = vadd.f32 %v5760, %v5778
        %5780 = vdwg.mxu0
        %5781 = vmatpush.bf16.msra.mxu0 %v4184
        %5782 = vmatpush.bf16.msra.mxu0 %v4174
        %5783 = vmatpush.bf16.msra.mxu0 %v4164
        %5784 = vmatpush.bf16.msra.mxu0 %v4154
        %5785 = vmatpush.bf16.msra.mxu0 %v4144
        %5786 = vmatpush.bf16.msra.mxu0 %v4134
        %5787 = vmatpush.bf16.msra.mxu0 %v4124
        %5788 = vmatpush.bf16.msra.mxu0 %v4114
        %5789 = vmatmul.bf16.gmra.mxu0 %v1515
        %v5790 = vpop.f32.mrf.mxu0
        %v5791 = vadd.f32 %v5772, %v5790
        %v5792 = vpop.f32.mrf.mxu0
        %v5793 = vadd.f32 %v5774, %v5792
        %5794 = vmatmul.bf16.gmra.mxu0 %v1525
        %v5795 = vpop.f32.mrf.mxu0
        %v5796 = vadd.f32 %v5777, %v5795
        %v5797 = vpop.f32.mrf.mxu0
        %v5798 = vadd.f32 %v5779, %v5797
        %5799 = vdwg.mxu0
        %5800 = vmatpush.bf16.msra.mxu0 %v4264
        %5801 = vmatpush.bf16.msra.mxu0 %v4254
        %5802 = vmatpush.bf16.msra.mxu0 %v4244
        %5803 = vmatpush.bf16.msra.mxu0 %v4234
        %5804 = vmatpush.bf16.msra.mxu0 %v4224
        %5805 = vmatpush.bf16.msra.mxu0 %v4214
        %5806 = vmatpush.bf16.msra.mxu0 %v4204
        %5807 = vmatpush.bf16.msra.mxu0 %v4194
        %5808 = vmatmul.bf16.gmra.mxu0 %v1516
        %v5809 = vpop.f32.mrf.mxu0
        %v5810 = vadd.f32 %v5791, %v5809
        %v5811 = vpop.f32.mrf.mxu0
        %v5812 = vadd.f32 %v5793, %v5811
        %5813 = vmatmul.bf16.gmra.mxu0 %v1526
        %v5814 = vpop.f32.mrf.mxu0
        %v5815 = vadd.f32 %v5796, %v5814
        %v5816 = vpop.f32.mrf.mxu0
        %v5817 = vadd.f32 %v5798, %v5816
        %5818 = vdwg.mxu0
        %5819 = vmatpush.bf16.msra.mxu0 %v4344
        %5820 = vmatpush.bf16.msra.mxu0 %v4334
        %5821 = vmatpush.bf16.msra.mxu0 %v4324
        %5822 = vmatpush.bf16.msra.mxu0 %v4314
        %5823 = vmatpush.bf16.msra.mxu0 %v4304
        %5824 = vmatpush.bf16.msra.mxu0 %v4294
        %5825 = vmatpush.bf16.msra.mxu0 %v4284
        %5826 = vmatpush.bf16.msra.mxu0 %v4274
        %5827 = vmatmul.bf16.gmra.mxu0 %v1517
        %v5828 = vpop.f32.mrf.mxu0
        %v5829 = vadd.f32 %v5810, %v5828
        %v5830 = vpop.f32.mrf.mxu0
        %v5831 = vadd.f32 %v5812, %v5830
        %5832 = vmatmul.bf16.gmra.mxu0 %v1527
        %v5833 = vpop.f32.mrf.mxu0
        %v5834 = vadd.f32 %v5815, %v5833
        %v5835 = vpop.f32.mrf.mxu0
        %v5836 = vadd.f32 %v5817, %v5835
        %5837 = vdwg.mxu0
        %5838 = vmatpush.bf16.msra.mxu0 %v4424
        %5839 = vmatpush.bf16.msra.mxu0 %v4414
        %5840 = vmatpush.bf16.msra.mxu0 %v4404
        %5841 = vmatpush.bf16.msra.mxu0 %v4394
        %5842 = vmatpush.bf16.msra.mxu0 %v4384
        %5843 = vmatpush.bf16.msra.mxu0 %v4374
        %5844 = vmatpush.bf16.msra.mxu0 %v4364
        %5845 = vmatpush.bf16.msra.mxu0 %v4354
        %5846 = vmatmul.bf16.gmra.mxu0 %v1518
        %v5847 = vpop.f32.mrf.mxu0
        %v5848 = vadd.f32 %v5829, %v5847
        %v5849 = vpop.f32.mrf.mxu0
        %v5850 = vadd.f32 %v5831, %v5849
        %5851 = vmatmul.bf16.gmra.mxu0 %v1528
        %v5852 = vpop.f32.mrf.mxu0
        %v5853 = vadd.f32 %v5834, %v5852
        %v5854 = vpop.f32.mrf.mxu0
        %v5855 = vadd.f32 %v5836, %v5854
        %5856 = vdwg.mxu0
        %5857 = vmatpush.bf16.msra.mxu0 %v4504
        %5858 = vmatpush.bf16.msra.mxu0 %v4494
        %5859 = vmatpush.bf16.msra.mxu0 %v4484
        %5860 = vmatpush.bf16.msra.mxu0 %v4474
        %5861 = vmatpush.bf16.msra.mxu0 %v4464
        %5862 = vmatpush.bf16.msra.mxu0 %v4454
        %5863 = vmatpush.bf16.msra.mxu0 %v4444
        %5864 = vmatpush.bf16.msra.mxu0 %v4434
        %5865 = vmatmul.bf16.gmra.mxu0 %v1519
        %v5866 = vpop.f32.mrf.mxu0
        %v5867 = vadd.f32 %v5848, %v5866
        %v5868 = vpop.f32.mrf.mxu0
        %v5869 = vadd.f32 %v5850, %v5868
        %5870 = vmatmul.bf16.gmra.mxu0 %v1529
        %v5871 = vpop.f32.mrf.mxu0
        %v5872 = vadd.f32 %v5853, %v5871
        %v5873 = vpop.f32.mrf.mxu0
        %v5874 = vadd.f32 %v5855, %v5873
        %5875 = vdwg.mxu0
        %5876 = vmatpush.bf16.msra.mxu0 %v4584
        %5877 = vmatpush.bf16.msra.mxu0 %v4574
        %5878 = vmatpush.bf16.msra.mxu0 %v4564
        %5879 = vmatpush.bf16.msra.mxu0 %v4554
        %5880 = vmatpush.bf16.msra.mxu0 %v4544
        %5881 = vmatpush.bf16.msra.mxu0 %v4534
        %5882 = vmatpush.bf16.msra.mxu0 %v4524
        %5883 = vmatpush.bf16.msra.mxu0 %v4514
        %5884 = vmatmul.bf16.gmra.mxu0 %v1520
        %v5885 = vpop.f32.mrf.mxu0
        %v5886 = vadd.f32 %v5867, %v5885
        %v5887 = vpop.f32.mrf.mxu0
        %v5888 = vadd.f32 %v5869, %v5887
        %5889 = vmatmul.bf16.gmra.mxu0 %v1530
        %v5890 = vpop.f32.mrf.mxu0
        %v5891 = vadd.f32 %v5872, %v5890
        %v5892 = vpop.f32.mrf.mxu0
        %v5893 = vadd.f32 %v5874, %v5892
        %5894 = vdwg.mxu0
        %5895 = vmatpush.bf16.msra.mxu0 %v4664
        %5896 = vmatpush.bf16.msra.mxu0 %v4654
        %5897 = vmatpush.bf16.msra.mxu0 %v4644
        %5898 = vmatpush.bf16.msra.mxu0 %v4634
        %5899 = vmatpush.bf16.msra.mxu0 %v4624
        %5900 = vmatpush.bf16.msra.mxu0 %v4614
        %5901 = vmatpush.bf16.msra.mxu0 %v4604
        %5902 = vmatpush.bf16.msra.mxu0 %v4594
        %5903 = vmatmul.bf16.gmra.mxu0 %v1521
        %v5904 = vpop.f32.mrf.mxu0
        %v5905 = vadd.f32 %v5886, %v5904
        %v5906 = vpop.f32.mrf.mxu0
        %v5907 = vadd.f32 %v5888, %v5906
        %5908 = vmatmul.bf16.gmra.mxu0 %v1531
        %v5909 = vpop.f32.mrf.mxu0
        %v5910 = vadd.f32 %v5891, %v5909
        %v5911 = vpop.f32.mrf.mxu0
        %v5912 = vadd.f32 %v5893, %v5911
        %5913 = vdwg.mxu0
        %5914 = vmatpush.bf16.msra.mxu0 %v4744
        %5915 = vmatpush.bf16.msra.mxu0 %v4734
        %5916 = vmatpush.bf16.msra.mxu0 %v4724
        %5917 = vmatpush.bf16.msra.mxu0 %v4714
        %5918 = vmatpush.bf16.msra.mxu0 %v4704
        %5919 = vmatpush.bf16.msra.mxu0 %v4694
        %5920 = vmatpush.bf16.msra.mxu0 %v4684
        %5921 = vmatpush.bf16.msra.mxu0 %v4674
        %5922 = vmatmul.bf16.gmra.mxu0 %v1522
        %v5923 = vpop.f32.mrf.mxu0
        %v5924 = vadd.f32 %v5905, %v5923
        %v5925 = vpop.f32.mrf.mxu0
        %v5926 = vadd.f32 %v5907, %v5925
        %5927 = vmatmul.bf16.gmra.mxu0 %v1532
        %v5928 = vpop.f32.mrf.mxu0
        %v5929 = vadd.f32 %v5910, %v5928
        %v5930 = vpop.f32.mrf.mxu0
        %v5931 = vadd.f32 %v5912, %v5930
        %5932 = vdwg.mxu0
        %5933 = vmatpush.bf16.msra.mxu0 %v4025
        %5934 = vmatpush.bf16.msra.mxu0 %v4015
        %5935 = vmatpush.bf16.msra.mxu0 %v4005
        %5936 = vmatpush.bf16.msra.mxu0 %v3995
        %5937 = vmatpush.bf16.msra.mxu0 %v3985
        %5938 = vmatpush.bf16.msra.mxu0 %v3975
        %5939 = vmatpush.bf16.msra.mxu0 %v3965
        %5940 = vmatpush.bf16.msra.mxu0 %v3955
        %5941 = vmatmul.bf16.gmra.mxu0 %v1513
        %v5942 = vpop.f32.mrf.mxu0
        %v5943 = vadd.f32 %v1435, %v5942
        %v5944 = vpop.f32.mrf.mxu0
        %v5945 = vadd.f32 %v1435, %v5944
        %5946 = vmatmul.bf16.gmra.mxu0 %v1523
        %v5947 = vpop.f32.mrf.mxu0
        %v5948 = vadd.f32 %v1435, %v5947
        %v5949 = vpop.f32.mrf.mxu0
        %v5950 = vadd.f32 %v1435, %v5949
        %5951 = vdwg.mxu0
        %5952 = vmatpush.bf16.msra.mxu0 %v4105
        %5953 = vmatpush.bf16.msra.mxu0 %v4095
        %5954 = vmatpush.bf16.msra.mxu0 %v4085
        %5955 = vmatpush.bf16.msra.mxu0 %v4075
        %5956 = vmatpush.bf16.msra.mxu0 %v4065
        %5957 = vmatpush.bf16.msra.mxu0 %v4055
        %5958 = vmatpush.bf16.msra.mxu0 %v4045
        %5959 = vmatpush.bf16.msra.mxu0 %v4035
        %5960 = vmatmul.bf16.gmra.mxu0 %v1514
        %v5961 = vpop.f32.mrf.mxu0
        %v5962 = vadd.f32 %v5943, %v5961
        %v5963 = vpop.f32.mrf.mxu0
        %v5964 = vadd.f32 %v5945, %v5963
        %5965 = vmatmul.bf16.gmra.mxu0 %v1524
        %v5966 = vpop.f32.mrf.mxu0
        %v5967 = vadd.f32 %v5948, %v5966
        %v5968 = vpop.f32.mrf.mxu0
        %v5969 = vadd.f32 %v5950, %v5968
        %5970 = vdwg.mxu0
        %5971 = vmatpush.bf16.msra.mxu0 %v4185
        %5972 = vmatpush.bf16.msra.mxu0 %v4175
        %5973 = vmatpush.bf16.msra.mxu0 %v4165
        %5974 = vmatpush.bf16.msra.mxu0 %v4155
        %5975 = vmatpush.bf16.msra.mxu0 %v4145
        %5976 = vmatpush.bf16.msra.mxu0 %v4135
        %5977 = vmatpush.bf16.msra.mxu0 %v4125
        %5978 = vmatpush.bf16.msra.mxu0 %v4115
        %5979 = vmatmul.bf16.gmra.mxu0 %v1515
        %v5980 = vpop.f32.mrf.mxu0
        %v5981 = vadd.f32 %v5962, %v5980
        %v5982 = vpop.f32.mrf.mxu0
        %v5983 = vadd.f32 %v5964, %v5982
        %5984 = vmatmul.bf16.gmra.mxu0 %v1525
        %v5985 = vpop.f32.mrf.mxu0
        %v5986 = vadd.f32 %v5967, %v5985
        %v5987 = vpop.f32.mrf.mxu0
        %v5988 = vadd.f32 %v5969, %v5987
        %5989 = vdwg.mxu0
        %5990 = vmatpush.bf16.msra.mxu0 %v4265
        %5991 = vmatpush.bf16.msra.mxu0 %v4255
        %5992 = vmatpush.bf16.msra.mxu0 %v4245
        %5993 = vmatpush.bf16.msra.mxu0 %v4235
        %5994 = vmatpush.bf16.msra.mxu0 %v4225
        %5995 = vmatpush.bf16.msra.mxu0 %v4215
        %5996 = vmatpush.bf16.msra.mxu0 %v4205
        %5997 = vmatpush.bf16.msra.mxu0 %v4195
        %5998 = vmatmul.bf16.gmra.mxu0 %v1516
        %v5999 = vpop.f32.mrf.mxu0
        %v6000 = vadd.f32 %v5981, %v5999
        %v6001 = vpop.f32.mrf.mxu0
        %v6002 = vadd.f32 %v5983, %v6001
        %6003 = vmatmul.bf16.gmra.mxu0 %v1526
        %v6004 = vpop.f32.mrf.mxu0
        %v6005 = vadd.f32 %v5986, %v6004
        %v6006 = vpop.f32.mrf.mxu0
        %v6007 = vadd.f32 %v5988, %v6006
        %6008 = vdwg.mxu0
        %6009 = vmatpush.bf16.msra.mxu0 %v4345
        %6010 = vmatpush.bf16.msra.mxu0 %v4335
        %6011 = vmatpush.bf16.msra.mxu0 %v4325
        %6012 = vmatpush.bf16.msra.mxu0 %v4315
        %6013 = vmatpush.bf16.msra.mxu0 %v4305
        %6014 = vmatpush.bf16.msra.mxu0 %v4295
        %6015 = vmatpush.bf16.msra.mxu0 %v4285
        %6016 = vmatpush.bf16.msra.mxu0 %v4275
        %6017 = vmatmul.bf16.gmra.mxu0 %v1517
        %v6018 = vpop.f32.mrf.mxu0
        %v6019 = vadd.f32 %v6000, %v6018
        %v6020 = vpop.f32.mrf.mxu0
        %v6021 = vadd.f32 %v6002, %v6020
        %6022 = vmatmul.bf16.gmra.mxu0 %v1527
        %v6023 = vpop.f32.mrf.mxu0
        %v6024 = vadd.f32 %v6005, %v6023
        %v6025 = vpop.f32.mrf.mxu0
        %v6026 = vadd.f32 %v6007, %v6025
        %6027 = vdwg.mxu0
        %6028 = vmatpush.bf16.msra.mxu0 %v4425
        %6029 = vmatpush.bf16.msra.mxu0 %v4415
        %6030 = vmatpush.bf16.msra.mxu0 %v4405
        %6031 = vmatpush.bf16.msra.mxu0 %v4395
        %6032 = vmatpush.bf16.msra.mxu0 %v4385
        %6033 = vmatpush.bf16.msra.mxu0 %v4375
        %6034 = vmatpush.bf16.msra.mxu0 %v4365
        %6035 = vmatpush.bf16.msra.mxu0 %v4355
        %6036 = vmatmul.bf16.gmra.mxu0 %v1518
        %v6037 = vpop.f32.mrf.mxu0
        %v6038 = vadd.f32 %v6019, %v6037
        %v6039 = vpop.f32.mrf.mxu0
        %v6040 = vadd.f32 %v6021, %v6039
        %6041 = vmatmul.bf16.gmra.mxu0 %v1528
        %v6042 = vpop.f32.mrf.mxu0
        %v6043 = vadd.f32 %v6024, %v6042
        %v6044 = vpop.f32.mrf.mxu0
        %v6045 = vadd.f32 %v6026, %v6044
        %6046 = vdwg.mxu0
        %6047 = vmatpush.bf16.msra.mxu0 %v4505
        %6048 = vmatpush.bf16.msra.mxu0 %v4495
        %6049 = vmatpush.bf16.msra.mxu0 %v4485
        %6050 = vmatpush.bf16.msra.mxu0 %v4475
        %6051 = vmatpush.bf16.msra.mxu0 %v4465
        %6052 = vmatpush.bf16.msra.mxu0 %v4455
        %6053 = vmatpush.bf16.msra.mxu0 %v4445
        %6054 = vmatpush.bf16.msra.mxu0 %v4435
        %6055 = vmatmul.bf16.gmra.mxu0 %v1519
        %v6056 = vpop.f32.mrf.mxu0
        %v6057 = vadd.f32 %v6038, %v6056
        %v6058 = vpop.f32.mrf.mxu0
        %v6059 = vadd.f32 %v6040, %v6058
        %6060 = vmatmul.bf16.gmra.mxu0 %v1529
        %v6061 = vpop.f32.mrf.mxu0
        %v6062 = vadd.f32 %v6043, %v6061
        %v6063 = vpop.f32.mrf.mxu0
        %v6064 = vadd.f32 %v6045, %v6063
        %6065 = vdwg.mxu0
        %6066 = vmatpush.bf16.msra.mxu0 %v4585
        %6067 = vmatpush.bf16.msra.mxu0 %v4575
        %6068 = vmatpush.bf16.msra.mxu0 %v4565
        %6069 = vmatpush.bf16.msra.mxu0 %v4555
        %6070 = vmatpush.bf16.msra.mxu0 %v4545
        %6071 = vmatpush.bf16.msra.mxu0 %v4535
        %6072 = vmatpush.bf16.msra.mxu0 %v4525
        %6073 = vmatpush.bf16.msra.mxu0 %v4515
        %6074 = vmatmul.bf16.gmra.mxu0 %v1520
        %v6075 = vpop.f32.mrf.mxu0
        %v6076 = vadd.f32 %v6057, %v6075
        %v6077 = vpop.f32.mrf.mxu0
        %v6078 = vadd.f32 %v6059, %v6077
        %6079 = vmatmul.bf16.gmra.mxu0 %v1530
        %v6080 = vpop.f32.mrf.mxu0
        %v6081 = vadd.f32 %v6062, %v6080
        %v6082 = vpop.f32.mrf.mxu0
        %v6083 = vadd.f32 %v6064, %v6082
        %6084 = vdwg.mxu0
        %6085 = vmatpush.bf16.msra.mxu0 %v4665
        %6086 = vmatpush.bf16.msra.mxu0 %v4655
        %6087 = vmatpush.bf16.msra.mxu0 %v4645
        %6088 = vmatpush.bf16.msra.mxu0 %v4635
        %6089 = vmatpush.bf16.msra.mxu0 %v4625
        %6090 = vmatpush.bf16.msra.mxu0 %v4615
        %6091 = vmatpush.bf16.msra.mxu0 %v4605
        %6092 = vmatpush.bf16.msra.mxu0 %v4595
        %6093 = vmatmul.bf16.gmra.mxu0 %v1521
        %v6094 = vpop.f32.mrf.mxu0
        %v6095 = vadd.f32 %v6076, %v6094
        %v6096 = vpop.f32.mrf.mxu0
        %v6097 = vadd.f32 %v6078, %v6096
        %6098 = vmatmul.bf16.gmra.mxu0 %v1531
        %v6099 = vpop.f32.mrf.mxu0
        %v6100 = vadd.f32 %v6081, %v6099
        %v6101 = vpop.f32.mrf.mxu0
        %v6102 = vadd.f32 %v6083, %v6101
        %6103 = vdwg.mxu0
        %6104 = vmatpush.bf16.msra.mxu0 %v4745
        %6105 = vmatpush.bf16.msra.mxu0 %v4735
        %6106 = vmatpush.bf16.msra.mxu0 %v4725
        %6107 = vmatpush.bf16.msra.mxu0 %v4715
        %6108 = vmatpush.bf16.msra.mxu0 %v4705
        %6109 = vmatpush.bf16.msra.mxu0 %v4695
        %6110 = vmatpush.bf16.msra.mxu0 %v4685
        %6111 = vmatpush.bf16.msra.mxu0 %v4675
        %6112 = vmatmul.bf16.gmra.mxu0 %v1522
        %v6113 = vpop.f32.mrf.mxu0
        %v6114 = vadd.f32 %v6095, %v6113
        %v6115 = vpop.f32.mrf.mxu0
        %v6116 = vadd.f32 %v6097, %v6115
        %6117 = vmatmul.bf16.gmra.mxu0 %v1532
        %v6118 = vpop.f32.mrf.mxu0
        %v6119 = vadd.f32 %v6100, %v6118
        %v6120 = vpop.f32.mrf.mxu0
        %v6121 = vadd.f32 %v6102, %v6120
        %6122 = vdwg.mxu0
        %6123 = vmatpush.bf16.msra.mxu0 %v4026
        %6124 = vmatpush.bf16.msra.mxu0 %v4016
        %6125 = vmatpush.bf16.msra.mxu0 %v4006
        %6126 = vmatpush.bf16.msra.mxu0 %v3996
        %6127 = vmatpush.bf16.msra.mxu0 %v3986
        %6128 = vmatpush.bf16.msra.mxu0 %v3976
        %6129 = vmatpush.bf16.msra.mxu0 %v3966
        %6130 = vmatpush.bf16.msra.mxu0 %v3956
        %6131 = vmatmul.bf16.gmra.mxu0 %v1513
        %v6132 = vpop.f32.mrf.mxu0
        %v6133 = vadd.f32 %v1436, %v6132
        %v6134 = vpop.f32.mrf.mxu0
        %v6135 = vadd.f32 %v1436, %v6134
        %6136 = vmatmul.bf16.gmra.mxu0 %v1523
        %v6137 = vpop.f32.mrf.mxu0
        %v6138 = vadd.f32 %v1436, %v6137
        %v6139 = vpop.f32.mrf.mxu0
        %v6140 = vadd.f32 %v1436, %v6139
        %6141 = vdwg.mxu0
        %6142 = vmatpush.bf16.msra.mxu0 %v4106
        %6143 = vmatpush.bf16.msra.mxu0 %v4096
        %6144 = vmatpush.bf16.msra.mxu0 %v4086
        %6145 = vmatpush.bf16.msra.mxu0 %v4076
        %6146 = vmatpush.bf16.msra.mxu0 %v4066
        %6147 = vmatpush.bf16.msra.mxu0 %v4056
        %6148 = vmatpush.bf16.msra.mxu0 %v4046
        %6149 = vmatpush.bf16.msra.mxu0 %v4036
        %6150 = vmatmul.bf16.gmra.mxu0 %v1514
        %v6151 = vpop.f32.mrf.mxu0
        %v6152 = vadd.f32 %v6133, %v6151
        %v6153 = vpop.f32.mrf.mxu0
        %v6154 = vadd.f32 %v6135, %v6153
        %6155 = vmatmul.bf16.gmra.mxu0 %v1524
        %v6156 = vpop.f32.mrf.mxu0
        %v6157 = vadd.f32 %v6138, %v6156
        %v6158 = vpop.f32.mrf.mxu0
        %v6159 = vadd.f32 %v6140, %v6158
        %6160 = vdwg.mxu0
        %6161 = vmatpush.bf16.msra.mxu0 %v4186
        %6162 = vmatpush.bf16.msra.mxu0 %v4176
        %6163 = vmatpush.bf16.msra.mxu0 %v4166
        %6164 = vmatpush.bf16.msra.mxu0 %v4156
        %6165 = vmatpush.bf16.msra.mxu0 %v4146
        %6166 = vmatpush.bf16.msra.mxu0 %v4136
        %6167 = vmatpush.bf16.msra.mxu0 %v4126
        %6168 = vmatpush.bf16.msra.mxu0 %v4116
        %6169 = vmatmul.bf16.gmra.mxu0 %v1515
        %v6170 = vpop.f32.mrf.mxu0
        %v6171 = vadd.f32 %v6152, %v6170
        %v6172 = vpop.f32.mrf.mxu0
        %v6173 = vadd.f32 %v6154, %v6172
        %6174 = vmatmul.bf16.gmra.mxu0 %v1525
        %v6175 = vpop.f32.mrf.mxu0
        %v6176 = vadd.f32 %v6157, %v6175
        %v6177 = vpop.f32.mrf.mxu0
        %v6178 = vadd.f32 %v6159, %v6177
        %6179 = vdwg.mxu0
        %6180 = vmatpush.bf16.msra.mxu0 %v4266
        %6181 = vmatpush.bf16.msra.mxu0 %v4256
        %6182 = vmatpush.bf16.msra.mxu0 %v4246
        %6183 = vmatpush.bf16.msra.mxu0 %v4236
        %6184 = vmatpush.bf16.msra.mxu0 %v4226
        %6185 = vmatpush.bf16.msra.mxu0 %v4216
        %6186 = vmatpush.bf16.msra.mxu0 %v4206
        %6187 = vmatpush.bf16.msra.mxu0 %v4196
        %6188 = vmatmul.bf16.gmra.mxu0 %v1516
        %v6189 = vpop.f32.mrf.mxu0
        %v6190 = vadd.f32 %v6171, %v6189
        %v6191 = vpop.f32.mrf.mxu0
        %v6192 = vadd.f32 %v6173, %v6191
        %6193 = vmatmul.bf16.gmra.mxu0 %v1526
        %v6194 = vpop.f32.mrf.mxu0
        %v6195 = vadd.f32 %v6176, %v6194
        %v6196 = vpop.f32.mrf.mxu0
        %v6197 = vadd.f32 %v6178, %v6196
        %6198 = vdwg.mxu0
        %6199 = vmatpush.bf16.msra.mxu0 %v4346
        %6200 = vmatpush.bf16.msra.mxu0 %v4336
        %6201 = vmatpush.bf16.msra.mxu0 %v4326
        %6202 = vmatpush.bf16.msra.mxu0 %v4316
        %6203 = vmatpush.bf16.msra.mxu0 %v4306
        %6204 = vmatpush.bf16.msra.mxu0 %v4296
        %6205 = vmatpush.bf16.msra.mxu0 %v4286
        %6206 = vmatpush.bf16.msra.mxu0 %v4276
        %6207 = vmatmul.bf16.gmra.mxu0 %v1517
        %v6208 = vpop.f32.mrf.mxu0
        %v6209 = vadd.f32 %v6190, %v6208
        %v6210 = vpop.f32.mrf.mxu0
        %v6211 = vadd.f32 %v6192, %v6210
        %6212 = vmatmul.bf16.gmra.mxu0 %v1527
        %v6213 = vpop.f32.mrf.mxu0
        %v6214 = vadd.f32 %v6195, %v6213
        %v6215 = vpop.f32.mrf.mxu0
        %v6216 = vadd.f32 %v6197, %v6215
        %6217 = vdwg.mxu0
        %6218 = vmatpush.bf16.msra.mxu0 %v4426
        %6219 = vmatpush.bf16.msra.mxu0 %v4416
        %6220 = vmatpush.bf16.msra.mxu0 %v4406
        %6221 = vmatpush.bf16.msra.mxu0 %v4396
        %6222 = vmatpush.bf16.msra.mxu0 %v4386
        %6223 = vmatpush.bf16.msra.mxu0 %v4376
        %6224 = vmatpush.bf16.msra.mxu0 %v4366
        %6225 = vmatpush.bf16.msra.mxu0 %v4356
        %6226 = vmatmul.bf16.gmra.mxu0 %v1518
        %v6227 = vpop.f32.mrf.mxu0
        %v6228 = vadd.f32 %v6209, %v6227
        %v6229 = vpop.f32.mrf.mxu0
        %v6230 = vadd.f32 %v6211, %v6229
        %6231 = vmatmul.bf16.gmra.mxu0 %v1528
        %v6232 = vpop.f32.mrf.mxu0
        %v6233 = vadd.f32 %v6214, %v6232
        %v6234 = vpop.f32.mrf.mxu0
        %v6235 = vadd.f32 %v6216, %v6234
        %6236 = vdwg.mxu0
        %6237 = vmatpush.bf16.msra.mxu0 %v4506
        %6238 = vmatpush.bf16.msra.mxu0 %v4496
        %6239 = vmatpush.bf16.msra.mxu0 %v4486
        %6240 = vmatpush.bf16.msra.mxu0 %v4476
        %6241 = vmatpush.bf16.msra.mxu0 %v4466
        %6242 = vmatpush.bf16.msra.mxu0 %v4456
        %6243 = vmatpush.bf16.msra.mxu0 %v4446
        %6244 = vmatpush.bf16.msra.mxu0 %v4436
        %6245 = vmatmul.bf16.gmra.mxu0 %v1519
        %v6246 = vpop.f32.mrf.mxu0
        %v6247 = vadd.f32 %v6228, %v6246
        %v6248 = vpop.f32.mrf.mxu0
        %v6249 = vadd.f32 %v6230, %v6248
        %6250 = vmatmul.bf16.gmra.mxu0 %v1529
        %v6251 = vpop.f32.mrf.mxu0
        %v6252 = vadd.f32 %v6233, %v6251
        %v6253 = vpop.f32.mrf.mxu0
        %v6254 = vadd.f32 %v6235, %v6253
        %6255 = vdwg.mxu0
        %6256 = vmatpush.bf16.msra.mxu0 %v4586
        %6257 = vmatpush.bf16.msra.mxu0 %v4576
        %6258 = vmatpush.bf16.msra.mxu0 %v4566
        %6259 = vmatpush.bf16.msra.mxu0 %v4556
        %6260 = vmatpush.bf16.msra.mxu0 %v4546
        %6261 = vmatpush.bf16.msra.mxu0 %v4536
        %6262 = vmatpush.bf16.msra.mxu0 %v4526
        %6263 = vmatpush.bf16.msra.mxu0 %v4516
        %6264 = vmatmul.bf16.gmra.mxu0 %v1520
        %v6265 = vpop.f32.mrf.mxu0
        %v6266 = vadd.f32 %v6247, %v6265
        %v6267 = vpop.f32.mrf.mxu0
        %v6268 = vadd.f32 %v6249, %v6267
        %6269 = vmatmul.bf16.gmra.mxu0 %v1530
        %v6270 = vpop.f32.mrf.mxu0
        %v6271 = vadd.f32 %v6252, %v6270
        %v6272 = vpop.f32.mrf.mxu0
        %v6273 = vadd.f32 %v6254, %v6272
        %6274 = vdwg.mxu0
        %6275 = vmatpush.bf16.msra.mxu0 %v4666
        %6276 = vmatpush.bf16.msra.mxu0 %v4656
        %6277 = vmatpush.bf16.msra.mxu0 %v4646
        %6278 = vmatpush.bf16.msra.mxu0 %v4636
        %6279 = vmatpush.bf16.msra.mxu0 %v4626
        %6280 = vmatpush.bf16.msra.mxu0 %v4616
        %6281 = vmatpush.bf16.msra.mxu0 %v4606
        %6282 = vmatpush.bf16.msra.mxu0 %v4596
        %6283 = vmatmul.bf16.gmra.mxu0 %v1521
        %v6284 = vpop.f32.mrf.mxu0
        %v6285 = vadd.f32 %v6266, %v6284
        %v6286 = vpop.f32.mrf.mxu0
        %v6287 = vadd.f32 %v6268, %v6286
        %6288 = vmatmul.bf16.gmra.mxu0 %v1531
        %v6289 = vpop.f32.mrf.mxu0
        %v6290 = vadd.f32 %v6271, %v6289
        %v6291 = vpop.f32.mrf.mxu0
        %v6292 = vadd.f32 %v6273, %v6291
        %6293 = vdwg.mxu0
        %6294 = vmatpush.bf16.msra.mxu0 %v4746
        %6295 = vmatpush.bf16.msra.mxu0 %v4736
        %6296 = vmatpush.bf16.msra.mxu0 %v4726
        %6297 = vmatpush.bf16.msra.mxu0 %v4716
        %6298 = vmatpush.bf16.msra.mxu0 %v4706
        %6299 = vmatpush.bf16.msra.mxu0 %v4696
        %6300 = vmatpush.bf16.msra.mxu0 %v4686
        %6301 = vmatpush.bf16.msra.mxu0 %v4676
        %6302 = vmatmul.bf16.gmra.mxu0 %v1522
        %v6303 = vpop.f32.mrf.mxu0
        %v6304 = vadd.f32 %v6285, %v6303
        %v6305 = vpop.f32.mrf.mxu0
        %v6306 = vadd.f32 %v6287, %v6305
        %6307 = vmatmul.bf16.gmra.mxu0 %v1532
        %v6308 = vpop.f32.mrf.mxu0
        %v6309 = vadd.f32 %v6290, %v6308
        %v6310 = vpop.f32.mrf.mxu0
        %v6311 = vadd.f32 %v6292, %v6310
        %6312 = vdwg.mxu0
        %6313 = vmatpush.bf16.msra.mxu0 %v4027
        %6314 = vmatpush.bf16.msra.mxu0 %v4017
        %6315 = vmatpush.bf16.msra.mxu0 %v4007
        %6316 = vmatpush.bf16.msra.mxu0 %v3997
        %6317 = vmatpush.bf16.msra.mxu0 %v3987
        %6318 = vmatpush.bf16.msra.mxu0 %v3977
        %6319 = vmatpush.bf16.msra.mxu0 %v3967
        %6320 = vmatpush.bf16.msra.mxu0 %v3957
        %6321 = vmatmul.bf16.gmra.mxu0 %v1513
        %v6322 = vpop.f32.mrf.mxu0
        %v6323 = vadd.f32 %v1437, %v6322
        %v6324 = vpop.f32.mrf.mxu0
        %v6325 = vadd.f32 %v1437, %v6324
        %6326 = vmatmul.bf16.gmra.mxu0 %v1523
        %v6327 = vpop.f32.mrf.mxu0
        %v6328 = vadd.f32 %v1437, %v6327
        %v6329 = vpop.f32.mrf.mxu0
        %v6330 = vadd.f32 %v1437, %v6329
        %6331 = vdwg.mxu0
        %6332 = vmatpush.bf16.msra.mxu0 %v4107
        %6333 = vmatpush.bf16.msra.mxu0 %v4097
        %6334 = vmatpush.bf16.msra.mxu0 %v4087
        %6335 = vmatpush.bf16.msra.mxu0 %v4077
        %6336 = vmatpush.bf16.msra.mxu0 %v4067
        %6337 = vmatpush.bf16.msra.mxu0 %v4057
        %6338 = vmatpush.bf16.msra.mxu0 %v4047
        %6339 = vmatpush.bf16.msra.mxu0 %v4037
        %6340 = vmatmul.bf16.gmra.mxu0 %v1514
        %v6341 = vpop.f32.mrf.mxu0
        %v6342 = vadd.f32 %v6323, %v6341
        %v6343 = vpop.f32.mrf.mxu0
        %v6344 = vadd.f32 %v6325, %v6343
        %6345 = vmatmul.bf16.gmra.mxu0 %v1524
        %v6346 = vpop.f32.mrf.mxu0
        %v6347 = vadd.f32 %v6328, %v6346
        %v6348 = vpop.f32.mrf.mxu0
        %v6349 = vadd.f32 %v6330, %v6348
        %6350 = vdwg.mxu0
        %6351 = vmatpush.bf16.msra.mxu0 %v4187
        %6352 = vmatpush.bf16.msra.mxu0 %v4177
        %6353 = vmatpush.bf16.msra.mxu0 %v4167
        %6354 = vmatpush.bf16.msra.mxu0 %v4157
        %6355 = vmatpush.bf16.msra.mxu0 %v4147
        %6356 = vmatpush.bf16.msra.mxu0 %v4137
        %6357 = vmatpush.bf16.msra.mxu0 %v4127
        %6358 = vmatpush.bf16.msra.mxu0 %v4117
        %6359 = vmatmul.bf16.gmra.mxu0 %v1515
        %v6360 = vpop.f32.mrf.mxu0
        %v6361 = vadd.f32 %v6342, %v6360
        %v6362 = vpop.f32.mrf.mxu0
        %v6363 = vadd.f32 %v6344, %v6362
        %6364 = vmatmul.bf16.gmra.mxu0 %v1525
        %v6365 = vpop.f32.mrf.mxu0
        %v6366 = vadd.f32 %v6347, %v6365
        %v6367 = vpop.f32.mrf.mxu0
        %v6368 = vadd.f32 %v6349, %v6367
        %6369 = vdwg.mxu0
        %6370 = vmatpush.bf16.msra.mxu0 %v4267
        %6371 = vmatpush.bf16.msra.mxu0 %v4257
        %6372 = vmatpush.bf16.msra.mxu0 %v4247
        %6373 = vmatpush.bf16.msra.mxu0 %v4237
        %6374 = vmatpush.bf16.msra.mxu0 %v4227
        %6375 = vmatpush.bf16.msra.mxu0 %v4217
        %6376 = vmatpush.bf16.msra.mxu0 %v4207
        %6377 = vmatpush.bf16.msra.mxu0 %v4197
        %6378 = vmatmul.bf16.gmra.mxu0 %v1516
        %v6379 = vpop.f32.mrf.mxu0
        %v6380 = vadd.f32 %v6361, %v6379
        %v6381 = vpop.f32.mrf.mxu0
        %v6382 = vadd.f32 %v6363, %v6381
        %6383 = vmatmul.bf16.gmra.mxu0 %v1526
        %v6384 = vpop.f32.mrf.mxu0
        %v6385 = vadd.f32 %v6366, %v6384
        %v6386 = vpop.f32.mrf.mxu0
        %v6387 = vadd.f32 %v6368, %v6386
        %6388 = vdwg.mxu0
        %6389 = vmatpush.bf16.msra.mxu0 %v4347
        %6390 = vmatpush.bf16.msra.mxu0 %v4337
        %6391 = vmatpush.bf16.msra.mxu0 %v4327
        %6392 = vmatpush.bf16.msra.mxu0 %v4317
        %6393 = vmatpush.bf16.msra.mxu0 %v4307
        %6394 = vmatpush.bf16.msra.mxu0 %v4297
        %6395 = vmatpush.bf16.msra.mxu0 %v4287
        %6396 = vmatpush.bf16.msra.mxu0 %v4277
        %6397 = vmatmul.bf16.gmra.mxu0 %v1517
        %v6398 = vpop.f32.mrf.mxu0
        %v6399 = vadd.f32 %v6380, %v6398
        %v6400 = vpop.f32.mrf.mxu0
        %v6401 = vadd.f32 %v6382, %v6400
        %6402 = vmatmul.bf16.gmra.mxu0 %v1527
        %v6403 = vpop.f32.mrf.mxu0
        %v6404 = vadd.f32 %v6385, %v6403
        %v6405 = vpop.f32.mrf.mxu0
        %v6406 = vadd.f32 %v6387, %v6405
        %6407 = vdwg.mxu0
        %6408 = vmatpush.bf16.msra.mxu0 %v4427
        %6409 = vmatpush.bf16.msra.mxu0 %v4417
        %6410 = vmatpush.bf16.msra.mxu0 %v4407
        %6411 = vmatpush.bf16.msra.mxu0 %v4397
        %6412 = vmatpush.bf16.msra.mxu0 %v4387
        %6413 = vmatpush.bf16.msra.mxu0 %v4377
        %6414 = vmatpush.bf16.msra.mxu0 %v4367
        %6415 = vmatpush.bf16.msra.mxu0 %v4357
        %6416 = vmatmul.bf16.gmra.mxu0 %v1518
        %v6417 = vpop.f32.mrf.mxu0
        %v6418 = vadd.f32 %v6399, %v6417
        %v6419 = vpop.f32.mrf.mxu0
        %v6420 = vadd.f32 %v6401, %v6419
        %6421 = vmatmul.bf16.gmra.mxu0 %v1528
        %v6422 = vpop.f32.mrf.mxu0
        %v6423 = vadd.f32 %v6404, %v6422
        %v6424 = vpop.f32.mrf.mxu0
        %v6425 = vadd.f32 %v6406, %v6424
        %6426 = vdwg.mxu0
        %6427 = vmatpush.bf16.msra.mxu0 %v4507
        %6428 = vmatpush.bf16.msra.mxu0 %v4497
        %6429 = vmatpush.bf16.msra.mxu0 %v4487
        %6430 = vmatpush.bf16.msra.mxu0 %v4477
        %6431 = vmatpush.bf16.msra.mxu0 %v4467
        %6432 = vmatpush.bf16.msra.mxu0 %v4457
        %6433 = vmatpush.bf16.msra.mxu0 %v4447
        %6434 = vmatpush.bf16.msra.mxu0 %v4437
        %6435 = vmatmul.bf16.gmra.mxu0 %v1519
        %v6436 = vpop.f32.mrf.mxu0
        %v6437 = vadd.f32 %v6418, %v6436
        %v6438 = vpop.f32.mrf.mxu0
        %v6439 = vadd.f32 %v6420, %v6438
        %6440 = vmatmul.bf16.gmra.mxu0 %v1529
        %v6441 = vpop.f32.mrf.mxu0
        %v6442 = vadd.f32 %v6423, %v6441
        %v6443 = vpop.f32.mrf.mxu0
        %v6444 = vadd.f32 %v6425, %v6443
        %6445 = vdwg.mxu0
        %6446 = vmatpush.bf16.msra.mxu0 %v4587
        %6447 = vmatpush.bf16.msra.mxu0 %v4577
        %6448 = vmatpush.bf16.msra.mxu0 %v4567
        %6449 = vmatpush.bf16.msra.mxu0 %v4557
        %6450 = vmatpush.bf16.msra.mxu0 %v4547
        %6451 = vmatpush.bf16.msra.mxu0 %v4537
        %6452 = vmatpush.bf16.msra.mxu0 %v4527
        %6453 = vmatpush.bf16.msra.mxu0 %v4517
        %6454 = vmatmul.bf16.gmra.mxu0 %v1520
        %v6455 = vpop.f32.mrf.mxu0
        %v6456 = vadd.f32 %v6437, %v6455
        %v6457 = vpop.f32.mrf.mxu0
        %v6458 = vadd.f32 %v6439, %v6457
        %6459 = vmatmul.bf16.gmra.mxu0 %v1530
        %v6460 = vpop.f32.mrf.mxu0
        %v6461 = vadd.f32 %v6442, %v6460
        %v6462 = vpop.f32.mrf.mxu0
        %v6463 = vadd.f32 %v6444, %v6462
        %6464 = vdwg.mxu0
        %6465 = vmatpush.bf16.msra.mxu0 %v4667
        %6466 = vmatpush.bf16.msra.mxu0 %v4657
        %6467 = vmatpush.bf16.msra.mxu0 %v4647
        %6468 = vmatpush.bf16.msra.mxu0 %v4637
        %6469 = vmatpush.bf16.msra.mxu0 %v4627
        %6470 = vmatpush.bf16.msra.mxu0 %v4617
        %6471 = vmatpush.bf16.msra.mxu0 %v4607
        %6472 = vmatpush.bf16.msra.mxu0 %v4597
        %6473 = vmatmul.bf16.gmra.mxu0 %v1521
        %v6474 = vpop.f32.mrf.mxu0
        %v6475 = vadd.f32 %v6456, %v6474
        %v6476 = vpop.f32.mrf.mxu0
        %v6477 = vadd.f32 %v6458, %v6476
        %6478 = vmatmul.bf16.gmra.mxu0 %v1531
        %v6479 = vpop.f32.mrf.mxu0
        %v6480 = vadd.f32 %v6461, %v6479
        %v6481 = vpop.f32.mrf.mxu0
        %v6482 = vadd.f32 %v6463, %v6481
        %6483 = vdwg.mxu0
        %6484 = vmatpush.bf16.msra.mxu0 %v4747
        %6485 = vmatpush.bf16.msra.mxu0 %v4737
        %6486 = vmatpush.bf16.msra.mxu0 %v4727
        %6487 = vmatpush.bf16.msra.mxu0 %v4717
        %6488 = vmatpush.bf16.msra.mxu0 %v4707
        %6489 = vmatpush.bf16.msra.mxu0 %v4697
        %6490 = vmatpush.bf16.msra.mxu0 %v4687
        %6491 = vmatpush.bf16.msra.mxu0 %v4677
        %6492 = vmatmul.bf16.gmra.mxu0 %v1522
        %v6493 = vpop.f32.mrf.mxu0
        %v6494 = vadd.f32 %v6475, %v6493
        %v6495 = vpop.f32.mrf.mxu0
        %v6496 = vadd.f32 %v6477, %v6495
        %6497 = vmatmul.bf16.gmra.mxu0 %v1532
        %v6498 = vpop.f32.mrf.mxu0
        %v6499 = vadd.f32 %v6480, %v6498
        %v6500 = vpop.f32.mrf.mxu0
        %v6501 = vadd.f32 %v6482, %v6500
        %6502 = vdwg.mxu0
        %6503 = vmatpush.bf16.msra.mxu0 %v4028
        %6504 = vmatpush.bf16.msra.mxu0 %v4018
        %6505 = vmatpush.bf16.msra.mxu0 %v4008
        %6506 = vmatpush.bf16.msra.mxu0 %v3998
        %6507 = vmatpush.bf16.msra.mxu0 %v3988
        %6508 = vmatpush.bf16.msra.mxu0 %v3978
        %6509 = vmatpush.bf16.msra.mxu0 %v3968
        %6510 = vmatpush.bf16.msra.mxu0 %v3958
        %6511 = vmatmul.bf16.gmra.mxu0 %v1513
        %v6512 = vpop.f32.mrf.mxu0
        %v6513 = vadd.f32 %v1438, %v6512
        %v6514 = vpop.f32.mrf.mxu0
        %v6515 = vadd.f32 %v1438, %v6514
        %6516 = vmatmul.bf16.gmra.mxu0 %v1523
        %v6517 = vpop.f32.mrf.mxu0
        %v6518 = vadd.f32 %v1438, %v6517
        %v6519 = vpop.f32.mrf.mxu0
        %v6520 = vadd.f32 %v1438, %v6519
        %6521 = vdwg.mxu0
        %6522 = vmatpush.bf16.msra.mxu0 %v4108
        %6523 = vmatpush.bf16.msra.mxu0 %v4098
        %6524 = vmatpush.bf16.msra.mxu0 %v4088
        %6525 = vmatpush.bf16.msra.mxu0 %v4078
        %6526 = vmatpush.bf16.msra.mxu0 %v4068
        %6527 = vmatpush.bf16.msra.mxu0 %v4058
        %6528 = vmatpush.bf16.msra.mxu0 %v4048
        %6529 = vmatpush.bf16.msra.mxu0 %v4038
        %6530 = vmatmul.bf16.gmra.mxu0 %v1514
        %v6531 = vpop.f32.mrf.mxu0
        %v6532 = vadd.f32 %v6513, %v6531
        %v6533 = vpop.f32.mrf.mxu0
        %v6534 = vadd.f32 %v6515, %v6533
        %6535 = vmatmul.bf16.gmra.mxu0 %v1524
        %v6536 = vpop.f32.mrf.mxu0
        %v6537 = vadd.f32 %v6518, %v6536
        %v6538 = vpop.f32.mrf.mxu0
        %v6539 = vadd.f32 %v6520, %v6538
        %6540 = vdwg.mxu0
        %6541 = vmatpush.bf16.msra.mxu0 %v4188
        %6542 = vmatpush.bf16.msra.mxu0 %v4178
        %6543 = vmatpush.bf16.msra.mxu0 %v4168
        %6544 = vmatpush.bf16.msra.mxu0 %v4158
        %6545 = vmatpush.bf16.msra.mxu0 %v4148
        %6546 = vmatpush.bf16.msra.mxu0 %v4138
        %6547 = vmatpush.bf16.msra.mxu0 %v4128
        %6548 = vmatpush.bf16.msra.mxu0 %v4118
        %6549 = vmatmul.bf16.gmra.mxu0 %v1515
        %v6550 = vpop.f32.mrf.mxu0
        %v6551 = vadd.f32 %v6532, %v6550
        %v6552 = vpop.f32.mrf.mxu0
        %v6553 = vadd.f32 %v6534, %v6552
        %6554 = vmatmul.bf16.gmra.mxu0 %v1525
        %v6555 = vpop.f32.mrf.mxu0
        %v6556 = vadd.f32 %v6537, %v6555
        %v6557 = vpop.f32.mrf.mxu0
        %v6558 = vadd.f32 %v6539, %v6557
        %6559 = vdwg.mxu0
        %6560 = vmatpush.bf16.msra.mxu0 %v4268
        %6561 = vmatpush.bf16.msra.mxu0 %v4258
        %6562 = vmatpush.bf16.msra.mxu0 %v4248
        %6563 = vmatpush.bf16.msra.mxu0 %v4238
        %6564 = vmatpush.bf16.msra.mxu0 %v4228
        %6565 = vmatpush.bf16.msra.mxu0 %v4218
        %6566 = vmatpush.bf16.msra.mxu0 %v4208
        %6567 = vmatpush.bf16.msra.mxu0 %v4198
        %6568 = vmatmul.bf16.gmra.mxu0 %v1516
        %v6569 = vpop.f32.mrf.mxu0
        %v6570 = vadd.f32 %v6551, %v6569
        %v6571 = vpop.f32.mrf.mxu0
        %v6572 = vadd.f32 %v6553, %v6571
        %6573 = vmatmul.bf16.gmra.mxu0 %v1526
        %v6574 = vpop.f32.mrf.mxu0
        %v6575 = vadd.f32 %v6556, %v6574
        %v6576 = vpop.f32.mrf.mxu0
        %v6577 = vadd.f32 %v6558, %v6576
        %6578 = vdwg.mxu0
        %6579 = vmatpush.bf16.msra.mxu0 %v4348
        %6580 = vmatpush.bf16.msra.mxu0 %v4338
        %6581 = vmatpush.bf16.msra.mxu0 %v4328
        %6582 = vmatpush.bf16.msra.mxu0 %v4318
        %6583 = vmatpush.bf16.msra.mxu0 %v4308
        %6584 = vmatpush.bf16.msra.mxu0 %v4298
        %6585 = vmatpush.bf16.msra.mxu0 %v4288
        %6586 = vmatpush.bf16.msra.mxu0 %v4278
        %6587 = vmatmul.bf16.gmra.mxu0 %v1517
        %v6588 = vpop.f32.mrf.mxu0
        %v6589 = vadd.f32 %v6570, %v6588
        %v6590 = vpop.f32.mrf.mxu0
        %v6591 = vadd.f32 %v6572, %v6590
        %6592 = vmatmul.bf16.gmra.mxu0 %v1527
        %v6593 = vpop.f32.mrf.mxu0
        %v6594 = vadd.f32 %v6575, %v6593
        %v6595 = vpop.f32.mrf.mxu0
        %v6596 = vadd.f32 %v6577, %v6595
        %6597 = vdwg.mxu0
        %6598 = vmatpush.bf16.msra.mxu0 %v4428
        %6599 = vmatpush.bf16.msra.mxu0 %v4418
        %6600 = vmatpush.bf16.msra.mxu0 %v4408
        %6601 = vmatpush.bf16.msra.mxu0 %v4398
        %6602 = vmatpush.bf16.msra.mxu0 %v4388
        %6603 = vmatpush.bf16.msra.mxu0 %v4378
        %6604 = vmatpush.bf16.msra.mxu0 %v4368
        %6605 = vmatpush.bf16.msra.mxu0 %v4358
        %6606 = vmatmul.bf16.gmra.mxu0 %v1518
        %v6607 = vpop.f32.mrf.mxu0
        %v6608 = vadd.f32 %v6589, %v6607
        %v6609 = vpop.f32.mrf.mxu0
        %v6610 = vadd.f32 %v6591, %v6609
        %6611 = vmatmul.bf16.gmra.mxu0 %v1528
        %v6612 = vpop.f32.mrf.mxu0
        %v6613 = vadd.f32 %v6594, %v6612
        %v6614 = vpop.f32.mrf.mxu0
        %v6615 = vadd.f32 %v6596, %v6614
        %6616 = vdwg.mxu0
        %6617 = vmatpush.bf16.msra.mxu0 %v4508
        %6618 = vmatpush.bf16.msra.mxu0 %v4498
        %6619 = vmatpush.bf16.msra.mxu0 %v4488
        %6620 = vmatpush.bf16.msra.mxu0 %v4478
        %6621 = vmatpush.bf16.msra.mxu0 %v4468
        %6622 = vmatpush.bf16.msra.mxu0 %v4458
        %6623 = vmatpush.bf16.msra.mxu0 %v4448
        %6624 = vmatpush.bf16.msra.mxu0 %v4438
        %6625 = vmatmul.bf16.gmra.mxu0 %v1519
        %v6626 = vpop.f32.mrf.mxu0
        %v6627 = vadd.f32 %v6608, %v6626
        %v6628 = vpop.f32.mrf.mxu0
        %v6629 = vadd.f32 %v6610, %v6628
        %6630 = vmatmul.bf16.gmra.mxu0 %v1529
        %v6631 = vpop.f32.mrf.mxu0
        %v6632 = vadd.f32 %v6613, %v6631
        %v6633 = vpop.f32.mrf.mxu0
        %v6634 = vadd.f32 %v6615, %v6633
        %6635 = vdwg.mxu0
        %6636 = vmatpush.bf16.msra.mxu0 %v4588
        %6637 = vmatpush.bf16.msra.mxu0 %v4578
        %6638 = vmatpush.bf16.msra.mxu0 %v4568
        %6639 = vmatpush.bf16.msra.mxu0 %v4558
        %6640 = vmatpush.bf16.msra.mxu0 %v4548
        %6641 = vmatpush.bf16.msra.mxu0 %v4538
        %6642 = vmatpush.bf16.msra.mxu0 %v4528
        %6643 = vmatpush.bf16.msra.mxu0 %v4518
        %6644 = vmatmul.bf16.gmra.mxu0 %v1520
        %v6645 = vpop.f32.mrf.mxu0
        %v6646 = vadd.f32 %v6627, %v6645
        %v6647 = vpop.f32.mrf.mxu0
        %v6648 = vadd.f32 %v6629, %v6647
        %6649 = vmatmul.bf16.gmra.mxu0 %v1530
        %v6650 = vpop.f32.mrf.mxu0
        %v6651 = vadd.f32 %v6632, %v6650
        %v6652 = vpop.f32.mrf.mxu0
        %v6653 = vadd.f32 %v6634, %v6652
        %6654 = vdwg.mxu0
        %6655 = vmatpush.bf16.msra.mxu0 %v4668
        %6656 = vmatpush.bf16.msra.mxu0 %v4658
        %6657 = vmatpush.bf16.msra.mxu0 %v4648
        %6658 = vmatpush.bf16.msra.mxu0 %v4638
        %6659 = vmatpush.bf16.msra.mxu0 %v4628
        %6660 = vmatpush.bf16.msra.mxu0 %v4618
        %6661 = vmatpush.bf16.msra.mxu0 %v4608
        %6662 = vmatpush.bf16.msra.mxu0 %v4598
        %6663 = vmatmul.bf16.gmra.mxu0 %v1521
        %v6664 = vpop.f32.mrf.mxu0
        %v6665 = vadd.f32 %v6646, %v6664
        %v6666 = vpop.f32.mrf.mxu0
        %v6667 = vadd.f32 %v6648, %v6666
        %6668 = vmatmul.bf16.gmra.mxu0 %v1531
        %v6669 = vpop.f32.mrf.mxu0
        %v6670 = vadd.f32 %v6651, %v6669
        %v6671 = vpop.f32.mrf.mxu0
        %v6672 = vadd.f32 %v6653, %v6671
        %6673 = vdwg.mxu0
        %6674 = vmatpush.bf16.msra.mxu0 %v4748
        %6675 = vmatpush.bf16.msra.mxu0 %v4738
        %6676 = vmatpush.bf16.msra.mxu0 %v4728
        %6677 = vmatpush.bf16.msra.mxu0 %v4718
        %6678 = vmatpush.bf16.msra.mxu0 %v4708
        %6679 = vmatpush.bf16.msra.mxu0 %v4698
        %6680 = vmatpush.bf16.msra.mxu0 %v4688
        %6681 = vmatpush.bf16.msra.mxu0 %v4678
        %6682 = vmatmul.bf16.gmra.mxu0 %v1522
        %v6683 = vpop.f32.mrf.mxu0
        %v6684 = vadd.f32 %v6665, %v6683
        %v6685 = vpop.f32.mrf.mxu0
        %v6686 = vadd.f32 %v6667, %v6685
        %6687 = vmatmul.bf16.gmra.mxu0 %v1532
        %v6688 = vpop.f32.mrf.mxu0
        %v6689 = vadd.f32 %v6670, %v6688
        %v6690 = vpop.f32.mrf.mxu0
        %v6691 = vadd.f32 %v6672, %v6690
        %6692 = vdwg.mxu0
        %6693 = vmatpush.bf16.msra.mxu0 %v4029
        %6694 = vmatpush.bf16.msra.mxu0 %v4019
        %6695 = vmatpush.bf16.msra.mxu0 %v4009
        %6696 = vmatpush.bf16.msra.mxu0 %v3999
        %6697 = vmatpush.bf16.msra.mxu0 %v3989
        %6698 = vmatpush.bf16.msra.mxu0 %v3979
        %6699 = vmatpush.bf16.msra.mxu0 %v3969
        %6700 = vmatpush.bf16.msra.mxu0 %v3959
        %6701 = vmatmul.bf16.gmra.mxu0 %v1513
        %v6702 = vpop.f32.mrf.mxu0
        %v6703 = vadd.f32 %v1439, %v6702
        %v6704 = vpop.f32.mrf.mxu0
        %v6705 = vadd.f32 %v1439, %v6704
        %6706 = vmatmul.bf16.gmra.mxu0 %v1523
        %v6707 = vpop.f32.mrf.mxu0
        %v6708 = vadd.f32 %v1439, %v6707
        %v6709 = vpop.f32.mrf.mxu0
        %v6710 = vadd.f32 %v1439, %v6709
        %6711 = vdwg.mxu0
        %6712 = vmatpush.bf16.msra.mxu0 %v4109
        %6713 = vmatpush.bf16.msra.mxu0 %v4099
        %6714 = vmatpush.bf16.msra.mxu0 %v4089
        %6715 = vmatpush.bf16.msra.mxu0 %v4079
        %6716 = vmatpush.bf16.msra.mxu0 %v4069
        %6717 = vmatpush.bf16.msra.mxu0 %v4059
        %6718 = vmatpush.bf16.msra.mxu0 %v4049
        %6719 = vmatpush.bf16.msra.mxu0 %v4039
        %6720 = vmatmul.bf16.gmra.mxu0 %v1514
        %v6721 = vpop.f32.mrf.mxu0
        %v6722 = vadd.f32 %v6703, %v6721
        %v6723 = vpop.f32.mrf.mxu0
        %v6724 = vadd.f32 %v6705, %v6723
        %6725 = vmatmul.bf16.gmra.mxu0 %v1524
        %v6726 = vpop.f32.mrf.mxu0
        %v6727 = vadd.f32 %v6708, %v6726
        %v6728 = vpop.f32.mrf.mxu0
        %v6729 = vadd.f32 %v6710, %v6728
        %6730 = vdwg.mxu0
        %6731 = vmatpush.bf16.msra.mxu0 %v4189
        %6732 = vmatpush.bf16.msra.mxu0 %v4179
        %6733 = vmatpush.bf16.msra.mxu0 %v4169
        %6734 = vmatpush.bf16.msra.mxu0 %v4159
        %6735 = vmatpush.bf16.msra.mxu0 %v4149
        %6736 = vmatpush.bf16.msra.mxu0 %v4139
        %6737 = vmatpush.bf16.msra.mxu0 %v4129
        %6738 = vmatpush.bf16.msra.mxu0 %v4119
        %6739 = vmatmul.bf16.gmra.mxu0 %v1515
        %v6740 = vpop.f32.mrf.mxu0
        %v6741 = vadd.f32 %v6722, %v6740
        %v6742 = vpop.f32.mrf.mxu0
        %v6743 = vadd.f32 %v6724, %v6742
        %6744 = vmatmul.bf16.gmra.mxu0 %v1525
        %v6745 = vpop.f32.mrf.mxu0
        %v6746 = vadd.f32 %v6727, %v6745
        %v6747 = vpop.f32.mrf.mxu0
        %v6748 = vadd.f32 %v6729, %v6747
        %6749 = vdwg.mxu0
        %6750 = vmatpush.bf16.msra.mxu0 %v4269
        %6751 = vmatpush.bf16.msra.mxu0 %v4259
        %6752 = vmatpush.bf16.msra.mxu0 %v4249
        %6753 = vmatpush.bf16.msra.mxu0 %v4239
        %6754 = vmatpush.bf16.msra.mxu0 %v4229
        %6755 = vmatpush.bf16.msra.mxu0 %v4219
        %6756 = vmatpush.bf16.msra.mxu0 %v4209
        %6757 = vmatpush.bf16.msra.mxu0 %v4199
        %6758 = vmatmul.bf16.gmra.mxu0 %v1516
        %v6759 = vpop.f32.mrf.mxu0
        %v6760 = vadd.f32 %v6741, %v6759
        %v6761 = vpop.f32.mrf.mxu0
        %v6762 = vadd.f32 %v6743, %v6761
        %6763 = vmatmul.bf16.gmra.mxu0 %v1526
        %v6764 = vpop.f32.mrf.mxu0
        %v6765 = vadd.f32 %v6746, %v6764
        %v6766 = vpop.f32.mrf.mxu0
        %v6767 = vadd.f32 %v6748, %v6766
        %6768 = vdwg.mxu0
        %6769 = vmatpush.bf16.msra.mxu0 %v4349
        %6770 = vmatpush.bf16.msra.mxu0 %v4339
        %6771 = vmatpush.bf16.msra.mxu0 %v4329
        %6772 = vmatpush.bf16.msra.mxu0 %v4319
        %6773 = vmatpush.bf16.msra.mxu0 %v4309
        %6774 = vmatpush.bf16.msra.mxu0 %v4299
        %6775 = vmatpush.bf16.msra.mxu0 %v4289
        %6776 = vmatpush.bf16.msra.mxu0 %v4279
        %6777 = vmatmul.bf16.gmra.mxu0 %v1517
        %v6778 = vpop.f32.mrf.mxu0
        %v6779 = vadd.f32 %v6760, %v6778
        %v6780 = vpop.f32.mrf.mxu0
        %v6781 = vadd.f32 %v6762, %v6780
        %6782 = vmatmul.bf16.gmra.mxu0 %v1527
        %v6783 = vpop.f32.mrf.mxu0
        %v6784 = vadd.f32 %v6765, %v6783
        %v6785 = vpop.f32.mrf.mxu0
        %v6786 = vadd.f32 %v6767, %v6785
        %6787 = vdwg.mxu0
        %6788 = vmatpush.bf16.msra.mxu0 %v4429
        %6789 = vmatpush.bf16.msra.mxu0 %v4419
        %6790 = vmatpush.bf16.msra.mxu0 %v4409
        %6791 = vmatpush.bf16.msra.mxu0 %v4399
        %6792 = vmatpush.bf16.msra.mxu0 %v4389
        %6793 = vmatpush.bf16.msra.mxu0 %v4379
        %6794 = vmatpush.bf16.msra.mxu0 %v4369
        %6795 = vmatpush.bf16.msra.mxu0 %v4359
        %6796 = vmatmul.bf16.gmra.mxu0 %v1518
        %v6797 = vpop.f32.mrf.mxu0
        %v6798 = vadd.f32 %v6779, %v6797
        %v6799 = vpop.f32.mrf.mxu0
        %v6800 = vadd.f32 %v6781, %v6799
        %6801 = vmatmul.bf16.gmra.mxu0 %v1528
        %v6802 = vpop.f32.mrf.mxu0
        %v6803 = vadd.f32 %v6784, %v6802
        %v6804 = vpop.f32.mrf.mxu0
        %v6805 = vadd.f32 %v6786, %v6804
        %6806 = vdwg.mxu0
        %6807 = vmatpush.bf16.msra.mxu0 %v4509
        %6808 = vmatpush.bf16.msra.mxu0 %v4499
        %6809 = vmatpush.bf16.msra.mxu0 %v4489
        %6810 = vmatpush.bf16.msra.mxu0 %v4479
        %6811 = vmatpush.bf16.msra.mxu0 %v4469
        %6812 = vmatpush.bf16.msra.mxu0 %v4459
        %6813 = vmatpush.bf16.msra.mxu0 %v4449
        %6814 = vmatpush.bf16.msra.mxu0 %v4439
        %6815 = vmatmul.bf16.gmra.mxu0 %v1519
        %v6816 = vpop.f32.mrf.mxu0
        %v6817 = vadd.f32 %v6798, %v6816
        %v6818 = vpop.f32.mrf.mxu0
        %v6819 = vadd.f32 %v6800, %v6818
        %6820 = vmatmul.bf16.gmra.mxu0 %v1529
        %v6821 = vpop.f32.mrf.mxu0
        %v6822 = vadd.f32 %v6803, %v6821
        %v6823 = vpop.f32.mrf.mxu0
        %v6824 = vadd.f32 %v6805, %v6823
        %6825 = vdwg.mxu0
        %6826 = vmatpush.bf16.msra.mxu0 %v4589
        %6827 = vmatpush.bf16.msra.mxu0 %v4579
        %6828 = vmatpush.bf16.msra.mxu0 %v4569
        %6829 = vmatpush.bf16.msra.mxu0 %v4559
        %6830 = vmatpush.bf16.msra.mxu0 %v4549
        %6831 = vmatpush.bf16.msra.mxu0 %v4539
        %6832 = vmatpush.bf16.msra.mxu0 %v4529
        %6833 = vmatpush.bf16.msra.mxu0 %v4519
        %6834 = vmatmul.bf16.gmra.mxu0 %v1520
        %v6835 = vpop.f32.mrf.mxu0
        %v6836 = vadd.f32 %v6817, %v6835
        %v6837 = vpop.f32.mrf.mxu0
        %v6838 = vadd.f32 %v6819, %v6837
        %6839 = vmatmul.bf16.gmra.mxu0 %v1530
        %v6840 = vpop.f32.mrf.mxu0
        %v6841 = vadd.f32 %v6822, %v6840
        %v6842 = vpop.f32.mrf.mxu0
        %v6843 = vadd.f32 %v6824, %v6842
        %6844 = vdwg.mxu0
        %6845 = vmatpush.bf16.msra.mxu0 %v4669
        %6846 = vmatpush.bf16.msra.mxu0 %v4659
        %6847 = vmatpush.bf16.msra.mxu0 %v4649
        %6848 = vmatpush.bf16.msra.mxu0 %v4639
        %6849 = vmatpush.bf16.msra.mxu0 %v4629
        %6850 = vmatpush.bf16.msra.mxu0 %v4619
        %6851 = vmatpush.bf16.msra.mxu0 %v4609
        %6852 = vmatpush.bf16.msra.mxu0 %v4599
        %6853 = vmatmul.bf16.gmra.mxu0 %v1521
        %v6854 = vpop.f32.mrf.mxu0
        %v6855 = vadd.f32 %v6836, %v6854
        %v6856 = vpop.f32.mrf.mxu0
        %v6857 = vadd.f32 %v6838, %v6856
        %6858 = vmatmul.bf16.gmra.mxu0 %v1531
        %v6859 = vpop.f32.mrf.mxu0
        %v6860 = vadd.f32 %v6841, %v6859
        %v6861 = vpop.f32.mrf.mxu0
        %v6862 = vadd.f32 %v6843, %v6861
        %6863 = vdwg.mxu0
        %6864 = vmatpush.bf16.msra.mxu0 %v4749
        %6865 = vmatpush.bf16.msra.mxu0 %v4739
        %6866 = vmatpush.bf16.msra.mxu0 %v4729
        %6867 = vmatpush.bf16.msra.mxu0 %v4719
        %6868 = vmatpush.bf16.msra.mxu0 %v4709
        %6869 = vmatpush.bf16.msra.mxu0 %v4699
        %6870 = vmatpush.bf16.msra.mxu0 %v4689
        %6871 = vmatpush.bf16.msra.mxu0 %v4679
        %6872 = vmatmul.bf16.gmra.mxu0 %v1522
        %v6873 = vpop.f32.mrf.mxu0
        %v6874 = vadd.f32 %v6855, %v6873
        %v6875 = vpop.f32.mrf.mxu0
        %v6876 = vadd.f32 %v6857, %v6875
        %6877 = vmatmul.bf16.gmra.mxu0 %v1532
        %v6878 = vpop.f32.mrf.mxu0
        %v6879 = vadd.f32 %v6860, %v6878
        %v6880 = vpop.f32.mrf.mxu0
        %v6881 = vadd.f32 %v6862, %v6880
        %6882 = vdwg.mxu0
        %6883 = vmatpush.bf16.msra.mxu0 %v4030
        %6884 = vmatpush.bf16.msra.mxu0 %v4020
        %6885 = vmatpush.bf16.msra.mxu0 %v4010
        %6886 = vmatpush.bf16.msra.mxu0 %v4000
        %6887 = vmatpush.bf16.msra.mxu0 %v3990
        %6888 = vmatpush.bf16.msra.mxu0 %v3980
        %6889 = vmatpush.bf16.msra.mxu0 %v3970
        %6890 = vmatpush.bf16.msra.mxu0 %v3960
        %6891 = vmatmul.bf16.gmra.mxu0 %v1513
        %v6892 = vpop.f32.mrf.mxu0
        %v6893 = vadd.f32 %v1440, %v6892
        %v6894 = vpop.f32.mrf.mxu0
        %v6895 = vadd.f32 %v1440, %v6894
        %6896 = vmatmul.bf16.gmra.mxu0 %v1523
        %v6897 = vpop.f32.mrf.mxu0
        %v6898 = vadd.f32 %v1440, %v6897
        %v6899 = vpop.f32.mrf.mxu0
        %v6900 = vadd.f32 %v1440, %v6899
        %6901 = vdwg.mxu0
        %6902 = vmatpush.bf16.msra.mxu0 %v4110
        %6903 = vmatpush.bf16.msra.mxu0 %v4100
        %6904 = vmatpush.bf16.msra.mxu0 %v4090
        %6905 = vmatpush.bf16.msra.mxu0 %v4080
        %6906 = vmatpush.bf16.msra.mxu0 %v4070
        %6907 = vmatpush.bf16.msra.mxu0 %v4060
        %6908 = vmatpush.bf16.msra.mxu0 %v4050
        %6909 = vmatpush.bf16.msra.mxu0 %v4040
        %6910 = vmatmul.bf16.gmra.mxu0 %v1514
        %v6911 = vpop.f32.mrf.mxu0
        %v6912 = vadd.f32 %v6893, %v6911
        %v6913 = vpop.f32.mrf.mxu0
        %v6914 = vadd.f32 %v6895, %v6913
        %6915 = vmatmul.bf16.gmra.mxu0 %v1524
        %v6916 = vpop.f32.mrf.mxu0
        %v6917 = vadd.f32 %v6898, %v6916
        %v6918 = vpop.f32.mrf.mxu0
        %v6919 = vadd.f32 %v6900, %v6918
        %6920 = vdwg.mxu0
        %6921 = vmatpush.bf16.msra.mxu0 %v4190
        %6922 = vmatpush.bf16.msra.mxu0 %v4180
        %6923 = vmatpush.bf16.msra.mxu0 %v4170
        %6924 = vmatpush.bf16.msra.mxu0 %v4160
        %6925 = vmatpush.bf16.msra.mxu0 %v4150
        %6926 = vmatpush.bf16.msra.mxu0 %v4140
        %6927 = vmatpush.bf16.msra.mxu0 %v4130
        %6928 = vmatpush.bf16.msra.mxu0 %v4120
        %6929 = vmatmul.bf16.gmra.mxu0 %v1515
        %v6930 = vpop.f32.mrf.mxu0
        %v6931 = vadd.f32 %v6912, %v6930
        %v6932 = vpop.f32.mrf.mxu0
        %v6933 = vadd.f32 %v6914, %v6932
        %6934 = vmatmul.bf16.gmra.mxu0 %v1525
        %v6935 = vpop.f32.mrf.mxu0
        %v6936 = vadd.f32 %v6917, %v6935
        %v6937 = vpop.f32.mrf.mxu0
        %v6938 = vadd.f32 %v6919, %v6937
        %6939 = vdwg.mxu0
        %6940 = vmatpush.bf16.msra.mxu0 %v4270
        %6941 = vmatpush.bf16.msra.mxu0 %v4260
        %6942 = vmatpush.bf16.msra.mxu0 %v4250
        %6943 = vmatpush.bf16.msra.mxu0 %v4240
        %6944 = vmatpush.bf16.msra.mxu0 %v4230
        %6945 = vmatpush.bf16.msra.mxu0 %v4220
        %6946 = vmatpush.bf16.msra.mxu0 %v4210
        %6947 = vmatpush.bf16.msra.mxu0 %v4200
        %6948 = vmatmul.bf16.gmra.mxu0 %v1516
        %v6949 = vpop.f32.mrf.mxu0
        %v6950 = vadd.f32 %v6931, %v6949
        %v6951 = vpop.f32.mrf.mxu0
        %v6952 = vadd.f32 %v6933, %v6951
        %6953 = vmatmul.bf16.gmra.mxu0 %v1526
        %v6954 = vpop.f32.mrf.mxu0
        %v6955 = vadd.f32 %v6936, %v6954
        %v6956 = vpop.f32.mrf.mxu0
        %v6957 = vadd.f32 %v6938, %v6956
        %6958 = vdwg.mxu0
        %6959 = vmatpush.bf16.msra.mxu0 %v4350
        %6960 = vmatpush.bf16.msra.mxu0 %v4340
        %6961 = vmatpush.bf16.msra.mxu0 %v4330
        %6962 = vmatpush.bf16.msra.mxu0 %v4320
        %6963 = vmatpush.bf16.msra.mxu0 %v4310
        %6964 = vmatpush.bf16.msra.mxu0 %v4300
        %6965 = vmatpush.bf16.msra.mxu0 %v4290
        %6966 = vmatpush.bf16.msra.mxu0 %v4280
        %6967 = vmatmul.bf16.gmra.mxu0 %v1517
        %v6968 = vpop.f32.mrf.mxu0
        %v6969 = vadd.f32 %v6950, %v6968
        %v6970 = vpop.f32.mrf.mxu0
        %v6971 = vadd.f32 %v6952, %v6970
        %6972 = vmatmul.bf16.gmra.mxu0 %v1527
        %v6973 = vpop.f32.mrf.mxu0
        %v6974 = vadd.f32 %v6955, %v6973
        %v6975 = vpop.f32.mrf.mxu0
        %v6976 = vadd.f32 %v6957, %v6975
        %6977 = vdwg.mxu0
        %6978 = vmatpush.bf16.msra.mxu0 %v4430
        %6979 = vmatpush.bf16.msra.mxu0 %v4420
        %6980 = vmatpush.bf16.msra.mxu0 %v4410
        %6981 = vmatpush.bf16.msra.mxu0 %v4400
        %6982 = vmatpush.bf16.msra.mxu0 %v4390
        %6983 = vmatpush.bf16.msra.mxu0 %v4380
        %6984 = vmatpush.bf16.msra.mxu0 %v4370
        %6985 = vmatpush.bf16.msra.mxu0 %v4360
        %6986 = vmatmul.bf16.gmra.mxu0 %v1518
        %v6987 = vpop.f32.mrf.mxu0
        %v6988 = vadd.f32 %v6969, %v6987
        %v6989 = vpop.f32.mrf.mxu0
        %v6990 = vadd.f32 %v6971, %v6989
        %6991 = vmatmul.bf16.gmra.mxu0 %v1528
        %v6992 = vpop.f32.mrf.mxu0
        %v6993 = vadd.f32 %v6974, %v6992
        %v6994 = vpop.f32.mrf.mxu0
        %v6995 = vadd.f32 %v6976, %v6994
        %6996 = vdwg.mxu0
        %6997 = vmatpush.bf16.msra.mxu0 %v4510
        %6998 = vmatpush.bf16.msra.mxu0 %v4500
        %6999 = vmatpush.bf16.msra.mxu0 %v4490
        %7000 = vmatpush.bf16.msra.mxu0 %v4480
        %7001 = vmatpush.bf16.msra.mxu0 %v4470
        %7002 = vmatpush.bf16.msra.mxu0 %v4460
        %7003 = vmatpush.bf16.msra.mxu0 %v4450
        %7004 = vmatpush.bf16.msra.mxu0 %v4440
        %7005 = vmatmul.bf16.gmra.mxu0 %v1519
        %v7006 = vpop.f32.mrf.mxu0
        %v7007 = vadd.f32 %v6988, %v7006
        %v7008 = vpop.f32.mrf.mxu0
        %v7009 = vadd.f32 %v6990, %v7008
        %7010 = vmatmul.bf16.gmra.mxu0 %v1529
        %v7011 = vpop.f32.mrf.mxu0
        %v7012 = vadd.f32 %v6993, %v7011
        %v7013 = vpop.f32.mrf.mxu0
        %v7014 = vadd.f32 %v6995, %v7013
        %7015 = vdwg.mxu0
        %7016 = vmatpush.bf16.msra.mxu0 %v4590
        %7017 = vmatpush.bf16.msra.mxu0 %v4580
        %7018 = vmatpush.bf16.msra.mxu0 %v4570
        %7019 = vmatpush.bf16.msra.mxu0 %v4560
        %7020 = vmatpush.bf16.msra.mxu0 %v4550
        %7021 = vmatpush.bf16.msra.mxu0 %v4540
        %7022 = vmatpush.bf16.msra.mxu0 %v4530
        %7023 = vmatpush.bf16.msra.mxu0 %v4520
        %7024 = vmatmul.bf16.gmra.mxu0 %v1520
        %v7025 = vpop.f32.mrf.mxu0
        %v7026 = vadd.f32 %v7007, %v7025
        %v7027 = vpop.f32.mrf.mxu0
        %v7028 = vadd.f32 %v7009, %v7027
        %7029 = vmatmul.bf16.gmra.mxu0 %v1530
        %v7030 = vpop.f32.mrf.mxu0
        %v7031 = vadd.f32 %v7012, %v7030
        %v7032 = vpop.f32.mrf.mxu0
        %v7033 = vadd.f32 %v7014, %v7032
        %7034 = vdwg.mxu0
        %7035 = vmatpush.bf16.msra.mxu0 %v4670
        %7036 = vmatpush.bf16.msra.mxu0 %v4660
        %7037 = vmatpush.bf16.msra.mxu0 %v4650
        %7038 = vmatpush.bf16.msra.mxu0 %v4640
        %7039 = vmatpush.bf16.msra.mxu0 %v4630
        %7040 = vmatpush.bf16.msra.mxu0 %v4620
        %7041 = vmatpush.bf16.msra.mxu0 %v4610
        %7042 = vmatpush.bf16.msra.mxu0 %v4600
        %7043 = vmatmul.bf16.gmra.mxu0 %v1521
        %v7044 = vpop.f32.mrf.mxu0
        %v7045 = vadd.f32 %v7026, %v7044
        %v7046 = vpop.f32.mrf.mxu0
        %v7047 = vadd.f32 %v7028, %v7046
        %7048 = vmatmul.bf16.gmra.mxu0 %v1531
        %v7049 = vpop.f32.mrf.mxu0
        %v7050 = vadd.f32 %v7031, %v7049
        %v7051 = vpop.f32.mrf.mxu0
        %v7052 = vadd.f32 %v7033, %v7051
        %7053 = vdwg.mxu0
        %7054 = vmatpush.bf16.msra.mxu0 %v4750
        %7055 = vmatpush.bf16.msra.mxu0 %v4740
        %7056 = vmatpush.bf16.msra.mxu0 %v4730
        %7057 = vmatpush.bf16.msra.mxu0 %v4720
        %7058 = vmatpush.bf16.msra.mxu0 %v4710
        %7059 = vmatpush.bf16.msra.mxu0 %v4700
        %7060 = vmatpush.bf16.msra.mxu0 %v4690
        %7061 = vmatpush.bf16.msra.mxu0 %v4680
        %7062 = vmatmul.bf16.gmra.mxu0 %v1522
        %v7063 = vpop.f32.mrf.mxu0
        %v7064 = vadd.f32 %v7045, %v7063
        %v7065 = vpop.f32.mrf.mxu0
        %v7066 = vadd.f32 %v7047, %v7065
        %7067 = vmatmul.bf16.gmra.mxu0 %v1532
        %v7068 = vpop.f32.mrf.mxu0
        %v7069 = vadd.f32 %v7050, %v7068
        %v7070 = vpop.f32.mrf.mxu0
        %v7071 = vadd.f32 %v7052, %v7070
        %7072 = vdwg.mxu0
        %7073 = vmatpush.bf16.msra.mxu0 %v4031
        %7074 = vmatpush.bf16.msra.mxu0 %v4021
        %7075 = vmatpush.bf16.msra.mxu0 %v4011
        %7076 = vmatpush.bf16.msra.mxu0 %v4001
        %7077 = vmatpush.bf16.msra.mxu0 %v3991
        %7078 = vmatpush.bf16.msra.mxu0 %v3981
        %7079 = vmatpush.bf16.msra.mxu0 %v3971
        %7080 = vmatpush.bf16.msra.mxu0 %v3961
        %7081 = vmatmul.bf16.gmra.mxu0 %v1513
        %v7082 = vpop.f32.mrf.mxu0
        %v7083 = vadd.f32 %v1441, %v7082
        %v7084 = vpop.f32.mrf.mxu0
        %v7085 = vadd.f32 %v1441, %v7084
        %7086 = vmatmul.bf16.gmra.mxu0 %v1523
        %v7087 = vpop.f32.mrf.mxu0
        %v7088 = vadd.f32 %v1441, %v7087
        %v7089 = vpop.f32.mrf.mxu0
        %v7090 = vadd.f32 %v1441, %v7089
        %7091 = vdwg.mxu0
        %7092 = vmatpush.bf16.msra.mxu0 %v4111
        %7093 = vmatpush.bf16.msra.mxu0 %v4101
        %7094 = vmatpush.bf16.msra.mxu0 %v4091
        %7095 = vmatpush.bf16.msra.mxu0 %v4081
        %7096 = vmatpush.bf16.msra.mxu0 %v4071
        %7097 = vmatpush.bf16.msra.mxu0 %v4061
        %7098 = vmatpush.bf16.msra.mxu0 %v4051
        %7099 = vmatpush.bf16.msra.mxu0 %v4041
        %7100 = vmatmul.bf16.gmra.mxu0 %v1514
        %v7101 = vpop.f32.mrf.mxu0
        %v7102 = vadd.f32 %v7083, %v7101
        %v7103 = vpop.f32.mrf.mxu0
        %v7104 = vadd.f32 %v7085, %v7103
        %7105 = vmatmul.bf16.gmra.mxu0 %v1524
        %v7106 = vpop.f32.mrf.mxu0
        %v7107 = vadd.f32 %v7088, %v7106
        %v7108 = vpop.f32.mrf.mxu0
        %v7109 = vadd.f32 %v7090, %v7108
        %7110 = vdwg.mxu0
        %7111 = vmatpush.bf16.msra.mxu0 %v4191
        %7112 = vmatpush.bf16.msra.mxu0 %v4181
        %7113 = vmatpush.bf16.msra.mxu0 %v4171
        %7114 = vmatpush.bf16.msra.mxu0 %v4161
        %7115 = vmatpush.bf16.msra.mxu0 %v4151
        %7116 = vmatpush.bf16.msra.mxu0 %v4141
        %7117 = vmatpush.bf16.msra.mxu0 %v4131
        %7118 = vmatpush.bf16.msra.mxu0 %v4121
        %7119 = vmatmul.bf16.gmra.mxu0 %v1515
        %v7120 = vpop.f32.mrf.mxu0
        %v7121 = vadd.f32 %v7102, %v7120
        %v7122 = vpop.f32.mrf.mxu0
        %v7123 = vadd.f32 %v7104, %v7122
        %7124 = vmatmul.bf16.gmra.mxu0 %v1525
        %v7125 = vpop.f32.mrf.mxu0
        %v7126 = vadd.f32 %v7107, %v7125
        %v7127 = vpop.f32.mrf.mxu0
        %v7128 = vadd.f32 %v7109, %v7127
        %7129 = vdwg.mxu0
        %7130 = vmatpush.bf16.msra.mxu0 %v4271
        %7131 = vmatpush.bf16.msra.mxu0 %v4261
        %7132 = vmatpush.bf16.msra.mxu0 %v4251
        %7133 = vmatpush.bf16.msra.mxu0 %v4241
        %7134 = vmatpush.bf16.msra.mxu0 %v4231
        %7135 = vmatpush.bf16.msra.mxu0 %v4221
        %7136 = vmatpush.bf16.msra.mxu0 %v4211
        %7137 = vmatpush.bf16.msra.mxu0 %v4201
        %7138 = vmatmul.bf16.gmra.mxu0 %v1516
        %v7139 = vpop.f32.mrf.mxu0
        %v7140 = vadd.f32 %v7121, %v7139
        %v7141 = vpop.f32.mrf.mxu0
        %v7142 = vadd.f32 %v7123, %v7141
        %7143 = vmatmul.bf16.gmra.mxu0 %v1526
        %v7144 = vpop.f32.mrf.mxu0
        %v7145 = vadd.f32 %v7126, %v7144
        %v7146 = vpop.f32.mrf.mxu0
        %v7147 = vadd.f32 %v7128, %v7146
        %7148 = vdwg.mxu0
        %7149 = vmatpush.bf16.msra.mxu0 %v4351
        %7150 = vmatpush.bf16.msra.mxu0 %v4341
        %7151 = vmatpush.bf16.msra.mxu0 %v4331
        %7152 = vmatpush.bf16.msra.mxu0 %v4321
        %7153 = vmatpush.bf16.msra.mxu0 %v4311
        %7154 = vmatpush.bf16.msra.mxu0 %v4301
        %7155 = vmatpush.bf16.msra.mxu0 %v4291
        %7156 = vmatpush.bf16.msra.mxu0 %v4281
        %7157 = vmatmul.bf16.gmra.mxu0 %v1517
        %v7158 = vpop.f32.mrf.mxu0
        %v7159 = vadd.f32 %v7140, %v7158
        %v7160 = vpop.f32.mrf.mxu0
        %v7161 = vadd.f32 %v7142, %v7160
        %7162 = vmatmul.bf16.gmra.mxu0 %v1527
        %v7163 = vpop.f32.mrf.mxu0
        %v7164 = vadd.f32 %v7145, %v7163
        %v7165 = vpop.f32.mrf.mxu0
        %v7166 = vadd.f32 %v7147, %v7165
        %7167 = vdwg.mxu0
        %7168 = vmatpush.bf16.msra.mxu0 %v4431
        %7169 = vmatpush.bf16.msra.mxu0 %v4421
        %7170 = vmatpush.bf16.msra.mxu0 %v4411
        %7171 = vmatpush.bf16.msra.mxu0 %v4401
        %7172 = vmatpush.bf16.msra.mxu0 %v4391
        %7173 = vmatpush.bf16.msra.mxu0 %v4381
        %7174 = vmatpush.bf16.msra.mxu0 %v4371
        %7175 = vmatpush.bf16.msra.mxu0 %v4361
        %7176 = vmatmul.bf16.gmra.mxu0 %v1518
        %v7177 = vpop.f32.mrf.mxu0
        %v7178 = vadd.f32 %v7159, %v7177
        %v7179 = vpop.f32.mrf.mxu0
        %v7180 = vadd.f32 %v7161, %v7179
        %7181 = vmatmul.bf16.gmra.mxu0 %v1528
        %v7182 = vpop.f32.mrf.mxu0
        %v7183 = vadd.f32 %v7164, %v7182
        %v7184 = vpop.f32.mrf.mxu0
        %v7185 = vadd.f32 %v7166, %v7184
        %7186 = vdwg.mxu0
        %7187 = vmatpush.bf16.msra.mxu0 %v4511
        %7188 = vmatpush.bf16.msra.mxu0 %v4501
        %7189 = vmatpush.bf16.msra.mxu0 %v4491
        %7190 = vmatpush.bf16.msra.mxu0 %v4481
        %7191 = vmatpush.bf16.msra.mxu0 %v4471
        %7192 = vmatpush.bf16.msra.mxu0 %v4461
        %7193 = vmatpush.bf16.msra.mxu0 %v4451
        %7194 = vmatpush.bf16.msra.mxu0 %v4441
        %7195 = vmatmul.bf16.gmra.mxu0 %v1519
        %v7196 = vpop.f32.mrf.mxu0
        %v7197 = vadd.f32 %v7178, %v7196
        %v7198 = vpop.f32.mrf.mxu0
        %v7199 = vadd.f32 %v7180, %v7198
        %7200 = vmatmul.bf16.gmra.mxu0 %v1529
        %v7201 = vpop.f32.mrf.mxu0
        %v7202 = vadd.f32 %v7183, %v7201
        %v7203 = vpop.f32.mrf.mxu0
        %v7204 = vadd.f32 %v7185, %v7203
        %7205 = vdwg.mxu0
        %7206 = vmatpush.bf16.msra.mxu0 %v4591
        %7207 = vmatpush.bf16.msra.mxu0 %v4581
        %7208 = vmatpush.bf16.msra.mxu0 %v4571
        %7209 = vmatpush.bf16.msra.mxu0 %v4561
        %7210 = vmatpush.bf16.msra.mxu0 %v4551
        %7211 = vmatpush.bf16.msra.mxu0 %v4541
        %7212 = vmatpush.bf16.msra.mxu0 %v4531
        %7213 = vmatpush.bf16.msra.mxu0 %v4521
        %7214 = vmatmul.bf16.gmra.mxu0 %v1520
        %v7215 = vpop.f32.mrf.mxu0
        %v7216 = vadd.f32 %v7197, %v7215
        %v7217 = vpop.f32.mrf.mxu0
        %v7218 = vadd.f32 %v7199, %v7217
        %7219 = vmatmul.bf16.gmra.mxu0 %v1530
        %v7220 = vpop.f32.mrf.mxu0
        %v7221 = vadd.f32 %v7202, %v7220
        %v7222 = vpop.f32.mrf.mxu0
        %v7223 = vadd.f32 %v7204, %v7222
        %7224 = vdwg.mxu0
        %7225 = vmatpush.bf16.msra.mxu0 %v4671
        %7226 = vmatpush.bf16.msra.mxu0 %v4661
        %7227 = vmatpush.bf16.msra.mxu0 %v4651
        %7228 = vmatpush.bf16.msra.mxu0 %v4641
        %7229 = vmatpush.bf16.msra.mxu0 %v4631
        %7230 = vmatpush.bf16.msra.mxu0 %v4621
        %7231 = vmatpush.bf16.msra.mxu0 %v4611
        %7232 = vmatpush.bf16.msra.mxu0 %v4601
        %7233 = vmatmul.bf16.gmra.mxu0 %v1521
        %v7234 = vpop.f32.mrf.mxu0
        %v7235 = vadd.f32 %v7216, %v7234
        %v7236 = vpop.f32.mrf.mxu0
        %v7237 = vadd.f32 %v7218, %v7236
        %7238 = vmatmul.bf16.gmra.mxu0 %v1531
        %v7239 = vpop.f32.mrf.mxu0
        %v7240 = vadd.f32 %v7221, %v7239
        %v7241 = vpop.f32.mrf.mxu0
        %v7242 = vadd.f32 %v7223, %v7241
        %7243 = vdwg.mxu0
        %7244 = vmatpush.bf16.msra.mxu0 %v4751
        %7245 = vmatpush.bf16.msra.mxu0 %v4741
        %7246 = vmatpush.bf16.msra.mxu0 %v4731
        %7247 = vmatpush.bf16.msra.mxu0 %v4721
        %7248 = vmatpush.bf16.msra.mxu0 %v4711
        %7249 = vmatpush.bf16.msra.mxu0 %v4701
        %7250 = vmatpush.bf16.msra.mxu0 %v4691
        %7251 = vmatpush.bf16.msra.mxu0 %v4681
        %7252 = vmatmul.bf16.gmra.mxu0 %v1522
        %v7253 = vpop.f32.mrf.mxu0
        %v7254 = vadd.f32 %v7235, %v7253
        %v7255 = vpop.f32.mrf.mxu0
        %v7256 = vadd.f32 %v7237, %v7255
        %7257 = vmatmul.bf16.gmra.mxu0 %v1532
        %v7258 = vpop.f32.mrf.mxu0
        %v7259 = vadd.f32 %v7240, %v7258
        %v7260 = vpop.f32.mrf.mxu0
        %v7261 = vadd.f32 %v7242, %v7260
        %7262 = vdwg.mxu0
        %7263 = vmatpush.bf16.msra.mxu0 %v4032
        %7264 = vmatpush.bf16.msra.mxu0 %v4022
        %7265 = vmatpush.bf16.msra.mxu0 %v4012
        %7266 = vmatpush.bf16.msra.mxu0 %v4002
        %7267 = vmatpush.bf16.msra.mxu0 %v3992
        %7268 = vmatpush.bf16.msra.mxu0 %v3982
        %7269 = vmatpush.bf16.msra.mxu0 %v3972
        %7270 = vmatpush.bf16.msra.mxu0 %v3962
        %7271 = vmatmul.bf16.gmra.mxu0 %v1513
        %v7272 = vpop.f32.mrf.mxu0
        %v7273 = vadd.f32 %v1442, %v7272
        %v7274 = vpop.f32.mrf.mxu0
        %v7275 = vadd.f32 %v1442, %v7274
        %7276 = vmatmul.bf16.gmra.mxu0 %v1523
        %v7277 = vpop.f32.mrf.mxu0
        %v7278 = vadd.f32 %v1442, %v7277
        %v7279 = vpop.f32.mrf.mxu0
        %v7280 = vadd.f32 %v1442, %v7279
        %7281 = vdwg.mxu0
        %7282 = vmatpush.bf16.msra.mxu0 %v4112
        %7283 = vmatpush.bf16.msra.mxu0 %v4102
        %7284 = vmatpush.bf16.msra.mxu0 %v4092
        %7285 = vmatpush.bf16.msra.mxu0 %v4082
        %7286 = vmatpush.bf16.msra.mxu0 %v4072
        %7287 = vmatpush.bf16.msra.mxu0 %v4062
        %7288 = vmatpush.bf16.msra.mxu0 %v4052
        %7289 = vmatpush.bf16.msra.mxu0 %v4042
        %7290 = vmatmul.bf16.gmra.mxu0 %v1514
        %v7291 = vpop.f32.mrf.mxu0
        %v7292 = vadd.f32 %v7273, %v7291
        %v7293 = vpop.f32.mrf.mxu0
        %v7294 = vadd.f32 %v7275, %v7293
        %7295 = vmatmul.bf16.gmra.mxu0 %v1524
        %v7296 = vpop.f32.mrf.mxu0
        %v7297 = vadd.f32 %v7278, %v7296
        %v7298 = vpop.f32.mrf.mxu0
        %v7299 = vadd.f32 %v7280, %v7298
        %7300 = vdwg.mxu0
        %7301 = vmatpush.bf16.msra.mxu0 %v4192
        %7302 = vmatpush.bf16.msra.mxu0 %v4182
        %7303 = vmatpush.bf16.msra.mxu0 %v4172
        %7304 = vmatpush.bf16.msra.mxu0 %v4162
        %7305 = vmatpush.bf16.msra.mxu0 %v4152
        %7306 = vmatpush.bf16.msra.mxu0 %v4142
        %7307 = vmatpush.bf16.msra.mxu0 %v4132
        %7308 = vmatpush.bf16.msra.mxu0 %v4122
        %7309 = vmatmul.bf16.gmra.mxu0 %v1515
        %v7310 = vpop.f32.mrf.mxu0
        %v7311 = vadd.f32 %v7292, %v7310
        %v7312 = vpop.f32.mrf.mxu0
        %v7313 = vadd.f32 %v7294, %v7312
        %7314 = vmatmul.bf16.gmra.mxu0 %v1525
        %v7315 = vpop.f32.mrf.mxu0
        %v7316 = vadd.f32 %v7297, %v7315
        %v7317 = vpop.f32.mrf.mxu0
        %v7318 = vadd.f32 %v7299, %v7317
        %7319 = vdwg.mxu0
        %7320 = vmatpush.bf16.msra.mxu0 %v4272
        %7321 = vmatpush.bf16.msra.mxu0 %v4262
        %7322 = vmatpush.bf16.msra.mxu0 %v4252
        %7323 = vmatpush.bf16.msra.mxu0 %v4242
        %7324 = vmatpush.bf16.msra.mxu0 %v4232
        %7325 = vmatpush.bf16.msra.mxu0 %v4222
        %7326 = vmatpush.bf16.msra.mxu0 %v4212
        %7327 = vmatpush.bf16.msra.mxu0 %v4202
        %7328 = vmatmul.bf16.gmra.mxu0 %v1516
        %v7329 = vpop.f32.mrf.mxu0
        %v7330 = vadd.f32 %v7311, %v7329
        %v7331 = vpop.f32.mrf.mxu0
        %v7332 = vadd.f32 %v7313, %v7331
        %7333 = vmatmul.bf16.gmra.mxu0 %v1526
        %v7334 = vpop.f32.mrf.mxu0
        %v7335 = vadd.f32 %v7316, %v7334
        %v7336 = vpop.f32.mrf.mxu0
        %v7337 = vadd.f32 %v7318, %v7336
        %7338 = vdwg.mxu0
        %7339 = vmatpush.bf16.msra.mxu0 %v4352
        %7340 = vmatpush.bf16.msra.mxu0 %v4342
        %7341 = vmatpush.bf16.msra.mxu0 %v4332
        %7342 = vmatpush.bf16.msra.mxu0 %v4322
        %7343 = vmatpush.bf16.msra.mxu0 %v4312
        %7344 = vmatpush.bf16.msra.mxu0 %v4302
        %7345 = vmatpush.bf16.msra.mxu0 %v4292
        %7346 = vmatpush.bf16.msra.mxu0 %v4282
        %7347 = vmatmul.bf16.gmra.mxu0 %v1517
        %v7348 = vpop.f32.mrf.mxu0
        %v7349 = vadd.f32 %v7330, %v7348
        %v7350 = vpop.f32.mrf.mxu0
        %v7351 = vadd.f32 %v7332, %v7350
        %7352 = vmatmul.bf16.gmra.mxu0 %v1527
        %v7353 = vpop.f32.mrf.mxu0
        %v7354 = vadd.f32 %v7335, %v7353
        %v7355 = vpop.f32.mrf.mxu0
        %v7356 = vadd.f32 %v7337, %v7355
        %7357 = vdwg.mxu0
        %7358 = vmatpush.bf16.msra.mxu0 %v4432
        %7359 = vmatpush.bf16.msra.mxu0 %v4422
        %7360 = vmatpush.bf16.msra.mxu0 %v4412
        %7361 = vmatpush.bf16.msra.mxu0 %v4402
        %7362 = vmatpush.bf16.msra.mxu0 %v4392
        %7363 = vmatpush.bf16.msra.mxu0 %v4382
        %7364 = vmatpush.bf16.msra.mxu0 %v4372
        %7365 = vmatpush.bf16.msra.mxu0 %v4362
        %7366 = vmatmul.bf16.gmra.mxu0 %v1518
        %v7367 = vpop.f32.mrf.mxu0
        %v7368 = vadd.f32 %v7349, %v7367
        %v7369 = vpop.f32.mrf.mxu0
        %v7370 = vadd.f32 %v7351, %v7369
        %7371 = vmatmul.bf16.gmra.mxu0 %v1528
        %v7372 = vpop.f32.mrf.mxu0
        %v7373 = vadd.f32 %v7354, %v7372
        %v7374 = vpop.f32.mrf.mxu0
        %v7375 = vadd.f32 %v7356, %v7374
        %7376 = vdwg.mxu0
        %7377 = vmatpush.bf16.msra.mxu0 %v4512
        %7378 = vmatpush.bf16.msra.mxu0 %v4502
        %7379 = vmatpush.bf16.msra.mxu0 %v4492
        %7380 = vmatpush.bf16.msra.mxu0 %v4482
        %7381 = vmatpush.bf16.msra.mxu0 %v4472
        %7382 = vmatpush.bf16.msra.mxu0 %v4462
        %7383 = vmatpush.bf16.msra.mxu0 %v4452
        %7384 = vmatpush.bf16.msra.mxu0 %v4442
        %7385 = vmatmul.bf16.gmra.mxu0 %v1519
        %v7386 = vpop.f32.mrf.mxu0
        %v7387 = vadd.f32 %v7368, %v7386
        %v7388 = vpop.f32.mrf.mxu0
        %v7389 = vadd.f32 %v7370, %v7388
        %7390 = vmatmul.bf16.gmra.mxu0 %v1529
        %v7391 = vpop.f32.mrf.mxu0
        %v7392 = vadd.f32 %v7373, %v7391
        %v7393 = vpop.f32.mrf.mxu0
        %v7394 = vadd.f32 %v7375, %v7393
        %7395 = vdwg.mxu0
        %7396 = vmatpush.bf16.msra.mxu0 %v4592
        %7397 = vmatpush.bf16.msra.mxu0 %v4582
        %7398 = vmatpush.bf16.msra.mxu0 %v4572
        %7399 = vmatpush.bf16.msra.mxu0 %v4562
        %7400 = vmatpush.bf16.msra.mxu0 %v4552
        %7401 = vmatpush.bf16.msra.mxu0 %v4542
        %7402 = vmatpush.bf16.msra.mxu0 %v4532
        %7403 = vmatpush.bf16.msra.mxu0 %v4522
        %7404 = vmatmul.bf16.gmra.mxu0 %v1520
        %v7405 = vpop.f32.mrf.mxu0
        %v7406 = vadd.f32 %v7387, %v7405
        %v7407 = vpop.f32.mrf.mxu0
        %v7408 = vadd.f32 %v7389, %v7407
        %7409 = vmatmul.bf16.gmra.mxu0 %v1530
        %v7410 = vpop.f32.mrf.mxu0
        %v7411 = vadd.f32 %v7392, %v7410
        %v7412 = vpop.f32.mrf.mxu0
        %v7413 = vadd.f32 %v7394, %v7412
        %7414 = vdwg.mxu0
        %7415 = vmatpush.bf16.msra.mxu0 %v4672
        %7416 = vmatpush.bf16.msra.mxu0 %v4662
        %7417 = vmatpush.bf16.msra.mxu0 %v4652
        %7418 = vmatpush.bf16.msra.mxu0 %v4642
        %7419 = vmatpush.bf16.msra.mxu0 %v4632
        %7420 = vmatpush.bf16.msra.mxu0 %v4622
        %7421 = vmatpush.bf16.msra.mxu0 %v4612
        %7422 = vmatpush.bf16.msra.mxu0 %v4602
        %7423 = vmatmul.bf16.gmra.mxu0 %v1521
        %v7424 = vpop.f32.mrf.mxu0
        %v7425 = vadd.f32 %v7406, %v7424
        %v7426 = vpop.f32.mrf.mxu0
        %v7427 = vadd.f32 %v7408, %v7426
        %7428 = vmatmul.bf16.gmra.mxu0 %v1531
        %v7429 = vpop.f32.mrf.mxu0
        %v7430 = vadd.f32 %v7411, %v7429
        %v7431 = vpop.f32.mrf.mxu0
        %v7432 = vadd.f32 %v7413, %v7431
        %7433 = vdwg.mxu0
        %7434 = vmatpush.bf16.msra.mxu0 %v4752
        %7435 = vmatpush.bf16.msra.mxu0 %v4742
        %7436 = vmatpush.bf16.msra.mxu0 %v4732
        %7437 = vmatpush.bf16.msra.mxu0 %v4722
        %7438 = vmatpush.bf16.msra.mxu0 %v4712
        %7439 = vmatpush.bf16.msra.mxu0 %v4702
        %7440 = vmatpush.bf16.msra.mxu0 %v4692
        %7441 = vmatpush.bf16.msra.mxu0 %v4682
        %7442 = vmatmul.bf16.gmra.mxu0 %v1522
        %v7443 = vpop.f32.mrf.mxu0
        %v7444 = vadd.f32 %v7425, %v7443
        %v7445 = vpop.f32.mrf.mxu0
        %v7446 = vadd.f32 %v7427, %v7445
        %7447 = vmatmul.bf16.gmra.mxu0 %v1532
        %v7448 = vpop.f32.mrf.mxu0
        %v7449 = vadd.f32 %v7430, %v7448
        %v7450 = vpop.f32.mrf.mxu0
        %v7451 = vadd.f32 %v7432, %v7450
        %7452 = vdwg.mxu0
        %v7453 = vmax.f32 %v5734, 0.0
        %v7454 = vmax.f32 %v5924, 0.0
        %v7455 = vmax.f32 %v6114, 0.0
        %v7456 = vmax.f32 %v6304, 0.0
        %v7457 = vmax.f32 %v6494, 0.0
        %v7458 = vmax.f32 %v6684, 0.0
        %v7459 = vmax.f32 %v6874, 0.0
        %v7460 = vmax.f32 %v7064, 0.0
        %v7461 = vmax.f32 %v7254, 0.0
        %v7462 = vmax.f32 %v7444, 0.0
        %v7463 = vmax.f32 %v5736, 0.0
        %v7464 = vmax.f32 %v5926, 0.0
        %v7465 = vmax.f32 %v6116, 0.0
        %v7466 = vmax.f32 %v6306, 0.0
        %v7467 = vmax.f32 %v6496, 0.0
        %v7468 = vmax.f32 %v6686, 0.0
        %v7469 = vmax.f32 %v6876, 0.0
        %v7470 = vmax.f32 %v7066, 0.0
        %v7471 = vmax.f32 %v7256, 0.0
        %v7472 = vmax.f32 %v7446, 0.0
        %v7473 = vmax.f32 %v5739, 0.0
        %v7474 = vmax.f32 %v5929, 0.0
        %v7475 = vmax.f32 %v6119, 0.0
        %v7476 = vmax.f32 %v6309, 0.0
        %v7477 = vmax.f32 %v6499, 0.0
        %v7478 = vmax.f32 %v6689, 0.0
        %v7479 = vmax.f32 %v6879, 0.0
        %v7480 = vmax.f32 %v7069, 0.0
        %v7481 = vmax.f32 %v7259, 0.0
        %v7482 = vmax.f32 %v7449, 0.0
        %v7483 = vmax.f32 %v5741, 0.0
        %v7484 = vmax.f32 %v5931, 0.0
        %v7485 = vmax.f32 %v6121, 0.0
        %v7486 = vmax.f32 %v6311, 0.0
        %v7487 = vmax.f32 %v6501, 0.0
        %v7488 = vmax.f32 %v6691, 0.0
        %v7489 = vmax.f32 %v6881, 0.0
        %v7490 = vmax.f32 %v7071, 0.0
        %v7491 = vmax.f32 %v7261, 0.0
        %v7492 = vmax.f32 %v7451, 0.0
        %v7493 = vld [vmem:[%s498] sm:$0xff]
        %v7494 = vld [vmem:[%s498 + $0x8] sm:$0x3]
        %v7497 = vperm.slane %v7493, 0
        %v7498 = vperm.slane %v7493, 1
        %v7499 = vperm.slane %v7493, 2
        %v7500 = vperm.slane %v7493, 3
        %v7501 = vperm.slane %v7493, 4
        %v7502 = vperm.slane %v7493, 5
        %v7503 = vperm.slane %v7493, 6
        %v7504 = vperm.slane %v7493, 7
        %v7505 = vperm.slane %v7494, 0
        %v7506 = vperm.slane %v7494, 1
        %v7517 = vmul.f32 %v7453, %v7497
        %v7518 = vmul.f32 %v7454, %v7498
        %v7519 = vmul.f32 %v7455, %v7499
        %v7520 = vmul.f32 %v7456, %v7500
        %v7521 = vmul.f32 %v7457, %v7501
        %v7522 = vmul.f32 %v7458, %v7502
        %v7523 = vmul.f32 %v7459, %v7503
        %v7524 = vmul.f32 %v7460, %v7504
        %v7525 = vmul.f32 %v7461, %v7505
        %v7526 = vmul.f32 %v7462, %v7506
        %v7527 = vmul.f32 %v7463, %v7497
        %v7528 = vmul.f32 %v7464, %v7498
        %v7529 = vmul.f32 %v7465, %v7499
        %v7530 = vmul.f32 %v7466, %v7500
        %v7531 = vmul.f32 %v7467, %v7501
        %v7532 = vmul.f32 %v7468, %v7502
        %v7533 = vmul.f32 %v7469, %v7503
        %v7534 = vmul.f32 %v7470, %v7504
        %v7535 = vmul.f32 %v7471, %v7505
        %v7536 = vmul.f32 %v7472, %v7506
        %v7537 = vmul.f32 %v7473, %v7497
        %v7538 = vmul.f32 %v7474, %v7498
        %v7539 = vmul.f32 %v7475, %v7499
        %v7540 = vmul.f32 %v7476, %v7500
        %v7541 = vmul.f32 %v7477, %v7501
        %v7542 = vmul.f32 %v7478, %v7502
        %v7543 = vmul.f32 %v7479, %v7503
        %v7544 = vmul.f32 %v7480, %v7504
        %v7545 = vmul.f32 %v7481, %v7505
        %v7546 = vmul.f32 %v7482, %v7506
        %v7547 = vmul.f32 %v7483, %v7497
        %v7548 = vmul.f32 %v7484, %v7498
        %v7549 = vmul.f32 %v7485, %v7499
        %v7550 = vmul.f32 %v7486, %v7500
        %v7551 = vmul.f32 %v7487, %v7501
        %v7552 = vmul.f32 %v7488, %v7502
        %v7553 = vmul.f32 %v7489, %v7503
        %v7554 = vmul.f32 %v7490, %v7504
        %v7555 = vmul.f32 %v7491, %v7505
        %v7556 = vmul.f32 %v7492, %v7506
        %v7557 = vadd.f32 %v7517, %v7518
        %v7558 = vadd.f32 %v7557, %v7519
        %v7559 = vadd.f32 %v7558, %v7520
        %v7560 = vadd.f32 %v7559, %v7521
        %v7561 = vadd.f32 %v7560, %v7522
        %v7562 = vadd.f32 %v7561, %v7523
        %v7563 = vadd.f32 %v7562, %v7524
        %v7564 = vadd.f32 %v7563, %v7525
        %v7565 = vadd.f32 %v7564, %v7526
        %7566 = vadd.xlane.f32.xlu0 %v7565
        %v7567 = vpop.xlane.xlu0 %7566
        %v7568 = vadd.f32 %v7527, %v7528
        %v7569 = vadd.f32 %v7568, %v7529
        %v7570 = vadd.f32 %v7569, %v7530
        %v7571 = vadd.f32 %v7570, %v7531
        %v7572 = vadd.f32 %v7571, %v7532
        %v7573 = vadd.f32 %v7572, %v7533
        %v7574 = vadd.f32 %v7573, %v7534
        %v7575 = vadd.f32 %v7574, %v7535
        %v7576 = vadd.f32 %v7575, %v7536
        %7577 = vadd.xlane.f32.xlu0 %v7576
        %v7578 = vpop.xlane.xlu0 %7577
        %v7579 = vadd.f32 %v7537, %v7538
        %v7580 = vadd.f32 %v7579, %v7539
        %v7581 = vadd.f32 %v7580, %v7540
        %v7582 = vadd.f32 %v7581, %v7541
        %v7583 = vadd.f32 %v7582, %v7542
        %v7584 = vadd.f32 %v7583, %v7543
        %v7585 = vadd.f32 %v7584, %v7544
        %v7586 = vadd.f32 %v7585, %v7545
        %v7587 = vadd.f32 %v7586, %v7546
        %7588 = vadd.xlane.f32.xlu0 %v7587
        %v7589 = vpop.xlane.xlu0 %7588
        %v7590 = vadd.f32 %v7547, %v7548
        %v7591 = vadd.f32 %v7590, %v7549
        %v7592 = vadd.f32 %v7591, %v7550
        %v7593 = vadd.f32 %v7592, %v7551
        %v7594 = vadd.f32 %v7593, %v7552
        %v7595 = vadd.f32 %v7594, %v7553
        %v7596 = vadd.f32 %v7595, %v7554
        %v7597 = vadd.f32 %v7596, %v7555
        %v7598 = vadd.f32 %v7597, %v7556
        %7599 = vadd.xlane.f32.xlu0 %v7598
        %v7600 = vpop.xlane.xlu0 %7599
        %v7601 = vld [vmem:[%s598] sm:$0x1]
        %v7603 = vperm.slane %v7601, 0
        %v7605 = vadd.f32 %v7567, %v7603
        %v7606 = vadd.f32 %v7578, %v7603
        %v7607 = vadd.f32 %v7589, %v7603
        %v7608 = vadd.f32 %v7600, %v7603
        %v7609 = vxor.u32 %v7605, 2147483648
        %v7610 = vxor.u32 %v7606, 2147483648
        %v7611 = vxor.u32 %v7607, 2147483648
        %v7612 = vxor.u32 %v7608, 2147483648
        %v7613 = vmul.f32 %v7609, 1.442695
        %v7614 = vpow.pop %v7613
        %v7615 = vmul.f32 %v7610, 1.442695
        %v7616 = vpow.pop %v7615
        %v7617 = vmul.f32 %v7611, 1.442695
        %v7618 = vpow.pop %v7617
        %v7619 = vmul.f32 %v7612, 1.442695
        %v7620 = vpow.pop %v7619
        %v7621 = vadd.f32 %v7614, 1.0
        %v7622 = vadd.f32 %v7616, 1.0
        %v7623 = vadd.f32 %v7618, 1.0
        %v7624 = vadd.f32 %v7620, 1.0
        %v7625 = vrcp.pop %v7621
        %v7626 = vmul.f32 %v7621, %v7625
        %v7627 = vsub.f32 1.0, %v7626
        %v7628 = vmul.f32 %v7625, %v7627
        %v7629 = vadd.f32 %v7625, %v7628
        %vm7630 = vweird.f32 %v7621
        %vm7631 = vweird.f32 %v7625
        %vm7632 = vmor %vm7630, %vm7631
        %v7633 = vsel %vm7632, %v7625, %v7629
        %v7634 = vand.u32 2147483647, %v7621
        %vm7635 = vcmp.eq.f32.partialorder %v7634, 8.507059e+37
        %v7636 = vand.u32 %v7621, 2147483648
        %v7637 = vor.u32 1.1754944e-38, %v7636
        %v7638 = vsel %vm7635, %v7637, %v7633
        %v7639 = vmul.f32 1.0, %v7638
        %v7640 = vrcp.pop %v7622
        %v7641 = vmul.f32 %v7622, %v7640
        %v7642 = vsub.f32 1.0, %v7641
        %v7643 = vmul.f32 %v7640, %v7642
        %v7644 = vadd.f32 %v7640, %v7643
        %vm7645 = vweird.f32 %v7622
        %vm7646 = vweird.f32 %v7640
        %vm7647 = vmor %vm7645, %vm7646
        %v7648 = vsel %vm7647, %v7640, %v7644
        %v7649 = vand.u32 2147483647, %v7622
        %vm7650 = vcmp.eq.f32.partialorder %v7649, 8.507059e+37
        %v7651 = vand.u32 %v7622, 2147483648
        %v7652 = vor.u32 1.1754944e-38, %v7651
        %v7653 = vsel %vm7650, %v7652, %v7648
        %v7654 = vmul.f32 1.0, %v7653
        %v7655 = vrcp.pop %v7623
        %v7656 = vmul.f32 %v7623, %v7655
        %v7657 = vsub.f32 1.0, %v7656
        %v7658 = vmul.f32 %v7655, %v7657
        %v7659 = vadd.f32 %v7655, %v7658
        %vm7660 = vweird.f32 %v7623
        %vm7661 = vweird.f32 %v7655
        %vm7662 = vmor %vm7660, %vm7661
        %v7663 = vsel %vm7662, %v7655, %v7659
        %v7664 = vand.u32 2147483647, %v7623
        %vm7665 = vcmp.eq.f32.partialorder %v7664, 8.507059e+37
        %v7666 = vand.u32 %v7623, 2147483648
        %v7667 = vor.u32 1.1754944e-38, %v7666
        %v7668 = vsel %vm7665, %v7667, %v7663
        %v7669 = vmul.f32 1.0, %v7668
        %v7670 = vrcp.pop %v7624
        %v7671 = vmul.f32 %v7624, %v7670
        %v7672 = vsub.f32 1.0, %v7671
        %v7673 = vmul.f32 %v7670, %v7672
        %v7674 = vadd.f32 %v7670, %v7673
        %vm7675 = vweird.f32 %v7624
        %vm7676 = vweird.f32 %v7670
        %vm7677 = vmor %vm7675, %vm7676
        %v7678 = vsel %vm7677, %v7670, %v7674
        %v7679 = vand.u32 2147483647, %v7624
        %vm7680 = vcmp.eq.f32.partialorder %v7679, 8.507059e+37
        %v7681 = vand.u32 %v7624, 2147483648
        %v7682 = vor.u32 1.1754944e-38, %v7681
        %v7683 = vsel %vm7680, %v7682, %v7678
        %v7684 = vmul.f32 1.0, %v7683
        %vm7685 = vcmask 7168
        %7686 = vst.msk [vmem:[%s608] sm:$0xff] %vm7685, %v7639
        %7687 = vst.msk [vmem:[%s608 + $0x8] sm:$0xff] %vm7685, %v7654
        %7688 = vst.msk [vmem:[%s608 + $0x10] sm:$0xff] %vm7685, %v7669
        %7689 = vst.msk [vmem:[%s608 + $0x18] sm:$0xff] %vm7685, %v7684
        %v7690 = vunpack.c.l.bf16 %v609
        %v7691 = vunpack.c.h.bf16 %v609
        %v7692 = vunpack.c.l.bf16 %v610
        %v7693 = vunpack.c.h.bf16 %v610
        %v7694 = vunpack.c.l.bf16 %v611
        %v7695 = vunpack.c.h.bf16 %v611
        %v7696 = vunpack.c.l.bf16 %v612
        %v7697 = vunpack.c.h.bf16 %v612
        %v7698 = vunpack.c.l.bf16 %v613
        %v7699 = vunpack.c.h.bf16 %v613
        %v7700 = vunpack.c.l.bf16 %v614
        %v7701 = vunpack.c.h.bf16 %v614
        %v7702 = vunpack.c.l.bf16 %v615
        %v7703 = vunpack.c.h.bf16 %v615
        %v7704 = vunpack.c.l.bf16 %v616
        %v7705 = vunpack.c.h.bf16 %v616
        %v7706 = vunpack.c.l.bf16 %v617
        %v7707 = vunpack.c.h.bf16 %v617
        %v7708 = vunpack.c.l.bf16 %v618
        %v7709 = vunpack.c.h.bf16 %v618
        %v7710 = vunpack.c.l.bf16 %v619
        %v7711 = vunpack.c.h.bf16 %v619
        %v7712 = vunpack.c.l.bf16 %v620
        %v7713 = vunpack.c.h.bf16 %v620
        %v7714 = vunpack.c.l.bf16 %v621
        %v7715 = vunpack.c.h.bf16 %v621
        %v7716 = vunpack.c.l.bf16 %v622
        %v7717 = vunpack.c.h.bf16 %v622
        %v7718 = vunpack.c.l.bf16 %v623
        %v7719 = vunpack.c.h.bf16 %v623
        %v7720 = vunpack.c.l.bf16 %v624
        %v7721 = vunpack.c.h.bf16 %v624
        %v7722 = vunpack.c.l.bf16 %v625
        %v7723 = vunpack.c.h.bf16 %v625
        %v7724 = vunpack.c.l.bf16 %v626
        %v7725 = vunpack.c.h.bf16 %v626
        %v7726 = vunpack.c.l.bf16 %v627
        %v7727 = vunpack.c.h.bf16 %v627
        %v7728 = vunpack.c.l.bf16 %v628
        %v7729 = vunpack.c.h.bf16 %v628
        %7731 = vset.pattern.permute.xlu0 0
        %7732 = vperm.xlu0 %7731, %v7639
        %v7733 = vpop.permute.xlu0 %7732
        %7736 = vset.pattern.permute.xlu0 0
        %7737 = vperm.xlu0 %7736, %v7654
        %v7738 = vpop.permute.xlu0 %7737
        %7741 = vset.pattern.permute.xlu0 0
        %7742 = vperm.xlu0 %7741, %v7669
        %v7743 = vpop.permute.xlu0 %7742
        %7746 = vset.pattern.permute.xlu0 0
        %7747 = vperm.xlu0 %7746, %v7684
        %v7748 = vpop.permute.xlu0 %7747
        %v7750 = vmul.f32 %v7690, %v7733
        %v7751 = vmul.f32 %v7691, %v7733
        %v7752 = vmul.f32 %v7692, %v7733
        %v7753 = vmul.f32 %v7693, %v7733
        %v7754 = vmul.f32 %v7694, %v7733
        %v7755 = vmul.f32 %v7695, %v7733
        %v7756 = vmul.f32 %v7696, %v7733
        %v7757 = vmul.f32 %v7697, %v7733
        %v7758 = vmul.f32 %v7698, %v7733
        %v7759 = vmul.f32 %v7699, %v7733
        %v7760 = vmul.f32 %v7700, %v7738
        %v7761 = vmul.f32 %v7701, %v7738
        %v7762 = vmul.f32 %v7702, %v7738
        %v7763 = vmul.f32 %v7703, %v7738
        %v7764 = vmul.f32 %v7704, %v7738
        %v7765 = vmul.f32 %v7705, %v7738
        %v7766 = vmul.f32 %v7706, %v7738
        %v7767 = vmul.f32 %v7707, %v7738
        %v7768 = vmul.f32 %v7708, %v7738
        %v7769 = vmul.f32 %v7709, %v7738
        %v7770 = vmul.f32 %v7710, %v7743
        %v7771 = vmul.f32 %v7711, %v7743
        %v7772 = vmul.f32 %v7712, %v7743
        %v7773 = vmul.f32 %v7713, %v7743
        %v7774 = vmul.f32 %v7714, %v7743
        %v7775 = vmul.f32 %v7715, %v7743
        %v7776 = vmul.f32 %v7716, %v7743
        %v7777 = vmul.f32 %v7717, %v7743
        %v7778 = vmul.f32 %v7718, %v7743
        %v7779 = vmul.f32 %v7719, %v7743
        %v7780 = vmul.f32 %v7720, %v7748
        %v7781 = vmul.f32 %v7721, %v7748
        %v7782 = vmul.f32 %v7722, %v7748
        %v7783 = vmul.f32 %v7723, %v7748
        %v7784 = vmul.f32 %v7724, %v7748
        %v7785 = vmul.f32 %v7725, %v7748
        %v7786 = vmul.f32 %v7726, %v7748
        %v7787 = vmul.f32 %v7727, %v7748
        %v7788 = vmul.f32 %v7728, %v7748
        %v7789 = vmul.f32 %v7729, %v7748
        %v7790 = vadd.f32 %v7750, %v7760
        %v7791 = vrot.slane %v7790, 4
        %v7792 = vadd.f32 %v7790, %v7791
        %v7793 = vrot.slane %v7792, 2
        %v7794 = vadd.f32 %v7792, %v7793
        %v7795 = vrot.slane %v7794, 1
        %v7796 = vadd.f32 %v7794, %v7795
        %v7797 = vadd.f32 %v7751, %v7761
        %v7798 = vrot.slane %v7797, 4
        %v7799 = vadd.f32 %v7797, %v7798
        %v7800 = vrot.slane %v7799, 2
        %v7801 = vadd.f32 %v7799, %v7800
        %v7802 = vrot.slane %v7801, 1
        %v7803 = vadd.f32 %v7801, %v7802
        %v7804 = vadd.f32 %v7752, %v7762
        %v7805 = vrot.slane %v7804, 4
        %v7806 = vadd.f32 %v7804, %v7805
        %v7807 = vrot.slane %v7806, 2
        %v7808 = vadd.f32 %v7806, %v7807
        %v7809 = vrot.slane %v7808, 1
        %v7810 = vadd.f32 %v7808, %v7809
        %v7811 = vadd.f32 %v7753, %v7763
        %v7812 = vrot.slane %v7811, 4
        %v7813 = vadd.f32 %v7811, %v7812
        %v7814 = vrot.slane %v7813, 2
        %v7815 = vadd.f32 %v7813, %v7814
        %v7816 = vrot.slane %v7815, 1
        %v7817 = vadd.f32 %v7815, %v7816
        %v7818 = vadd.f32 %v7754, %v7764
        %v7819 = vrot.slane %v7818, 4
        %v7820 = vadd.f32 %v7818, %v7819
        %v7821 = vrot.slane %v7820, 2
        %v7822 = vadd.f32 %v7820, %v7821
        %v7823 = vrot.slane %v7822, 1
        %v7824 = vadd.f32 %v7822, %v7823
        %v7825 = vadd.f32 %v7755, %v7765
        %v7826 = vrot.slane %v7825, 4
        %v7827 = vadd.f32 %v7825, %v7826
        %v7828 = vrot.slane %v7827, 2
        %v7829 = vadd.f32 %v7827, %v7828
        %v7830 = vrot.slane %v7829, 1
        %v7831 = vadd.f32 %v7829, %v7830
        %v7832 = vadd.f32 %v7756, %v7766
        %v7833 = vrot.slane %v7832, 4
        %v7834 = vadd.f32 %v7832, %v7833
        %v7835 = vrot.slane %v7834, 2
        %v7836 = vadd.f32 %v7834, %v7835
        %v7837 = vrot.slane %v7836, 1
        %v7838 = vadd.f32 %v7836, %v7837
        %v7839 = vadd.f32 %v7757, %v7767
        %v7840 = vrot.slane %v7839, 4
        %v7841 = vadd.f32 %v7839, %v7840
        %v7842 = vrot.slane %v7841, 2
        %v7843 = vadd.f32 %v7841, %v7842
        %v7844 = vrot.slane %v7843, 1
        %v7845 = vadd.f32 %v7843, %v7844
        %v7846 = vadd.f32 %v7758, %v7768
        %v7847 = vrot.slane %v7846, 4
        %v7848 = vadd.f32 %v7846, %v7847
        %v7849 = vrot.slane %v7848, 2
        %v7850 = vadd.f32 %v7848, %v7849
        %v7851 = vrot.slane %v7850, 1
        %v7852 = vadd.f32 %v7850, %v7851
        %v7853 = vadd.f32 %v7759, %v7769
        %v7854 = vrot.slane %v7853, 4
        %v7855 = vadd.f32 %v7853, %v7854
        %v7856 = vrot.slane %v7855, 2
        %v7857 = vadd.f32 %v7855, %v7856
        %v7858 = vrot.slane %v7857, 1
        %v7859 = vadd.f32 %v7857, %v7858
        %v7860 = vadd.f32 %v7770, %v7780
        %v7861 = vrot.slane %v7860, 4
        %v7862 = vadd.f32 %v7860, %v7861
        %v7863 = vrot.slane %v7862, 2
        %v7864 = vadd.f32 %v7862, %v7863
        %v7865 = vrot.slane %v7864, 1
        %v7866 = vadd.f32 %v7864, %v7865
        %v7867 = vadd.f32 %v7771, %v7781
        %v7868 = vrot.slane %v7867, 4
        %v7869 = vadd.f32 %v7867, %v7868
        %v7870 = vrot.slane %v7869, 2
        %v7871 = vadd.f32 %v7869, %v7870
        %v7872 = vrot.slane %v7871, 1
        %v7873 = vadd.f32 %v7871, %v7872
        %v7874 = vadd.f32 %v7772, %v7782
        %v7875 = vrot.slane %v7874, 4
        %v7876 = vadd.f32 %v7874, %v7875
        %v7877 = vrot.slane %v7876, 2
        %v7878 = vadd.f32 %v7876, %v7877
        %v7879 = vrot.slane %v7878, 1
        %v7880 = vadd.f32 %v7878, %v7879
        %v7881 = vadd.f32 %v7773, %v7783
        %v7882 = vrot.slane %v7881, 4
        %v7883 = vadd.f32 %v7881, %v7882
        %v7884 = vrot.slane %v7883, 2
        %v7885 = vadd.f32 %v7883, %v7884
        %v7886 = vrot.slane %v7885, 1
        %v7887 = vadd.f32 %v7885, %v7886
        %v7888 = vadd.f32 %v7774, %v7784
        %v7889 = vrot.slane %v7888, 4
        %v7890 = vadd.f32 %v7888, %v7889
        %v7891 = vrot.slane %v7890, 2
        %v7892 = vadd.f32 %v7890, %v7891
        %v7893 = vrot.slane %v7892, 1
        %v7894 = vadd.f32 %v7892, %v7893
        %v7895 = vadd.f32 %v7775, %v7785
        %v7896 = vrot.slane %v7895, 4
        %v7897 = vadd.f32 %v7895, %v7896
        %v7898 = vrot.slane %v7897, 2
        %v7899 = vadd.f32 %v7897, %v7898
        %v7900 = vrot.slane %v7899, 1
        %v7901 = vadd.f32 %v7899, %v7900
        %v7902 = vadd.f32 %v7776, %v7786
        %v7903 = vrot.slane %v7902, 4
        %v7904 = vadd.f32 %v7902, %v7903
        %v7905 = vrot.slane %v7904, 2
        %v7906 = vadd.f32 %v7904, %v7905
        %v7907 = vrot.slane %v7906, 1
        %v7908 = vadd.f32 %v7906, %v7907
        %v7909 = vadd.f32 %v7777, %v7787
        %v7910 = vrot.slane %v7909, 4
        %v7911 = vadd.f32 %v7909, %v7910
        %v7912 = vrot.slane %v7911, 2
        %v7913 = vadd.f32 %v7911, %v7912
        %v7914 = vrot.slane %v7913, 1
        %v7915 = vadd.f32 %v7913, %v7914
        %v7916 = vadd.f32 %v7778, %v7788
        %v7917 = vrot.slane %v7916, 4
        %v7918 = vadd.f32 %v7916, %v7917
        %v7919 = vrot.slane %v7918, 2
        %v7920 = vadd.f32 %v7918, %v7919
        %v7921 = vrot.slane %v7920, 1
        %v7922 = vadd.f32 %v7920, %v7921
        %v7923 = vadd.f32 %v7779, %v7789
        %v7924 = vrot.slane %v7923, 4
        %v7925 = vadd.f32 %v7923, %v7924
        %v7926 = vrot.slane %v7925, 2
        %v7927 = vadd.f32 %v7925, %v7926
        %v7928 = vrot.slane %v7927, 1
        %v7929 = vadd.f32 %v7927, %v7928
        %v7930 = vmul.f32 %v7796, 0.0625
        %v7931 = vmul.f32 %v7803, 0.0625
        %v7932 = vmul.f32 %v7810, 0.0625
        %v7933 = vmul.f32 %v7817, 0.0625
        %v7934 = vmul.f32 %v7824, 0.0625
        %v7935 = vmul.f32 %v7831, 0.0625
        %v7936 = vmul.f32 %v7838, 0.0625
        %v7937 = vmul.f32 %v7845, 0.0625
        %v7938 = vmul.f32 %v7852, 0.0625
        %v7939 = vmul.f32 %v7859, 0.0625
        %v7940 = vmul.f32 %v7866, 0.0625
        %v7941 = vmul.f32 %v7873, 0.0625
        %v7942 = vmul.f32 %v7880, 0.0625
        %v7943 = vmul.f32 %v7887, 0.0625
        %v7944 = vmul.f32 %v7894, 0.0625
        %v7945 = vmul.f32 %v7901, 0.0625
        %v7946 = vmul.f32 %v7908, 0.0625
        %v7947 = vmul.f32 %v7915, 0.0625
        %v7948 = vmul.f32 %v7922, 0.0625
        %v7949 = vmul.f32 %v7929, 0.0625
        %v7950 = vpack.c.bf16 %v7930, %v7930
        %v7951 = vpack.c.bf16 %v7931, %v7931
        %v7952 = vpack.c.bf16 %v7932, %v7932
        %v7953 = vpack.c.bf16 %v7933, %v7933
        %v7954 = vpack.c.bf16 %v7934, %v7934
        %v7955 = vpack.c.bf16 %v7935, %v7935
        %v7956 = vpack.c.bf16 %v7936, %v7936
        %v7957 = vpack.c.bf16 %v7937, %v7937
        %v7958 = vpack.c.bf16 %v7938, %v7938
        %v7959 = vpack.c.bf16 %v7939, %v7939
        %v7960 = vpack.c.bf16 %v7940, %v7940
        %v7961 = vpack.c.bf16 %v7941, %v7941
        %v7962 = vpack.c.bf16 %v7942, %v7942
        %v7963 = vpack.c.bf16 %v7943, %v7943
        %v7964 = vpack.c.bf16 %v7944, %v7944
        %v7965 = vpack.c.bf16 %v7945, %v7945
        %v7966 = vpack.c.bf16 %v7946, %v7946
        %v7967 = vpack.c.bf16 %v7947, %v7947
        %v7968 = vpack.c.bf16 %v7948, %v7948
        %v7969 = vpack.c.bf16 %v7949, %v7949
        %v7970 = vld [vmem:[%s508] sm:$0xff]
        %v7971 = vld [vmem:[%s508 + $0x8] sm:$0xff]
        %v7972 = vld [vmem:[%s508 + $0x10] sm:$0xff]
        %v7973 = vld [vmem:[%s508 + $0x18] sm:$0xff]
        %v7974 = vld [vmem:[%s508 + $0x20] sm:$0xff]
        %v7975 = vld [vmem:[%s508 + $0x28] sm:$0xff]
        %v7976 = vld [vmem:[%s508 + $0x30] sm:$0xff]
        %v7977 = vld [vmem:[%s508 + $0x38] sm:$0xff]
        %v7978 = vld [vmem:[%s508 + $0x40] sm:$0xff]
        %v7979 = vld [vmem:[%s508 + $0x48] sm:$0xff]
        %v7980 = vld [vmem:[%s508 + $0x50] sm:$0xff]
        %v7981 = vld [vmem:[%s508 + $0x58] sm:$0xff]
        %v7982 = vld [vmem:[%s508 + $0x60] sm:$0xff]
        %v7983 = vld [vmem:[%s508 + $0x68] sm:$0xff]
        %v7984 = vld [vmem:[%s508 + $0x70] sm:$0xff]
        %v7985 = vld [vmem:[%s508 + $0x78] sm:$0xff]
        %v7986 = vld [vmem:[%s508 + $0x80] sm:$0xff]
        %v7987 = vld [vmem:[%s508 + $0x88] sm:$0xff]
        %v7988 = vld [vmem:[%s508 + $0x90] sm:$0xff]
        %v7989 = vld [vmem:[%s508 + $0x98] sm:$0xff]
        %v7990 = vld [vmem:[%s508 + $0xa0] sm:$0xff]
        %v7991 = vld [vmem:[%s508 + $0xa8] sm:$0xff]
        %v7992 = vld [vmem:[%s508 + $0xb0] sm:$0xff]
        %v7993 = vld [vmem:[%s508 + $0xb8] sm:$0xff]
        %v7994 = vld [vmem:[%s508 + $0xc0] sm:$0xff]
        %v7995 = vld [vmem:[%s508 + $0xc8] sm:$0xff]
        %v7996 = vld [vmem:[%s508 + $0xd0] sm:$0xff]
        %v7997 = vld [vmem:[%s508 + $0xd8] sm:$0xff]
        %v7998 = vld [vmem:[%s508 + $0xe0] sm:$0xff]
        %v7999 = vld [vmem:[%s508 + $0xe8] sm:$0xff]
        %v8000 = vld [vmem:[%s508 + $0xf0] sm:$0xff]
        %v8001 = vld [vmem:[%s508 + $0xf8] sm:$0xff]
        %v8002 = vld [vmem:[%s508 + $0x100] sm:$0xff]
        %v8003 = vld [vmem:[%s508 + $0x108] sm:$0xff]
        %v8004 = vld [vmem:[%s508 + $0x110] sm:$0xff]
        %v8005 = vld [vmem:[%s508 + $0x118] sm:$0xff]
        %v8006 = vld [vmem:[%s508 + $0x120] sm:$0xff]
        %v8007 = vld [vmem:[%s508 + $0x128] sm:$0xff]
        %v8008 = vld [vmem:[%s508 + $0x130] sm:$0xff]
        %v8009 = vld [vmem:[%s508 + $0x138] sm:$0xff]
        %v8010 = vld [vmem:[%s508 + $0x140] sm:$0xff]
        %v8011 = vld [vmem:[%s508 + $0x148] sm:$0xff]
        %v8012 = vld [vmem:[%s508 + $0x150] sm:$0xff]
        %v8013 = vld [vmem:[%s508 + $0x158] sm:$0xff]
        %v8014 = vld [vmem:[%s508 + $0x160] sm:$0xff]
        %v8015 = vld [vmem:[%s508 + $0x168] sm:$0xff]
        %v8016 = vld [vmem:[%s508 + $0x170] sm:$0xff]
        %v8017 = vld [vmem:[%s508 + $0x178] sm:$0xff]
        %v8018 = vld [vmem:[%s508 + $0x180] sm:$0xff]
        %v8019 = vld [vmem:[%s508 + $0x188] sm:$0xff]
        %v8020 = vld [vmem:[%s508 + $0x190] sm:$0xff]
        %v8021 = vld [vmem:[%s508 + $0x198] sm:$0xff]
        %v8022 = vld [vmem:[%s508 + $0x1a0] sm:$0xff]
        %v8023 = vld [vmem:[%s508 + $0x1a8] sm:$0xff]
        %v8024 = vld [vmem:[%s508 + $0x1b0] sm:$0xff]
        %v8025 = vld [vmem:[%s508 + $0x1b8] sm:$0xff]
        %v8026 = vld [vmem:[%s508 + $0x1c0] sm:$0xff]
        %v8027 = vld [vmem:[%s508 + $0x1c8] sm:$0xff]
        %v8028 = vld [vmem:[%s508 + $0x1d0] sm:$0xff]
        %v8029 = vld [vmem:[%s508 + $0x1d8] sm:$0xff]
        %v8030 = vld [vmem:[%s508 + $0x1e0] sm:$0xff]
        %v8031 = vld [vmem:[%s508 + $0x1e8] sm:$0xff]
        %v8032 = vld [vmem:[%s508 + $0x1f0] sm:$0xff]
        %v8033 = vld [vmem:[%s508 + $0x1f8] sm:$0xff]
        %v8034 = vld [vmem:[%s508 + $0x200] sm:$0xff]
        %v8035 = vld [vmem:[%s508 + $0x208] sm:$0xff]
        %v8036 = vld [vmem:[%s508 + $0x210] sm:$0xff]
        %v8037 = vld [vmem:[%s508 + $0x218] sm:$0xff]
        %v8038 = vld [vmem:[%s508 + $0x220] sm:$0xff]
        %v8039 = vld [vmem:[%s508 + $0x228] sm:$0xff]
        %v8040 = vld [vmem:[%s508 + $0x230] sm:$0xff]
        %v8041 = vld [vmem:[%s508 + $0x238] sm:$0xff]
        %v8042 = vld [vmem:[%s508 + $0x240] sm:$0xff]
        %v8043 = vld [vmem:[%s508 + $0x248] sm:$0xff]
        %v8044 = vld [vmem:[%s508 + $0x250] sm:$0xff]
        %v8045 = vld [vmem:[%s508 + $0x258] sm:$0xff]
        %v8046 = vld [vmem:[%s508 + $0x260] sm:$0xff]
        %v8047 = vld [vmem:[%s508 + $0x268] sm:$0xff]
        %v8048 = vld [vmem:[%s508 + $0x270] sm:$0xff]
        %v8049 = vld [vmem:[%s508 + $0x278] sm:$0xff]
        %v8050 = vld [vmem:[%s508 + $0x280] sm:$0xff]
        %v8051 = vld [vmem:[%s508 + $0x288] sm:$0xff]
        %v8052 = vld [vmem:[%s508 + $0x290] sm:$0xff]
        %v8053 = vld [vmem:[%s508 + $0x298] sm:$0xff]
        %v8054 = vld [vmem:[%s508 + $0x2a0] sm:$0xff]
        %v8055 = vld [vmem:[%s508 + $0x2a8] sm:$0xff]
        %v8056 = vld [vmem:[%s508 + $0x2b0] sm:$0xff]
        %v8057 = vld [vmem:[%s508 + $0x2b8] sm:$0xff]
        %v8058 = vld [vmem:[%s508 + $0x2c0] sm:$0xff]
        %v8059 = vld [vmem:[%s508 + $0x2c8] sm:$0xff]
        %v8060 = vld [vmem:[%s508 + $0x2d0] sm:$0xff]
        %v8061 = vld [vmem:[%s508 + $0x2d8] sm:$0xff]
        %v8062 = vld [vmem:[%s508 + $0x2e0] sm:$0xff]
        %v8063 = vld [vmem:[%s508 + $0x2e8] sm:$0xff]
        %v8064 = vld [vmem:[%s508 + $0x2f0] sm:$0xff]
        %v8065 = vld [vmem:[%s508 + $0x2f8] sm:$0xff]
        %v8066 = vld [vmem:[%s508 + $0x300] sm:$0xff]
        %v8067 = vld [vmem:[%s508 + $0x308] sm:$0xff]
        %v8068 = vld [vmem:[%s508 + $0x310] sm:$0xff]
        %v8069 = vld [vmem:[%s508 + $0x318] sm:$0xff]
        %v8070 = vld [vmem:[%s508 + $0x320] sm:$0xff]
        %v8071 = vld [vmem:[%s508 + $0x328] sm:$0xff]
        %v8072 = vld [vmem:[%s508 + $0x330] sm:$0xff]
        %v8073 = vld [vmem:[%s508 + $0x338] sm:$0xff]
        %v8074 = vld [vmem:[%s508 + $0x340] sm:$0xff]
        %v8075 = vld [vmem:[%s508 + $0x348] sm:$0xff]
        %v8076 = vld [vmem:[%s508 + $0x350] sm:$0xff]
        %v8077 = vld [vmem:[%s508 + $0x358] sm:$0xff]
        %v8078 = vld [vmem:[%s508 + $0x360] sm:$0xff]
        %v8079 = vld [vmem:[%s508 + $0x368] sm:$0xff]
        %v8080 = vld [vmem:[%s508 + $0x370] sm:$0xff]
        %v8081 = vld [vmem:[%s508 + $0x378] sm:$0xff]
        %v8082 = vld [vmem:[%s508 + $0x380] sm:$0xff]
        %v8083 = vld [vmem:[%s508 + $0x388] sm:$0xff]
        %v8084 = vld [vmem:[%s508 + $0x390] sm:$0xff]
        %v8085 = vld [vmem:[%s508 + $0x398] sm:$0xff]
        %v8086 = vld [vmem:[%s508 + $0x3a0] sm:$0xff]
        %v8087 = vld [vmem:[%s508 + $0x3a8] sm:$0xff]
        %v8088 = vld [vmem:[%s508 + $0x3b0] sm:$0xff]
        %v8089 = vld [vmem:[%s508 + $0x3b8] sm:$0xff]
        %v8090 = vld [vmem:[%s508 + $0x3c0] sm:$0xff]
        %v8091 = vld [vmem:[%s508 + $0x3c8] sm:$0xff]
        %v8092 = vld [vmem:[%s508 + $0x3d0] sm:$0xff]
        %v8093 = vld [vmem:[%s508 + $0x3d8] sm:$0xff]
        %v8094 = vld [vmem:[%s508 + $0x3e0] sm:$0xff]
        %v8095 = vld [vmem:[%s508 + $0x3e8] sm:$0xff]
        %v8096 = vld [vmem:[%s508 + $0x3f0] sm:$0xff]
        %v8097 = vld [vmem:[%s508 + $0x3f8] sm:$0xff]
        %v8098 = vld [vmem:[%s508 + $0x400] sm:$0xff]
        %v8099 = vld [vmem:[%s508 + $0x408] sm:$0xff]
        %v8100 = vld [vmem:[%s508 + $0x410] sm:$0xff]
        %v8101 = vld [vmem:[%s508 + $0x418] sm:$0xff]
        %v8102 = vld [vmem:[%s508 + $0x420] sm:$0xff]
        %v8103 = vld [vmem:[%s508 + $0x428] sm:$0xff]
        %v8104 = vld [vmem:[%s508 + $0x430] sm:$0xff]
        %v8105 = vld [vmem:[%s508 + $0x438] sm:$0xff]
        %v8106 = vld [vmem:[%s508 + $0x440] sm:$0xff]
        %v8107 = vld [vmem:[%s508 + $0x448] sm:$0xff]
        %v8108 = vld [vmem:[%s508 + $0x450] sm:$0xff]
        %v8109 = vld [vmem:[%s508 + $0x458] sm:$0xff]
        %v8110 = vld [vmem:[%s508 + $0x460] sm:$0xff]
        %v8111 = vld [vmem:[%s508 + $0x468] sm:$0xff]
        %v8112 = vld [vmem:[%s508 + $0x470] sm:$0xff]
        %v8113 = vld [vmem:[%s508 + $0x478] sm:$0xff]
        %v8114 = vld [vmem:[%s508 + $0x480] sm:$0xff]
        %v8115 = vld [vmem:[%s508 + $0x488] sm:$0xff]
        %v8116 = vld [vmem:[%s508 + $0x490] sm:$0xff]
        %v8117 = vld [vmem:[%s508 + $0x498] sm:$0xff]
        %v8118 = vld [vmem:[%s508 + $0x4a0] sm:$0xff]
        %v8119 = vld [vmem:[%s508 + $0x4a8] sm:$0xff]
        %v8120 = vld [vmem:[%s508 + $0x4b0] sm:$0xff]
        %v8121 = vld [vmem:[%s508 + $0x4b8] sm:$0xff]
        %v8122 = vld [vmem:[%s508 + $0x4c0] sm:$0xff]
        %v8123 = vld [vmem:[%s508 + $0x4c8] sm:$0xff]
        %v8124 = vld [vmem:[%s508 + $0x4d0] sm:$0xff]
        %v8125 = vld [vmem:[%s508 + $0x4d8] sm:$0xff]
        %v8126 = vld [vmem:[%s508 + $0x4e0] sm:$0xff]
        %v8127 = vld [vmem:[%s508 + $0x4e8] sm:$0xff]
        %v8128 = vld [vmem:[%s508 + $0x4f0] sm:$0xff]
        %v8129 = vld [vmem:[%s508 + $0x4f8] sm:$0xff]
        %v8130 = vld [vmem:[%s508 + $0x500] sm:$0xff]
        %v8131 = vld [vmem:[%s508 + $0x508] sm:$0xff]
        %v8132 = vld [vmem:[%s508 + $0x510] sm:$0xff]
        %v8133 = vld [vmem:[%s508 + $0x518] sm:$0xff]
        %v8134 = vld [vmem:[%s508 + $0x520] sm:$0xff]
        %v8135 = vld [vmem:[%s508 + $0x528] sm:$0xff]
        %v8136 = vld [vmem:[%s508 + $0x530] sm:$0xff]
        %v8137 = vld [vmem:[%s508 + $0x538] sm:$0xff]
        %v8138 = vld [vmem:[%s508 + $0x540] sm:$0xff]
        %v8139 = vld [vmem:[%s508 + $0x548] sm:$0xff]
        %v8140 = vld [vmem:[%s508 + $0x550] sm:$0xff]
        %v8141 = vld [vmem:[%s508 + $0x558] sm:$0xff]
        %v8142 = vld [vmem:[%s508 + $0x560] sm:$0xff]
        %v8143 = vld [vmem:[%s508 + $0x568] sm:$0xff]
        %v8144 = vld [vmem:[%s508 + $0x570] sm:$0xff]
        %v8145 = vld [vmem:[%s508 + $0x578] sm:$0xff]
        %v8146 = vld [vmem:[%s508 + $0x580] sm:$0xff]
        %v8147 = vld [vmem:[%s508 + $0x588] sm:$0xff]
        %v8148 = vld [vmem:[%s508 + $0x590] sm:$0xff]
        %v8149 = vld [vmem:[%s508 + $0x598] sm:$0xff]
        %v8150 = vld [vmem:[%s508 + $0x5a0] sm:$0xff]
        %v8151 = vld [vmem:[%s508 + $0x5a8] sm:$0xff]
        %v8152 = vld [vmem:[%s508 + $0x5b0] sm:$0xff]
        %v8153 = vld [vmem:[%s508 + $0x5b8] sm:$0xff]
        %v8154 = vld [vmem:[%s508 + $0x5c0] sm:$0xff]
        %v8155 = vld [vmem:[%s508 + $0x5c8] sm:$0xff]
        %v8156 = vld [vmem:[%s508 + $0x5d0] sm:$0xff]
        %v8157 = vld [vmem:[%s508 + $0x5d8] sm:$0xff]
        %v8158 = vld [vmem:[%s508 + $0x5e0] sm:$0xff]
        %v8159 = vld [vmem:[%s508 + $0x5e8] sm:$0xff]
        %v8160 = vld [vmem:[%s508 + $0x5f0] sm:$0xff]
        %v8161 = vld [vmem:[%s508 + $0x5f8] sm:$0xff]
        %v8162 = vld [vmem:[%s508 + $0x600] sm:$0xff]
        %v8163 = vld [vmem:[%s508 + $0x608] sm:$0xff]
        %v8164 = vld [vmem:[%s508 + $0x610] sm:$0xff]
        %v8165 = vld [vmem:[%s508 + $0x618] sm:$0xff]
        %v8166 = vld [vmem:[%s508 + $0x620] sm:$0xff]
        %v8167 = vld [vmem:[%s508 + $0x628] sm:$0xff]
        %v8168 = vld [vmem:[%s508 + $0x630] sm:$0xff]
        %v8169 = vld [vmem:[%s508 + $0x638] sm:$0xff]
        %v8170 = vld [vmem:[%s508 + $0x640] sm:$0xff]
        %v8171 = vld [vmem:[%s508 + $0x648] sm:$0xff]
        %v8172 = vld [vmem:[%s508 + $0x650] sm:$0xff]
        %v8173 = vld [vmem:[%s508 + $0x658] sm:$0xff]
        %v8174 = vld [vmem:[%s508 + $0x660] sm:$0xff]
        %v8175 = vld [vmem:[%s508 + $0x668] sm:$0xff]
        %v8176 = vld [vmem:[%s508 + $0x670] sm:$0xff]
        %v8177 = vld [vmem:[%s508 + $0x678] sm:$0xff]
        %v8178 = vld [vmem:[%s508 + $0x680] sm:$0xff]
        %v8179 = vld [vmem:[%s508 + $0x688] sm:$0xff]
        %v8180 = vld [vmem:[%s508 + $0x690] sm:$0xff]
        %v8181 = vld [vmem:[%s508 + $0x698] sm:$0xff]
        %v8182 = vld [vmem:[%s508 + $0x6a0] sm:$0xff]
        %v8183 = vld [vmem:[%s508 + $0x6a8] sm:$0xff]
        %v8184 = vld [vmem:[%s508 + $0x6b0] sm:$0xff]
        %v8185 = vld [vmem:[%s508 + $0x6b8] sm:$0xff]
        %v8186 = vld [vmem:[%s508 + $0x6c0] sm:$0xff]
        %v8187 = vld [vmem:[%s508 + $0x6c8] sm:$0xff]
        %v8188 = vld [vmem:[%s508 + $0x6d0] sm:$0xff]
        %v8189 = vld [vmem:[%s508 + $0x6d8] sm:$0xff]
        %v8190 = vld [vmem:[%s508 + $0x6e0] sm:$0xff]
        %v8191 = vld [vmem:[%s508 + $0x6e8] sm:$0xff]
        %v8192 = vld [vmem:[%s508 + $0x6f0] sm:$0xff]
        %v8193 = vld [vmem:[%s508 + $0x6f8] sm:$0xff]
        %v8194 = vld [vmem:[%s508 + $0x700] sm:$0xff]
        %v8195 = vld [vmem:[%s508 + $0x708] sm:$0xff]
        %v8196 = vld [vmem:[%s508 + $0x710] sm:$0xff]
        %v8197 = vld [vmem:[%s508 + $0x718] sm:$0xff]
        %v8198 = vld [vmem:[%s508 + $0x720] sm:$0xff]
        %v8199 = vld [vmem:[%s508 + $0x728] sm:$0xff]
        %v8200 = vld [vmem:[%s508 + $0x730] sm:$0xff]
        %v8201 = vld [vmem:[%s508 + $0x738] sm:$0xff]
        %v8202 = vld [vmem:[%s508 + $0x740] sm:$0xff]
        %v8203 = vld [vmem:[%s508 + $0x748] sm:$0xff]
        %v8204 = vld [vmem:[%s508 + $0x750] sm:$0xff]
        %v8205 = vld [vmem:[%s508 + $0x758] sm:$0xff]
        %v8206 = vld [vmem:[%s508 + $0x760] sm:$0xff]
        %v8207 = vld [vmem:[%s508 + $0x768] sm:$0xff]
        %v8208 = vld [vmem:[%s508 + $0x770] sm:$0xff]
        %v8209 = vld [vmem:[%s508 + $0x778] sm:$0xff]
        %v8210 = vld [vmem:[%s508 + $0x780] sm:$0xff]
        %v8211 = vld [vmem:[%s508 + $0x788] sm:$0xff]
        %v8212 = vld [vmem:[%s508 + $0x790] sm:$0xff]
        %v8213 = vld [vmem:[%s508 + $0x798] sm:$0xff]
        %v8214 = vld [vmem:[%s508 + $0x7a0] sm:$0xff]
        %v8215 = vld [vmem:[%s508 + $0x7a8] sm:$0xff]
        %v8216 = vld [vmem:[%s508 + $0x7b0] sm:$0xff]
        %v8217 = vld [vmem:[%s508 + $0x7b8] sm:$0xff]
        %v8218 = vld [vmem:[%s508 + $0x7c0] sm:$0xff]
        %v8219 = vld [vmem:[%s508 + $0x7c8] sm:$0xff]
        %v8220 = vld [vmem:[%s508 + $0x7d0] sm:$0xff]
        %v8221 = vld [vmem:[%s508 + $0x7d8] sm:$0xff]
        %v8222 = vld [vmem:[%s508 + $0x7e0] sm:$0xff]
        %v8223 = vld [vmem:[%s508 + $0x7e8] sm:$0xff]
        %v8224 = vld [vmem:[%s508 + $0x7f0] sm:$0xff]
        %v8225 = vld [vmem:[%s508 + $0x7f8] sm:$0xff]
        %v8226 = vld [vmem:[%s508 + $0x800] sm:$0xff]
        %v8227 = vld [vmem:[%s508 + $0x808] sm:$0xff]
        %v8228 = vld [vmem:[%s508 + $0x810] sm:$0xff]
        %v8229 = vld [vmem:[%s508 + $0x818] sm:$0xff]
        %v8230 = vld [vmem:[%s508 + $0x820] sm:$0xff]
        %v8231 = vld [vmem:[%s508 + $0x828] sm:$0xff]
        %v8232 = vld [vmem:[%s508 + $0x830] sm:$0xff]
        %v8233 = vld [vmem:[%s508 + $0x838] sm:$0xff]
        %v8234 = vld [vmem:[%s508 + $0x840] sm:$0xff]
        %v8235 = vld [vmem:[%s508 + $0x848] sm:$0xff]
        %v8236 = vld [vmem:[%s508 + $0x850] sm:$0xff]
        %v8237 = vld [vmem:[%s508 + $0x858] sm:$0xff]
        %v8238 = vld [vmem:[%s508 + $0x860] sm:$0xff]
        %v8239 = vld [vmem:[%s508 + $0x868] sm:$0xff]
        %v8240 = vld [vmem:[%s508 + $0x870] sm:$0xff]
        %v8241 = vld [vmem:[%s508 + $0x878] sm:$0xff]
        %v8242 = vld [vmem:[%s508 + $0x880] sm:$0xff]
        %v8243 = vld [vmem:[%s508 + $0x888] sm:$0xff]
        %v8244 = vld [vmem:[%s508 + $0x890] sm:$0xff]
        %v8245 = vld [vmem:[%s508 + $0x898] sm:$0xff]
        %v8246 = vld [vmem:[%s508 + $0x8a0] sm:$0xff]
        %v8247 = vld [vmem:[%s508 + $0x8a8] sm:$0xff]
        %v8248 = vld [vmem:[%s508 + $0x8b0] sm:$0xff]
        %v8249 = vld [vmem:[%s508 + $0x8b8] sm:$0xff]
        %v8250 = vld [vmem:[%s508 + $0x8c0] sm:$0xff]
        %v8251 = vld [vmem:[%s508 + $0x8c8] sm:$0xff]
        %v8252 = vld [vmem:[%s508 + $0x8d0] sm:$0xff]
        %v8253 = vld [vmem:[%s508 + $0x8d8] sm:$0xff]
        %v8254 = vld [vmem:[%s508 + $0x8e0] sm:$0xff]
        %v8255 = vld [vmem:[%s508 + $0x8e8] sm:$0xff]
        %v8256 = vld [vmem:[%s508 + $0x8f0] sm:$0xff]
        %v8257 = vld [vmem:[%s508 + $0x8f8] sm:$0xff]
        %v8258 = vld [vmem:[%s508 + $0x900] sm:$0xff]
        %v8259 = vld [vmem:[%s508 + $0x908] sm:$0xff]
        %v8260 = vld [vmem:[%s508 + $0x910] sm:$0xff]
        %v8261 = vld [vmem:[%s508 + $0x918] sm:$0xff]
        %v8262 = vld [vmem:[%s508 + $0x920] sm:$0xff]
        %v8263 = vld [vmem:[%s508 + $0x928] sm:$0xff]
        %v8264 = vld [vmem:[%s508 + $0x930] sm:$0xff]
        %v8265 = vld [vmem:[%s508 + $0x938] sm:$0xff]
        %v8266 = vld [vmem:[%s508 + $0x940] sm:$0xff]
        %v8267 = vld [vmem:[%s508 + $0x948] sm:$0xff]
        %v8268 = vld [vmem:[%s508 + $0x950] sm:$0xff]
        %v8269 = vld [vmem:[%s508 + $0x958] sm:$0xff]
        %v8270 = vld [vmem:[%s508 + $0x960] sm:$0xff]
        %v8271 = vld [vmem:[%s508 + $0x968] sm:$0xff]
        %v8272 = vld [vmem:[%s508 + $0x970] sm:$0xff]
        %v8273 = vld [vmem:[%s508 + $0x978] sm:$0xff]
        %v8274 = vld [vmem:[%s508 + $0x980] sm:$0xff]
        %v8275 = vld [vmem:[%s508 + $0x988] sm:$0xff]
        %v8276 = vld [vmem:[%s508 + $0x990] sm:$0xff]
        %v8277 = vld [vmem:[%s508 + $0x998] sm:$0xff]
        %v8278 = vld [vmem:[%s508 + $0x9a0] sm:$0xff]
        %v8279 = vld [vmem:[%s508 + $0x9a8] sm:$0xff]
        %v8280 = vld [vmem:[%s508 + $0x9b0] sm:$0xff]
        %v8281 = vld [vmem:[%s508 + $0x9b8] sm:$0xff]
        %v8282 = vld [vmem:[%s508 + $0x9c0] sm:$0xff]
        %v8283 = vld [vmem:[%s508 + $0x9c8] sm:$0xff]
        %v8284 = vld [vmem:[%s508 + $0x9d0] sm:$0xff]
        %v8285 = vld [vmem:[%s508 + $0x9d8] sm:$0xff]
        %v8286 = vld [vmem:[%s508 + $0x9e0] sm:$0xff]
        %v8287 = vld [vmem:[%s508 + $0x9e8] sm:$0xff]
        %v8288 = vld [vmem:[%s508 + $0x9f0] sm:$0xff]
        %v8289 = vld [vmem:[%s508 + $0x9f8] sm:$0xff]
        %v8290 = vld [vmem:[%s518] sm:$0xf]
        %v8292 = vperm.slane %v8290, 0
        %v8293 = vperm.slane %v8290, 1
        %v8294 = vperm.slane %v8290, 2
        %v8295 = vperm.slane %v8290, 3
        %v8320 = vunpack.c.l.b16 %v7950
        %v8321 = vunpack.c.l.b16 %v7951
        %v8322 = vunpack.c.l.b16 %v7952
        %v8323 = vunpack.c.l.b16 %v7953
        %v8324 = vunpack.c.l.b16 %v7954
        %v8325 = vunpack.c.l.b16 %v7955
        %v8326 = vunpack.c.l.b16 %v7956
        %v8327 = vunpack.c.l.b16 %v7957
        %v8328 = vunpack.c.l.b16 %v7958
        %v8329 = vunpack.c.l.b16 %v7959
        %v8330 = vunpack.c.l.b16 %v7960
        %v8331 = vunpack.c.l.b16 %v7961
        %v8332 = vunpack.c.l.b16 %v7962
        %v8333 = vunpack.c.l.b16 %v7963
        %v8334 = vunpack.c.l.b16 %v7964
        %v8335 = vunpack.c.l.b16 %v7965
        %v8336 = vunpack.c.l.b16 %v7966
        %v8337 = vunpack.c.l.b16 %v7967
        %v8338 = vunpack.c.l.b16 %v7968
        %v8339 = vunpack.c.l.b16 %v7969
        %vm8340 = vcmask 1041409
        %v8341 = vsel %vm8340, %v8330, %v8320
        %v8342 = vsel %vm8340, %v8331, %v8321
        %v8343 = vsel %vm8340, %v8332, %v8322
        %v8344 = vsel %vm8340, %v8333, %v8323
        %v8345 = vsel %vm8340, %v8334, %v8324
        %v8346 = vsel %vm8340, %v8335, %v8325
        %v8347 = vsel %vm8340, %v8336, %v8326
        %v8348 = vsel %vm8340, %v8337, %v8327
        %v8349 = vsel %vm8340, %v8338, %v8328
        %v8350 = vsel %vm8340, %v8339, %v8329
        %v8351 = vpack.c.b16 %v8341, %v8341
        %v8352 = vpack.c.b16 %v8342, %v8342
        %v8353 = vpack.c.b16 %v8343, %v8343
        %v8354 = vpack.c.b16 %v8344, %v8344
        %v8355 = vpack.c.b16 %v8345, %v8345
        %v8356 = vpack.c.b16 %v8346, %v8346
        %v8357 = vpack.c.b16 %v8347, %v8347
        %v8358 = vpack.c.b16 %v8348, %v8348
        %v8359 = vpack.c.b16 %v8349, %v8349
        %v8360 = vpack.c.b16 %v8350, %v8350
        %v8691 = vunpack.c.l.b16 %v7970
        %v8692 = vunpack.c.h.b16 %v7970
        %v8693 = vunpack.c.l.b16 %v7971
        %v8694 = vunpack.c.h.b16 %v7971
        %v8695 = vunpack.c.l.b16 %v7972
        %v8696 = vunpack.c.h.b16 %v7972
        %v8697 = vunpack.c.l.b16 %v7973
        %v8698 = vunpack.c.h.b16 %v7973
        %v8699 = vunpack.c.l.b16 %v7974
        %v8700 = vunpack.c.h.b16 %v7974
        %v8701 = vunpack.c.l.b16 %v7975
        %v8702 = vunpack.c.h.b16 %v7975
        %v8703 = vunpack.c.l.b16 %v7976
        %v8704 = vunpack.c.h.b16 %v7976
        %v8705 = vunpack.c.l.b16 %v7977
        %v8706 = vunpack.c.h.b16 %v7977
        %v8707 = vunpack.c.l.b16 %v7978
        %v8708 = vunpack.c.h.b16 %v7978
        %v8709 = vunpack.c.l.b16 %v7979
        %v8710 = vunpack.c.h.b16 %v7979
        %v8711 = vunpack.c.l.b16 %v7980
        %v8712 = vunpack.c.h.b16 %v7980
        %v8713 = vunpack.c.l.b16 %v7981
        %v8714 = vunpack.c.h.b16 %v7981
        %v8715 = vunpack.c.l.b16 %v7982
        %v8716 = vunpack.c.h.b16 %v7982
        %v8717 = vunpack.c.l.b16 %v7983
        %v8718 = vunpack.c.h.b16 %v7983
        %v8719 = vunpack.c.l.b16 %v7984
        %v8720 = vunpack.c.h.b16 %v7984
        %v8721 = vunpack.c.l.b16 %v7985
        %v8722 = vunpack.c.h.b16 %v7985
        %v8723 = vunpack.c.l.b16 %v7986
        %v8724 = vunpack.c.h.b16 %v7986
        %v8725 = vunpack.c.l.b16 %v7987
        %v8726 = vunpack.c.h.b16 %v7987
        %v8727 = vunpack.c.l.b16 %v7988
        %v8728 = vunpack.c.h.b16 %v7988
        %v8729 = vunpack.c.l.b16 %v7989
        %v8730 = vunpack.c.h.b16 %v7989
        %v8731 = vunpack.c.l.b16 %v7990
        %v8732 = vunpack.c.h.b16 %v7990
        %v8733 = vunpack.c.l.b16 %v7991
        %v8734 = vunpack.c.h.b16 %v7991
        %v8735 = vunpack.c.l.b16 %v7992
        %v8736 = vunpack.c.h.b16 %v7992
        %v8737 = vunpack.c.l.b16 %v7993
        %v8738 = vunpack.c.h.b16 %v7993
        %v8739 = vunpack.c.l.b16 %v7994
        %v8740 = vunpack.c.h.b16 %v7994
        %v8741 = vunpack.c.l.b16 %v7995
        %v8742 = vunpack.c.h.b16 %v7995
        %v8743 = vunpack.c.l.b16 %v7996
        %v8744 = vunpack.c.h.b16 %v7996
        %v8745 = vunpack.c.l.b16 %v7997
        %v8746 = vunpack.c.h.b16 %v7997
        %v8747 = vunpack.c.l.b16 %v7998
        %v8748 = vunpack.c.h.b16 %v7998
        %v8749 = vunpack.c.l.b16 %v7999
        %v8750 = vunpack.c.h.b16 %v7999
        %v8751 = vunpack.c.l.b16 %v8000
        %v8752 = vunpack.c.h.b16 %v8000
        %v8753 = vunpack.c.l.b16 %v8001
        %v8754 = vunpack.c.h.b16 %v8001
        %v8755 = vunpack.c.l.b16 %v8002
        %v8756 = vunpack.c.h.b16 %v8002
        %v8757 = vunpack.c.l.b16 %v8003
        %v8758 = vunpack.c.h.b16 %v8003
        %v8759 = vunpack.c.l.b16 %v8004
        %v8760 = vunpack.c.h.b16 %v8004
        %v8761 = vunpack.c.l.b16 %v8005
        %v8762 = vunpack.c.h.b16 %v8005
        %v8763 = vunpack.c.l.b16 %v8006
        %v8764 = vunpack.c.h.b16 %v8006
        %v8765 = vunpack.c.l.b16 %v8007
        %v8766 = vunpack.c.h.b16 %v8007
        %v8767 = vunpack.c.l.b16 %v8008
        %v8768 = vunpack.c.h.b16 %v8008
        %v8769 = vunpack.c.l.b16 %v8009
        %v8770 = vunpack.c.h.b16 %v8009
        %v8771 = vunpack.c.l.b16 %v8010
        %v8772 = vunpack.c.h.b16 %v8010
        %v8773 = vunpack.c.l.b16 %v8011
        %v8774 = vunpack.c.h.b16 %v8011
        %v8775 = vunpack.c.l.b16 %v8012
        %v8776 = vunpack.c.h.b16 %v8012
        %v8777 = vunpack.c.l.b16 %v8013
        %v8778 = vunpack.c.h.b16 %v8013
        %v8779 = vunpack.c.l.b16 %v8014
        %v8780 = vunpack.c.h.b16 %v8014
        %v8781 = vunpack.c.l.b16 %v8015
        %v8782 = vunpack.c.h.b16 %v8015
        %v8783 = vunpack.c.l.b16 %v8016
        %v8784 = vunpack.c.h.b16 %v8016
        %v8785 = vunpack.c.l.b16 %v8017
        %v8786 = vunpack.c.h.b16 %v8017
        %v8787 = vunpack.c.l.b16 %v8018
        %v8788 = vunpack.c.h.b16 %v8018
        %v8789 = vunpack.c.l.b16 %v8019
        %v8790 = vunpack.c.h.b16 %v8019
        %v8791 = vunpack.c.l.b16 %v8020
        %v8792 = vunpack.c.h.b16 %v8020
        %v8793 = vunpack.c.l.b16 %v8021
        %v8794 = vunpack.c.h.b16 %v8021
        %v8795 = vunpack.c.l.b16 %v8022
        %v8796 = vunpack.c.h.b16 %v8022
        %v8797 = vunpack.c.l.b16 %v8023
        %v8798 = vunpack.c.h.b16 %v8023
        %v8799 = vunpack.c.l.b16 %v8024
        %v8800 = vunpack.c.h.b16 %v8024
        %v8801 = vunpack.c.l.b16 %v8025
        %v8802 = vunpack.c.h.b16 %v8025
        %v8803 = vunpack.c.l.b16 %v8026
        %v8804 = vunpack.c.h.b16 %v8026
        %v8805 = vunpack.c.l.b16 %v8027
        %v8806 = vunpack.c.h.b16 %v8027
        %v8807 = vunpack.c.l.b16 %v8028
        %v8808 = vunpack.c.h.b16 %v8028
        %v8809 = vunpack.c.l.b16 %v8029
        %v8810 = vunpack.c.h.b16 %v8029
        %v8811 = vunpack.c.l.b16 %v8030
        %v8812 = vunpack.c.h.b16 %v8030
        %v8813 = vunpack.c.l.b16 %v8031
        %v8814 = vunpack.c.h.b16 %v8031
        %v8815 = vunpack.c.l.b16 %v8032
        %v8816 = vunpack.c.h.b16 %v8032
        %v8817 = vunpack.c.l.b16 %v8033
        %v8818 = vunpack.c.h.b16 %v8033
        %v8819 = vunpack.c.l.b16 %v8034
        %v8820 = vunpack.c.h.b16 %v8034
        %v8821 = vunpack.c.l.b16 %v8035
        %v8822 = vunpack.c.h.b16 %v8035
        %v8823 = vunpack.c.l.b16 %v8036
        %v8824 = vunpack.c.h.b16 %v8036
        %v8825 = vunpack.c.l.b16 %v8037
        %v8826 = vunpack.c.h.b16 %v8037
        %v8827 = vunpack.c.l.b16 %v8038
        %v8828 = vunpack.c.h.b16 %v8038
        %v8829 = vunpack.c.l.b16 %v8039
        %v8830 = vunpack.c.h.b16 %v8039
        %v8831 = vunpack.c.l.b16 %v8040
        %v8832 = vunpack.c.h.b16 %v8040
        %v8833 = vunpack.c.l.b16 %v8041
        %v8834 = vunpack.c.h.b16 %v8041
        %v8835 = vunpack.c.l.b16 %v8042
        %v8836 = vunpack.c.h.b16 %v8042
        %v8837 = vunpack.c.l.b16 %v8043
        %v8838 = vunpack.c.h.b16 %v8043
        %v8839 = vunpack.c.l.b16 %v8044
        %v8840 = vunpack.c.h.b16 %v8044
        %v8841 = vunpack.c.l.b16 %v8045
        %v8842 = vunpack.c.h.b16 %v8045
        %v8843 = vunpack.c.l.b16 %v8046
        %v8844 = vunpack.c.h.b16 %v8046
        %v8845 = vunpack.c.l.b16 %v8047
        %v8846 = vunpack.c.h.b16 %v8047
        %v8847 = vunpack.c.l.b16 %v8048
        %v8848 = vunpack.c.h.b16 %v8048
        %v8849 = vunpack.c.l.b16 %v8049
        %v8850 = vunpack.c.h.b16 %v8049
        %v8851 = vunpack.c.l.b16 %v8050
        %v8852 = vunpack.c.h.b16 %v8050
        %v8853 = vunpack.c.l.b16 %v8051
        %v8854 = vunpack.c.h.b16 %v8051
        %v8855 = vunpack.c.l.b16 %v8052
        %v8856 = vunpack.c.h.b16 %v8052
        %v8857 = vunpack.c.l.b16 %v8053
        %v8858 = vunpack.c.h.b16 %v8053
        %v8859 = vunpack.c.l.b16 %v8054
        %v8860 = vunpack.c.h.b16 %v8054
        %v8861 = vunpack.c.l.b16 %v8055
        %v8862 = vunpack.c.h.b16 %v8055
        %v8863 = vunpack.c.l.b16 %v8056
        %v8864 = vunpack.c.h.b16 %v8056
        %v8865 = vunpack.c.l.b16 %v8057
        %v8866 = vunpack.c.h.b16 %v8057
        %v8867 = vunpack.c.l.b16 %v8058
        %v8868 = vunpack.c.h.b16 %v8058
        %v8869 = vunpack.c.l.b16 %v8059
        %v8870 = vunpack.c.h.b16 %v8059
        %v8871 = vunpack.c.l.b16 %v8060
        %v8872 = vunpack.c.h.b16 %v8060
        %v8873 = vunpack.c.l.b16 %v8061
        %v8874 = vunpack.c.h.b16 %v8061
        %v8875 = vunpack.c.l.b16 %v8062
        %v8876 = vunpack.c.h.b16 %v8062
        %v8877 = vunpack.c.l.b16 %v8063
        %v8878 = vunpack.c.h.b16 %v8063
        %v8879 = vunpack.c.l.b16 %v8064
        %v8880 = vunpack.c.h.b16 %v8064
        %v8881 = vunpack.c.l.b16 %v8065
        %v8882 = vunpack.c.h.b16 %v8065
        %v8883 = vunpack.c.l.b16 %v8066
        %v8884 = vunpack.c.h.b16 %v8066
        %v8885 = vunpack.c.l.b16 %v8067
        %v8886 = vunpack.c.h.b16 %v8067
        %v8887 = vunpack.c.l.b16 %v8068
        %v8888 = vunpack.c.h.b16 %v8068
        %v8889 = vunpack.c.l.b16 %v8069
        %v8890 = vunpack.c.h.b16 %v8069
        %v8891 = vunpack.c.l.b16 %v8070
        %v8892 = vunpack.c.h.b16 %v8070
        %v8893 = vunpack.c.l.b16 %v8071
        %v8894 = vunpack.c.h.b16 %v8071
        %v8895 = vunpack.c.l.b16 %v8072
        %v8896 = vunpack.c.h.b16 %v8072
        %v8897 = vunpack.c.l.b16 %v8073
        %v8898 = vunpack.c.h.b16 %v8073
        %v8899 = vunpack.c.l.b16 %v8074
        %v8900 = vunpack.c.h.b16 %v8074
        %v8901 = vunpack.c.l.b16 %v8075
        %v8902 = vunpack.c.h.b16 %v8075
        %v8903 = vunpack.c.l.b16 %v8076
        %v8904 = vunpack.c.h.b16 %v8076
        %v8905 = vunpack.c.l.b16 %v8077
        %v8906 = vunpack.c.h.b16 %v8077
        %v8907 = vunpack.c.l.b16 %v8078
        %v8908 = vunpack.c.h.b16 %v8078
        %v8909 = vunpack.c.l.b16 %v8079
        %v8910 = vunpack.c.h.b16 %v8079
        %v8911 = vunpack.c.l.b16 %v8080
        %v8912 = vunpack.c.h.b16 %v8080
        %v8913 = vunpack.c.l.b16 %v8081
        %v8914 = vunpack.c.h.b16 %v8081
        %v8915 = vunpack.c.l.b16 %v8082
        %v8916 = vunpack.c.h.b16 %v8082
        %v8917 = vunpack.c.l.b16 %v8083
        %v8918 = vunpack.c.h.b16 %v8083
        %v8919 = vunpack.c.l.b16 %v8084
        %v8920 = vunpack.c.h.b16 %v8084
        %v8921 = vunpack.c.l.b16 %v8085
        %v8922 = vunpack.c.h.b16 %v8085
        %v8923 = vunpack.c.l.b16 %v8086
        %v8924 = vunpack.c.h.b16 %v8086
        %v8925 = vunpack.c.l.b16 %v8087
        %v8926 = vunpack.c.h.b16 %v8087
        %v8927 = vunpack.c.l.b16 %v8088
        %v8928 = vunpack.c.h.b16 %v8088
        %v8929 = vunpack.c.l.b16 %v8089
        %v8930 = vunpack.c.h.b16 %v8089
        %v8931 = vunpack.c.l.b16 %v8090
        %v8932 = vunpack.c.h.b16 %v8090
        %v8933 = vunpack.c.l.b16 %v8091
        %v8934 = vunpack.c.h.b16 %v8091
        %v8935 = vunpack.c.l.b16 %v8092
        %v8936 = vunpack.c.h.b16 %v8092
        %v8937 = vunpack.c.l.b16 %v8093
        %v8938 = vunpack.c.h.b16 %v8093
        %v8939 = vunpack.c.l.b16 %v8094
        %v8940 = vunpack.c.h.b16 %v8094
        %v8941 = vunpack.c.l.b16 %v8095
        %v8942 = vunpack.c.h.b16 %v8095
        %v8943 = vunpack.c.l.b16 %v8096
        %v8944 = vunpack.c.h.b16 %v8096
        %v8945 = vunpack.c.l.b16 %v8097
        %v8946 = vunpack.c.h.b16 %v8097
        %v8947 = vunpack.c.l.b16 %v8098
        %v8948 = vunpack.c.h.b16 %v8098
        %v8949 = vunpack.c.l.b16 %v8099
        %v8950 = vunpack.c.h.b16 %v8099
        %v8951 = vunpack.c.l.b16 %v8100
        %v8952 = vunpack.c.h.b16 %v8100
        %v8953 = vunpack.c.l.b16 %v8101
        %v8954 = vunpack.c.h.b16 %v8101
        %v8955 = vunpack.c.l.b16 %v8102
        %v8956 = vunpack.c.h.b16 %v8102
        %v8957 = vunpack.c.l.b16 %v8103
        %v8958 = vunpack.c.h.b16 %v8103
        %v8959 = vunpack.c.l.b16 %v8104
        %v8960 = vunpack.c.h.b16 %v8104
        %v8961 = vunpack.c.l.b16 %v8105
        %v8962 = vunpack.c.h.b16 %v8105
        %v8963 = vunpack.c.l.b16 %v8106
        %v8964 = vunpack.c.h.b16 %v8106
        %v8965 = vunpack.c.l.b16 %v8107
        %v8966 = vunpack.c.h.b16 %v8107
        %v8967 = vunpack.c.l.b16 %v8108
        %v8968 = vunpack.c.h.b16 %v8108
        %v8969 = vunpack.c.l.b16 %v8109
        %v8970 = vunpack.c.h.b16 %v8109
        %v8971 = vunpack.c.l.b16 %v8110
        %v8972 = vunpack.c.h.b16 %v8110
        %v8973 = vunpack.c.l.b16 %v8111
        %v8974 = vunpack.c.h.b16 %v8111
        %v8975 = vunpack.c.l.b16 %v8112
        %v8976 = vunpack.c.h.b16 %v8112
        %v8977 = vunpack.c.l.b16 %v8113
        %v8978 = vunpack.c.h.b16 %v8113
        %v8979 = vunpack.c.l.b16 %v8114
        %v8980 = vunpack.c.h.b16 %v8114
        %v8981 = vunpack.c.l.b16 %v8115
        %v8982 = vunpack.c.h.b16 %v8115
        %v8983 = vunpack.c.l.b16 %v8116
        %v8984 = vunpack.c.h.b16 %v8116
        %v8985 = vunpack.c.l.b16 %v8117
        %v8986 = vunpack.c.h.b16 %v8117
        %v8987 = vunpack.c.l.b16 %v8118
        %v8988 = vunpack.c.h.b16 %v8118
        %v8989 = vunpack.c.l.b16 %v8119
        %v8990 = vunpack.c.h.b16 %v8119
        %v8991 = vunpack.c.l.b16 %v8120
        %v8992 = vunpack.c.h.b16 %v8120
        %v8993 = vunpack.c.l.b16 %v8121
        %v8994 = vunpack.c.h.b16 %v8121
        %v8995 = vunpack.c.l.b16 %v8122
        %v8996 = vunpack.c.h.b16 %v8122
        %v8997 = vunpack.c.l.b16 %v8123
        %v8998 = vunpack.c.h.b16 %v8123
        %v8999 = vunpack.c.l.b16 %v8124
        %v9000 = vunpack.c.h.b16 %v8124
        %v9001 = vunpack.c.l.b16 %v8125
        %v9002 = vunpack.c.h.b16 %v8125
        %v9003 = vunpack.c.l.b16 %v8126
        %v9004 = vunpack.c.h.b16 %v8126
        %v9005 = vunpack.c.l.b16 %v8127
        %v9006 = vunpack.c.h.b16 %v8127
        %v9007 = vunpack.c.l.b16 %v8128
        %v9008 = vunpack.c.h.b16 %v8128
        %v9009 = vunpack.c.l.b16 %v8129
        %v9010 = vunpack.c.h.b16 %v8129
        %v9011 = vunpack.c.l.b16 %v8130
        %v9012 = vunpack.c.h.b16 %v8130
        %v9013 = vunpack.c.l.b16 %v8131
        %v9014 = vunpack.c.h.b16 %v8131
        %v9015 = vunpack.c.l.b16 %v8132
        %v9016 = vunpack.c.h.b16 %v8132
        %v9017 = vunpack.c.l.b16 %v8133
        %v9018 = vunpack.c.h.b16 %v8133
        %v9019 = vunpack.c.l.b16 %v8134
        %v9020 = vunpack.c.h.b16 %v8134
        %v9021 = vunpack.c.l.b16 %v8135
        %v9022 = vunpack.c.h.b16 %v8135
        %v9023 = vunpack.c.l.b16 %v8136
        %v9024 = vunpack.c.h.b16 %v8136
        %v9025 = vunpack.c.l.b16 %v8137
        %v9026 = vunpack.c.h.b16 %v8137
        %v9027 = vunpack.c.l.b16 %v8138
        %v9028 = vunpack.c.h.b16 %v8138
        %v9029 = vunpack.c.l.b16 %v8139
        %v9030 = vunpack.c.h.b16 %v8139
        %v9031 = vunpack.c.l.b16 %v8140
        %v9032 = vunpack.c.h.b16 %v8140
        %v9033 = vunpack.c.l.b16 %v8141
        %v9034 = vunpack.c.h.b16 %v8141
        %v9035 = vunpack.c.l.b16 %v8142
        %v9036 = vunpack.c.h.b16 %v8142
        %v9037 = vunpack.c.l.b16 %v8143
        %v9038 = vunpack.c.h.b16 %v8143
        %v9039 = vunpack.c.l.b16 %v8144
        %v9040 = vunpack.c.h.b16 %v8144
        %v9041 = vunpack.c.l.b16 %v8145
        %v9042 = vunpack.c.h.b16 %v8145
        %v9043 = vunpack.c.l.b16 %v8146
        %v9044 = vunpack.c.h.b16 %v8146
        %v9045 = vunpack.c.l.b16 %v8147
        %v9046 = vunpack.c.h.b16 %v8147
        %v9047 = vunpack.c.l.b16 %v8148
        %v9048 = vunpack.c.h.b16 %v8148
        %v9049 = vunpack.c.l.b16 %v8149
        %v9050 = vunpack.c.h.b16 %v8149
        %v9051 = vunpack.c.l.b16 %v8150
        %v9052 = vunpack.c.h.b16 %v8150
        %v9053 = vunpack.c.l.b16 %v8151
        %v9054 = vunpack.c.h.b16 %v8151
        %v9055 = vunpack.c.l.b16 %v8152
        %v9056 = vunpack.c.h.b16 %v8152
        %v9057 = vunpack.c.l.b16 %v8153
        %v9058 = vunpack.c.h.b16 %v8153
        %v9059 = vunpack.c.l.b16 %v8154
        %v9060 = vunpack.c.h.b16 %v8154
        %v9061 = vunpack.c.l.b16 %v8155
        %v9062 = vunpack.c.h.b16 %v8155
        %v9063 = vunpack.c.l.b16 %v8156
        %v9064 = vunpack.c.h.b16 %v8156
        %v9065 = vunpack.c.l.b16 %v8157
        %v9066 = vunpack.c.h.b16 %v8157
        %v9067 = vunpack.c.l.b16 %v8158
        %v9068 = vunpack.c.h.b16 %v8158
        %v9069 = vunpack.c.l.b16 %v8159
        %v9070 = vunpack.c.h.b16 %v8159
        %v9071 = vunpack.c.l.b16 %v8160
        %v9072 = vunpack.c.h.b16 %v8160
        %v9073 = vunpack.c.l.b16 %v8161
        %v9074 = vunpack.c.h.b16 %v8161
        %v9075 = vunpack.c.l.b16 %v8162
        %v9076 = vunpack.c.h.b16 %v8162
        %v9077 = vunpack.c.l.b16 %v8163
        %v9078 = vunpack.c.h.b16 %v8163
        %v9079 = vunpack.c.l.b16 %v8164
        %v9080 = vunpack.c.h.b16 %v8164
        %v9081 = vunpack.c.l.b16 %v8165
        %v9082 = vunpack.c.h.b16 %v8165
        %v9083 = vunpack.c.l.b16 %v8166
        %v9084 = vunpack.c.h.b16 %v8166
        %v9085 = vunpack.c.l.b16 %v8167
        %v9086 = vunpack.c.h.b16 %v8167
        %v9087 = vunpack.c.l.b16 %v8168
        %v9088 = vunpack.c.h.b16 %v8168
        %v9089 = vunpack.c.l.b16 %v8169
        %v9090 = vunpack.c.h.b16 %v8169
        %v9091 = vunpack.c.l.b16 %v8170
        %v9092 = vunpack.c.h.b16 %v8170
        %v9093 = vunpack.c.l.b16 %v8171
        %v9094 = vunpack.c.h.b16 %v8171
        %v9095 = vunpack.c.l.b16 %v8172
        %v9096 = vunpack.c.h.b16 %v8172
        %v9097 = vunpack.c.l.b16 %v8173
        %v9098 = vunpack.c.h.b16 %v8173
        %v9099 = vunpack.c.l.b16 %v8174
        %v9100 = vunpack.c.h.b16 %v8174
        %v9101 = vunpack.c.l.b16 %v8175
        %v9102 = vunpack.c.h.b16 %v8175
        %v9103 = vunpack.c.l.b16 %v8176
        %v9104 = vunpack.c.h.b16 %v8176
        %v9105 = vunpack.c.l.b16 %v8177
        %v9106 = vunpack.c.h.b16 %v8177
        %v9107 = vunpack.c.l.b16 %v8178
        %v9108 = vunpack.c.h.b16 %v8178
        %v9109 = vunpack.c.l.b16 %v8179
        %v9110 = vunpack.c.h.b16 %v8179
        %v9111 = vunpack.c.l.b16 %v8180
        %v9112 = vunpack.c.h.b16 %v8180
        %v9113 = vunpack.c.l.b16 %v8181
        %v9114 = vunpack.c.h.b16 %v8181
        %v9115 = vunpack.c.l.b16 %v8182
        %v9116 = vunpack.c.h.b16 %v8182
        %v9117 = vunpack.c.l.b16 %v8183
        %v9118 = vunpack.c.h.b16 %v8183
        %v9119 = vunpack.c.l.b16 %v8184
        %v9120 = vunpack.c.h.b16 %v8184
        %v9121 = vunpack.c.l.b16 %v8185
        %v9122 = vunpack.c.h.b16 %v8185
        %v9123 = vunpack.c.l.b16 %v8186
        %v9124 = vunpack.c.h.b16 %v8186
        %v9125 = vunpack.c.l.b16 %v8187
        %v9126 = vunpack.c.h.b16 %v8187
        %v9127 = vunpack.c.l.b16 %v8188
        %v9128 = vunpack.c.h.b16 %v8188
        %v9129 = vunpack.c.l.b16 %v8189
        %v9130 = vunpack.c.h.b16 %v8189
        %v9131 = vunpack.c.l.b16 %v8190
        %v9132 = vunpack.c.h.b16 %v8190
        %v9133 = vunpack.c.l.b16 %v8191
        %v9134 = vunpack.c.h.b16 %v8191
        %v9135 = vunpack.c.l.b16 %v8192
        %v9136 = vunpack.c.h.b16 %v8192
        %v9137 = vunpack.c.l.b16 %v8193
        %v9138 = vunpack.c.h.b16 %v8193
        %v9139 = vunpack.c.l.b16 %v8194
        %v9140 = vunpack.c.h.b16 %v8194
        %v9141 = vunpack.c.l.b16 %v8195
        %v9142 = vunpack.c.h.b16 %v8195
        %v9143 = vunpack.c.l.b16 %v8196
        %v9144 = vunpack.c.h.b16 %v8196
        %v9145 = vunpack.c.l.b16 %v8197
        %v9146 = vunpack.c.h.b16 %v8197
        %v9147 = vunpack.c.l.b16 %v8198
        %v9148 = vunpack.c.h.b16 %v8198
        %v9149 = vunpack.c.l.b16 %v8199
        %v9150 = vunpack.c.h.b16 %v8199
        %v9151 = vunpack.c.l.b16 %v8200
        %v9152 = vunpack.c.h.b16 %v8200
        %v9153 = vunpack.c.l.b16 %v8201
        %v9154 = vunpack.c.h.b16 %v8201
        %v9155 = vunpack.c.l.b16 %v8202
        %v9156 = vunpack.c.h.b16 %v8202
        %v9157 = vunpack.c.l.b16 %v8203
        %v9158 = vunpack.c.h.b16 %v8203
        %v9159 = vunpack.c.l.b16 %v8204
        %v9160 = vunpack.c.h.b16 %v8204
        %v9161 = vunpack.c.l.b16 %v8205
        %v9162 = vunpack.c.h.b16 %v8205
        %v9163 = vunpack.c.l.b16 %v8206
        %v9164 = vunpack.c.h.b16 %v8206
        %v9165 = vunpack.c.l.b16 %v8207
        %v9166 = vunpack.c.h.b16 %v8207
        %v9167 = vunpack.c.l.b16 %v8208
        %v9168 = vunpack.c.h.b16 %v8208
        %v9169 = vunpack.c.l.b16 %v8209
        %v9170 = vunpack.c.h.b16 %v8209
        %v9171 = vunpack.c.l.b16 %v8210
        %v9172 = vunpack.c.h.b16 %v8210
        %v9173 = vunpack.c.l.b16 %v8211
        %v9174 = vunpack.c.h.b16 %v8211
        %v9175 = vunpack.c.l.b16 %v8212
        %v9176 = vunpack.c.h.b16 %v8212
        %v9177 = vunpack.c.l.b16 %v8213
        %v9178 = vunpack.c.h.b16 %v8213
        %v9179 = vunpack.c.l.b16 %v8214
        %v9180 = vunpack.c.h.b16 %v8214
        %v9181 = vunpack.c.l.b16 %v8215
        %v9182 = vunpack.c.h.b16 %v8215
        %v9183 = vunpack.c.l.b16 %v8216
        %v9184 = vunpack.c.h.b16 %v8216
        %v9185 = vunpack.c.l.b16 %v8217
        %v9186 = vunpack.c.h.b16 %v8217
        %v9187 = vunpack.c.l.b16 %v8218
        %v9188 = vunpack.c.h.b16 %v8218
        %v9189 = vunpack.c.l.b16 %v8219
        %v9190 = vunpack.c.h.b16 %v8219
        %v9191 = vunpack.c.l.b16 %v8220
        %v9192 = vunpack.c.h.b16 %v8220
        %v9193 = vunpack.c.l.b16 %v8221
        %v9194 = vunpack.c.h.b16 %v8221
        %v9195 = vunpack.c.l.b16 %v8222
        %v9196 = vunpack.c.h.b16 %v8222
        %v9197 = vunpack.c.l.b16 %v8223
        %v9198 = vunpack.c.h.b16 %v8223
        %v9199 = vunpack.c.l.b16 %v8224
        %v9200 = vunpack.c.h.b16 %v8224
        %v9201 = vunpack.c.l.b16 %v8225
        %v9202 = vunpack.c.h.b16 %v8225
        %v9203 = vunpack.c.l.b16 %v8226
        %v9204 = vunpack.c.h.b16 %v8226
        %v9205 = vunpack.c.l.b16 %v8227
        %v9206 = vunpack.c.h.b16 %v8227
        %v9207 = vunpack.c.l.b16 %v8228
        %v9208 = vunpack.c.h.b16 %v8228
        %v9209 = vunpack.c.l.b16 %v8229
        %v9210 = vunpack.c.h.b16 %v8229
        %v9211 = vunpack.c.l.b16 %v8230
        %v9212 = vunpack.c.h.b16 %v8230
        %v9213 = vunpack.c.l.b16 %v8231
        %v9214 = vunpack.c.h.b16 %v8231
        %v9215 = vunpack.c.l.b16 %v8232
        %v9216 = vunpack.c.h.b16 %v8232
        %v9217 = vunpack.c.l.b16 %v8233
        %v9218 = vunpack.c.h.b16 %v8233
        %v9219 = vunpack.c.l.b16 %v8234
        %v9220 = vunpack.c.h.b16 %v8234
        %v9221 = vunpack.c.l.b16 %v8235
        %v9222 = vunpack.c.h.b16 %v8235
        %v9223 = vunpack.c.l.b16 %v8236
        %v9224 = vunpack.c.h.b16 %v8236
        %v9225 = vunpack.c.l.b16 %v8237
        %v9226 = vunpack.c.h.b16 %v8237
        %v9227 = vunpack.c.l.b16 %v8238
        %v9228 = vunpack.c.h.b16 %v8238
        %v9229 = vunpack.c.l.b16 %v8239
        %v9230 = vunpack.c.h.b16 %v8239
        %v9231 = vunpack.c.l.b16 %v8240
        %v9232 = vunpack.c.h.b16 %v8240
        %v9233 = vunpack.c.l.b16 %v8241
        %v9234 = vunpack.c.h.b16 %v8241
        %v9235 = vunpack.c.l.b16 %v8242
        %v9236 = vunpack.c.h.b16 %v8242
        %v9237 = vunpack.c.l.b16 %v8243
        %v9238 = vunpack.c.h.b16 %v8243
        %v9239 = vunpack.c.l.b16 %v8244
        %v9240 = vunpack.c.h.b16 %v8244
        %v9241 = vunpack.c.l.b16 %v8245
        %v9242 = vunpack.c.h.b16 %v8245
        %v9243 = vunpack.c.l.b16 %v8246
        %v9244 = vunpack.c.h.b16 %v8246
        %v9245 = vunpack.c.l.b16 %v8247
        %v9246 = vunpack.c.h.b16 %v8247
        %v9247 = vunpack.c.l.b16 %v8248
        %v9248 = vunpack.c.h.b16 %v8248
        %v9249 = vunpack.c.l.b16 %v8249
        %v9250 = vunpack.c.h.b16 %v8249
        %v9251 = vunpack.c.l.b16 %v8250
        %v9252 = vunpack.c.h.b16 %v8250
        %v9253 = vunpack.c.l.b16 %v8251
        %v9254 = vunpack.c.h.b16 %v8251
        %v9255 = vunpack.c.l.b16 %v8252
        %v9256 = vunpack.c.h.b16 %v8252
        %v9257 = vunpack.c.l.b16 %v8253
        %v9258 = vunpack.c.h.b16 %v8253
        %v9259 = vunpack.c.l.b16 %v8254
        %v9260 = vunpack.c.h.b16 %v8254
        %v9261 = vunpack.c.l.b16 %v8255
        %v9262 = vunpack.c.h.b16 %v8255
        %v9263 = vunpack.c.l.b16 %v8256
        %v9264 = vunpack.c.h.b16 %v8256
        %v9265 = vunpack.c.l.b16 %v8257
        %v9266 = vunpack.c.h.b16 %v8257
        %v9267 = vunpack.c.l.b16 %v8258
        %v9268 = vunpack.c.h.b16 %v8258
        %v9269 = vunpack.c.l.b16 %v8259
        %v9270 = vunpack.c.h.b16 %v8259
        %v9271 = vunpack.c.l.b16 %v8260
        %v9272 = vunpack.c.h.b16 %v8260
        %v9273 = vunpack.c.l.b16 %v8261
        %v9274 = vunpack.c.h.b16 %v8261
        %v9275 = vunpack.c.l.b16 %v8262
        %v9276 = vunpack.c.h.b16 %v8262
        %v9277 = vunpack.c.l.b16 %v8263
        %v9278 = vunpack.c.h.b16 %v8263
        %v9279 = vunpack.c.l.b16 %v8264
        %v9280 = vunpack.c.h.b16 %v8264
        %v9281 = vunpack.c.l.b16 %v8265
        %v9282 = vunpack.c.h.b16 %v8265
        %v9283 = vunpack.c.l.b16 %v8266
        %v9284 = vunpack.c.h.b16 %v8266
        %v9285 = vunpack.c.l.b16 %v8267
        %v9286 = vunpack.c.h.b16 %v8267
        %v9287 = vunpack.c.l.b16 %v8268
        %v9288 = vunpack.c.h.b16 %v8268
        %v9289 = vunpack.c.l.b16 %v8269
        %v9290 = vunpack.c.h.b16 %v8269
        %v9291 = vunpack.c.l.b16 %v8270
        %v9292 = vunpack.c.h.b16 %v8270
        %v9293 = vunpack.c.l.b16 %v8271
        %v9294 = vunpack.c.h.b16 %v8271
        %v9295 = vunpack.c.l.b16 %v8272
        %v9296 = vunpack.c.h.b16 %v8272
        %v9297 = vunpack.c.l.b16 %v8273
        %v9298 = vunpack.c.h.b16 %v8273
        %v9299 = vunpack.c.l.b16 %v8274
        %v9300 = vunpack.c.h.b16 %v8274
        %v9301 = vunpack.c.l.b16 %v8275
        %v9302 = vunpack.c.h.b16 %v8275
        %v9303 = vunpack.c.l.b16 %v8276
        %v9304 = vunpack.c.h.b16 %v8276
        %v9305 = vunpack.c.l.b16 %v8277
        %v9306 = vunpack.c.h.b16 %v8277
        %v9307 = vunpack.c.l.b16 %v8278
        %v9308 = vunpack.c.h.b16 %v8278
        %v9309 = vunpack.c.l.b16 %v8279
        %v9310 = vunpack.c.h.b16 %v8279
        %v9311 = vunpack.c.l.b16 %v8280
        %v9312 = vunpack.c.h.b16 %v8280
        %v9313 = vunpack.c.l.b16 %v8281
        %v9314 = vunpack.c.h.b16 %v8281
        %v9315 = vunpack.c.l.b16 %v8282
        %v9316 = vunpack.c.h.b16 %v8282
        %v9317 = vunpack.c.l.b16 %v8283
        %v9318 = vunpack.c.h.b16 %v8283
        %v9319 = vunpack.c.l.b16 %v8284
        %v9320 = vunpack.c.h.b16 %v8284
        %v9321 = vunpack.c.l.b16 %v8285
        %v9322 = vunpack.c.h.b16 %v8285
        %v9323 = vunpack.c.l.b16 %v8286
        %v9324 = vunpack.c.h.b16 %v8286
        %v9325 = vunpack.c.l.b16 %v8287
        %v9326 = vunpack.c.h.b16 %v8287
        %v9327 = vunpack.c.l.b16 %v8288
        %v9328 = vunpack.c.h.b16 %v8288
        %v9329 = vunpack.c.l.b16 %v8289
        %v9330 = vunpack.c.h.b16 %v8289
        %v9331 = vpack.c.b16 %v8695, %v8691
        %v9332 = vpack.c.b16 %v8696, %v8692
        %v9333 = vpack.c.b16 %v8697, %v8693
        %v9334 = vpack.c.b16 %v8698, %v8694
        %v9335 = vpack.c.b16 %v8703, %v8699
        %v9336 = vpack.c.b16 %v8704, %v8700
        %v9337 = vpack.c.b16 %v8705, %v8701
        %v9338 = vpack.c.b16 %v8706, %v8702
        %v9339 = vpack.c.b16 %v8711, %v8707
        %v9340 = vpack.c.b16 %v8712, %v8708
        %v9341 = vpack.c.b16 %v8713, %v8709
        %v9342 = vpack.c.b16 %v8714, %v8710
        %v9343 = vpack.c.b16 %v8719, %v8715
        %v9344 = vpack.c.b16 %v8720, %v8716
        %v9345 = vpack.c.b16 %v8721, %v8717
        %v9346 = vpack.c.b16 %v8722, %v8718
        %v9347 = vpack.c.b16 %v8727, %v8723
        %v9348 = vpack.c.b16 %v8728, %v8724
        %v9349 = vpack.c.b16 %v8729, %v8725
        %v9350 = vpack.c.b16 %v8730, %v8726
        %v9351 = vpack.c.b16 %v8735, %v8731
        %v9352 = vpack.c.b16 %v8736, %v8732
        %v9353 = vpack.c.b16 %v8737, %v8733
        %v9354 = vpack.c.b16 %v8738, %v8734
        %v9355 = vpack.c.b16 %v8743, %v8739
        %v9356 = vpack.c.b16 %v8744, %v8740
        %v9357 = vpack.c.b16 %v8745, %v8741
        %v9358 = vpack.c.b16 %v8746, %v8742
        %v9359 = vpack.c.b16 %v8751, %v8747
        %v9360 = vpack.c.b16 %v8752, %v8748
        %v9361 = vpack.c.b16 %v8753, %v8749
        %v9362 = vpack.c.b16 %v8754, %v8750
        %v9363 = vpack.c.b16 %v8759, %v8755
        %v9364 = vpack.c.b16 %v8760, %v8756
        %v9365 = vpack.c.b16 %v8761, %v8757
        %v9366 = vpack.c.b16 %v8762, %v8758
        %v9367 = vpack.c.b16 %v8767, %v8763
        %v9368 = vpack.c.b16 %v8768, %v8764
        %v9369 = vpack.c.b16 %v8769, %v8765
        %v9370 = vpack.c.b16 %v8770, %v8766
        %v9371 = vpack.c.b16 %v8775, %v8771
        %v9372 = vpack.c.b16 %v8776, %v8772
        %v9373 = vpack.c.b16 %v8777, %v8773
        %v9374 = vpack.c.b16 %v8778, %v8774
        %v9375 = vpack.c.b16 %v8783, %v8779
        %v9376 = vpack.c.b16 %v8784, %v8780
        %v9377 = vpack.c.b16 %v8785, %v8781
        %v9378 = vpack.c.b16 %v8786, %v8782
        %v9379 = vpack.c.b16 %v8791, %v8787
        %v9380 = vpack.c.b16 %v8792, %v8788
        %v9381 = vpack.c.b16 %v8793, %v8789
        %v9382 = vpack.c.b16 %v8794, %v8790
        %v9383 = vpack.c.b16 %v8799, %v8795
        %v9384 = vpack.c.b16 %v8800, %v8796
        %v9385 = vpack.c.b16 %v8801, %v8797
        %v9386 = vpack.c.b16 %v8802, %v8798
        %v9387 = vpack.c.b16 %v8807, %v8803
        %v9388 = vpack.c.b16 %v8808, %v8804
        %v9389 = vpack.c.b16 %v8809, %v8805
        %v9390 = vpack.c.b16 %v8810, %v8806
        %v9391 = vpack.c.b16 %v8815, %v8811
        %v9392 = vpack.c.b16 %v8816, %v8812
        %v9393 = vpack.c.b16 %v8817, %v8813
        %v9394 = vpack.c.b16 %v8818, %v8814
        %v9395 = vpack.c.b16 %v8823, %v8819
        %v9396 = vpack.c.b16 %v8824, %v8820
        %v9397 = vpack.c.b16 %v8825, %v8821
        %v9398 = vpack.c.b16 %v8826, %v8822
        %v9399 = vpack.c.b16 %v8831, %v8827
        %v9400 = vpack.c.b16 %v8832, %v8828
        %v9401 = vpack.c.b16 %v8833, %v8829
        %v9402 = vpack.c.b16 %v8834, %v8830
        %v9403 = vpack.c.b16 %v8839, %v8835
        %v9404 = vpack.c.b16 %v8840, %v8836
        %v9405 = vpack.c.b16 %v8841, %v8837
        %v9406 = vpack.c.b16 %v8842, %v8838
        %v9407 = vpack.c.b16 %v8847, %v8843
        %v9408 = vpack.c.b16 %v8848, %v8844
        %v9409 = vpack.c.b16 %v8849, %v8845
        %v9410 = vpack.c.b16 %v8850, %v8846
        %v9411 = vpack.c.b16 %v8855, %v8851
        %v9412 = vpack.c.b16 %v8856, %v8852
        %v9413 = vpack.c.b16 %v8857, %v8853
        %v9414 = vpack.c.b16 %v8858, %v8854
        %v9415 = vpack.c.b16 %v8863, %v8859
        %v9416 = vpack.c.b16 %v8864, %v8860
        %v9417 = vpack.c.b16 %v8865, %v8861
        %v9418 = vpack.c.b16 %v8866, %v8862
        %v9419 = vpack.c.b16 %v8871, %v8867
        %v9420 = vpack.c.b16 %v8872, %v8868
        %v9421 = vpack.c.b16 %v8873, %v8869
        %v9422 = vpack.c.b16 %v8874, %v8870
        %v9423 = vpack.c.b16 %v8879, %v8875
        %v9424 = vpack.c.b16 %v8880, %v8876
        %v9425 = vpack.c.b16 %v8881, %v8877
        %v9426 = vpack.c.b16 %v8882, %v8878
        %v9427 = vpack.c.b16 %v8887, %v8883
        %v9428 = vpack.c.b16 %v8888, %v8884
        %v9429 = vpack.c.b16 %v8889, %v8885
        %v9430 = vpack.c.b16 %v8890, %v8886
        %v9431 = vpack.c.b16 %v8895, %v8891
        %v9432 = vpack.c.b16 %v8896, %v8892
        %v9433 = vpack.c.b16 %v8897, %v8893
        %v9434 = vpack.c.b16 %v8898, %v8894
        %v9435 = vpack.c.b16 %v8903, %v8899
        %v9436 = vpack.c.b16 %v8904, %v8900
        %v9437 = vpack.c.b16 %v8905, %v8901
        %v9438 = vpack.c.b16 %v8906, %v8902
        %v9439 = vpack.c.b16 %v8911, %v8907
        %v9440 = vpack.c.b16 %v8912, %v8908
        %v9441 = vpack.c.b16 %v8913, %v8909
        %v9442 = vpack.c.b16 %v8914, %v8910
        %v9443 = vpack.c.b16 %v8919, %v8915
        %v9444 = vpack.c.b16 %v8920, %v8916
        %v9445 = vpack.c.b16 %v8921, %v8917
        %v9446 = vpack.c.b16 %v8922, %v8918
        %v9447 = vpack.c.b16 %v8927, %v8923
        %v9448 = vpack.c.b16 %v8928, %v8924
        %v9449 = vpack.c.b16 %v8929, %v8925
        %v9450 = vpack.c.b16 %v8930, %v8926
        %v9451 = vpack.c.b16 %v8935, %v8931
        %v9452 = vpack.c.b16 %v8936, %v8932
        %v9453 = vpack.c.b16 %v8937, %v8933
        %v9454 = vpack.c.b16 %v8938, %v8934
        %v9455 = vpack.c.b16 %v8943, %v8939
        %v9456 = vpack.c.b16 %v8944, %v8940
        %v9457 = vpack.c.b16 %v8945, %v8941
        %v9458 = vpack.c.b16 %v8946, %v8942
        %v9459 = vpack.c.b16 %v8951, %v8947
        %v9460 = vpack.c.b16 %v8952, %v8948
        %v9461 = vpack.c.b16 %v8953, %v8949
        %v9462 = vpack.c.b16 %v8954, %v8950
        %v9463 = vpack.c.b16 %v8959, %v8955
        %v9464 = vpack.c.b16 %v8960, %v8956
        %v9465 = vpack.c.b16 %v8961, %v8957
        %v9466 = vpack.c.b16 %v8962, %v8958
        %v9467 = vpack.c.b16 %v8967, %v8963
        %v9468 = vpack.c.b16 %v8968, %v8964
        %v9469 = vpack.c.b16 %v8969, %v8965
        %v9470 = vpack.c.b16 %v8970, %v8966
        %v9471 = vpack.c.b16 %v8975, %v8971
        %v9472 = vpack.c.b16 %v8976, %v8972
        %v9473 = vpack.c.b16 %v8977, %v8973
        %v9474 = vpack.c.b16 %v8978, %v8974
        %v9475 = vpack.c.b16 %v8983, %v8979
        %v9476 = vpack.c.b16 %v8984, %v8980
        %v9477 = vpack.c.b16 %v8985, %v8981
        %v9478 = vpack.c.b16 %v8986, %v8982
        %v9479 = vpack.c.b16 %v8991, %v8987
        %v9480 = vpack.c.b16 %v8992, %v8988
        %v9481 = vpack.c.b16 %v8993, %v8989
        %v9482 = vpack.c.b16 %v8994, %v8990
        %v9483 = vpack.c.b16 %v8999, %v8995
        %v9484 = vpack.c.b16 %v9000, %v8996
        %v9485 = vpack.c.b16 %v9001, %v8997
        %v9486 = vpack.c.b16 %v9002, %v8998
        %v9487 = vpack.c.b16 %v9007, %v9003
        %v9488 = vpack.c.b16 %v9008, %v9004
        %v9489 = vpack.c.b16 %v9009, %v9005
        %v9490 = vpack.c.b16 %v9010, %v9006
        %v9491 = vpack.c.b16 %v9015, %v9011
        %v9492 = vpack.c.b16 %v9016, %v9012
        %v9493 = vpack.c.b16 %v9017, %v9013
        %v9494 = vpack.c.b16 %v9018, %v9014
        %v9495 = vpack.c.b16 %v9023, %v9019
        %v9496 = vpack.c.b16 %v9024, %v9020
        %v9497 = vpack.c.b16 %v9025, %v9021
        %v9498 = vpack.c.b16 %v9026, %v9022
        %v9499 = vpack.c.b16 %v9031, %v9027
        %v9500 = vpack.c.b16 %v9032, %v9028
        %v9501 = vpack.c.b16 %v9033, %v9029
        %v9502 = vpack.c.b16 %v9034, %v9030
        %v9503 = vpack.c.b16 %v9039, %v9035
        %v9504 = vpack.c.b16 %v9040, %v9036
        %v9505 = vpack.c.b16 %v9041, %v9037
        %v9506 = vpack.c.b16 %v9042, %v9038
        %v9507 = vpack.c.b16 %v9047, %v9043
        %v9508 = vpack.c.b16 %v9048, %v9044
        %v9509 = vpack.c.b16 %v9049, %v9045
        %v9510 = vpack.c.b16 %v9050, %v9046
        %v9511 = vpack.c.b16 %v9055, %v9051
        %v9512 = vpack.c.b16 %v9056, %v9052
        %v9513 = vpack.c.b16 %v9057, %v9053
        %v9514 = vpack.c.b16 %v9058, %v9054
        %v9515 = vpack.c.b16 %v9063, %v9059
        %v9516 = vpack.c.b16 %v9064, %v9060
        %v9517 = vpack.c.b16 %v9065, %v9061
        %v9518 = vpack.c.b16 %v9066, %v9062
        %v9519 = vpack.c.b16 %v9071, %v9067
        %v9520 = vpack.c.b16 %v9072, %v9068
        %v9521 = vpack.c.b16 %v9073, %v9069
        %v9522 = vpack.c.b16 %v9074, %v9070
        %v9523 = vpack.c.b16 %v9079, %v9075
        %v9524 = vpack.c.b16 %v9080, %v9076
        %v9525 = vpack.c.b16 %v9081, %v9077
        %v9526 = vpack.c.b16 %v9082, %v9078
        %v9527 = vpack.c.b16 %v9087, %v9083
        %v9528 = vpack.c.b16 %v9088, %v9084
        %v9529 = vpack.c.b16 %v9089, %v9085
        %v9530 = vpack.c.b16 %v9090, %v9086
        %v9531 = vpack.c.b16 %v9095, %v9091
        %v9532 = vpack.c.b16 %v9096, %v9092
        %v9533 = vpack.c.b16 %v9097, %v9093
        %v9534 = vpack.c.b16 %v9098, %v9094
        %v9535 = vpack.c.b16 %v9103, %v9099
        %v9536 = vpack.c.b16 %v9104, %v9100
        %v9537 = vpack.c.b16 %v9105, %v9101
        %v9538 = vpack.c.b16 %v9106, %v9102
        %v9539 = vpack.c.b16 %v9111, %v9107
        %v9540 = vpack.c.b16 %v9112, %v9108
        %v9541 = vpack.c.b16 %v9113, %v9109
        %v9542 = vpack.c.b16 %v9114, %v9110
        %v9543 = vpack.c.b16 %v9119, %v9115
        %v9544 = vpack.c.b16 %v9120, %v9116
        %v9545 = vpack.c.b16 %v9121, %v9117
        %v9546 = vpack.c.b16 %v9122, %v9118
        %v9547 = vpack.c.b16 %v9127, %v9123
        %v9548 = vpack.c.b16 %v9128, %v9124
        %v9549 = vpack.c.b16 %v9129, %v9125
        %v9550 = vpack.c.b16 %v9130, %v9126
        %v9551 = vpack.c.b16 %v9135, %v9131
        %v9552 = vpack.c.b16 %v9136, %v9132
        %v9553 = vpack.c.b16 %v9137, %v9133
        %v9554 = vpack.c.b16 %v9138, %v9134
        %v9555 = vpack.c.b16 %v9143, %v9139
        %v9556 = vpack.c.b16 %v9144, %v9140
        %v9557 = vpack.c.b16 %v9145, %v9141
        %v9558 = vpack.c.b16 %v9146, %v9142
        %v9559 = vpack.c.b16 %v9151, %v9147
        %v9560 = vpack.c.b16 %v9152, %v9148
        %v9561 = vpack.c.b16 %v9153, %v9149
        %v9562 = vpack.c.b16 %v9154, %v9150
        %v9563 = vpack.c.b16 %v9159, %v9155
        %v9564 = vpack.c.b16 %v9160, %v9156
        %v9565 = vpack.c.b16 %v9161, %v9157
        %v9566 = vpack.c.b16 %v9162, %v9158
        %v9567 = vpack.c.b16 %v9167, %v9163
        %v9568 = vpack.c.b16 %v9168, %v9164
        %v9569 = vpack.c.b16 %v9169, %v9165
        %v9570 = vpack.c.b16 %v9170, %v9166
        %v9571 = vpack.c.b16 %v9175, %v9171
        %v9572 = vpack.c.b16 %v9176, %v9172
        %v9573 = vpack.c.b16 %v9177, %v9173
        %v9574 = vpack.c.b16 %v9178, %v9174
        %v9575 = vpack.c.b16 %v9183, %v9179
        %v9576 = vpack.c.b16 %v9184, %v9180
        %v9577 = vpack.c.b16 %v9185, %v9181
        %v9578 = vpack.c.b16 %v9186, %v9182
        %v9579 = vpack.c.b16 %v9191, %v9187
        %v9580 = vpack.c.b16 %v9192, %v9188
        %v9581 = vpack.c.b16 %v9193, %v9189
        %v9582 = vpack.c.b16 %v9194, %v9190
        %v9583 = vpack.c.b16 %v9199, %v9195
        %v9584 = vpack.c.b16 %v9200, %v9196
        %v9585 = vpack.c.b16 %v9201, %v9197
        %v9586 = vpack.c.b16 %v9202, %v9198
        %v9587 = vpack.c.b16 %v9207, %v9203
        %v9588 = vpack.c.b16 %v9208, %v9204
        %v9589 = vpack.c.b16 %v9209, %v9205
        %v9590 = vpack.c.b16 %v9210, %v9206
        %v9591 = vpack.c.b16 %v9215, %v9211
        %v9592 = vpack.c.b16 %v9216, %v9212
        %v9593 = vpack.c.b16 %v9217, %v9213
        %v9594 = vpack.c.b16 %v9218, %v9214
        %v9595 = vpack.c.b16 %v9223, %v9219
        %v9596 = vpack.c.b16 %v9224, %v9220
        %v9597 = vpack.c.b16 %v9225, %v9221
        %v9598 = vpack.c.b16 %v9226, %v9222
        %v9599 = vpack.c.b16 %v9231, %v9227
        %v9600 = vpack.c.b16 %v9232, %v9228
        %v9601 = vpack.c.b16 %v9233, %v9229
        %v9602 = vpack.c.b16 %v9234, %v9230
        %v9603 = vpack.c.b16 %v9239, %v9235
        %v9604 = vpack.c.b16 %v9240, %v9236
        %v9605 = vpack.c.b16 %v9241, %v9237
        %v9606 = vpack.c.b16 %v9242, %v9238
        %v9607 = vpack.c.b16 %v9247, %v9243
        %v9608 = vpack.c.b16 %v9248, %v9244
        %v9609 = vpack.c.b16 %v9249, %v9245
        %v9610 = vpack.c.b16 %v9250, %v9246
        %v9611 = vpack.c.b16 %v9255, %v9251
        %v9612 = vpack.c.b16 %v9256, %v9252
        %v9613 = vpack.c.b16 %v9257, %v9253
        %v9614 = vpack.c.b16 %v9258, %v9254
        %v9615 = vpack.c.b16 %v9263, %v9259
        %v9616 = vpack.c.b16 %v9264, %v9260
        %v9617 = vpack.c.b16 %v9265, %v9261
        %v9618 = vpack.c.b16 %v9266, %v9262
        %v9619 = vpack.c.b16 %v9271, %v9267
        %v9620 = vpack.c.b16 %v9272, %v9268
        %v9621 = vpack.c.b16 %v9273, %v9269
        %v9622 = vpack.c.b16 %v9274, %v9270
        %v9623 = vpack.c.b16 %v9279, %v9275
        %v9624 = vpack.c.b16 %v9280, %v9276
        %v9625 = vpack.c.b16 %v9281, %v9277
        %v9626 = vpack.c.b16 %v9282, %v9278
        %v9627 = vpack.c.b16 %v9287, %v9283
        %v9628 = vpack.c.b16 %v9288, %v9284
        %v9629 = vpack.c.b16 %v9289, %v9285
        %v9630 = vpack.c.b16 %v9290, %v9286
        %v9631 = vpack.c.b16 %v9295, %v9291
        %v9632 = vpack.c.b16 %v9296, %v9292
        %v9633 = vpack.c.b16 %v9297, %v9293
        %v9634 = vpack.c.b16 %v9298, %v9294
        %v9635 = vpack.c.b16 %v9303, %v9299
        %v9636 = vpack.c.b16 %v9304, %v9300
        %v9637 = vpack.c.b16 %v9305, %v9301
        %v9638 = vpack.c.b16 %v9306, %v9302
        %v9639 = vpack.c.b16 %v9311, %v9307
        %v9640 = vpack.c.b16 %v9312, %v9308
        %v9641 = vpack.c.b16 %v9313, %v9309
        %v9642 = vpack.c.b16 %v9314, %v9310
        %v9643 = vpack.c.b16 %v9319, %v9315
        %v9644 = vpack.c.b16 %v9320, %v9316
        %v9645 = vpack.c.b16 %v9321, %v9317
        %v9646 = vpack.c.b16 %v9322, %v9318
        %v9647 = vpack.c.b16 %v9327, %v9323
        %v9648 = vpack.c.b16 %v9328, %v9324
        %v9649 = vpack.c.b16 %v9329, %v9325
        %v9650 = vpack.c.b16 %v9330, %v9326
        %9971 = vmatpush.bf16.msra.mxu0 %v9359
        %9972 = vmatpush.bf16.msra.mxu0 %v9355
        %9973 = vmatpush.bf16.msra.mxu0 %v9351
        %9974 = vmatpush.bf16.msra.mxu0 %v9347
        %9975 = vmatpush.bf16.msra.mxu0 %v9343
        %9976 = vmatpush.bf16.msra.mxu0 %v9339
        %9977 = vmatpush.bf16.msra.mxu0 %v9335
        %9978 = vmatpush.bf16.msra.mxu0 %v9331
        %9979 = vmatmul.bf16.gmra.mxu0 %v8351
        %v9980 = vpop.f32.mrf.mxu0
        %v9981 = vadd.f32 %v8292, %v9980
        %v9982 = vpop.f32.mrf.mxu0
        %9983 = vdwg.mxu0
        %9984 = vmatpush.bf16.msra.mxu0 %v9391
        %9985 = vmatpush.bf16.msra.mxu0 %v9387
        %9986 = vmatpush.bf16.msra.mxu0 %v9383
        %9987 = vmatpush.bf16.msra.mxu0 %v9379
        %9988 = vmatpush.bf16.msra.mxu0 %v9375
        %9989 = vmatpush.bf16.msra.mxu0 %v9371
        %9990 = vmatpush.bf16.msra.mxu0 %v9367
        %9991 = vmatpush.bf16.msra.mxu0 %v9363
        %9992 = vmatmul.bf16.gmra.mxu0 %v8352
        %v9993 = vpop.f32.mrf.mxu0
        %v9994 = vadd.f32 %v9981, %v9993
        %v9995 = vpop.f32.mrf.mxu0
        %9996 = vdwg.mxu0
        %9997 = vmatpush.bf16.msra.mxu0 %v9423
        %9998 = vmatpush.bf16.msra.mxu0 %v9419
        %9999 = vmatpush.bf16.msra.mxu0 %v9415
        %10000 = vmatpush.bf16.msra.mxu0 %v9411
        %10001 = vmatpush.bf16.msra.mxu0 %v9407
        %10002 = vmatpush.bf16.msra.mxu0 %v9403
        %10003 = vmatpush.bf16.msra.mxu0 %v9399
        %10004 = vmatpush.bf16.msra.mxu0 %v9395
        %10005 = vmatmul.bf16.gmra.mxu0 %v8353
        %v10006 = vpop.f32.mrf.mxu0
        %v10007 = vadd.f32 %v9994, %v10006
        %v10008 = vpop.f32.mrf.mxu0
        %10009 = vdwg.mxu0
        %10010 = vmatpush.bf16.msra.mxu0 %v9455
        %10011 = vmatpush.bf16.msra.mxu0 %v9451
        %10012 = vmatpush.bf16.msra.mxu0 %v9447
        %10013 = vmatpush.bf16.msra.mxu0 %v9443
        %10014 = vmatpush.bf16.msra.mxu0 %v9439
        %10015 = vmatpush.bf16.msra.mxu0 %v9435
        %10016 = vmatpush.bf16.msra.mxu0 %v9431
        %10017 = vmatpush.bf16.msra.mxu0 %v9427
        %10018 = vmatmul.bf16.gmra.mxu0 %v8354
        %v10019 = vpop.f32.mrf.mxu0
        %v10020 = vadd.f32 %v10007, %v10019
        %v10021 = vpop.f32.mrf.mxu0
        %10022 = vdwg.mxu0
        %10023 = vmatpush.bf16.msra.mxu0 %v9487
        %10024 = vmatpush.bf16.msra.mxu0 %v9483
        %10025 = vmatpush.bf16.msra.mxu0 %v9479
        %10026 = vmatpush.bf16.msra.mxu0 %v9475
        %10027 = vmatpush.bf16.msra.mxu0 %v9471
        %10028 = vmatpush.bf16.msra.mxu0 %v9467
        %10029 = vmatpush.bf16.msra.mxu0 %v9463
        %10030 = vmatpush.bf16.msra.mxu0 %v9459
        %10031 = vmatmul.bf16.gmra.mxu0 %v8355
        %v10032 = vpop.f32.mrf.mxu0
        %v10033 = vadd.f32 %v10020, %v10032
        %v10034 = vpop.f32.mrf.mxu0
        %10035 = vdwg.mxu0
        %10036 = vmatpush.bf16.msra.mxu0 %v9519
        %10037 = vmatpush.bf16.msra.mxu0 %v9515
        %10038 = vmatpush.bf16.msra.mxu0 %v9511
        %10039 = vmatpush.bf16.msra.mxu0 %v9507
        %10040 = vmatpush.bf16.msra.mxu0 %v9503
        %10041 = vmatpush.bf16.msra.mxu0 %v9499
        %10042 = vmatpush.bf16.msra.mxu0 %v9495
        %10043 = vmatpush.bf16.msra.mxu0 %v9491
        %10044 = vmatmul.bf16.gmra.mxu0 %v8356
        %v10045 = vpop.f32.mrf.mxu0
        %v10046 = vadd.f32 %v10033, %v10045
        %v10047 = vpop.f32.mrf.mxu0
        %10048 = vdwg.mxu0
        %10049 = vmatpush.bf16.msra.mxu0 %v9551
        %10050 = vmatpush.bf16.msra.mxu0 %v9547
        %10051 = vmatpush.bf16.msra.mxu0 %v9543
        %10052 = vmatpush.bf16.msra.mxu0 %v9539
        %10053 = vmatpush.bf16.msra.mxu0 %v9535
        %10054 = vmatpush.bf16.msra.mxu0 %v9531
        %10055 = vmatpush.bf16.msra.mxu0 %v9527
        %10056 = vmatpush.bf16.msra.mxu0 %v9523
        %10057 = vmatmul.bf16.gmra.mxu0 %v8357
        %v10058 = vpop.f32.mrf.mxu0
        %v10059 = vadd.f32 %v10046, %v10058
        %v10060 = vpop.f32.mrf.mxu0
        %10061 = vdwg.mxu0
        %10062 = vmatpush.bf16.msra.mxu0 %v9583
        %10063 = vmatpush.bf16.msra.mxu0 %v9579
        %10064 = vmatpush.bf16.msra.mxu0 %v9575
        %10065 = vmatpush.bf16.msra.mxu0 %v9571
        %10066 = vmatpush.bf16.msra.mxu0 %v9567
        %10067 = vmatpush.bf16.msra.mxu0 %v9563
        %10068 = vmatpush.bf16.msra.mxu0 %v9559
        %10069 = vmatpush.bf16.msra.mxu0 %v9555
        %10070 = vmatmul.bf16.gmra.mxu0 %v8358
        %v10071 = vpop.f32.mrf.mxu0
        %v10072 = vadd.f32 %v10059, %v10071
        %v10073 = vpop.f32.mrf.mxu0
        %10074 = vdwg.mxu0
        %10075 = vmatpush.bf16.msra.mxu0 %v9615
        %10076 = vmatpush.bf16.msra.mxu0 %v9611
        %10077 = vmatpush.bf16.msra.mxu0 %v9607
        %10078 = vmatpush.bf16.msra.mxu0 %v9603
        %10079 = vmatpush.bf16.msra.mxu0 %v9599
        %10080 = vmatpush.bf16.msra.mxu0 %v9595
        %10081 = vmatpush.bf16.msra.mxu0 %v9591
        %10082 = vmatpush.bf16.msra.mxu0 %v9587
        %10083 = vmatmul.bf16.gmra.mxu0 %v8359
        %v10084 = vpop.f32.mrf.mxu0
        %v10085 = vadd.f32 %v10072, %v10084
        %v10086 = vpop.f32.mrf.mxu0
        %10087 = vdwg.mxu0
        %10088 = vmatpush.bf16.msra.mxu0 %v9647
        %10089 = vmatpush.bf16.msra.mxu0 %v9643
        %10090 = vmatpush.bf16.msra.mxu0 %v9639
        %10091 = vmatpush.bf16.msra.mxu0 %v9635
        %10092 = vmatpush.bf16.msra.mxu0 %v9631
        %10093 = vmatpush.bf16.msra.mxu0 %v9627
        %10094 = vmatpush.bf16.msra.mxu0 %v9623
        %10095 = vmatpush.bf16.msra.mxu0 %v9619
        %10096 = vmatmul.bf16.gmra.mxu0 %v8360
        %v10097 = vpop.f32.mrf.mxu0
        %v10098 = vadd.f32 %v10085, %v10097
        %v10099 = vpop.f32.mrf.mxu0
        %10100 = vdwg.mxu0
        %10101 = vmatpush.bf16.msra.mxu0 %v9360
        %10102 = vmatpush.bf16.msra.mxu0 %v9356
        %10103 = vmatpush.bf16.msra.mxu0 %v9352
        %10104 = vmatpush.bf16.msra.mxu0 %v9348
        %10105 = vmatpush.bf16.msra.mxu0 %v9344
        %10106 = vmatpush.bf16.msra.mxu0 %v9340
        %10107 = vmatpush.bf16.msra.mxu0 %v9336
        %10108 = vmatpush.bf16.msra.mxu0 %v9332
        %10109 = vmatmul.bf16.gmra.mxu0 %v8351
        %v10110 = vpop.f32.mrf.mxu0
        %v10111 = vadd.f32 %v8293, %v10110
        %v10112 = vpop.f32.mrf.mxu0
        %10113 = vdwg.mxu0
        %10114 = vmatpush.bf16.msra.mxu0 %v9392
        %10115 = vmatpush.bf16.msra.mxu0 %v9388
        %10116 = vmatpush.bf16.msra.mxu0 %v9384
        %10117 = vmatpush.bf16.msra.mxu0 %v9380
        %10118 = vmatpush.bf16.msra.mxu0 %v9376
        %10119 = vmatpush.bf16.msra.mxu0 %v9372
        %10120 = vmatpush.bf16.msra.mxu0 %v9368
        %10121 = vmatpush.bf16.msra.mxu0 %v9364
        %10122 = vmatmul.bf16.gmra.mxu0 %v8352
        %v10123 = vpop.f32.mrf.mxu0
        %v10124 = vadd.f32 %v10111, %v10123
        %v10125 = vpop.f32.mrf.mxu0
        %10126 = vdwg.mxu0
        %10127 = vmatpush.bf16.msra.mxu0 %v9424
        %10128 = vmatpush.bf16.msra.mxu0 %v9420
        %10129 = vmatpush.bf16.msra.mxu0 %v9416
        %10130 = vmatpush.bf16.msra.mxu0 %v9412
        %10131 = vmatpush.bf16.msra.mxu0 %v9408
        %10132 = vmatpush.bf16.msra.mxu0 %v9404
        %10133 = vmatpush.bf16.msra.mxu0 %v9400
        %10134 = vmatpush.bf16.msra.mxu0 %v9396
        %10135 = vmatmul.bf16.gmra.mxu0 %v8353
        %v10136 = vpop.f32.mrf.mxu0
        %v10137 = vadd.f32 %v10124, %v10136
        %v10138 = vpop.f32.mrf.mxu0
        %10139 = vdwg.mxu0
        %10140 = vmatpush.bf16.msra.mxu0 %v9456
        %10141 = vmatpush.bf16.msra.mxu0 %v9452
        %10142 = vmatpush.bf16.msra.mxu0 %v9448
        %10143 = vmatpush.bf16.msra.mxu0 %v9444
        %10144 = vmatpush.bf16.msra.mxu0 %v9440
        %10145 = vmatpush.bf16.msra.mxu0 %v9436
        %10146 = vmatpush.bf16.msra.mxu0 %v9432
        %10147 = vmatpush.bf16.msra.mxu0 %v9428
        %10148 = vmatmul.bf16.gmra.mxu0 %v8354
        %v10149 = vpop.f32.mrf.mxu0
        %v10150 = vadd.f32 %v10137, %v10149
        %v10151 = vpop.f32.mrf.mxu0
        %10152 = vdwg.mxu0
        %10153 = vmatpush.bf16.msra.mxu0 %v9488
        %10154 = vmatpush.bf16.msra.mxu0 %v9484
        %10155 = vmatpush.bf16.msra.mxu0 %v9480
        %10156 = vmatpush.bf16.msra.mxu0 %v9476
        %10157 = vmatpush.bf16.msra.mxu0 %v9472
        %10158 = vmatpush.bf16.msra.mxu0 %v9468
        %10159 = vmatpush.bf16.msra.mxu0 %v9464
        %10160 = vmatpush.bf16.msra.mxu0 %v9460
        %10161 = vmatmul.bf16.gmra.mxu0 %v8355
        %v10162 = vpop.f32.mrf.mxu0
        %v10163 = vadd.f32 %v10150, %v10162
        %v10164 = vpop.f32.mrf.mxu0
        %10165 = vdwg.mxu0
        %10166 = vmatpush.bf16.msra.mxu0 %v9520
        %10167 = vmatpush.bf16.msra.mxu0 %v9516
        %10168 = vmatpush.bf16.msra.mxu0 %v9512
        %10169 = vmatpush.bf16.msra.mxu0 %v9508
        %10170 = vmatpush.bf16.msra.mxu0 %v9504
        %10171 = vmatpush.bf16.msra.mxu0 %v9500
        %10172 = vmatpush.bf16.msra.mxu0 %v9496
        %10173 = vmatpush.bf16.msra.mxu0 %v9492
        %10174 = vmatmul.bf16.gmra.mxu0 %v8356
        %v10175 = vpop.f32.mrf.mxu0
        %v10176 = vadd.f32 %v10163, %v10175
        %v10177 = vpop.f32.mrf.mxu0
        %10178 = vdwg.mxu0
        %10179 = vmatpush.bf16.msra.mxu0 %v9552
        %10180 = vmatpush.bf16.msra.mxu0 %v9548
        %10181 = vmatpush.bf16.msra.mxu0 %v9544
        %10182 = vmatpush.bf16.msra.mxu0 %v9540
        %10183 = vmatpush.bf16.msra.mxu0 %v9536
        %10184 = vmatpush.bf16.msra.mxu0 %v9532
        %10185 = vmatpush.bf16.msra.mxu0 %v9528
        %10186 = vmatpush.bf16.msra.mxu0 %v9524
        %10187 = vmatmul.bf16.gmra.mxu0 %v8357
        %v10188 = vpop.f32.mrf.mxu0
        %v10189 = vadd.f32 %v10176, %v10188
        %v10190 = vpop.f32.mrf.mxu0
        %10191 = vdwg.mxu0
        %10192 = vmatpush.bf16.msra.mxu0 %v9584
        %10193 = vmatpush.bf16.msra.mxu0 %v9580
        %10194 = vmatpush.bf16.msra.mxu0 %v9576
        %10195 = vmatpush.bf16.msra.mxu0 %v9572
        %10196 = vmatpush.bf16.msra.mxu0 %v9568
        %10197 = vmatpush.bf16.msra.mxu0 %v9564
        %10198 = vmatpush.bf16.msra.mxu0 %v9560
        %10199 = vmatpush.bf16.msra.mxu0 %v9556
        %10200 = vmatmul.bf16.gmra.mxu0 %v8358
        %v10201 = vpop.f32.mrf.mxu0
        %v10202 = vadd.f32 %v10189, %v10201
        %v10203 = vpop.f32.mrf.mxu0
        %10204 = vdwg.mxu0
        %10205 = vmatpush.bf16.msra.mxu0 %v9616
        %10206 = vmatpush.bf16.msra.mxu0 %v9612
        %10207 = vmatpush.bf16.msra.mxu0 %v9608
        %10208 = vmatpush.bf16.msra.mxu0 %v9604
        %10209 = vmatpush.bf16.msra.mxu0 %v9600
        %10210 = vmatpush.bf16.msra.mxu0 %v9596
        %10211 = vmatpush.bf16.msra.mxu0 %v9592
        %10212 = vmatpush.bf16.msra.mxu0 %v9588
        %10213 = vmatmul.bf16.gmra.mxu0 %v8359
        %v10214 = vpop.f32.mrf.mxu0
        %v10215 = vadd.f32 %v10202, %v10214
        %v10216 = vpop.f32.mrf.mxu0
        %10217 = vdwg.mxu0
        %10218 = vmatpush.bf16.msra.mxu0 %v9648
        %10219 = vmatpush.bf16.msra.mxu0 %v9644
        %10220 = vmatpush.bf16.msra.mxu0 %v9640
        %10221 = vmatpush.bf16.msra.mxu0 %v9636
        %10222 = vmatpush.bf16.msra.mxu0 %v9632
        %10223 = vmatpush.bf16.msra.mxu0 %v9628
        %10224 = vmatpush.bf16.msra.mxu0 %v9624
        %10225 = vmatpush.bf16.msra.mxu0 %v9620
        %10226 = vmatmul.bf16.gmra.mxu0 %v8360
        %v10227 = vpop.f32.mrf.mxu0
        %v10228 = vadd.f32 %v10215, %v10227
        %v10229 = vpop.f32.mrf.mxu0
        %10230 = vdwg.mxu0
        %10231 = vmatpush.bf16.msra.mxu0 %v9361
        %10232 = vmatpush.bf16.msra.mxu0 %v9357
        %10233 = vmatpush.bf16.msra.mxu0 %v9353
        %10234 = vmatpush.bf16.msra.mxu0 %v9349
        %10235 = vmatpush.bf16.msra.mxu0 %v9345
        %10236 = vmatpush.bf16.msra.mxu0 %v9341
        %10237 = vmatpush.bf16.msra.mxu0 %v9337
        %10238 = vmatpush.bf16.msra.mxu0 %v9333
        %10239 = vmatmul.bf16.gmra.mxu0 %v8351
        %v10240 = vpop.f32.mrf.mxu0
        %v10241 = vadd.f32 %v8294, %v10240
        %v10242 = vpop.f32.mrf.mxu0
        %10243 = vdwg.mxu0
        %10244 = vmatpush.bf16.msra.mxu0 %v9393
        %10245 = vmatpush.bf16.msra.mxu0 %v9389
        %10246 = vmatpush.bf16.msra.mxu0 %v9385
        %10247 = vmatpush.bf16.msra.mxu0 %v9381
        %10248 = vmatpush.bf16.msra.mxu0 %v9377
        %10249 = vmatpush.bf16.msra.mxu0 %v9373
        %10250 = vmatpush.bf16.msra.mxu0 %v9369
        %10251 = vmatpush.bf16.msra.mxu0 %v9365
        %10252 = vmatmul.bf16.gmra.mxu0 %v8352
        %v10253 = vpop.f32.mrf.mxu0
        %v10254 = vadd.f32 %v10241, %v10253
        %v10255 = vpop.f32.mrf.mxu0
        %10256 = vdwg.mxu0
        %10257 = vmatpush.bf16.msra.mxu0 %v9425
        %10258 = vmatpush.bf16.msra.mxu0 %v9421
        %10259 = vmatpush.bf16.msra.mxu0 %v9417
        %10260 = vmatpush.bf16.msra.mxu0 %v9413
        %10261 = vmatpush.bf16.msra.mxu0 %v9409
        %10262 = vmatpush.bf16.msra.mxu0 %v9405
        %10263 = vmatpush.bf16.msra.mxu0 %v9401
        %10264 = vmatpush.bf16.msra.mxu0 %v9397
        %10265 = vmatmul.bf16.gmra.mxu0 %v8353
        %v10266 = vpop.f32.mrf.mxu0
        %v10267 = vadd.f32 %v10254, %v10266
        %v10268 = vpop.f32.mrf.mxu0
        %10269 = vdwg.mxu0
        %10270 = vmatpush.bf16.msra.mxu0 %v9457
        %10271 = vmatpush.bf16.msra.mxu0 %v9453
        %10272 = vmatpush.bf16.msra.mxu0 %v9449
        %10273 = vmatpush.bf16.msra.mxu0 %v9445
        %10274 = vmatpush.bf16.msra.mxu0 %v9441
        %10275 = vmatpush.bf16.msra.mxu0 %v9437
        %10276 = vmatpush.bf16.msra.mxu0 %v9433
        %10277 = vmatpush.bf16.msra.mxu0 %v9429
        %10278 = vmatmul.bf16.gmra.mxu0 %v8354
        %v10279 = vpop.f32.mrf.mxu0
        %v10280 = vadd.f32 %v10267, %v10279
        %v10281 = vpop.f32.mrf.mxu0
        %10282 = vdwg.mxu0
        %10283 = vmatpush.bf16.msra.mxu0 %v9489
        %10284 = vmatpush.bf16.msra.mxu0 %v9485
        %10285 = vmatpush.bf16.msra.mxu0 %v9481
        %10286 = vmatpush.bf16.msra.mxu0 %v9477
        %10287 = vmatpush.bf16.msra.mxu0 %v9473
        %10288 = vmatpush.bf16.msra.mxu0 %v9469
        %10289 = vmatpush.bf16.msra.mxu0 %v9465
        %10290 = vmatpush.bf16.msra.mxu0 %v9461
        %10291 = vmatmul.bf16.gmra.mxu0 %v8355
        %v10292 = vpop.f32.mrf.mxu0
        %v10293 = vadd.f32 %v10280, %v10292
        %v10294 = vpop.f32.mrf.mxu0
        %10295 = vdwg.mxu0
        %10296 = vmatpush.bf16.msra.mxu0 %v9521
        %10297 = vmatpush.bf16.msra.mxu0 %v9517
        %10298 = vmatpush.bf16.msra.mxu0 %v9513
        %10299 = vmatpush.bf16.msra.mxu0 %v9509
        %10300 = vmatpush.bf16.msra.mxu0 %v9505
        %10301 = vmatpush.bf16.msra.mxu0 %v9501
        %10302 = vmatpush.bf16.msra.mxu0 %v9497
        %10303 = vmatpush.bf16.msra.mxu0 %v9493
        %10304 = vmatmul.bf16.gmra.mxu0 %v8356
        %v10305 = vpop.f32.mrf.mxu0
        %v10306 = vadd.f32 %v10293, %v10305
        %v10307 = vpop.f32.mrf.mxu0
        %10308 = vdwg.mxu0
        %10309 = vmatpush.bf16.msra.mxu0 %v9553
        %10310 = vmatpush.bf16.msra.mxu0 %v9549
        %10311 = vmatpush.bf16.msra.mxu0 %v9545
        %10312 = vmatpush.bf16.msra.mxu0 %v9541
        %10313 = vmatpush.bf16.msra.mxu0 %v9537
        %10314 = vmatpush.bf16.msra.mxu0 %v9533
        %10315 = vmatpush.bf16.msra.mxu0 %v9529
        %10316 = vmatpush.bf16.msra.mxu0 %v9525
        %10317 = vmatmul.bf16.gmra.mxu0 %v8357
        %v10318 = vpop.f32.mrf.mxu0
        %v10319 = vadd.f32 %v10306, %v10318
        %v10320 = vpop.f32.mrf.mxu0
        %10321 = vdwg.mxu0
        %10322 = vmatpush.bf16.msra.mxu0 %v9585
        %10323 = vmatpush.bf16.msra.mxu0 %v9581
        %10324 = vmatpush.bf16.msra.mxu0 %v9577
        %10325 = vmatpush.bf16.msra.mxu0 %v9573
        %10326 = vmatpush.bf16.msra.mxu0 %v9569
        %10327 = vmatpush.bf16.msra.mxu0 %v9565
        %10328 = vmatpush.bf16.msra.mxu0 %v9561
        %10329 = vmatpush.bf16.msra.mxu0 %v9557
        %10330 = vmatmul.bf16.gmra.mxu0 %v8358
        %v10331 = vpop.f32.mrf.mxu0
        %v10332 = vadd.f32 %v10319, %v10331
        %v10333 = vpop.f32.mrf.mxu0
        %10334 = vdwg.mxu0
        %10335 = vmatpush.bf16.msra.mxu0 %v9617
        %10336 = vmatpush.bf16.msra.mxu0 %v9613
        %10337 = vmatpush.bf16.msra.mxu0 %v9609
        %10338 = vmatpush.bf16.msra.mxu0 %v9605
        %10339 = vmatpush.bf16.msra.mxu0 %v9601
        %10340 = vmatpush.bf16.msra.mxu0 %v9597
        %10341 = vmatpush.bf16.msra.mxu0 %v9593
        %10342 = vmatpush.bf16.msra.mxu0 %v9589
        %10343 = vmatmul.bf16.gmra.mxu0 %v8359
        %v10344 = vpop.f32.mrf.mxu0
        %v10345 = vadd.f32 %v10332, %v10344
        %v10346 = vpop.f32.mrf.mxu0
        %10347 = vdwg.mxu0
        %10348 = vmatpush.bf16.msra.mxu0 %v9649
        %10349 = vmatpush.bf16.msra.mxu0 %v9645
        %10350 = vmatpush.bf16.msra.mxu0 %v9641
        %10351 = vmatpush.bf16.msra.mxu0 %v9637
        %10352 = vmatpush.bf16.msra.mxu0 %v9633
        %10353 = vmatpush.bf16.msra.mxu0 %v9629
        %10354 = vmatpush.bf16.msra.mxu0 %v9625
        %10355 = vmatpush.bf16.msra.mxu0 %v9621
        %10356 = vmatmul.bf16.gmra.mxu0 %v8360
        %v10357 = vpop.f32.mrf.mxu0
        %v10358 = vadd.f32 %v10345, %v10357
        %v10359 = vpop.f32.mrf.mxu0
        %10360 = vdwg.mxu0
        %10361 = vmatpush.bf16.msra.mxu0 %v9362
        %10362 = vmatpush.bf16.msra.mxu0 %v9358
        %10363 = vmatpush.bf16.msra.mxu0 %v9354
        %10364 = vmatpush.bf16.msra.mxu0 %v9350
        %10365 = vmatpush.bf16.msra.mxu0 %v9346
        %10366 = vmatpush.bf16.msra.mxu0 %v9342
        %10367 = vmatpush.bf16.msra.mxu0 %v9338
        %10368 = vmatpush.bf16.msra.mxu0 %v9334
        %10369 = vmatmul.bf16.gmra.mxu0 %v8351
        %v10370 = vpop.f32.mrf.mxu0
        %v10371 = vadd.f32 %v8295, %v10370
        %v10372 = vpop.f32.mrf.mxu0
        %10373 = vdwg.mxu0
        %10374 = vmatpush.bf16.msra.mxu0 %v9394
        %10375 = vmatpush.bf16.msra.mxu0 %v9390
        %10376 = vmatpush.bf16.msra.mxu0 %v9386
        %10377 = vmatpush.bf16.msra.mxu0 %v9382
        %10378 = vmatpush.bf16.msra.mxu0 %v9378
        %10379 = vmatpush.bf16.msra.mxu0 %v9374
        %10380 = vmatpush.bf16.msra.mxu0 %v9370
        %10381 = vmatpush.bf16.msra.mxu0 %v9366
        %10382 = vmatmul.bf16.gmra.mxu0 %v8352
        %v10383 = vpop.f32.mrf.mxu0
        %v10384 = vadd.f32 %v10371, %v10383
        %v10385 = vpop.f32.mrf.mxu0
        %10386 = vdwg.mxu0
        %10387 = vmatpush.bf16.msra.mxu0 %v9426
        %10388 = vmatpush.bf16.msra.mxu0 %v9422
        %10389 = vmatpush.bf16.msra.mxu0 %v9418
        %10390 = vmatpush.bf16.msra.mxu0 %v9414
        %10391 = vmatpush.bf16.msra.mxu0 %v9410
        %10392 = vmatpush.bf16.msra.mxu0 %v9406
        %10393 = vmatpush.bf16.msra.mxu0 %v9402
        %10394 = vmatpush.bf16.msra.mxu0 %v9398
        %10395 = vmatmul.bf16.gmra.mxu0 %v8353
        %v10396 = vpop.f32.mrf.mxu0
        %v10397 = vadd.f32 %v10384, %v10396
        %v10398 = vpop.f32.mrf.mxu0
        %10399 = vdwg.mxu0
        %10400 = vmatpush.bf16.msra.mxu0 %v9458
        %10401 = vmatpush.bf16.msra.mxu0 %v9454
        %10402 = vmatpush.bf16.msra.mxu0 %v9450
        %10403 = vmatpush.bf16.msra.mxu0 %v9446
        %10404 = vmatpush.bf16.msra.mxu0 %v9442
        %10405 = vmatpush.bf16.msra.mxu0 %v9438
        %10406 = vmatpush.bf16.msra.mxu0 %v9434
        %10407 = vmatpush.bf16.msra.mxu0 %v9430
        %10408 = vmatmul.bf16.gmra.mxu0 %v8354
        %v10409 = vpop.f32.mrf.mxu0
        %v10410 = vadd.f32 %v10397, %v10409
        %v10411 = vpop.f32.mrf.mxu0
        %10412 = vdwg.mxu0
        %10413 = vmatpush.bf16.msra.mxu0 %v9490
        %10414 = vmatpush.bf16.msra.mxu0 %v9486
        %10415 = vmatpush.bf16.msra.mxu0 %v9482
        %10416 = vmatpush.bf16.msra.mxu0 %v9478
        %10417 = vmatpush.bf16.msra.mxu0 %v9474
        %10418 = vmatpush.bf16.msra.mxu0 %v9470
        %10419 = vmatpush.bf16.msra.mxu0 %v9466
        %10420 = vmatpush.bf16.msra.mxu0 %v9462
        %10421 = vmatmul.bf16.gmra.mxu0 %v8355
        %v10422 = vpop.f32.mrf.mxu0
        %v10423 = vadd.f32 %v10410, %v10422
        %v10424 = vpop.f32.mrf.mxu0
        %10425 = vdwg.mxu0
        %10426 = vmatpush.bf16.msra.mxu0 %v9522
        %10427 = vmatpush.bf16.msra.mxu0 %v9518
        %10428 = vmatpush.bf16.msra.mxu0 %v9514
        %10429 = vmatpush.bf16.msra.mxu0 %v9510
        %10430 = vmatpush.bf16.msra.mxu0 %v9506
        %10431 = vmatpush.bf16.msra.mxu0 %v9502
        %10432 = vmatpush.bf16.msra.mxu0 %v9498
        %10433 = vmatpush.bf16.msra.mxu0 %v9494
        %10434 = vmatmul.bf16.gmra.mxu0 %v8356
        %v10435 = vpop.f32.mrf.mxu0
        %v10436 = vadd.f32 %v10423, %v10435
        %v10437 = vpop.f32.mrf.mxu0
        %10438 = vdwg.mxu0
        %10439 = vmatpush.bf16.msra.mxu0 %v9554
        %10440 = vmatpush.bf16.msra.mxu0 %v9550
        %10441 = vmatpush.bf16.msra.mxu0 %v9546
        %10442 = vmatpush.bf16.msra.mxu0 %v9542
        %10443 = vmatpush.bf16.msra.mxu0 %v9538
        %10444 = vmatpush.bf16.msra.mxu0 %v9534
        %10445 = vmatpush.bf16.msra.mxu0 %v9530
        %10446 = vmatpush.bf16.msra.mxu0 %v9526
        %10447 = vmatmul.bf16.gmra.mxu0 %v8357
        %v10448 = vpop.f32.mrf.mxu0
        %v10449 = vadd.f32 %v10436, %v10448
        %v10450 = vpop.f32.mrf.mxu0
        %10451 = vdwg.mxu0
        %10452 = vmatpush.bf16.msra.mxu0 %v9586
        %10453 = vmatpush.bf16.msra.mxu0 %v9582
        %10454 = vmatpush.bf16.msra.mxu0 %v9578
        %10455 = vmatpush.bf16.msra.mxu0 %v9574
        %10456 = vmatpush.bf16.msra.mxu0 %v9570
        %10457 = vmatpush.bf16.msra.mxu0 %v9566
        %10458 = vmatpush.bf16.msra.mxu0 %v9562
        %10459 = vmatpush.bf16.msra.mxu0 %v9558
        %10460 = vmatmul.bf16.gmra.mxu0 %v8358
        %v10461 = vpop.f32.mrf.mxu0
        %v10462 = vadd.f32 %v10449, %v10461
        %v10463 = vpop.f32.mrf.mxu0
        %10464 = vdwg.mxu0
        %10465 = vmatpush.bf16.msra.mxu0 %v9618
        %10466 = vmatpush.bf16.msra.mxu0 %v9614
        %10467 = vmatpush.bf16.msra.mxu0 %v9610
        %10468 = vmatpush.bf16.msra.mxu0 %v9606
        %10469 = vmatpush.bf16.msra.mxu0 %v9602
        %10470 = vmatpush.bf16.msra.mxu0 %v9598
        %10471 = vmatpush.bf16.msra.mxu0 %v9594
        %10472 = vmatpush.bf16.msra.mxu0 %v9590
        %10473 = vmatmul.bf16.gmra.mxu0 %v8359
        %v10474 = vpop.f32.mrf.mxu0
        %v10475 = vadd.f32 %v10462, %v10474
        %v10476 = vpop.f32.mrf.mxu0
        %10477 = vdwg.mxu0
        %10478 = vmatpush.bf16.msra.mxu0 %v9650
        %10479 = vmatpush.bf16.msra.mxu0 %v9646
        %10480 = vmatpush.bf16.msra.mxu0 %v9642
        %10481 = vmatpush.bf16.msra.mxu0 %v9638
        %10482 = vmatpush.bf16.msra.mxu0 %v9634
        %10483 = vmatpush.bf16.msra.mxu0 %v9630
        %10484 = vmatpush.bf16.msra.mxu0 %v9626
        %10485 = vmatpush.bf16.msra.mxu0 %v9622
        %10486 = vmatmul.bf16.gmra.mxu0 %v8360
        %v10487 = vpop.f32.mrf.mxu0
        %v10488 = vadd.f32 %v10475, %v10487
        %v10489 = vpop.f32.mrf.mxu0
        %10490 = vdwg.mxu0
        %v10495 = vrot.slane %v10228, 6
        %v10496 = vrot.slane %v10358, 4
        %v10497 = vrot.slane %v10488, 2
        %vm10498 = vcmask 1041408
        %v10499 = vsel %vm10498, %v10098, %v10495
        %vm10500 = vcmask 1045508
        %v10501 = vsel %vm10500, %v10496, %v10497
        %vm10502 = vcmask 1043456
        %v10503 = vsel %vm10502, %v10499, %v10501
        %10505 = vst [vmem:[%s586] sm:$0xff] %v10503
        %v10506 = vld [vmem:[%s603] sm:$0xff]
        %v10507 = vld [vmem:[%s603 + $0x8] sm:$0xff]
        %v10508 = vld [vmem:[%s603 + $0x10] sm:$0xff]
        %v10509 = vld [vmem:[%s603 + $0x18] sm:$0xff]
        %v10510 = vld [vmem:[%s603 + $0x20] sm:$0xff]
        %v10511 = vld [vmem:[%s603 + $0x28] sm:$0xff]
        %v10512 = vld [vmem:[%s603 + $0x30] sm:$0xff]
        %v10513 = vld [vmem:[%s603 + $0x38] sm:$0xff]
        %v10514 = vld [vmem:[%s603 + $0x40] sm:$0xff]
        %v10515 = vld [vmem:[%s603 + $0x48] sm:$0xff]
        %v10516 = vld [vmem:[%s603 + $0x50] sm:$0xff]
        %v10517 = vld [vmem:[%s603 + $0x58] sm:$0xff]
        %v10518 = vld [vmem:[%s603 + $0x60] sm:$0xff]
        %v10519 = vld [vmem:[%s603 + $0x68] sm:$0xff]
        %v10520 = vld [vmem:[%s603 + $0x70] sm:$0xff]
        %v10521 = vld [vmem:[%s603 + $0x78] sm:$0xff]
        %v10522 = vld [vmem:[%s603 + $0x80] sm:$0xff]
        %v10523 = vld [vmem:[%s603 + $0x88] sm:$0xff]
        %v10524 = vld [vmem:[%s603 + $0x90] sm:$0xff]
        %v10525 = vld [vmem:[%s603 + $0x98] sm:$0xff]
        %v10526 = vld [vmem:[%s603 + $0xa0] sm:$0xff]
        %v10527 = vld [vmem:[%s603 + $0xa8] sm:$0xff]
        %v10528 = vld [vmem:[%s603 + $0xb0] sm:$0xff]
        %v10529 = vld [vmem:[%s603 + $0xb8] sm:$0xff]
        %v10530 = vld [vmem:[%s603 + $0xc0] sm:$0xff]
        %v10531 = vld [vmem:[%s603 + $0xc8] sm:$0xff]
        %v10532 = vld [vmem:[%s603 + $0xd0] sm:$0xff]
        %v10533 = vld [vmem:[%s603 + $0xd8] sm:$0xff]
        %v10534 = vld [vmem:[%s603 + $0xe0] sm:$0xff]
        %v10535 = vld [vmem:[%s603 + $0xe8] sm:$0xff]
        %v10536 = vld [vmem:[%s603 + $0xf0] sm:$0xff]
        %v10537 = vld [vmem:[%s603 + $0xf8] sm:$0xff]
        %v10538 = vld [vmem:[%s603 + $0x100] sm:$0xff]
        %v10539 = vld [vmem:[%s603 + $0x108] sm:$0xff]
        %v10540 = vld [vmem:[%s603 + $0x110] sm:$0xff]
        %v10541 = vld [vmem:[%s603 + $0x118] sm:$0xff]
        %v10542 = vld [vmem:[%s603 + $0x120] sm:$0xff]
        %v10543 = vld [vmem:[%s603 + $0x128] sm:$0xff]
        %v10544 = vld [vmem:[%s603 + $0x130] sm:$0xff]
        %v10545 = vld [vmem:[%s603 + $0x138] sm:$0xff]
        %v10546 = vld [vmem:[%s603 + $0x140] sm:$0xff]
        %v10547 = vld [vmem:[%s603 + $0x148] sm:$0xff]
        %v10548 = vld [vmem:[%s603 + $0x150] sm:$0xff]
        %v10549 = vld [vmem:[%s603 + $0x158] sm:$0xff]
        %v10550 = vld [vmem:[%s603 + $0x160] sm:$0xff]
        %v10551 = vld [vmem:[%s603 + $0x168] sm:$0xff]
        %v10552 = vld [vmem:[%s603 + $0x170] sm:$0xff]
        %v10553 = vld [vmem:[%s603 + $0x178] sm:$0xff]
        %v10554 = vld [vmem:[%s603 + $0x180] sm:$0xff]
        %v10555 = vld [vmem:[%s603 + $0x188] sm:$0xff]
        %v10556 = vld [vmem:[%s603 + $0x190] sm:$0xff]
        %v10557 = vld [vmem:[%s603 + $0x198] sm:$0xff]
        %v10558 = vld [vmem:[%s603 + $0x1a0] sm:$0xff]
        %v10559 = vld [vmem:[%s603 + $0x1a8] sm:$0xff]
        %v10560 = vld [vmem:[%s603 + $0x1b0] sm:$0xff]
        %v10561 = vld [vmem:[%s603 + $0x1b8] sm:$0xff]
        %v10562 = vld [vmem:[%s603 + $0x1c0] sm:$0xff]
        %v10563 = vld [vmem:[%s603 + $0x1c8] sm:$0xff]
        %v10564 = vld [vmem:[%s603 + $0x1d0] sm:$0xff]
        %v10565 = vld [vmem:[%s603 + $0x1d8] sm:$0xff]
        %v10566 = vld [vmem:[%s603 + $0x1e0] sm:$0xff]
        %v10567 = vld [vmem:[%s603 + $0x1e8] sm:$0xff]
        %v10568 = vld [vmem:[%s603 + $0x1f0] sm:$0xff]
        %v10569 = vld [vmem:[%s603 + $0x1f8] sm:$0xff]
        %10570 = vmatpush.msra.mxu0 %v10521
        %10571 = vmatpush.msra.mxu0 %v10520
        %10572 = vmatpush.msra.mxu0 %v10519
        %10573 = vmatpush.msra.mxu0 %v10518
        %10574 = vmatpush.msra.mxu0 %v10517
        %10575 = vmatpush.msra.mxu0 %v10516
        %10576 = vmatpush.msra.mxu0 %v10515
        %10577 = vmatpush.msra.mxu0 %v10514
        %10578 = vmatpush.msra.mxu0 %v10513
        %10579 = vmatpush.msra.mxu0 %v10512
        %10580 = vmatpush.msra.mxu0 %v10511
        %10581 = vmatpush.msra.mxu0 %v10510
        %10582 = vmatpush.msra.mxu0 %v10509
        %10583 = vmatpush.msra.mxu0 %v10508
        %10584 = vmatpush.msra.mxu0 %v10507
        %10585 = vmatpush.msra.mxu0 %v10506
        %10586 = vmatmul.f32.gmra.mxu0 %v10098
        %v10587 = vpop.f32.mrf.mxu0
        %v10588 = vadd.f32 0.0, %v10587
        %10589 = vdwg.mxu0
        %10590 = vmatpush.msra.mxu0 %v10537
        %10591 = vmatpush.msra.mxu0 %v10536
        %10592 = vmatpush.msra.mxu0 %v10535
        %10593 = vmatpush.msra.mxu0 %v10534
        %10594 = vmatpush.msra.mxu0 %v10533
        %10595 = vmatpush.msra.mxu0 %v10532
        %10596 = vmatpush.msra.mxu0 %v10531
        %10597 = vmatpush.msra.mxu0 %v10530
        %10598 = vmatpush.msra.mxu0 %v10529
        %10599 = vmatpush.msra.mxu0 %v10528
        %10600 = vmatpush.msra.mxu0 %v10527
        %10601 = vmatpush.msra.mxu0 %v10526
        %10602 = vmatpush.msra.mxu0 %v10525
        %10603 = vmatpush.msra.mxu0 %v10524
        %10604 = vmatpush.msra.mxu0 %v10523
        %10605 = vmatpush.msra.mxu0 %v10522
        %10606 = vmatmul.f32.gmra.mxu0 %v10228
        %v10607 = vpop.f32.mrf.mxu0
        %v10608 = vadd.f32 %v10588, %v10607
        %10609 = vdwg.mxu0
        %10610 = vmatpush.msra.mxu0 %v10553
        %10611 = vmatpush.msra.mxu0 %v10552
        %10612 = vmatpush.msra.mxu0 %v10551
        %10613 = vmatpush.msra.mxu0 %v10550
        %10614 = vmatpush.msra.mxu0 %v10549
        %10615 = vmatpush.msra.mxu0 %v10548
        %10616 = vmatpush.msra.mxu0 %v10547
        %10617 = vmatpush.msra.mxu0 %v10546
        %10618 = vmatpush.msra.mxu0 %v10545
        %10619 = vmatpush.msra.mxu0 %v10544
        %10620 = vmatpush.msra.mxu0 %v10543
        %10621 = vmatpush.msra.mxu0 %v10542
        %10622 = vmatpush.msra.mxu0 %v10541
        %10623 = vmatpush.msra.mxu0 %v10540
        %10624 = vmatpush.msra.mxu0 %v10539
        %10625 = vmatpush.msra.mxu0 %v10538
        %10626 = vmatmul.f32.gmra.mxu0 %v10358
        %v10627 = vpop.f32.mrf.mxu0
        %v10628 = vadd.f32 %v10608, %v10627
        %10629 = vdwg.mxu0
        %10630 = vmatpush.msra.mxu0 %v10569
        %10631 = vmatpush.msra.mxu0 %v10568
        %10632 = vmatpush.msra.mxu0 %v10567
        %10633 = vmatpush.msra.mxu0 %v10566
        %10634 = vmatpush.msra.mxu0 %v10565
        %10635 = vmatpush.msra.mxu0 %v10564
        %10636 = vmatpush.msra.mxu0 %v10563
        %10637 = vmatpush.msra.mxu0 %v10562
        %10638 = vmatpush.msra.mxu0 %v10561
        %10639 = vmatpush.msra.mxu0 %v10560
        %10640 = vmatpush.msra.mxu0 %v10559
        %10641 = vmatpush.msra.mxu0 %v10558
        %10642 = vmatpush.msra.mxu0 %v10557
        %10643 = vmatpush.msra.mxu0 %v10556
        %10644 = vmatpush.msra.mxu0 %v10555
        %10645 = vmatpush.msra.mxu0 %v10554
        %10646 = vmatmul.f32.gmra.mxu0 %v10488
        %v10647 = vpop.f32.mrf.mxu0
        %v10648 = vadd.f32 %v10628, %v10647
        %10649 = vdwg.mxu0
        %vm10650 = vcmask 9216
        %10651 = vst.msk [vmem:[%s579] sm:$0x3] %vm10650, %v10648
        %s10652 = sand.u32 %s249, 1
        %s10653 = scalar_lea.sflag [#allocation4], %s10652
        %s10654 = sand.u32 %s249, 1
        %s10655 = smul.addr %s10654, 2
        %s10656 = scalar_lea.vmem [#allocation13], %s10655
        %s10657 = sand.u32 %s275, 1
        %s10658 = scalar_lea.sflag [#allocation15], %s10657
        %s10659 = sand.u32 %s275, 1
        %s10660 = smul.addr %s10659, 8
        %s10661 = scalar_lea.vmem [#allocation14], %s10660
        %p10662 = scmp.lt.s32.totalorder %s38, 1
        %s10663 = scalar_select %p10662, %s38, 1
        %s10664 = smul.addr %s10663, 4
        %s10665 = smul.addr %s10664, 8
        %s10666 = scalar_lea.vmem %s10, %s10665
        // Predicated region
        $region77: #{tpu_custom_call.1} parent=51 // pred_check
          %p10667 = pneg %p259
        $region78: #{tpu_custom_call.1} parent=51 // pred_check_branch
          %10669 = sbr.rel (%p10667) target = $region80
        $region79: #{tpu_custom_call.1} parent=51 // pred_region
          %10671 = vsyncadd %s10653, 0
          %s10672 = smul.addr %s38, 2
          %s10673 = scalar_lea.hbm %s8, %s10672
          %s10675 = sshll.u32 %s10656, 4
          %s10676 = int_to_ptr.vmem [resolvable:$true] %s10675
          %s10677 = sshll.u32 %s10673, 4
          %s10678 = int_to_ptr.hbm [resolvable:$true] %s10677
          %10680 = dma.vmem_to_hbm [thread:$0]  %s10676, 32, %s10678, %s10653
        $region80: #{tpu_custom_call.1} parent=51 // pred_fallthru
          _
        // Predicated region
        $region81: #{tpu_custom_call.1} parent=51 // pred_check
          %p10681 = pneg %p285
        $region82: #{tpu_custom_call.1} parent=51 // pred_check_branch
          %10683 = sbr.rel (%p10681) target = $region84
        $region83: #{tpu_custom_call.1} parent=51 // pred_region
          %10685 = vsyncadd %s10658, 0
          %s10686 = smul.addr %s38, 4
          %s10687 = smul.addr %s10686, 2
          %s10688 = scalar_lea.hbm %s9, %s10687
          %s10690 = sshll.u32 %s10661, 4
          %s10691 = int_to_ptr.vmem [resolvable:$true] %s10690
          %s10692 = sshll.u32 %s10688, 4
          %s10693 = int_to_ptr.hbm [resolvable:$true] %s10692
          %10695 = dma.vmem_to_hbm [thread:$0]  %s10691, 128, %s10693, %s10658
        $region84: #{tpu_custom_call.1} parent=51 // pred_fallthru
          _
        // Predicated region
        $region85: #{tpu_custom_call.1} parent=51 // pred_check
          %p10696 = pneg %p311
        $region86: #{tpu_custom_call.1} parent=51 // pred_check_branch
          %10698 = sbr.rel (%p10696) target = $region88
        $region87: #{tpu_custom_call.1} parent=51 // pred_region
          _
        $region88: #{tpu_custom_call.1} parent=51 // pred_fallthru
          _
      $region52: #{tpu_custom_call.1} parent=5 // pred_fallthru
        _
      %p10699 = scmp.le.s32.totalorder 2, %s33
      // Predicated region
      $region89: #{tpu_custom_call.1} parent=5 // pred_check
        %p10700 = pneg %p10699
      $region90: #{tpu_custom_call.1} parent=5 // pred_check_branch
        %10702 = sbr.rel (%p10700) target = $region92
      $region91: #{tpu_custom_call.1} parent=5 // pred_region
        %s10703 = ssub.s32 %s33, 2
        // Predicated region
        $region93: #{tpu_custom_call.1} parent=91 // pred_check
          %p10704 = pneg %p265
        $region94: #{tpu_custom_call.1} parent=91 // pred_check_branch
          %10706 = sbr.rel (%p10704) target = $region96
        $region95: #{tpu_custom_call.1} parent=91 // pred_region
          %s10707 = sand.u32 %s250, 1
          %s10708 = scalar_lea.sflag [#allocation4], %s10707
          %s10709 = sand.u32 %s250, 1
          %s10710 = smul.addr %s10709, 2
          %s10711 = scalar_lea.vmem [#allocation13], %s10710
          %10713 = dma.done %s10708, 32
        $region96: #{tpu_custom_call.1} parent=91 // pred_fallthru
          _
        // Predicated region
        $region97: #{tpu_custom_call.1} parent=91 // pred_check
          %p10714 = pneg %p291
        $region98: #{tpu_custom_call.1} parent=91 // pred_check_branch
          %10716 = sbr.rel (%p10714) target = $region100
        $region99: #{tpu_custom_call.1} parent=91 // pred_region
          %s10717 = sand.u32 %s276, 1
          %s10718 = scalar_lea.sflag [#allocation15], %s10717
          %s10719 = sand.u32 %s276, 1
          %s10720 = smul.addr %s10719, 8
          %s10721 = scalar_lea.vmem [#allocation14], %s10720
          %10723 = dma.done %s10718, 128
        $region100: #{tpu_custom_call.1} parent=91 // pred_fallthru
          _
        // Predicated region
        $region101: #{tpu_custom_call.1} parent=91 // pred_check
          %p10724 = pneg %p317
        $region102: #{tpu_custom_call.1} parent=91 // pred_check_branch
          %10726 = sbr.rel (%p10724) target = $region104
        $region103: #{tpu_custom_call.1} parent=91 // pred_region
          %p10727 = scmp.lt.s32.totalorder %s39, 1
          %s10728 = scalar_select %p10727, %s39, 1
          %s10729 = smul.addr %s10728, 4
          %s10730 = smul.addr %s10729, 8
          %s10731 = scalar_lea.vmem %s10, %s10730
        $region104: #{tpu_custom_call.1} parent=91 // pred_fallthru
          _
      $region92: #{tpu_custom_call.1} parent=5 // pred_fallthru
        _
    $region6: #{tpu_custom_call.1} parent=1 // loop_footer
      %s37 = sadd.s32 1, %s33
    $region7: #{tpu_custom_call.1} parent=1 // loop_footer_branch
      %32 = sbr.rel target = $region3
    $region8: #{tpu_custom_call.1} parent=1 // loop_exit
      _
    %10732 = vsyncpa [#allocation3], 1
    %s10733 = scalar_lea.sflag [#allocation3], 1
    %10734 = vsyncpa %s10733, 1
    %10735 = vsyncpa [#allocation6], 1
    %s10736 = scalar_lea.sflag [#allocation6], 1
    %10737 = vsyncpa %s10736, 1
    %10738 = vsyncpa [#allocation9], 1
    %s10739 = scalar_lea.sflag [#allocation9], 1
    %10740 = vsyncpa %s10739, 1
    %10741 = vsyncpa [#allocation12], 1
    %s10742 = scalar_lea.sflag [#allocation12], 1
    %10743 = vsyncpa %s10742, 1
    %10744 = vsyncpa [#allocation4], 1
    %s10745 = scalar_lea.sflag [#allocation4], 1
    %10746 = vsyncpa %s10745, 1
    %10747 = vsyncpa [#allocation15], 1
    %s10748 = scalar_lea.sflag [#allocation15], 1
    %10749 = vsyncpa %s10748, 1

</llo_original>
